<compile_context>
chip_gen: v7x
topology: tpu7x:2x2x1
jax: 0.10.0
libtpu: 0.0.40
codegen_flags: <defaults>
</compile_context>

<pallas_src>
import jax
import jax.numpy as jnp
from jax.experimental import pallas as pl
from jax.experimental.pallas import tpu as pltpu


# ---------------------------------------------------------------------------
# Fused kernel
# ---------------------------------------------------------------------------
def _make_fused_kernel(cfg, B):
    L = cfg["L"]
    depth = cfg["depth"]
    S = cfg["S"]          # number of im2col blocks (effective taps, widest kernel)
    off = cfg["off"]      # left zero-padding of the im2col slab
    has_bottleneck = cfg["has_bottleneck"]
    shortcut_identity = cfg["shortcut_identity"]

    def _per_batch(a, fn):
        # Apply fn to each (L, C) batch slab of a (B*L, C) array and re-stack.
        outs = [fn(a[b * L:(b + 1) * L, :]) for b in range(B)]
        return jnp.concatenate(outs, axis=0) if B > 1 else outs[0]

    def _maxpool3(a):
        # MaxPool1d(kernel=3, stride=1, padding=1) along L, per batch.
        c = a.shape[1]
        neg = jnp.full((1, c), -jnp.inf, jnp.float32)

        def one(ab):
            up = jnp.concatenate([ab[1:, :], neg], axis=0)
            dn = jnp.concatenate([neg, ab[:L - 1, :]], axis=0)
            return jnp.maximum(jnp.maximum(up, ab), dn)

        return _per_batch(a, one)

    def _im2col(z):
        # (B*L, cz) -> (B*L, S*cz).  Column block j holds z shifted by (j - off)
        # along L with zero padding, so all three 'same' convs become a single
        # matmul with the host-packed (S*cz, 3*nf) weight matrix.
        cz = z.shape[1]
        lpad, rpad = off, S - 1 - off

        def one(zb):
            parts = []
            if lpad > 0:
                parts.append(jnp.zeros((lpad, cz), jnp.float32))
            parts.append(zb)
            if rpad > 0:
                parts.append(jnp.zeros((rpad, cz), jnp.float32))
            zp = jnp.concatenate(parts, axis=0) if len(parts) > 1 else parts[0]
            wins = [zp[j:j + L, :] for j in range(S)]
            return jnp.concatenate(wins, axis=1)            # (L, S*cz)

        return _per_batch(z, one)

    def kernel(*refs):
        refs = list(refs)
        x_ref = refs.pop(0)
        mods = []
        for d in range(depth):
            wb = refs.pop(0) if has_bottleneck[d] else None
            wc = refs.pop(0)          # (S*cz, 3*nf) fused conv weights
            wm = refs.pop(0)          # (ni, nf) 1x1 conv after maxpool
            bscale = refs.pop(0)      # (1, 4*nf) folded BN
            bshift = refs.pop(0)
            mods.append((wb, wc, wm, bscale, bshift))
        shorts = []
        for ident in shortcut_identity:
            ws = None if ident else refs.pop(0)
            shorts.append((ws, refs.pop(0), refs.pop(0)))
        fcw_ref = refs.pop(0)         # (4*nf, c_out)
        fcb_ref = refs.pop(0)         # (1, c_out)
        o_ref = refs.pop(0)           # (B, c_out)

        out = x_ref[...].astype(jnp.float32)          # (B*L, c_in) channel-last
        res = out
        si = 0
        for d in range(depth):
            wb, wc, wm, bscale, bshift = mods[d]
            inp = out
            # Bottleneck 1x1 conv (bias=False); skipped when absent.
            z = (jnp.dot(inp, wb[...], preferred_element_type=jnp.float32)
                 if wb is not None else inp)
            # All three 'same' convolutions as ONE matmul on the im2col slab.
            slab = _im2col(z)                                        # (B*L, S*cz)
            conv3 = jnp.dot(slab, wc[...],
                            preferred_element_type=jnp.float32)      # (B*L, 3*nf)
            # MaxPool1d(3,1,1) on the module input, then 1x1 conv.
            mpc = jnp.dot(_maxpool3(inp), wm[...],
                          preferred_element_type=jnp.float32)        # (B*L, nf)
            # Concat channels -> folded eval-mode BN -> ReLU.
            y = jnp.concatenate([conv3, mpc], axis=1)                # (B*L, 4*nf)
            y = y * bscale[...] + bshift[...]
            out = jnp.maximum(y, 0.0)
            # Residual shortcut every 3rd module.
            if d % 3 == 2:
                ws, sscale, sshift = shorts[si]
                si += 1
                sc = (res if ws is None                  # BN-only: no eye matmul
                      else jnp.dot(res, ws[...],
                                   preferred_element_type=jnp.float32))
                sc = sc * sscale[...] + sshift[...]
                out = jnp.maximum(out + sc, 0.0)
                res = out
        # GAP over L (per batch) -> Linear(4*nf, c_out), fused in.
        gaps = [jnp.mean(out[b * L:(b + 1) * L, :], axis=0, keepdims=True)
                for b in range(B)]
        gap = jnp.concatenate(gaps, axis=0) if B > 1 else gaps[0]    # (B, 4*nf)
        logits = jnp.dot(gap, fcw_ref[...],
                         preferred_element_type=jnp.float32) + fcb_ref[...]
        o_ref[...] = logits.astype(o_ref.dtype)

    return kernel


def inception_time_forward(x, params):
    """x: (B, C_in, L) NCW like PyTorch.  Returns (B, c_out) logits."""
    cfg = params["cfg"]
    B, c_in, L = x.shape
    assert c_in == cfg["c_in"] and L == cfg["L"]
    # Host-side layout plumbing: channel-last rows (B*L, C_in).
    x2 = jnp.transpose(x, (0, 2, 1)).reshape(B * L, c_in)
    kernel = _make_fused_kernel(cfg, B)
    return pl.pallas_call(
        kernel,
        out_shape=jax.ShapeDtypeStruct((B, cfg["c_out"]), jnp.float32),
        compiler_params=pltpu.CompilerParams(vmem_limit_bytes=32 * 1024 * 1024),
    )(x2, *params["flat"])


# ---------------------------------------------------------------------------
# Parameter init (deterministic, synthetic) + host-side weight packing
# ---------------------------------------------------------------------------
def init_params(key, c_in, c_out, seq_len, nf=32, ks=40, depth=6):
    L = seq_len
    ks_list = [ks // (2 ** i) for i in range(3)]
    ks_list = [k if k % 2 != 0 else k - 1 for k in ks_list]      # [39, 19, 9]
    pads = [k // 2 for k in ks_list]
    k0, p0 = ks_list[0], pads[0]
    t_min0 = max(0, p0 - L + 1)
    t_max0 = min(k0 - 1, p0 + L - 1)
    S = t_max0 - t_min0 + 1          # effective taps of the widest kernel
    off = p0 - t_min0                # left zero pad of the im2col slab

    keys = iter(jax.random.split(key, 1024))

    def rand(shape, std):
        return jax.random.normal(next(keys), shape, jnp.float32) * std

    def bn_fold(c, eps=1e-5):
        gamma = 1.0 + 0.1 * jax.random.normal(next(keys), (c,), jnp.float32)
        beta = 0.1 * jax.random.normal(next(keys), (c,), jnp.float32)
        mean = 0.1 * jax.random.normal(next(keys), (c,), jnp.float32)
        var = 1.0 + 0.1 * jax.random.uniform(next(keys), (c,), jnp.float32)
        scale = gamma / jnp.sqrt(var + eps)
        shift = beta - mean * scale
        return scale, shift

    def pack_convs(convs, cz):
        # convs[i]: (nf, cz, k_i) PyTorch layout -> (S*cz, 3*nf) block matrix.
        cols = []
        for w, k, p in zip(convs, ks_list, pads):
            j_lo = max(0, off - p)
            j_hi = min(S - 1, off - p + k - 1)
            t_lo = j_lo + p - off
            keff = j_hi - j_lo + 1
            blk = jnp.transpose(w, (2, 1, 0))[t_lo:t_lo + keff]      # (keff, cz, nf)
            blk = blk.reshape(keff * cz, nf)
            parts = []
            if j_lo > 0:
                parts.append(jnp.zeros((j_lo * cz, nf), jnp.float32))
            parts.append(blk)
            if j_hi < S - 1:
                parts.append(jnp.zeros(((S - 1 - j_hi) * cz, nf), jnp.float32))
            cols.append(jnp.concatenate(parts, axis=0) if len(parts) > 1 else blk)
        return jnp.concatenate(cols, axis=1)

    flat, has_bottleneck = [], []
    modules_raw = []
    for d in range(depth):
        ni = c_in if d == 0 else 4 * nf
        use_b = ni > 1
        has_bottleneck.append(use_b)
        cz = nf if use_b else ni
        wb = rand((nf, ni), 1.0 / ni ** 0.5) if use_b else None
        convs = [rand((nf, cz, k), 1.0 / (cz * k) ** 0.5) for k in ks_list]
        wm = rand((nf, ni), 1.0 / ni ** 0.5)
        scale, shift = bn_fold(4 * nf)
        modules_raw.append(dict(wb=wb, convs=convs, wm=wm, scale=scale, shift=shift))
        if use_b:
            flat.append(wb.T)                          # (ni, nf)
        flat.append(pack_convs(convs, cz))             # (S*cz, 3*nf)
        flat.append(wm.T)                              # (ni, nf)
        flat += [scale.reshape(1, -1), shift.reshape(1, -1)]

    shortcut_identity, shortcuts_raw = [], []
    for d in range(2, depth, 3):
        n_in = c_in if d == 2 else 4 * nf
        n_out = 4 * nf
        ident = n_in == n_out
        shortcut_identity.append(ident)
        w = None if ident else rand((n_out, n_in), 1.0 / n_in ** 0.5)
        scale, shift = bn_fold(n_out)
        shortcuts_raw.append(dict(w=w, scale=scale, shift=shift))
        if not ident:
            flat.append(w.T)                           # (n_in, n_out)
        flat += [scale.reshape(1, -1), shift.reshape(1, -1)]

    fc_std = 1.0 / (4 * nf) ** 0.5
    fc_w = rand((c_out, 4 * nf), fc_std)
    fc_b = jax.random.uniform(next(keys), (1, c_out), jnp.float32, -fc_std, fc_std)
    flat += [fc_w.T, fc_b]

    cfg = dict(L=L, c_in=c_in, c_out=c_out, nf=nf, depth=depth, S=S, off=off,
               has_bottleneck=tuple(has_bottleneck),
               shortcut_identity=tuple(shortcut_identity))
    raw = dict(modules=modules_raw, shortcuts=shortcuts_raw, fc_w=fc_w, fc_b=fc_b)
    return dict(cfg=cfg, flat=flat, raw=raw)


# ---------------------------------------------------------------------------
# Plain-JAX reference (independent of the packed weights) for validation
# ---------------------------------------------------------------------------
def _reference_forward(x, params):
    cfg, raw = params["cfg"], params["raw"]
    L = cfg["L"]
    hp = jax.lax.Precision.HIGHEST

    def conv1x1(w, a):                      # w (co, ci), a (B, ci, L)
        return jnp.einsum('oc,bcl->bol', w, a, precision=hp)

    def conv_same(w, a):                    # w (co, ci, k)
        k = w.shape[2]
        p = k // 2
        ap = jnp.pad(a, ((0, 0), (0, 0), (p, p)))
        out = 0.0
        for t in range(k):
            out = out + jnp.einsum('oc,bcl->bol', w[:, :, t], ap[:, :, t:t + L],
                                   precision=hp)
        return out

    out, res, si = x, x, 0
    for d in range(cfg["depth"]):
        m = raw["modules"][d]
        inp = out
        z = conv1x1(m["wb"], inp) if m["wb"] is not None else inp
        branches = [conv_same(w, z) for w in m["convs"]]
        ip = jnp.pad(inp, ((0, 0), (0, 0), (1, 1)), constant_values=-jnp.inf)
        mp = jnp.max(jnp.stack([ip[:, :, i:i + L] for i in range(3)]), axis=0)
        branches.append(conv1x1(m["wm"], mp))
        y = jnp.concatenate(branches, axis=1)
        y = y * m["scale"][None, :, None] + m["shift"][None, :, None]
        out = jnp.maximum(y, 0.0)
        if d % 3 == 2:
            s = raw["shortcuts"][si]
            si += 1
            sc = res if s["w"] is None else conv1x1(s["w"], res)
            sc = sc * s["scale"][None, :, None] + s["shift"][None, :, None]
            out = jnp.maximum(out + sc, 0.0)
            res = out
    gap = jnp.mean(out, axis=2)
    return jnp.dot(gap, raw["fc_w"].T, precision=hp) + raw["fc_b"]


# ---------------------------------------------------------------------------
if __name__ == "__main__":
    B, C_IN, SEQ, C_OUT, NF = 2, 4, 16, 5, 32

    key = jax.random.PRNGKey(0)
    kx, kp = jax.random.split(key)
    x = jax.random.normal(kx, (B, C_IN, SEQ), jnp.float32)
    params = init_params(kp, C_IN, C_OUT, SEQ, nf=NF, ks=40, depth=6)

    out = inception_time_forward(x, params)
    out = jax.block_until_ready(out)

    assert out.shape == (B, C_OUT), out.shape
    assert bool(jnp.all(jnp.isfinite(out)))
    ref = _reference_forward(x, params)
    assert bool(jnp.allclose(out, ref, rtol=5e-2, atol=5e-2)), \
        float(jnp.max(jnp.abs(out - ref)))
    print("KERNEL_OK")
</pallas_src>

<mosaic_0001>
module attributes {stable_mosaic.version = 11 : i64} {
  func.func @kernel(%arg0: memref<32x4xf32, #tpu.memory_space<vmem>>, %arg1: memref<4x32xf32, #tpu.memory_space<vmem>>, %arg2: memref<992x96xf32, #tpu.memory_space<vmem>>, %arg3: memref<4x32xf32, #tpu.memory_space<vmem>>, %arg4: memref<1x128xf32, #tpu.memory_space<vmem>>, %arg5: memref<1x128xf32, #tpu.memory_space<vmem>>, %arg6: memref<128x32xf32, #tpu.memory_space<vmem>>, %arg7: memref<992x96xf32, #tpu.memory_space<vmem>>, %arg8: memref<128x32xf32, #tpu.memory_space<vmem>>, %arg9: memref<1x128xf32, #tpu.memory_space<vmem>>, %arg10: memref<1x128xf32, #tpu.memory_space<vmem>>, %arg11: memref<128x32xf32, #tpu.memory_space<vmem>>, %arg12: memref<992x96xf32, #tpu.memory_space<vmem>>, %arg13: memref<128x32xf32, #tpu.memory_space<vmem>>, %arg14: memref<1x128xf32, #tpu.memory_space<vmem>>, %arg15: memref<1x128xf32, #tpu.memory_space<vmem>>, %arg16: memref<128x32xf32, #tpu.memory_space<vmem>>, %arg17: memref<992x96xf32, #tpu.memory_space<vmem>>, %arg18: memref<128x32xf32, #tpu.memory_space<vmem>>, %arg19: memref<1x128xf32, #tpu.memory_space<vmem>>, %arg20: memref<1x128xf32, #tpu.memory_space<vmem>>, %arg21: memref<128x32xf32, #tpu.memory_space<vmem>>, %arg22: memref<992x96xf32, #tpu.memory_space<vmem>>, %arg23: memref<128x32xf32, #tpu.memory_space<vmem>>, %arg24: memref<1x128xf32, #tpu.memory_space<vmem>>, %arg25: memref<1x128xf32, #tpu.memory_space<vmem>>, %arg26: memref<128x32xf32, #tpu.memory_space<vmem>>, %arg27: memref<992x96xf32, #tpu.memory_space<vmem>>, %arg28: memref<128x32xf32, #tpu.memory_space<vmem>>, %arg29: memref<1x128xf32, #tpu.memory_space<vmem>>, %arg30: memref<1x128xf32, #tpu.memory_space<vmem>>, %arg31: memref<4x128xf32, #tpu.memory_space<vmem>>, %arg32: memref<1x128xf32, #tpu.memory_space<vmem>>, %arg33: memref<1x128xf32, #tpu.memory_space<vmem>>, %arg34: memref<1x128xf32, #tpu.memory_space<vmem>>, %arg35: memref<1x128xf32, #tpu.memory_space<vmem>>, %arg36: memref<128x5xf32, #tpu.memory_space<vmem>>, %arg37: memref<1x5xf32, #tpu.memory_space<vmem>>, %arg38: memref<2x5xf32, #tpu.memory_space<vmem>>) attributes {dimension_semantics = [], scalar_prefetch = 0 : i64, scratch_operands = 0 : i64, tpu.core_type = #tpu.core_type<tc>} {
    %c0 = arith.constant 0 : index
    %c0_0 = arith.constant 0 : index
    %0 = vector.load %arg0[%c0, %c0_0] : memref<32x4xf32, #tpu.memory_space<vmem>>, vector<32x4xf32>
    %c0_1 = arith.constant 0 : index
    %c0_2 = arith.constant 0 : index
    %1 = vector.load %arg1[%c0_1, %c0_2] : memref<4x32xf32, #tpu.memory_space<vmem>>, vector<4x32xf32>
    %cst = arith.constant dense<0.000000e+00> : vector<32x32xf32>
    %2 = tpu.matmul %0, %1, %cst {dimension_numbers = #tpu.dot_dimension_numbers<[1], [0], [0], [1], [0, 0, 1, 1], [], []>} : vector<32x4xf32>, vector<4x32xf32>, vector<32x32xf32> -> vector<32x32xf32>
    %3 = vector.extract_strided_slice %2 {offsets = [0, 0], sizes = [16, 32], strides = [1, 1]} : vector<32x32xf32> to vector<16x32xf32>
    %cst_3 = arith.constant 0.000000e+00 : f32
    %4 = vector.broadcast %cst_3 : f32 to vector<15x32xf32>
    %cst_4 = arith.constant 0.000000e+00 : f32
    %5 = vector.broadcast %cst_4 : f32 to vector<15x32xf32>
    %6 = tpu.concatenate %4, %3, %5 in 0 : vector<15x32xf32>, vector<16x32xf32>, vector<15x32xf32> -> vector<46x32xf32>
    %7 = vector.extract_strided_slice %6 {offsets = [0, 0], sizes = [16, 32], strides = [1, 1]} : vector<46x32xf32> to vector<16x32xf32>
    %8 = vector.extract_strided_slice %6 {offsets = [1, 0], sizes = [16, 32], strides = [1, 1]} : vector<46x32xf32> to vector<16x32xf32>
    %9 = vector.extract_strided_slice %6 {offsets = [2, 0], sizes = [16, 32], strides = [1, 1]} : vector<46x32xf32> to vector<16x32xf32>
    %10 = vector.extract_strided_slice %6 {offsets = [3, 0], sizes = [16, 32], strides = [1, 1]} : vector<46x32xf32> to vector<16x32xf32>
    %11 = vector.extract_strided_slice %6 {offsets = [4, 0], sizes = [16, 32], strides = [1, 1]} : vector<46x32xf32> to vector<16x32xf32>
    %12 = vector.extract_strided_slice %6 {offsets = [5, 0], sizes = [16, 32], strides = [1, 1]} : vector<46x32xf32> to vector<16x32xf32>
    %13 = vector.extract_strided_slice %6 {offsets = [6, 0], sizes = [16, 32], strides = [1, 1]} : vector<46x32xf32> to vector<16x32xf32>
    %14 = vector.extract_strided_slice %6 {offsets = [7, 0], sizes = [16, 32], strides = [1, 1]} : vector<46x32xf32> to vector<16x32xf32>
    %15 = vector.extract_strided_slice %6 {offsets = [8, 0], sizes = [16, 32], strides = [1, 1]} : vector<46x32xf32> to vector<16x32xf32>
    %16 = vector.extract_strided_slice %6 {offsets = [9, 0], sizes = [16, 32], strides = [1, 1]} : vector<46x32xf32> to vector<16x32xf32>
    %17 = vector.extract_strided_slice %6 {offsets = [10, 0], sizes = [16, 32], strides = [1, 1]} : vector<46x32xf32> to vector<16x32xf32>
    %18 = vector.extract_strided_slice %6 {offsets = [11, 0], sizes = [16, 32], strides = [1, 1]} : vector<46x32xf32> to vector<16x32xf32>
    %19 = vector.extract_strided_slice %6 {offsets = [12, 0], sizes = [16, 32], strides = [1, 1]} : vector<46x32xf32> to vector<16x32xf32>
    %20 = vector.extract_strided_slice %6 {offsets = [13, 0], sizes = [16, 32], strides = [1, 1]} : vector<46x32xf32> to vector<16x32xf32>
    %21 = vector.extract_strided_slice %6 {offsets = [14, 0], sizes = [16, 32], strides = [1, 1]} : vector<46x32xf32> to vector<16x32xf32>
    %22 = vector.extract_strided_slice %6 {offsets = [15, 0], sizes = [16, 32], strides = [1, 1]} : vector<46x32xf32> to vector<16x32xf32>
    %23 = vector.extract_strided_slice %6 {offsets = [16, 0], sizes = [16, 32], strides = [1, 1]} : vector<46x32xf32> to vector<16x32xf32>
    %24 = vector.extract_strided_slice %6 {offsets = [17, 0], sizes = [16, 32], strides = [1, 1]} : vector<46x32xf32> to vector<16x32xf32>
    %25 = vector.extract_strided_slice %6 {offsets = [18, 0], sizes = [16, 32], strides = [1, 1]} : vector<46x32xf32> to vector<16x32xf32>
    %26 = vector.extract_strided_slice %6 {offsets = [19, 0], sizes = [16, 32], strides = [1, 1]} : vector<46x32xf32> to vector<16x32xf32>
    %27 = vector.extract_strided_slice %6 {offsets = [20, 0], sizes = [16, 32], strides = [1, 1]} : vector<46x32xf32> to vector<16x32xf32>
    %28 = vector.extract_strided_slice %6 {offsets = [21, 0], sizes = [16, 32], strides = [1, 1]} : vector<46x32xf32> to vector<16x32xf32>
    %29 = vector.extract_strided_slice %6 {offsets = [22, 0], sizes = [16, 32], strides = [1, 1]} : vector<46x32xf32> to vector<16x32xf32>
    %30 = vector.extract_strided_slice %6 {offsets = [23, 0], sizes = [16, 32], strides = [1, 1]} : vector<46x32xf32> to vector<16x32xf32>
    %31 = vector.extract_strided_slice %6 {offsets = [24, 0], sizes = [16, 32], strides = [1, 1]} : vector<46x32xf32> to vector<16x32xf32>
    %32 = vector.extract_strided_slice %6 {offsets = [25, 0], sizes = [16, 32], strides = [1, 1]} : vector<46x32xf32> to vector<16x32xf32>
    %33 = vector.extract_strided_slice %6 {offsets = [26, 0], sizes = [16, 32], strides = [1, 1]} : vector<46x32xf32> to vector<16x32xf32>
    %34 = vector.extract_strided_slice %6 {offsets = [27, 0], sizes = [16, 32], strides = [1, 1]} : vector<46x32xf32> to vector<16x32xf32>
    %35 = vector.extract_strided_slice %6 {offsets = [28, 0], sizes = [16, 32], strides = [1, 1]} : vector<46x32xf32> to vector<16x32xf32>
    %36 = vector.extract_strided_slice %6 {offsets = [29, 0], sizes = [16, 32], strides = [1, 1]} : vector<46x32xf32> to vector<16x32xf32>
    %37 = vector.extract_strided_slice %6 {offsets = [30, 0], sizes = [16, 32], strides = [1, 1]} : vector<46x32xf32> to vector<16x32xf32>
    %38 = tpu.concatenate %7, %8, %9, %10, %11, %12, %13, %14, %15, %16, %17, %18, %19, %20, %21, %22 in 1 : vector<16x32xf32>, vector<16x32xf32>, vector<16x32xf32>, vector<16x32xf32>, vector<16x32xf32>, vector<16x32xf32>, vector<16x32xf32>, vector<16x32xf32>, vector<16x32xf32>, vector<16x32xf32>, vector<16x32xf32>, vector<16x32xf32>, vector<16x32xf32>, vector<16x32xf32>, vector<16x32xf32>, vector<16x32xf32> -> vector<16x512xf32>
    %39 = tpu.concatenate %23, %24, %25, %26, %27, %28, %29, %30, %31, %32, %33, %34, %35, %36, %37 in 1 : vector<16x32xf32>, vector<16x32xf32>, vector<16x32xf32>, vector<16x32xf32>, vector<16x32xf32>, vector<16x32xf32>, vector<16x32xf32>, vector<16x32xf32>, vector<16x32xf32>, vector<16x32xf32>, vector<16x32xf32>, vector<16x32xf32>, vector<16x32xf32>, vector<16x32xf32>, vector<16x32xf32> -> vector<16x480xf32>
    %40 = tpu.concatenate %38, %39 in 1 : vector<16x512xf32>, vector<16x480xf32> -> vector<16x992xf32>
    %41 = vector.extract_strided_slice %2 {offsets = [16, 0], sizes = [16, 32], strides = [1, 1]} : vector<32x32xf32> to vector<16x32xf32>
    %cst_5 = arith.constant 0.000000e+00 : f32
    %42 = vector.broadcast %cst_5 : f32 to vector<15x32xf32>
    %cst_6 = arith.constant 0.000000e+00 : f32
    %43 = vector.broadcast %cst_6 : f32 to vector<15x32xf32>
    %44 = tpu.concatenate %42, %41, %43 in 0 : vector<15x32xf32>, vector<16x32xf32>, vector<15x32xf32> -> vector<46x32xf32>
    %45 = vector.extract_strided_slice %44 {offsets = [0, 0], sizes = [16, 32], strides = [1, 1]} : vector<46x32xf32> to vector<16x32xf32>
    %46 = vector.extract_strided_slice %44 {offsets = [1, 0], sizes = [16, 32], strides = [1, 1]} : vector<46x32xf32> to vector<16x32xf32>
    %47 = vector.extract_strided_slice %44 {offsets = [2, 0], sizes = [16, 32], strides = [1, 1]} : vector<46x32xf32> to vector<16x32xf32>
    %48 = vector.extract_strided_slice %44 {offsets = [3, 0], sizes = [16, 32], strides = [1, 1]} : vector<46x32xf32> to vector<16x32xf32>
    %49 = vector.extract_strided_slice %44 {offsets = [4, 0], sizes = [16, 32], strides = [1, 1]} : vector<46x32xf32> to vector<16x32xf32>
    %50 = vector.extract_strided_slice %44 {offsets = [5, 0], sizes = [16, 32], strides = [1, 1]} : vector<46x32xf32> to vector<16x32xf32>
    %51 = vector.extract_strided_slice %44 {offsets = [6, 0], sizes = [16, 32], strides = [1, 1]} : vector<46x32xf32> to vector<16x32xf32>
    %52 = vector.extract_strided_slice %44 {offsets = [7, 0], sizes = [16, 32], strides = [1, 1]} : vector<46x32xf32> to vector<16x32xf32>
    %53 = vector.extract_strided_slice %44 {offsets = [8, 0], sizes = [16, 32], strides = [1, 1]} : vector<46x32xf32> to vector<16x32xf32>
    %54 = vector.extract_strided_slice %44 {offsets = [9, 0], sizes = [16, 32], strides = [1, 1]} : vector<46x32xf32> to vector<16x32xf32>
    %55 = vector.extract_strided_slice %44 {offsets = [10, 0], sizes = [16, 32], strides = [1, 1]} : vector<46x32xf32> to vector<16x32xf32>
    %56 = vector.extract_strided_slice %44 {offsets = [11, 0], sizes = [16, 32], strides = [1, 1]} : vector<46x32xf32> to vector<16x32xf32>
    %57 = vector.extract_strided_slice %44 {offsets = [12, 0], sizes = [16, 32], strides = [1, 1]} : vector<46x32xf32> to vector<16x32xf32>
    %58 = vector.extract_strided_slice %44 {offsets = [13, 0], sizes = [16, 32], strides = [1, 1]} : vector<46x32xf32> to vector<16x32xf32>
    %59 = vector.extract_strided_slice %44 {offsets = [14, 0], sizes = [16, 32], strides = [1, 1]} : vector<46x32xf32> to vector<16x32xf32>
    %60 = vector.extract_strided_slice %44 {offsets = [15, 0], sizes = [16, 32], strides = [1, 1]} : vector<46x32xf32> to vector<16x32xf32>
    %61 = vector.extract_strided_slice %44 {offsets = [16, 0], sizes = [16, 32], strides = [1, 1]} : vector<46x32xf32> to vector<16x32xf32>
    %62 = vector.extract_strided_slice %44 {offsets = [17, 0], sizes = [16, 32], strides = [1, 1]} : vector<46x32xf32> to vector<16x32xf32>
    %63 = vector.extract_strided_slice %44 {offsets = [18, 0], sizes = [16, 32], strides = [1, 1]} : vector<46x32xf32> to vector<16x32xf32>
    %64 = vector.extract_strided_slice %44 {offsets = [19, 0], sizes = [16, 32], strides = [1, 1]} : vector<46x32xf32> to vector<16x32xf32>
    %65 = vector.extract_strided_slice %44 {offsets = [20, 0], sizes = [16, 32], strides = [1, 1]} : vector<46x32xf32> to vector<16x32xf32>
    %66 = vector.extract_strided_slice %44 {offsets = [21, 0], sizes = [16, 32], strides = [1, 1]} : vector<46x32xf32> to vector<16x32xf32>
    %67 = vector.extract_strided_slice %44 {offsets = [22, 0], sizes = [16, 32], strides = [1, 1]} : vector<46x32xf32> to vector<16x32xf32>
    %68 = vector.extract_strided_slice %44 {offsets = [23, 0], sizes = [16, 32], strides = [1, 1]} : vector<46x32xf32> to vector<16x32xf32>
    %69 = vector.extract_strided_slice %44 {offsets = [24, 0], sizes = [16, 32], strides = [1, 1]} : vector<46x32xf32> to vector<16x32xf32>
    %70 = vector.extract_strided_slice %44 {offsets = [25, 0], sizes = [16, 32], strides = [1, 1]} : vector<46x32xf32> to vector<16x32xf32>
    %71 = vector.extract_strided_slice %44 {offsets = [26, 0], sizes = [16, 32], strides = [1, 1]} : vector<46x32xf32> to vector<16x32xf32>
    %72 = vector.extract_strided_slice %44 {offsets = [27, 0], sizes = [16, 32], strides = [1, 1]} : vector<46x32xf32> to vector<16x32xf32>
    %73 = vector.extract_strided_slice %44 {offsets = [28, 0], sizes = [16, 32], strides = [1, 1]} : vector<46x32xf32> to vector<16x32xf32>
    %74 = vector.extract_strided_slice %44 {offsets = [29, 0], sizes = [16, 32], strides = [1, 1]} : vector<46x32xf32> to vector<16x32xf32>
    %75 = vector.extract_strided_slice %44 {offsets = [30, 0], sizes = [16, 32], strides = [1, 1]} : vector<46x32xf32> to vector<16x32xf32>
    %76 = tpu.concatenate %45, %46, %47, %48, %49, %50, %51, %52, %53, %54, %55, %56, %57, %58, %59, %60 in 1 : vector<16x32xf32>, vector<16x32xf32>, vector<16x32xf32>, vector<16x32xf32>, vector<16x32xf32>, vector<16x32xf32>, vector<16x32xf32>, vector<16x32xf32>, vector<16x32xf32>, vector<16x32xf32>, vector<16x32xf32>, vector<16x32xf32>, vector<16x32xf32>, vector<16x32xf32>, vector<16x32xf32>, vector<16x32xf32> -> vector<16x512xf32>
    %77 = tpu.concatenate %61, %62, %63, %64, %65, %66, %67, %68, %69, %70, %71, %72, %73, %74, %75 in 1 : vector<16x32xf32>, vector<16x32xf32>, vector<16x32xf32>, vector<16x32xf32>, vector<16x32xf32>, vector<16x32xf32>, vector<16x32xf32>, vector<16x32xf32>, vector<16x32xf32>, vector<16x32xf32>, vector<16x32xf32>, vector<16x32xf32>, vector<16x32xf32>, vector<16x32xf32>, vector<16x32xf32> -> vector<16x480xf32>
    %78 = tpu.concatenate %76, %77 in 1 : vector<16x512xf32>, vector<16x480xf32> -> vector<16x992xf32>
    %79 = tpu.concatenate %40, %78 in 0 : vector<16x992xf32>, vector<16x992xf32> -> vector<32x992xf32>
    %c0_7 = arith.constant 0 : index
    %c0_8 = arith.constant 0 : index
    %80 = vector.load %arg2[%c0_7, %c0_8] : memref<992x96xf32, #tpu.memory_space<vmem>>, vector<992x96xf32>
    %cst_9 = arith.constant dense<0.000000e+00> : vector<32x96xf32>
    %81 = tpu.matmul %79, %80, %cst_9 {dimension_numbers = #tpu.dot_dimension_numbers<[1], [0], [0], [1], [0, 0, 1, 1], [], []>} : vector<32x992xf32>, vector<992x96xf32>, vector<32x96xf32> -> vector<32x96xf32>
    %cst_10 = arith.constant 0xFF800000 : f32
    %82 = vector.broadcast %cst_10 : f32 to vector<1x4xf32>
    %83 = vector.extract_strided_slice %0 {offsets = [0, 0], sizes = [16, 4], strides = [1, 1]} : vector<32x4xf32> to vector<16x4xf32>
    %84 = vector.extract_strided_slice %83 {offsets = [1, 0], sizes = [15, 4], strides = [1, 1]} : vector<16x4xf32> to vector<15x4xf32>
    %85 = tpu.concatenate %84, %82 in 0 : vector<15x4xf32>, vector<1x4xf32> -> vector<16x4xf32>
    %86 = vector.extract_strided_slice %83 {offsets = [0, 0], sizes = [15, 4], strides = [1, 1]} : vector<16x4xf32> to vector<15x4xf32>
    %87 = tpu.concatenate %82, %86 in 0 : vector<1x4xf32>, vector<15x4xf32> -> vector<16x4xf32>
    %88 = arith.maximumf %85, %83 : vector<16x4xf32>
    %89 = arith.maximumf %88, %87 : vector<16x4xf32>
    %90 = vector.extract_strided_slice %0 {offsets = [16, 0], sizes = [16, 4], strides = [1, 1]} : vector<32x4xf32> to vector<16x4xf32>
    %91 = vector.extract_strided_slice %90 {offsets = [1, 0], sizes = [15, 4], strides = [1, 1]} : vector<16x4xf32> to vector<15x4xf32>
    %92 = tpu.concatenate %91, %82 in 0 : vector<15x4xf32>, vector<1x4xf32> -> vector<16x4xf32>
    %93 = vector.extract_strided_slice %90 {offsets = [0, 0], sizes = [15, 4], strides = [1, 1]} : vector<16x4xf32> to vector<15x4xf32>
    %94 = tpu.concatenate %82, %93 in 0 : vector<1x4xf32>, vector<15x4xf32> -> vector<16x4xf32>
    %95 = arith.maximumf %92, %90 : vector<16x4xf32>
    %96 = arith.maximumf %95, %94 : vector<16x4xf32>
    %97 = tpu.concatenate %89, %96 in 0 : vector<16x4xf32>, vector<16x4xf32> -> vector<32x4xf32>
    %c0_11 = arith.constant 0 : index
    %c0_12 = arith.constant 0 : index
    %98 = vector.load %arg3[%c0_11, %c0_12] : memref<4x32xf32, #tpu.memory_space<vmem>>, vector<4x32xf32>
    %cst_13 = arith.constant dense<0.000000e+00> : vector<32x32xf32>
    %99 = tpu.matmul %97, %98, %cst_13 {dimension_numbers = #tpu.dot_dimension_numbers<[1], [0], [0], [1], [0, 0, 1, 1], [], []>} : vector<32x4xf32>, vector<4x32xf32>, vector<32x32xf32> -> vector<32x32xf32>
    %100 = tpu.concatenate %81, %99 in 1 : vector<32x96xf32>, vector<32x32xf32> -> vector<32x128xf32>
    %c0_14 = arith.constant 0 : index
    %c0_15 = arith.constant 0 : index
    %101 = vector.load %arg4[%c0_14, %c0_15] : memref<1x128xf32, #tpu.memory_space<vmem>>, vector<1x128xf32>
    %102 = vector.broadcast %101 : vector<1x128xf32> to vector<32x128xf32>
    %103 = arith.mulf %100, %102 : vector<32x128xf32>
    %c0_16 = arith.constant 0 : index
    %c0_17 = arith.constant 0 : index
    %104 = vector.load %arg5[%c0_16, %c0_17] : memref<1x128xf32, #tpu.memory_space<vmem>>, vector<1x128xf32>
    %105 = vector.broadcast %104 : vector<1x128xf32> to vector<32x128xf32>
    %106 = arith.addf %103, %105 : vector<32x128xf32>
    %cst_18 = arith.constant 0.000000e+00 : f32
    %107 = vector.broadcast %cst_18 : f32 to vector<32x128xf32>
    %108 = arith.maximumf %106, %107 : vector<32x128xf32>
    %c0_19 = arith.constant 0 : index
    %c0_20 = arith.constant 0 : index
    %109 = vector.load %arg6[%c0_19, %c0_20] : memref<128x32xf32, #tpu.memory_space<vmem>>, vector<128x32xf32>
    %cst_21 = arith.constant dense<0.000000e+00> : vector<32x32xf32>
    %110 = tpu.matmul %108, %109, %cst_21 {dimension_numbers = #tpu.dot_dimension_numbers<[1], [0], [0], [1], [0, 0, 1, 1], [], []>} : vector<32x128xf32>, vector<128x32xf32>, vector<32x32xf32> -> vector<32x32xf32>
    %111 = vector.extract_strided_slice %110 {offsets = [0, 0], sizes = [16, 32], strides = [1, 1]} : vector<32x32xf32> to vector<16x32xf32>
    %cst_22 = arith.constant 0.000000e+00 : f32
    %112 = vector.broadcast %cst_22 : f32 to vector<15x32xf32>
    %cst_23 = arith.constant 0.000000e+00 : f32
    %113 = vector.broadcast %cst_23 : f32 to vector<15x32xf32>
    %114 = tpu.concatenate %112, %111, %113 in 0 : vector<15x32xf32>, vector<16x32xf32>, vector<15x32xf32> -> vector<46x32xf32>
    %115 = vector.extract_strided_slice %114 {offsets = [0, 0], sizes = [16, 32], strides = [1, 1]} : vector<46x32xf32> to vector<16x32xf32>
    %116 = vector.extract_strided_slice %114 {offsets = [1, 0], sizes = [16, 32], strides = [1, 1]} : vector<46x32xf32> to vector<16x32xf32>
    %117 = vector.extract_strided_slice %114 {offsets = [2, 0], sizes = [16, 32], strides = [1, 1]} : vector<46x32xf32> to vector<16x32xf32>
    %118 = vector.extract_strided_slice %114 {offsets = [3, 0], sizes = [16, 32], strides = [1, 1]} : vector<46x32xf32> to vector<16x32xf32>
    %119 = vector.extract_strided_slice %114 {offsets = [4, 0], sizes = [16, 32], strides = [1, 1]} : vector<46x32xf32> to vector<16x32xf32>
    %120 = vector.extract_strided_slice %114 {offsets = [5, 0], sizes = [16, 32], strides = [1, 1]} : vector<46x32xf32> to vector<16x32xf32>
    %121 = vector.extract_strided_slice %114 {offsets = [6, 0], sizes = [16, 32], strides = [1, 1]} : vector<46x32xf32> to vector<16x32xf32>
    %122 = vector.extract_strided_slice %114 {offsets = [7, 0], sizes = [16, 32], strides = [1, 1]} : vector<46x32xf32> to vector<16x32xf32>
    %123 = vector.extract_strided_slice %114 {offsets = [8, 0], sizes = [16, 32], strides = [1, 1]} : vector<46x32xf32> to vector<16x32xf32>
    %124 = vector.extract_strided_slice %114 {offsets = [9, 0], sizes = [16, 32], strides = [1, 1]} : vector<46x32xf32> to vector<16x32xf32>
    %125 = vector.extract_strided_slice %114 {offsets = [10, 0], sizes = [16, 32], strides = [1, 1]} : vector<46x32xf32> to vector<16x32xf32>
    %126 = vector.extract_strided_slice %114 {offsets = [11, 0], sizes = [16, 32], strides = [1, 1]} : vector<46x32xf32> to vector<16x32xf32>
    %127 = vector.extract_strided_slice %114 {offsets = [12, 0], sizes = [16, 32], strides = [1, 1]} : vector<46x32xf32> to vector<16x32xf32>
    %128 = vector.extract_strided_slice %114 {offsets = [13, 0], sizes = [16, 32], strides = [1, 1]} : vector<46x32xf32> to vector<16x32xf32>
    %129 = vector.extract_strided_slice %114 {offsets = [14, 0], sizes = [16, 32], strides = [1, 1]} : vector<46x32xf32> to vector<16x32xf32>
    %130 = vector.extract_strided_slice %114 {offsets = [15, 0], sizes = [16, 32], strides = [1, 1]} : vector<46x32xf32> to vector<16x32xf32>
    %131 = vector.extract_strided_slice %114 {offsets = [16, 0], sizes = [16, 32], strides = [1, 1]} : vector<46x32xf32> to vector<16x32xf32>
    %132 = vector.extract_strided_slice %114 {offsets = [17, 0], sizes = [16, 32], strides = [1, 1]} : vector<46x32xf32> to vector<16x32xf32>
    %133 = vector.extract_strided_slice %114 {offsets = [18, 0], sizes = [16, 32], strides = [1, 1]} : vector<46x32xf32> to vector<16x32xf32>
    %134 = vector.extract_strided_slice %114 {offsets = [19, 0], sizes = [16, 32], strides = [1, 1]} : vector<46x32xf32> to vector<16x32xf32>
    %135 = vector.extract_strided_slice %114 {offsets = [20, 0], sizes = [16, 32], strides = [1, 1]} : vector<46x32xf32> to vector<16x32xf32>
    %136 = vector.extract_strided_slice %114 {offsets = [21, 0], sizes = [16, 32], strides = [1, 1]} : vector<46x32xf32> to vector<16x32xf32>
    %137 = vector.extract_strided_slice %114 {offsets = [22, 0], sizes = [16, 32], strides = [1, 1]} : vector<46x32xf32> to vector<16x32xf32>
    %138 = vector.extract_strided_slice %114 {offsets = [23, 0], sizes = [16, 32], strides = [1, 1]} : vector<46x32xf32> to vector<16x32xf32>
    %139 = vector.extract_strided_slice %114 {offsets = [24, 0], sizes = [16, 32], strides = [1, 1]} : vector<46x32xf32> to vector<16x32xf32>
    %140 = vector.extract_strided_slice %114 {offsets = [25, 0], sizes = [16, 32], strides = [1, 1]} : vector<46x32xf32> to vector<16x32xf32>
    %141 = vector.extract_strided_slice %114 {offsets = [26, 0], sizes = [16, 32], strides = [1, 1]} : vector<46x32xf32> to vector<16x32xf32>
    %142 = vector.extract_strided_slice %114 {offsets = [27, 0], sizes = [16, 32], strides = [1, 1]} : vector<46x32xf32> to vector<16x32xf32>
    %143 = vector.extract_strided_slice %114 {offsets = [28, 0], sizes = [16, 32], strides = [1, 1]} : vector<46x32xf32> to vector<16x32xf32>
    %144 = vector.extract_strided_slice %114 {offsets = [29, 0], sizes = [16, 32], strides = [1, 1]} : vector<46x32xf32> to vector<16x32xf32>
    %145 = vector.extract_strided_slice %114 {offsets = [30, 0], sizes = [16, 32], strides = [1, 1]} : vector<46x32xf32> to vector<16x32xf32>
    %146 = tpu.concatenate %115, %116, %117, %118, %119, %120, %121, %122, %123, %124, %125, %126, %127, %128, %129, %130 in 1 : vector<16x32xf32>, vector<16x32xf32>, vector<16x32xf32>, vector<16x32xf32>, vector<16x32xf32>, vector<16x32xf32>, vector<16x32xf32>, vector<16x32xf32>, vector<16x32xf32>, vector<16x32xf32>, vector<16x32xf32>, vector<16x32xf32>, vector<16x32xf32>, vector<16x32xf32>, vector<16x32xf32>, vector<16x32xf32> -> vector<16x512xf32>
    %147 = tpu.concatenate %131, %132, %133, %134, %135, %136, %137, %138, %139, %140, %141, %142, %143, %144, %145 in 1 : vector<16x32xf32>, vector<16x32xf32>, vector<16x32xf32>, vector<16x32xf32>, vector<16x32xf32>, vector<16x32xf32>, vector<16x32xf32>, vector<16x32xf32>, vector<16x32xf32>, vector<16x32xf32>, vector<16x32xf32>, vector<16x32xf32>, vector<16x32xf32>, vector<16x32xf32>, vector<16x32xf32> -> vector<16x480xf32>
    %148 = tpu.concatenate %146, %147 in 1 : vector<16x512xf32>, vector<16x480xf32> -> vector<16x992xf32>
    %149 = vector.extract_strided_slice %110 {offsets = [16, 0], sizes = [16, 32], strides = [1, 1]} : vector<32x32xf32> to vector<16x32xf32>
    %cst_24 = arith.constant 0.000000e+00 : f32
    %150 = vector.broadcast %cst_24 : f32 to vector<15x32xf32>
    %cst_25 = arith.constant 0.000000e+00 : f32
    %151 = vector.broadcast %cst_25 : f32 to vector<15x32xf32>
    %152 = tpu.concatenate %150, %149, %151 in 0 : vector<15x32xf32>, vector<16x32xf32>, vector<15x32xf32> -> vector<46x32xf32>
    %153 = vector.extract_strided_slice %152 {offsets = [0, 0], sizes = [16, 32], strides = [1, 1]} : vector<46x32xf32> to vector<16x32xf32>
    %154 = vector.extract_strided_slice %152 {offsets = [1, 0], sizes = [16, 32], strides = [1, 1]} : vector<46x32xf32> to vector<16x32xf32>
    %155 = vector.extract_strided_slice %152 {offsets = [2, 0], sizes = [16, 32], strides = [1, 1]} : vector<46x32xf32> to vector<16x32xf32>
    %156 = vector.extract_strided_slice %152 {offsets = [3, 0], sizes = [16, 32], strides = [1, 1]} : vector<46x32xf32> to vector<16x32xf32>
    %157 = vector.extract_strided_slice %152 {offsets = [4, 0], sizes = [16, 32], strides = [1, 1]} : vector<46x32xf32> to vector<16x32xf32>
    %158 = vector.extract_strided_slice %152 {offsets = [5, 0], sizes = [16, 32], strides = [1, 1]} : vector<46x32xf32> to vector<16x32xf32>
    %159 = vector.extract_strided_slice %152 {offsets = [6, 0], sizes = [16, 32], strides = [1, 1]} : vector<46x32xf32> to vector<16x32xf32>
    %160 = vector.extract_strided_slice %152 {offsets = [7, 0], sizes = [16, 32], strides = [1, 1]} : vector<46x32xf32> to vector<16x32xf32>
    %161 = vector.extract_strided_slice %152 {offsets = [8, 0], sizes = [16, 32], strides = [1, 1]} : vector<46x32xf32> to vector<16x32xf32>
    %162 = vector.extract_strided_slice %152 {offsets = [9, 0], sizes = [16, 32], strides = [1, 1]} : vector<46x32xf32> to vector<16x32xf32>
    %163 = vector.extract_strided_slice %152 {offsets = [10, 0], sizes = [16, 32], strides = [1, 1]} : vector<46x32xf32> to vector<16x32xf32>
    %164 = vector.extract_strided_slice %152 {offsets = [11, 0], sizes = [16, 32], strides = [1, 1]} : vector<46x32xf32> to vector<16x32xf32>
    %165 = vector.extract_strided_slice %152 {offsets = [12, 0], sizes = [16, 32], strides = [1, 1]} : vector<46x32xf32> to vector<16x32xf32>
    %166 = vector.extract_strided_slice %152 {offsets = [13, 0], sizes = [16, 32], strides = [1, 1]} : vector<46x32xf32> to vector<16x32xf32>
    %167 = vector.extract_strided_slice %152 {offsets = [14, 0], sizes = [16, 32], strides = [1, 1]} : vector<46x32xf32> to vector<16x32xf32>
    %168 = vector.extract_strided_slice %152 {offsets = [15, 0], sizes = [16, 32], strides = [1, 1]} : vector<46x32xf32> to vector<16x32xf32>
    %169 = vector.extract_strided_slice %152 {offsets = [16, 0], sizes = [16, 32], strides = [1, 1]} : vector<46x32xf32> to vector<16x32xf32>
    %170 = vector.extract_strided_slice %152 {offsets = [17, 0], sizes = [16, 32], strides = [1, 1]} : vector<46x32xf32> to vector<16x32xf32>
    %171 = vector.extract_strided_slice %152 {offsets = [18, 0], sizes = [16, 32], strides = [1, 1]} : vector<46x32xf32> to vector<16x32xf32>
    %172 = vector.extract_strided_slice %152 {offsets = [19, 0], sizes = [16, 32], strides = [1, 1]} : vector<46x32xf32> to vector<16x32xf32>
    %173 = vector.extract_strided_slice %152 {offsets = [20, 0], sizes = [16, 32], strides = [1, 1]} : vector<46x32xf32> to vector<16x32xf32>
    %174 = vector.extract_strided_slice %152 {offsets = [21, 0], sizes = [16, 32], strides = [1, 1]} : vector<46x32xf32> to vector<16x32xf32>
    %175 = vector.extract_strided_slice %152 {offsets = [22, 0], sizes = [16, 32], strides = [1, 1]} : vector<46x32xf32> to vector<16x32xf32>
    %176 = vector.extract_strided_slice %152 {offsets = [23, 0], sizes = [16, 32], strides = [1, 1]} : vector<46x32xf32> to vector<16x32xf32>
    %177 = vector.extract_strided_slice %152 {offsets = [24, 0], sizes = [16, 32], strides = [1, 1]} : vector<46x32xf32> to vector<16x32xf32>
    %178 = vector.extract_strided_slice %152 {offsets = [25, 0], sizes = [16, 32], strides = [1, 1]} : vector<46x32xf32> to vector<16x32xf32>
    %179 = vector.extract_strided_slice %152 {offsets = [26, 0], sizes = [16, 32], strides = [1, 1]} : vector<46x32xf32> to vector<16x32xf32>
    %180 = vector.extract_strided_slice %152 {offsets = [27, 0], sizes = [16, 32], strides = [1, 1]} : vector<46x32xf32> to vector<16x32xf32>
    %181 = vector.extract_strided_slice %152 {offsets = [28, 0], sizes = [16, 32], strides = [1, 1]} : vector<46x32xf32> to vector<16x32xf32>
    %182 = vector.extract_strided_slice %152 {offsets = [29, 0], sizes = [16, 32], strides = [1, 1]} : vector<46x32xf32> to vector<16x32xf32>
    %183 = vector.extract_strided_slice %152 {offsets = [30, 0], sizes = [16, 32], strides = [1, 1]} : vector<46x32xf32> to vector<16x32xf32>
    %184 = tpu.concatenate %153, %154, %155, %156, %157, %158, %159, %160, %161, %162, %163, %164, %165, %166, %167, %168 in 1 : vector<16x32xf32>, vector<16x32xf32>, vector<16x32xf32>, vector<16x32xf32>, vector<16x32xf32>, vector<16x32xf32>, vector<16x32xf32>, vector<16x32xf32>, vector<16x32xf32>, vector<16x32xf32>, vector<16x32xf32>, vector<16x32xf32>, vector<16x32xf32>, vector<16x32xf32>, vector<16x32xf32>, vector<16x32xf32> -> vector<16x512xf32>
    %185 = tpu.concatenate %169, %170, %171, %172, %173, %174, %175, %176, %177, %178, %179, %180, %181, %182, %183 in 1 : vector<16x32xf32>, vector<16x32xf32>, vector<16x32xf32>, vector<16x32xf32>, vector<16x32xf32>, vector<16x32xf32>, vector<16x32xf32>, vector<16x32xf32>, vector<16x32xf32>, vector<16x32xf32>, vector<16x32xf32>, vector<16x32xf32>, vector<16x32xf32>, vector<16x32xf32>, vector<16x32xf32> -> vector<16x480xf32>
    %186 = tpu.concatenate %184, %185 in 1 : vector<16x512xf32>, vector<16x480xf32> -> vector<16x992xf32>
    %187 = tpu.concatenate %148, %186 in 0 : vector<16x992xf32>, vector<16x992xf32> -> vector<32x992xf32>
    %c0_26 = arith.constant 0 : index
    %c0_27 = arith.constant 0 : index
    %188 = vector.load %arg7[%c0_26, %c0_27] : memref<992x96xf32, #tpu.memory_space<vmem>>, vector<992x96xf32>
    %cst_28 = arith.constant dense<0.000000e+00> : vector<32x96xf32>
    %189 = tpu.matmul %187, %188, %cst_28 {dimension_numbers = #tpu.dot_dimension_numbers<[1], [0], [0], [1], [0, 0, 1, 1], [], []>} : vector<32x992xf32>, vector<992x96xf32>, vector<32x96xf32> -> vector<32x96xf32>
    %cst_29 = arith.constant 0xFF800000 : f32
    %190 = vector.broadcast %cst_29 : f32 to vector<1x128xf32>
    %191 = vector.extract_strided_slice %108 {offsets = [0, 0], sizes = [16, 128], strides = [1, 1]} : vector<32x128xf32> to vector<16x128xf32>
    %192 = vector.extract_strided_slice %191 {offsets = [1, 0], sizes = [15, 128], strides = [1, 1]} : vector<16x128xf32> to vector<15x128xf32>
    %193 = tpu.concatenate %192, %190 in 0 : vector<15x128xf32>, vector<1x128xf32> -> vector<16x128xf32>
    %194 = vector.extract_strided_slice %191 {offsets = [0, 0], sizes = [15, 128], strides = [1, 1]} : vector<16x128xf32> to vector<15x128xf32>
    %195 = tpu.concatenate %190, %194 in 0 : vector<1x128xf32>, vector<15x128xf32> -> vector<16x128xf32>
    %196 = arith.maximumf %193, %191 : vector<16x128xf32>
    %197 = arith.maximumf %196, %195 : vector<16x128xf32>
    %198 = vector.extract_strided_slice %108 {offsets = [16, 0], sizes = [16, 128], strides = [1, 1]} : vector<32x128xf32> to vector<16x128xf32>
    %199 = vector.extract_strided_slice %198 {offsets = [1, 0], sizes = [15, 128], strides = [1, 1]} : vector<16x128xf32> to vector<15x128xf32>
    %200 = tpu.concatenate %199, %190 in 0 : vector<15x128xf32>, vector<1x128xf32> -> vector<16x128xf32>
    %201 = vector.extract_strided_slice %198 {offsets = [0, 0], sizes = [15, 128], strides = [1, 1]} : vector<16x128xf32> to vector<15x128xf32>
    %202 = tpu.concatenate %190, %201 in 0 : vector<1x128xf32>, vector<15x128xf32> -> vector<16x128xf32>
    %203 = arith.maximumf %200, %198 : vector<16x128xf32>
    %204 = arith.maximumf %203, %202 : vector<16x128xf32>
    %205 = tpu.concatenate %197, %204 in 0 : vector<16x128xf32>, vector<16x128xf32> -> vector<32x128xf32>
    %c0_30 = arith.constant 0 : index
    %c0_31 = arith.constant 0 : index
    %206 = vector.load %arg8[%c0_30, %c0_31] : memref<128x32xf32, #tpu.memory_space<vmem>>, vector<128x32xf32>
    %cst_32 = arith.constant dense<0.000000e+00> : vector<32x32xf32>
    %207 = tpu.matmul %205, %206, %cst_32 {dimension_numbers = #tpu.dot_dimension_numbers<[1], [0], [0], [1], [0, 0, 1, 1], [], []>} : vector<32x128xf32>, vector<128x32xf32>, vector<32x32xf32> -> vector<32x32xf32>
    %208 = tpu.concatenate %189, %207 in 1 : vector<32x96xf32>, vector<32x32xf32> -> vector<32x128xf32>
    %c0_33 = arith.constant 0 : index
    %c0_34 = arith.constant 0 : index
    %209 = vector.load %arg9[%c0_33, %c0_34] : memref<1x128xf32, #tpu.memory_space<vmem>>, vector<1x128xf32>
    %210 = vector.broadcast %209 : vector<1x128xf32> to vector<32x128xf32>
    %211 = arith.mulf %208, %210 : vector<32x128xf32>
    %c0_35 = arith.constant 0 : index
    %c0_36 = arith.constant 0 : index
    %212 = vector.load %arg10[%c0_35, %c0_36] : memref<1x128xf32, #tpu.memory_space<vmem>>, vector<1x128xf32>
    %213 = vector.broadcast %212 : vector<1x128xf32> to vector<32x128xf32>
    %214 = arith.addf %211, %213 : vector<32x128xf32>
    %cst_37 = arith.constant 0.000000e+00 : f32
    %215 = vector.broadcast %cst_37 : f32 to vector<32x128xf32>
    %216 = arith.maximumf %214, %215 : vector<32x128xf32>
    %c0_38 = arith.constant 0 : index
    %c0_39 = arith.constant 0 : index
    %217 = vector.load %arg11[%c0_38, %c0_39] : memref<128x32xf32, #tpu.memory_space<vmem>>, vector<128x32xf32>
    %cst_40 = arith.constant dense<0.000000e+00> : vector<32x32xf32>
    %218 = tpu.matmul %216, %217, %cst_40 {dimension_numbers = #tpu.dot_dimension_numbers<[1], [0], [0], [1], [0, 0, 1, 1], [], []>} : vector<32x128xf32>, vector<128x32xf32>, vector<32x32xf32> -> vector<32x32xf32>
    %219 = vector.extract_strided_slice %218 {offsets = [0, 0], sizes = [16, 32], strides = [1, 1]} : vector<32x32xf32> to vector<16x32xf32>
    %cst_41 = arith.constant 0.000000e+00 : f32
    %220 = vector.broadcast %cst_41 : f32 to vector<15x32xf32>
    %cst_42 = arith.constant 0.000000e+00 : f32
    %221 = vector.broadcast %cst_42 : f32 to vector<15x32xf32>
    %222 = tpu.concatenate %220, %219, %221 in 0 : vector<15x32xf32>, vector<16x32xf32>, vector<15x32xf32> -> vector<46x32xf32>
    %223 = vector.extract_strided_slice %222 {offsets = [0, 0], sizes = [16, 32], strides = [1, 1]} : vector<46x32xf32> to vector<16x32xf32>
    %224 = vector.extract_strided_slice %222 {offsets = [1, 0], sizes = [16, 32], strides = [1, 1]} : vector<46x32xf32> to vector<16x32xf32>
    %225 = vector.extract_strided_slice %222 {offsets = [2, 0], sizes = [16, 32], strides = [1, 1]} : vector<46x32xf32> to vector<16x32xf32>
    %226 = vector.extract_strided_slice %222 {offsets = [3, 0], sizes = [16, 32], strides = [1, 1]} : vector<46x32xf32> to vector<16x32xf32>
    %227 = vector.extract_strided_slice %222 {offsets = [4, 0], sizes = [16, 32], strides = [1, 1]} : vector<46x32xf32> to vector<16x32xf32>
    %228 = vector.extract_strided_slice %222 {offsets = [5, 0], sizes = [16, 32], strides = [1, 1]} : vector<46x32xf32> to vector<16x32xf32>
    %229 = vector.extract_strided_slice %222 {offsets = [6, 0], sizes = [16, 32], strides = [1, 1]} : vector<46x32xf32> to vector<16x32xf32>
    %230 = vector.extract_strided_slice %222 {offsets = [7, 0], sizes = [16, 32], strides = [1, 1]} : vector<46x32xf32> to vector<16x32xf32>
    %231 = vector.extract_strided_slice %222 {offsets = [8, 0], sizes = [16, 32], strides = [1, 1]} : vector<46x32xf32> to vector<16x32xf32>
    %232 = vector.extract_strided_slice %222 {offsets = [9, 0], sizes = [16, 32], strides = [1, 1]} : vector<46x32xf32> to vector<16x32xf32>
    %233 = vector.extract_strided_slice %222 {offsets = [10, 0], sizes = [16, 32], strides = [1, 1]} : vector<46x32xf32> to vector<16x32xf32>
    %234 = vector.extract_strided_slice %222 {offsets = [11, 0], sizes = [16, 32], strides = [1, 1]} : vector<46x32xf32> to vector<16x32xf32>
    %235 = vector.extract_strided_slice %222 {offsets = [12, 0], sizes = [16, 32], strides = [1, 1]} : vector<46x32xf32> to vector<16x32xf32>
    %236 = vector.extract_strided_slice %222 {offsets = [13, 0], sizes = [16, 32], strides = [1, 1]} : vector<46x32xf32> to vector<16x32xf32>
    %237 = vector.extract_strided_slice %222 {offsets = [14, 0], sizes = [16, 32], strides = [1, 1]} : vector<46x32xf32> to vector<16x32xf32>
    %238 = vector.extract_strided_slice %222 {offsets = [15, 0], sizes = [16, 32], strides = [1, 1]} : vector<46x32xf32> to vector<16x32xf32>
    %239 = vector.extract_strided_slice %222 {offsets = [16, 0], sizes = [16, 32], strides = [1, 1]} : vector<46x32xf32> to vector<16x32xf32>
    %240 = vector.extract_strided_slice %222 {offsets = [17, 0], sizes = [16, 32], strides = [1, 1]} : vector<46x32xf32> to vector<16x32xf32>
    %241 = vector.extract_strided_slice %222 {offsets = [18, 0], sizes = [16, 32], strides = [1, 1]} : vector<46x32xf32> to vector<16x32xf32>
    %242 = vector.extract_strided_slice %222 {offsets = [19, 0], sizes = [16, 32], strides = [1, 1]} : vector<46x32xf32> to vector<16x32xf32>
    %243 = vector.extract_strided_slice %222 {offsets = [20, 0], sizes = [16, 32], strides = [1, 1]} : vector<46x32xf32> to vector<16x32xf32>
    %244 = vector.extract_strided_slice %222 {offsets = [21, 0], sizes = [16, 32], strides = [1, 1]} : vector<46x32xf32> to vector<16x32xf32>
    %245 = vector.extract_strided_slice %222 {offsets = [22, 0], sizes = [16, 32], strides = [1, 1]} : vector<46x32xf32> to vector<16x32xf32>
    %246 = vector.extract_strided_slice %222 {offsets = [23, 0], sizes = [16, 32], strides = [1, 1]} : vector<46x32xf32> to vector<16x32xf32>
    %247 = vector.extract_strided_slice %222 {offsets = [24, 0], sizes = [16, 32], strides = [1, 1]} : vector<46x32xf32> to vector<16x32xf32>
    %248 = vector.extract_strided_slice %222 {offsets = [25, 0], sizes = [16, 32], strides = [1, 1]} : vector<46x32xf32> to vector<16x32xf32>
    %249 = vector.extract_strided_slice %222 {offsets = [26, 0], sizes = [16, 32], strides = [1, 1]} : vector<46x32xf32> to vector<16x32xf32>
    %250 = vector.extract_strided_slice %222 {offsets = [27, 0], sizes = [16, 32], strides = [1, 1]} : vector<46x32xf32> to vector<16x32xf32>
    %251 = vector.extract_strided_slice %222 {offsets = [28, 0], sizes = [16, 32], strides = [1, 1]} : vector<46x32xf32> to vector<16x32xf32>
    %252 = vector.extract_strided_slice %222 {offsets = [29, 0], sizes = [16, 32], strides = [1, 1]} : vector<46x32xf32> to vector<16x32xf32>
    %253 = vector.extract_strided_slice %222 {offsets = [30, 0], sizes = [16, 32], strides = [1, 1]} : vector<46x32xf32> to vector<16x32xf32>
    %254 = tpu.concatenate %223, %224, %225, %226, %227, %228, %229, %230, %231, %232, %233, %234, %235, %236, %237, %238 in 1 : vector<16x32xf32>, vector<16x32xf32>, vector<16x32xf32>, vector<16x32xf32>, vector<16x32xf32>, vector<16x32xf32>, vector<16x32xf32>, vector<16x32xf32>, vector<16x32xf32>, vector<16x32xf32>, vector<16x32xf32>, vector<16x32xf32>, vector<16x32xf32>, vector<16x32xf32>, vector<16x32xf32>, vector<16x32xf32> -> vector<16x512xf32>
    %255 = tpu.concatenate %239, %240, %241, %242, %243, %244, %245, %246, %247, %248, %249, %250, %251, %252, %253 in 1 : vector<16x32xf32>, vector<16x32xf32>, vector<16x32xf32>, vector<16x32xf32>, vector<16x32xf32>, vector<16x32xf32>, vector<16x32xf32>, vector<16x32xf32>, vector<16x32xf32>, vector<16x32xf32>, vector<16x32xf32>, vector<16x32xf32>, vector<16x32xf32>, vector<16x32xf32>, vector<16x32xf32> -> vector<16x480xf32>
    %256 = tpu.concatenate %254, %255 in 1 : vector<16x512xf32>, vector<16x480xf32> -> vector<16x992xf32>
    %257 = vector.extract_strided_slice %218 {offsets = [16, 0], sizes = [16, 32], strides = [1, 1]} : vector<32x32xf32> to vector<16x32xf32>
    %cst_43 = arith.constant 0.000000e+00 : f32
    %258 = vector.broadcast %cst_43 : f32 to vector<15x32xf32>
    %cst_44 = arith.constant 0.000000e+00 : f32
    %259 = vector.broadcast %cst_44 : f32 to vector<15x32xf32>
    %260 = tpu.concatenate %258, %257, %259 in 0 : vector<15x32xf32>, vector<16x32xf32>, vector<15x32xf32> -> vector<46x32xf32>
    %261 = vector.extract_strided_slice %260 {offsets = [0, 0], sizes = [16, 32], strides = [1, 1]} : vector<46x32xf32> to vector<16x32xf32>
    %262 = vector.extract_strided_slice %260 {offsets = [1, 0], sizes = [16, 32], strides = [1, 1]} : vector<46x32xf32> to vector<16x32xf32>
    %263 = vector.extract_strided_slice %260 {offsets = [2, 0], sizes = [16, 32], strides = [1, 1]} : vector<46x32xf32> to vector<16x32xf32>
    %264 = vector.extract_strided_slice %260 {offsets = [3, 0], sizes = [16, 32], strides = [1, 1]} : vector<46x32xf32> to vector<16x32xf32>
    %265 = vector.extract_strided_slice %260 {offsets = [4, 0], sizes = [16, 32], strides = [1, 1]} : vector<46x32xf32> to vector<16x32xf32>
    %266 = vector.extract_strided_slice %260 {offsets = [5, 0], sizes = [16, 32], strides = [1, 1]} : vector<46x32xf32> to vector<16x32xf32>
    %267 = vector.extract_strided_slice %260 {offsets = [6, 0], sizes = [16, 32], strides = [1, 1]} : vector<46x32xf32> to vector<16x32xf32>
    %268 = vector.extract_strided_slice %260 {offsets = [7, 0], sizes = [16, 32], strides = [1, 1]} : vector<46x32xf32> to vector<16x32xf32>
    %269 = vector.extract_strided_slice %260 {offsets = [8, 0], sizes = [16, 32], strides = [1, 1]} : vector<46x32xf32> to vector<16x32xf32>
    %270 = vector.extract_strided_slice %260 {offsets = [9, 0], sizes = [16, 32], strides = [1, 1]} : vector<46x32xf32> to vector<16x32xf32>
    %271 = vector.extract_strided_slice %260 {offsets = [10, 0], sizes = [16, 32], strides = [1, 1]} : vector<46x32xf32> to vector<16x32xf32>
    %272 = vector.extract_strided_slice %260 {offsets = [11, 0], sizes = [16, 32], strides = [1, 1]} : vector<46x32xf32> to vector<16x32xf32>
    %273 = vector.extract_strided_slice %260 {offsets = [12, 0], sizes = [16, 32], strides = [1, 1]} : vector<46x32xf32> to vector<16x32xf32>
    %274 = vector.extract_strided_slice %260 {offsets = [13, 0], sizes = [16, 32], strides = [1, 1]} : vector<46x32xf32> to vector<16x32xf32>
    %275 = vector.extract_strided_slice %260 {offsets = [14, 0], sizes = [16, 32], strides = [1, 1]} : vector<46x32xf32> to vector<16x32xf32>
    %276 = vector.extract_strided_slice %260 {offsets = [15, 0], sizes = [16, 32], strides = [1, 1]} : vector<46x32xf32> to vector<16x32xf32>
    %277 = vector.extract_strided_slice %260 {offsets = [16, 0], sizes = [16, 32], strides = [1, 1]} : vector<46x32xf32> to vector<16x32xf32>
    %278 = vector.extract_strided_slice %260 {offsets = [17, 0], sizes = [16, 32], strides = [1, 1]} : vector<46x32xf32> to vector<16x32xf32>
    %279 = vector.extract_strided_slice %260 {offsets = [18, 0], sizes = [16, 32], strides = [1, 1]} : vector<46x32xf32> to vector<16x32xf32>
    %280 = vector.extract_strided_slice %260 {offsets = [19, 0], sizes = [16, 32], strides = [1, 1]} : vector<46x32xf32> to vector<16x32xf32>
    %281 = vector.extract_strided_slice %260 {offsets = [20, 0], sizes = [16, 32], strides = [1, 1]} : vector<46x32xf32> to vector<16x32xf32>
    %282 = vector.extract_strided_slice %260 {offsets = [21, 0], sizes = [16, 32], strides = [1, 1]} : vector<46x32xf32> to vector<16x32xf32>
    %283 = vector.extract_strided_slice %260 {offsets = [22, 0], sizes = [16, 32], strides = [1, 1]} : vector<46x32xf32> to vector<16x32xf32>
    %284 = vector.extract_strided_slice %260 {offsets = [23, 0], sizes = [16, 32], strides = [1, 1]} : vector<46x32xf32> to vector<16x32xf32>
    %285 = vector.extract_strided_slice %260 {offsets = [24, 0], sizes = [16, 32], strides = [1, 1]} : vector<46x32xf32> to vector<16x32xf32>
    %286 = vector.extract_strided_slice %260 {offsets = [25, 0], sizes = [16, 32], strides = [1, 1]} : vector<46x32xf32> to vector<16x32xf32>
    %287 = vector.extract_strided_slice %260 {offsets = [26, 0], sizes = [16, 32], strides = [1, 1]} : vector<46x32xf32> to vector<16x32xf32>
    %288 = vector.extract_strided_slice %260 {offsets = [27, 0], sizes = [16, 32], strides = [1, 1]} : vector<46x32xf32> to vector<16x32xf32>
    %289 = vector.extract_strided_slice %260 {offsets = [28, 0], sizes = [16, 32], strides = [1, 1]} : vector<46x32xf32> to vector<16x32xf32>
    %290 = vector.extract_strided_slice %260 {offsets = [29, 0], sizes = [16, 32], strides = [1, 1]} : vector<46x32xf32> to vector<16x32xf32>
    %291 = vector.extract_strided_slice %260 {offsets = [30, 0], sizes = [16, 32], strides = [1, 1]} : vector<46x32xf32> to vector<16x32xf32>
    %292 = tpu.concatenate %261, %262, %263, %264, %265, %266, %267, %268, %269, %270, %271, %272, %273, %274, %275, %276 in 1 : vector<16x32xf32>, vector<16x32xf32>, vector<16x32xf32>, vector<16x32xf32>, vector<16x32xf32>, vector<16x32xf32>, vector<16x32xf32>, vector<16x32xf32>, vector<16x32xf32>, vector<16x32xf32>, vector<16x32xf32>, vector<16x32xf32>, vector<16x32xf32>, vector<16x32xf32>, vector<16x32xf32>, vector<16x32xf32> -> vector<16x512xf32>
    %293 = tpu.concatenate %277, %278, %279, %280, %281, %282, %283, %284, %285, %286, %287, %288, %289, %290, %291 in 1 : vector<16x32xf32>, vector<16x32xf32>, vector<16x32xf32>, vector<16x32xf32>, vector<16x32xf32>, vector<16x32xf32>, vector<16x32xf32>, vector<16x32xf32>, vector<16x32xf32>, vector<16x32xf32>, vector<16x32xf32>, vector<16x32xf32>, vector<16x32xf32>, vector<16x32xf32>, vector<16x32xf32> -> vector<16x480xf32>
    %294 = tpu.concatenate %292, %293 in 1 : vector<16x512xf32>, vector<16x480xf32> -> vector<16x992xf32>
    %295 = tpu.concatenate %256, %294 in 0 : vector<16x992xf32>, vector<16x992xf32> -> vector<32x992xf32>
    %c0_45 = arith.constant 0 : index
    %c0_46 = arith.constant 0 : index
    %296 = vector.load %arg12[%c0_45, %c0_46] : memref<992x96xf32, #tpu.memory_space<vmem>>, vector<992x96xf32>
    %cst_47 = arith.constant dense<0.000000e+00> : vector<32x96xf32>
    %297 = tpu.matmul %295, %296, %cst_47 {dimension_numbers = #tpu.dot_dimension_numbers<[1], [0], [0], [1], [0, 0, 1, 1], [], []>} : vector<32x992xf32>, vector<992x96xf32>, vector<32x96xf32> -> vector<32x96xf32>
    %cst_48 = arith.constant 0xFF800000 : f32
    %298 = vector.broadcast %cst_48 : f32 to vector<1x128xf32>
    %299 = vector.extract_strided_slice %216 {offsets = [0, 0], sizes = [16, 128], strides = [1, 1]} : vector<32x128xf32> to vector<16x128xf32>
    %300 = vector.extract_strided_slice %299 {offsets = [1, 0], sizes = [15, 128], strides = [1, 1]} : vector<16x128xf32> to vector<15x128xf32>
    %301 = tpu.concatenate %300, %298 in 0 : vector<15x128xf32>, vector<1x128xf32> -> vector<16x128xf32>
    %302 = vector.extract_strided_slice %299 {offsets = [0, 0], sizes = [15, 128], strides = [1, 1]} : vector<16x128xf32> to vector<15x128xf32>
    %303 = tpu.concatenate %298, %302 in 0 : vector<1x128xf32>, vector<15x128xf32> -> vector<16x128xf32>
    %304 = arith.maximumf %301, %299 : vector<16x128xf32>
    %305 = arith.maximumf %304, %303 : vector<16x128xf32>
    %306 = vector.extract_strided_slice %216 {offsets = [16, 0], sizes = [16, 128], strides = [1, 1]} : vector<32x128xf32> to vector<16x128xf32>
    %307 = vector.extract_strided_slice %306 {offsets = [1, 0], sizes = [15, 128], strides = [1, 1]} : vector<16x128xf32> to vector<15x128xf32>
    %308 = tpu.concatenate %307, %298 in 0 : vector<15x128xf32>, vector<1x128xf32> -> vector<16x128xf32>
    %309 = vector.extract_strided_slice %306 {offsets = [0, 0], sizes = [15, 128], strides = [1, 1]} : vector<16x128xf32> to vector<15x128xf32>
    %310 = tpu.concatenate %298, %309 in 0 : vector<1x128xf32>, vector<15x128xf32> -> vector<16x128xf32>
    %311 = arith.maximumf %308, %306 : vector<16x128xf32>
    %312 = arith.maximumf %311, %310 : vector<16x128xf32>
    %313 = tpu.concatenate %305, %312 in 0 : vector<16x128xf32>, vector<16x128xf32> -> vector<32x128xf32>
    %c0_49 = arith.constant 0 : index
    %c0_50 = arith.constant 0 : index
    %314 = vector.load %arg13[%c0_49, %c0_50] : memref<128x32xf32, #tpu.memory_space<vmem>>, vector<128x32xf32>
    %cst_51 = arith.constant dense<0.000000e+00> : vector<32x32xf32>
    %315 = tpu.matmul %313, %314, %cst_51 {dimension_numbers = #tpu.dot_dimension_numbers<[1], [0], [0], [1], [0, 0, 1, 1], [], []>} : vector<32x128xf32>, vector<128x32xf32>, vector<32x32xf32> -> vector<32x32xf32>
    %316 = tpu.concatenate %297, %315 in 1 : vector<32x96xf32>, vector<32x32xf32> -> vector<32x128xf32>
    %c0_52 = arith.constant 0 : index
    %c0_53 = arith.constant 0 : index
    %317 = vector.load %arg14[%c0_52, %c0_53] : memref<1x128xf32, #tpu.memory_space<vmem>>, vector<1x128xf32>
    %318 = vector.broadcast %317 : vector<1x128xf32> to vector<32x128xf32>
    %319 = arith.mulf %316, %318 : vector<32x128xf32>
    %c0_54 = arith.constant 0 : index
    %c0_55 = arith.constant 0 : index
    %320 = vector.load %arg15[%c0_54, %c0_55] : memref<1x128xf32, #tpu.memory_space<vmem>>, vector<1x128xf32>
    %321 = vector.broadcast %320 : vector<1x128xf32> to vector<32x128xf32>
    %322 = arith.addf %319, %321 : vector<32x128xf32>
    %cst_56 = arith.constant 0.000000e+00 : f32
    %323 = vector.broadcast %cst_56 : f32 to vector<32x128xf32>
    %324 = arith.maximumf %322, %323 : vector<32x128xf32>
    %c0_57 = arith.constant 0 : index
    %c0_58 = arith.constant 0 : index
    %325 = vector.load %arg31[%c0_57, %c0_58] : memref<4x128xf32, #tpu.memory_space<vmem>>, vector<4x128xf32>
    %cst_59 = arith.constant dense<0.000000e+00> : vector<32x128xf32>
    %326 = tpu.matmul %0, %325, %cst_59 {dimension_numbers = #tpu.dot_dimension_numbers<[1], [0], [0], [1], [0, 0, 1, 1], [], []>} : vector<32x4xf32>, vector<4x128xf32>, vector<32x128xf32> -> vector<32x128xf32>
    %c0_60 = arith.constant 0 : index
    %c0_61 = arith.constant 0 : index
    %327 = vector.load %arg32[%c0_60, %c0_61] : memref<1x128xf32, #tpu.memory_space<vmem>>, vector<1x128xf32>
    %328 = vector.broadcast %327 : vector<1x128xf32> to vector<32x128xf32>
    %329 = arith.mulf %326, %328 : vector<32x128xf32>
    %c0_62 = arith.constant 0 : index
    %c0_63 = arith.constant 0 : index
    %330 = vector.load %arg33[%c0_62, %c0_63] : memref<1x128xf32, #tpu.memory_space<vmem>>, vector<1x128xf32>
    %331 = vector.broadcast %330 : vector<1x128xf32> to vector<32x128xf32>
    %332 = arith.addf %329, %331 : vector<32x128xf32>
    %333 = arith.addf %324, %332 : vector<32x128xf32>
    %cst_64 = arith.constant 0.000000e+00 : f32
    %334 = vector.broadcast %cst_64 : f32 to vector<32x128xf32>
    %335 = arith.maximumf %333, %334 : vector<32x128xf32>
    %c0_65 = arith.constant 0 : index
    %c0_66 = arith.constant 0 : index
    %336 = vector.load %arg16[%c0_65, %c0_66] : memref<128x32xf32, #tpu.memory_space<vmem>>, vector<128x32xf32>
    %cst_67 = arith.constant dense<0.000000e+00> : vector<32x32xf32>
    %337 = tpu.matmul %335, %336, %cst_67 {dimension_numbers = #tpu.dot_dimension_numbers<[1], [0], [0], [1], [0, 0, 1, 1], [], []>} : vector<32x128xf32>, vector<128x32xf32>, vector<32x32xf32> -> vector<32x32xf32>
    %338 = vector.extract_strided_slice %337 {offsets = [0, 0], sizes = [16, 32], strides = [1, 1]} : vector<32x32xf32> to vector<16x32xf32>
    %cst_68 = arith.constant 0.000000e+00 : f32
    %339 = vector.broadcast %cst_68 : f32 to vector<15x32xf32>
    %cst_69 = arith.constant 0.000000e+00 : f32
    %340 = vector.broadcast %cst_69 : f32 to vector<15x32xf32>
    %341 = tpu.concatenate %339, %338, %340 in 0 : vector<15x32xf32>, vector<16x32xf32>, vector<15x32xf32> -> vector<46x32xf32>
    %342 = vector.extract_strided_slice %341 {offsets = [0, 0], sizes = [16, 32], strides = [1, 1]} : vector<46x32xf32> to vector<16x32xf32>
    %343 = vector.extract_strided_slice %341 {offsets = [1, 0], sizes = [16, 32], strides = [1, 1]} : vector<46x32xf32> to vector<16x32xf32>
    %344 = vector.extract_strided_slice %341 {offsets = [2, 0], sizes = [16, 32], strides = [1, 1]} : vector<46x32xf32> to vector<16x32xf32>
    %345 = vector.extract_strided_slice %341 {offsets = [3, 0], sizes = [16, 32], strides = [1, 1]} : vector<46x32xf32> to vector<16x32xf32>
    %346 = vector.extract_strided_slice %341 {offsets = [4, 0], sizes = [16, 32], strides = [1, 1]} : vector<46x32xf32> to vector<16x32xf32>
    %347 = vector.extract_strided_slice %341 {offsets = [5, 0], sizes = [16, 32], strides = [1, 1]} : vector<46x32xf32> to vector<16x32xf32>
    %348 = vector.extract_strided_slice %341 {offsets = [6, 0], sizes = [16, 32], strides = [1, 1]} : vector<46x32xf32> to vector<16x32xf32>
    %349 = vector.extract_strided_slice %341 {offsets = [7, 0], sizes = [16, 32], strides = [1, 1]} : vector<46x32xf32> to vector<16x32xf32>
    %350 = vector.extract_strided_slice %341 {offsets = [8, 0], sizes = [16, 32], strides = [1, 1]} : vector<46x32xf32> to vector<16x32xf32>
    %351 = vector.extract_strided_slice %341 {offsets = [9, 0], sizes = [16, 32], strides = [1, 1]} : vector<46x32xf32> to vector<16x32xf32>
    %352 = vector.extract_strided_slice %341 {offsets = [10, 0], sizes = [16, 32], strides = [1, 1]} : vector<46x32xf32> to vector<16x32xf32>
    %353 = vector.extract_strided_slice %341 {offsets = [11, 0], sizes = [16, 32], strides = [1, 1]} : vector<46x32xf32> to vector<16x32xf32>
    %354 = vector.extract_strided_slice %341 {offsets = [12, 0], sizes = [16, 32], strides = [1, 1]} : vector<46x32xf32> to vector<16x32xf32>
    %355 = vector.extract_strided_slice %341 {offsets = [13, 0], sizes = [16, 32], strides = [1, 1]} : vector<46x32xf32> to vector<16x32xf32>
    %356 = vector.extract_strided_slice %341 {offsets = [14, 0], sizes = [16, 32], strides = [1, 1]} : vector<46x32xf32> to vector<16x32xf32>
    %357 = vector.extract_strided_slice %341 {offsets = [15, 0], sizes = [16, 32], strides = [1, 1]} : vector<46x32xf32> to vector<16x32xf32>
    %358 = vector.extract_strided_slice %341 {offsets = [16, 0], sizes = [16, 32], strides = [1, 1]} : vector<46x32xf32> to vector<16x32xf32>
    %359 = vector.extract_strided_slice %341 {offsets = [17, 0], sizes = [16, 32], strides = [1, 1]} : vector<46x32xf32> to vector<16x32xf32>
    %360 = vector.extract_strided_slice %341 {offsets = [18, 0], sizes = [16, 32], strides = [1, 1]} : vector<46x32xf32> to vector<16x32xf32>
    %361 = vector.extract_strided_slice %341 {offsets = [19, 0], sizes = [16, 32], strides = [1, 1]} : vector<46x32xf32> to vector<16x32xf32>
    %362 = vector.extract_strided_slice %341 {offsets = [20, 0], sizes = [16, 32], strides = [1, 1]} : vector<46x32xf32> to vector<16x32xf32>
    %363 = vector.extract_strided_slice %341 {offsets = [21, 0], sizes = [16, 32], strides = [1, 1]} : vector<46x32xf32> to vector<16x32xf32>
    %364 = vector.extract_strided_slice %341 {offsets = [22, 0], sizes = [16, 32], strides = [1, 1]} : vector<46x32xf32> to vector<16x32xf32>
    %365 = vector.extract_strided_slice %341 {offsets = [23, 0], sizes = [16, 32], strides = [1, 1]} : vector<46x32xf32> to vector<16x32xf32>
    %366 = vector.extract_strided_slice %341 {offsets = [24, 0], sizes = [16, 32], strides = [1, 1]} : vector<46x32xf32> to vector<16x32xf32>
    %367 = vector.extract_strided_slice %341 {offsets = [25, 0], sizes = [16, 32], strides = [1, 1]} : vector<46x32xf32> to vector<16x32xf32>
    %368 = vector.extract_strided_slice %341 {offsets = [26, 0], sizes = [16, 32], strides = [1, 1]} : vector<46x32xf32> to vector<16x32xf32>
    %369 = vector.extract_strided_slice %341 {offsets = [27, 0], sizes = [16, 32], strides = [1, 1]} : vector<46x32xf32> to vector<16x32xf32>
    %370 = vector.extract_strided_slice %341 {offsets = [28, 0], sizes = [16, 32], strides = [1, 1]} : vector<46x32xf32> to vector<16x32xf32>
    %371 = vector.extract_strided_slice %341 {offsets = [29, 0], sizes = [16, 32], strides = [1, 1]} : vector<46x32xf32> to vector<16x32xf32>
    %372 = vector.extract_strided_slice %341 {offsets = [30, 0], sizes = [16, 32], strides = [1, 1]} : vector<46x32xf32> to vector<16x32xf32>
    %373 = tpu.concatenate %342, %343, %344, %345, %346, %347, %348, %349, %350, %351, %352, %353, %354, %355, %356, %357 in 1 : vector<16x32xf32>, vector<16x32xf32>, vector<16x32xf32>, vector<16x32xf32>, vector<16x32xf32>, vector<16x32xf32>, vector<16x32xf32>, vector<16x32xf32>, vector<16x32xf32>, vector<16x32xf32>, vector<16x32xf32>, vector<16x32xf32>, vector<16x32xf32>, vector<16x32xf32>, vector<16x32xf32>, vector<16x32xf32> -> vector<16x512xf32>
    %374 = tpu.concatenate %358, %359, %360, %361, %362, %363, %364, %365, %366, %367, %368, %369, %370, %371, %372 in 1 : vector<16x32xf32>, vector<16x32xf32>, vector<16x32xf32>, vector<16x32xf32>, vector<16x32xf32>, vector<16x32xf32>, vector<16x32xf32>, vector<16x32xf32>, vector<16x32xf32>, vector<16x32xf32>, vector<16x32xf32>, vector<16x32xf32>, vector<16x32xf32>, vector<16x32xf32>, vector<16x32xf32> -> vector<16x480xf32>
    %375 = tpu.concatenate %373, %374 in 1 : vector<16x512xf32>, vector<16x480xf32> -> vector<16x992xf32>
    %376 = vector.extract_strided_slice %337 {offsets = [16, 0], sizes = [16, 32], strides = [1, 1]} : vector<32x32xf32> to vector<16x32xf32>
    %cst_70 = arith.constant 0.000000e+00 : f32
    %377 = vector.broadcast %cst_70 : f32 to vector<15x32xf32>
    %cst_71 = arith.constant 0.000000e+00 : f32
    %378 = vector.broadcast %cst_71 : f32 to vector<15x32xf32>
    %379 = tpu.concatenate %377, %376, %378 in 0 : vector<15x32xf32>, vector<16x32xf32>, vector<15x32xf32> -> vector<46x32xf32>
    %380 = vector.extract_strided_slice %379 {offsets = [0, 0], sizes = [16, 32], strides = [1, 1]} : vector<46x32xf32> to vector<16x32xf32>
    %381 = vector.extract_strided_slice %379 {offsets = [1, 0], sizes = [16, 32], strides = [1, 1]} : vector<46x32xf32> to vector<16x32xf32>
    %382 = vector.extract_strided_slice %379 {offsets = [2, 0], sizes = [16, 32], strides = [1, 1]} : vector<46x32xf32> to vector<16x32xf32>
    %383 = vector.extract_strided_slice %379 {offsets = [3, 0], sizes = [16, 32], strides = [1, 1]} : vector<46x32xf32> to vector<16x32xf32>
    %384 = vector.extract_strided_slice %379 {offsets = [4, 0], sizes = [16, 32], strides = [1, 1]} : vector<46x32xf32> to vector<16x32xf32>
    %385 = vector.extract_strided_slice %379 {offsets = [5, 0], sizes = [16, 32], strides = [1, 1]} : vector<46x32xf32> to vector<16x32xf32>
    %386 = vector.extract_strided_slice %379 {offsets = [6, 0], sizes = [16, 32], strides = [1, 1]} : vector<46x32xf32> to vector<16x32xf32>
    %387 = vector.extract_strided_slice %379 {offsets = [7, 0], sizes = [16, 32], strides = [1, 1]} : vector<46x32xf32> to vector<16x32xf32>
    %388 = vector.extract_strided_slice %379 {offsets = [8, 0], sizes = [16, 32], strides = [1, 1]} : vector<46x32xf32> to vector<16x32xf32>
    %389 = vector.extract_strided_slice %379 {offsets = [9, 0], sizes = [16, 32], strides = [1, 1]} : vector<46x32xf32> to vector<16x32xf32>
    %390 = vector.extract_strided_slice %379 {offsets = [10, 0], sizes = [16, 32], strides = [1, 1]} : vector<46x32xf32> to vector<16x32xf32>
    %391 = vector.extract_strided_slice %379 {offsets = [11, 0], sizes = [16, 32], strides = [1, 1]} : vector<46x32xf32> to vector<16x32xf32>
    %392 = vector.extract_strided_slice %379 {offsets = [12, 0], sizes = [16, 32], strides = [1, 1]} : vector<46x32xf32> to vector<16x32xf32>
    %393 = vector.extract_strided_slice %379 {offsets = [13, 0], sizes = [16, 32], strides = [1, 1]} : vector<46x32xf32> to vector<16x32xf32>
    %394 = vector.extract_strided_slice %379 {offsets = [14, 0], sizes = [16, 32], strides = [1, 1]} : vector<46x32xf32> to vector<16x32xf32>
    %395 = vector.extract_strided_slice %379 {offsets = [15, 0], sizes = [16, 32], strides = [1, 1]} : vector<46x32xf32> to vector<16x32xf32>
    %396 = vector.extract_strided_slice %379 {offsets = [16, 0], sizes = [16, 32], strides = [1, 1]} : vector<46x32xf32> to vector<16x32xf32>
    %397 = vector.extract_strided_slice %379 {offsets = [17, 0], sizes = [16, 32], strides = [1, 1]} : vector<46x32xf32> to vector<16x32xf32>
    %398 = vector.extract_strided_slice %379 {offsets = [18, 0], sizes = [16, 32], strides = [1, 1]} : vector<46x32xf32> to vector<16x32xf32>
    %399 = vector.extract_strided_slice %379 {offsets = [19, 0], sizes = [16, 32], strides = [1, 1]} : vector<46x32xf32> to vector<16x32xf32>
    %400 = vector.extract_strided_slice %379 {offsets = [20, 0], sizes = [16, 32], strides = [1, 1]} : vector<46x32xf32> to vector<16x32xf32>
    %401 = vector.extract_strided_slice %379 {offsets = [21, 0], sizes = [16, 32], strides = [1, 1]} : vector<46x32xf32> to vector<16x32xf32>
    %402 = vector.extract_strided_slice %379 {offsets = [22, 0], sizes = [16, 32], strides = [1, 1]} : vector<46x32xf32> to vector<16x32xf32>
    %403 = vector.extract_strided_slice %379 {offsets = [23, 0], sizes = [16, 32], strides = [1, 1]} : vector<46x32xf32> to vector<16x32xf32>
    %404 = vector.extract_strided_slice %379 {offsets = [24, 0], sizes = [16, 32], strides = [1, 1]} : vector<46x32xf32> to vector<16x32xf32>
    %405 = vector.extract_strided_slice %379 {offsets = [25, 0], sizes = [16, 32], strides = [1, 1]} : vector<46x32xf32> to vector<16x32xf32>
    %406 = vector.extract_strided_slice %379 {offsets = [26, 0], sizes = [16, 32], strides = [1, 1]} : vector<46x32xf32> to vector<16x32xf32>
    %407 = vector.extract_strided_slice %379 {offsets = [27, 0], sizes = [16, 32], strides = [1, 1]} : vector<46x32xf32> to vector<16x32xf32>
    %408 = vector.extract_strided_slice %379 {offsets = [28, 0], sizes = [16, 32], strides = [1, 1]} : vector<46x32xf32> to vector<16x32xf32>
    %409 = vector.extract_strided_slice %379 {offsets = [29, 0], sizes = [16, 32], strides = [1, 1]} : vector<46x32xf32> to vector<16x32xf32>
    %410 = vector.extract_strided_slice %379 {offsets = [30, 0], sizes = [16, 32], strides = [1, 1]} : vector<46x32xf32> to vector<16x32xf32>
    %411 = tpu.concatenate %380, %381, %382, %383, %384, %385, %386, %387, %388, %389, %390, %391, %392, %393, %394, %395 in 1 : vector<16x32xf32>, vector<16x32xf32>, vector<16x32xf32>, vector<16x32xf32>, vector<16x32xf32>, vector<16x32xf32>, vector<16x32xf32>, vector<16x32xf32>, vector<16x32xf32>, vector<16x32xf32>, vector<16x32xf32>, vector<16x32xf32>, vector<16x32xf32>, vector<16x32xf32>, vector<16x32xf32>, vector<16x32xf32> -> vector<16x512xf32>
    %412 = tpu.concatenate %396, %397, %398, %399, %400, %401, %402, %403, %404, %405, %406, %407, %408, %409, %410 in 1 : vector<16x32xf32>, vector<16x32xf32>, vector<16x32xf32>, vector<16x32xf32>, vector<16x32xf32>, vector<16x32xf32>, vector<16x32xf32>, vector<16x32xf32>, vector<16x32xf32>, vector<16x32xf32>, vector<16x32xf32>, vector<16x32xf32>, vector<16x32xf32>, vector<16x32xf32>, vector<16x32xf32> -> vector<16x480xf32>
    %413 = tpu.concatenate %411, %412 in 1 : vector<16x512xf32>, vector<16x480xf32> -> vector<16x992xf32>
    %414 = tpu.concatenate %375, %413 in 0 : vector<16x992xf32>, vector<16x992xf32> -> vector<32x992xf32>
    %c0_72 = arith.constant 0 : index
    %c0_73 = arith.constant 0 : index
    %415 = vector.load %arg17[%c0_72, %c0_73] : memref<992x96xf32, #tpu.memory_space<vmem>>, vector<992x96xf32>
    %cst_74 = arith.constant dense<0.000000e+00> : vector<32x96xf32>
    %416 = tpu.matmul %414, %415, %cst_74 {dimension_numbers = #tpu.dot_dimension_numbers<[1], [0], [0], [1], [0, 0, 1, 1], [], []>} : vector<32x992xf32>, vector<992x96xf32>, vector<32x96xf32> -> vector<32x96xf32>
    %cst_75 = arith.constant 0xFF800000 : f32
    %417 = vector.broadcast %cst_75 : f32 to vector<1x128xf32>
    %418 = vector.extract_strided_slice %335 {offsets = [0, 0], sizes = [16, 128], strides = [1, 1]} : vector<32x128xf32> to vector<16x128xf32>
    %419 = vector.extract_strided_slice %418 {offsets = [1, 0], sizes = [15, 128], strides = [1, 1]} : vector<16x128xf32> to vector<15x128xf32>
    %420 = tpu.concatenate %419, %417 in 0 : vector<15x128xf32>, vector<1x128xf32> -> vector<16x128xf32>
    %421 = vector.extract_strided_slice %418 {offsets = [0, 0], sizes = [15, 128], strides = [1, 1]} : vector<16x128xf32> to vector<15x128xf32>
    %422 = tpu.concatenate %417, %421 in 0 : vector<1x128xf32>, vector<15x128xf32> -> vector<16x128xf32>
    %423 = arith.maximumf %420, %418 : vector<16x128xf32>
    %424 = arith.maximumf %423, %422 : vector<16x128xf32>
    %425 = vector.extract_strided_slice %335 {offsets = [16, 0], sizes = [16, 128], strides = [1, 1]} : vector<32x128xf32> to vector<16x128xf32>
    %426 = vector.extract_strided_slice %425 {offsets = [1, 0], sizes = [15, 128], strides = [1, 1]} : vector<16x128xf32> to vector<15x128xf32>
    %427 = tpu.concatenate %426, %417 in 0 : vector<15x128xf32>, vector<1x128xf32> -> vector<16x128xf32>
    %428 = vector.extract_strided_slice %425 {offsets = [0, 0], sizes = [15, 128], strides = [1, 1]} : vector<16x128xf32> to vector<15x128xf32>
    %429 = tpu.concatenate %417, %428 in 0 : vector<1x128xf32>, vector<15x128xf32> -> vector<16x128xf32>
    %430 = arith.maximumf %427, %425 : vector<16x128xf32>
    %431 = arith.maximumf %430, %429 : vector<16x128xf32>
    %432 = tpu.concatenate %424, %431 in 0 : vector<16x128xf32>, vector<16x128xf32> -> vector<32x128xf32>
    %c0_76 = arith.constant 0 : index
    %c0_77 = arith.constant 0 : index
    %433 = vector.load %arg18[%c0_76, %c0_77] : memref<128x32xf32, #tpu.memory_space<vmem>>, vector<128x32xf32>
    %cst_78 = arith.constant dense<0.000000e+00> : vector<32x32xf32>
    %434 = tpu.matmul %432, %433, %cst_78 {dimension_numbers = #tpu.dot_dimension_numbers<[1], [0], [0], [1], [0, 0, 1, 1], [], []>} : vector<32x128xf32>, vector<128x32xf32>, vector<32x32xf32> -> vector<32x32xf32>
    %435 = tpu.concatenate %416, %434 in 1 : vector<32x96xf32>, vector<32x32xf32> -> vector<32x128xf32>
    %c0_79 = arith.constant 0 : index
    %c0_80 = arith.constant 0 : index
    %436 = vector.load %arg19[%c0_79, %c0_80] : memref<1x128xf32, #tpu.memory_space<vmem>>, vector<1x128xf32>
    %437 = vector.broadcast %436 : vector<1x128xf32> to vector<32x128xf32>
    %438 = arith.mulf %435, %437 : vector<32x128xf32>
    %c0_81 = arith.constant 0 : index
    %c0_82 = arith.constant 0 : index
    %439 = vector.load %arg20[%c0_81, %c0_82] : memref<1x128xf32, #tpu.memory_space<vmem>>, vector<1x128xf32>
    %440 = vector.broadcast %439 : vector<1x128xf32> to vector<32x128xf32>
    %441 = arith.addf %438, %440 : vector<32x128xf32>
    %cst_83 = arith.constant 0.000000e+00 : f32
    %442 = vector.broadcast %cst_83 : f32 to vector<32x128xf32>
    %443 = arith.maximumf %441, %442 : vector<32x128xf32>
    %c0_84 = arith.constant 0 : index
    %c0_85 = arith.constant 0 : index
    %444 = vector.load %arg21[%c0_84, %c0_85] : memref<128x32xf32, #tpu.memory_space<vmem>>, vector<128x32xf32>
    %cst_86 = arith.constant dense<0.000000e+00> : vector<32x32xf32>
    %445 = tpu.matmul %443, %444, %cst_86 {dimension_numbers = #tpu.dot_dimension_numbers<[1], [0], [0], [1], [0, 0, 1, 1], [], []>} : vector<32x128xf32>, vector<128x32xf32>, vector<32x32xf32> -> vector<32x32xf32>
    %446 = vector.extract_strided_slice %445 {offsets = [0, 0], sizes = [16, 32], strides = [1, 1]} : vector<32x32xf32> to vector<16x32xf32>
    %cst_87 = arith.constant 0.000000e+00 : f32
    %447 = vector.broadcast %cst_87 : f32 to vector<15x32xf32>
    %cst_88 = arith.constant 0.000000e+00 : f32
    %448 = vector.broadcast %cst_88 : f32 to vector<15x32xf32>
    %449 = tpu.concatenate %447, %446, %448 in 0 : vector<15x32xf32>, vector<16x32xf32>, vector<15x32xf32> -> vector<46x32xf32>
    %450 = vector.extract_strided_slice %449 {offsets = [0, 0], sizes = [16, 32], strides = [1, 1]} : vector<46x32xf32> to vector<16x32xf32>
    %451 = vector.extract_strided_slice %449 {offsets = [1, 0], sizes = [16, 32], strides = [1, 1]} : vector<46x32xf32> to vector<16x32xf32>
    %452 = vector.extract_strided_slice %449 {offsets = [2, 0], sizes = [16, 32], strides = [1, 1]} : vector<46x32xf32> to vector<16x32xf32>
    %453 = vector.extract_strided_slice %449 {offsets = [3, 0], sizes = [16, 32], strides = [1, 1]} : vector<46x32xf32> to vector<16x32xf32>
    %454 = vector.extract_strided_slice %449 {offsets = [4, 0], sizes = [16, 32], strides = [1, 1]} : vector<46x32xf32> to vector<16x32xf32>
    %455 = vector.extract_strided_slice %449 {offsets = [5, 0], sizes = [16, 32], strides = [1, 1]} : vector<46x32xf32> to vector<16x32xf32>
    %456 = vector.extract_strided_slice %449 {offsets = [6, 0], sizes = [16, 32], strides = [1, 1]} : vector<46x32xf32> to vector<16x32xf32>
    %457 = vector.extract_strided_slice %449 {offsets = [7, 0], sizes = [16, 32], strides = [1, 1]} : vector<46x32xf32> to vector<16x32xf32>
    %458 = vector.extract_strided_slice %449 {offsets = [8, 0], sizes = [16, 32], strides = [1, 1]} : vector<46x32xf32> to vector<16x32xf32>
    %459 = vector.extract_strided_slice %449 {offsets = [9, 0], sizes = [16, 32], strides = [1, 1]} : vector<46x32xf32> to vector<16x32xf32>
    %460 = vector.extract_strided_slice %449 {offsets = [10, 0], sizes = [16, 32], strides = [1, 1]} : vector<46x32xf32> to vector<16x32xf32>
    %461 = vector.extract_strided_slice %449 {offsets = [11, 0], sizes = [16, 32], strides = [1, 1]} : vector<46x32xf32> to vector<16x32xf32>
    %462 = vector.extract_strided_slice %449 {offsets = [12, 0], sizes = [16, 32], strides = [1, 1]} : vector<46x32xf32> to vector<16x32xf32>
    %463 = vector.extract_strided_slice %449 {offsets = [13, 0], sizes = [16, 32], strides = [1, 1]} : vector<46x32xf32> to vector<16x32xf32>
    %464 = vector.extract_strided_slice %449 {offsets = [14, 0], sizes = [16, 32], strides = [1, 1]} : vector<46x32xf32> to vector<16x32xf32>
    %465 = vector.extract_strided_slice %449 {offsets = [15, 0], sizes = [16, 32], strides = [1, 1]} : vector<46x32xf32> to vector<16x32xf32>
    %466 = vector.extract_strided_slice %449 {offsets = [16, 0], sizes = [16, 32], strides = [1, 1]} : vector<46x32xf32> to vector<16x32xf32>
    %467 = vector.extract_strided_slice %449 {offsets = [17, 0], sizes = [16, 32], strides = [1, 1]} : vector<46x32xf32> to vector<16x32xf32>
    %468 = vector.extract_strided_slice %449 {offsets = [18, 0], sizes = [16, 32], strides = [1, 1]} : vector<46x32xf32> to vector<16x32xf32>
    %469 = vector.extract_strided_slice %449 {offsets = [19, 0], sizes = [16, 32], strides = [1, 1]} : vector<46x32xf32> to vector<16x32xf32>
    %470 = vector.extract_strided_slice %449 {offsets = [20, 0], sizes = [16, 32], strides = [1, 1]} : vector<46x32xf32> to vector<16x32xf32>
    %471 = vector.extract_strided_slice %449 {offsets = [21, 0], sizes = [16, 32], strides = [1, 1]} : vector<46x32xf32> to vector<16x32xf32>
    %472 = vector.extract_strided_slice %449 {offsets = [22, 0], sizes = [16, 32], strides = [1, 1]} : vector<46x32xf32> to vector<16x32xf32>
    %473 = vector.extract_strided_slice %449 {offsets = [23, 0], sizes = [16, 32], strides = [1, 1]} : vector<46x32xf32> to vector<16x32xf32>
    %474 = vector.extract_strided_slice %449 {offsets = [24, 0], sizes = [16, 32], strides = [1, 1]} : vector<46x32xf32> to vector<16x32xf32>
    %475 = vector.extract_strided_slice %449 {offsets = [25, 0], sizes = [16, 32], strides = [1, 1]} : vector<46x32xf32> to vector<16x32xf32>
    %476 = vector.extract_strided_slice %449 {offsets = [26, 0], sizes = [16, 32], strides = [1, 1]} : vector<46x32xf32> to vector<16x32xf32>
    %477 = vector.extract_strided_slice %449 {offsets = [27, 0], sizes = [16, 32], strides = [1, 1]} : vector<46x32xf32> to vector<16x32xf32>
    %478 = vector.extract_strided_slice %449 {offsets = [28, 0], sizes = [16, 32], strides = [1, 1]} : vector<46x32xf32> to vector<16x32xf32>
    %479 = vector.extract_strided_slice %449 {offsets = [29, 0], sizes = [16, 32], strides = [1, 1]} : vector<46x32xf32> to vector<16x32xf32>
    %480 = vector.extract_strided_slice %449 {offsets = [30, 0], sizes = [16, 32], strides = [1, 1]} : vector<46x32xf32> to vector<16x32xf32>
    %481 = tpu.concatenate %450, %451, %452, %453, %454, %455, %456, %457, %458, %459, %460, %461, %462, %463, %464, %465 in 1 : vector<16x32xf32>, vector<16x32xf32>, vector<16x32xf32>, vector<16x32xf32>, vector<16x32xf32>, vector<16x32xf32>, vector<16x32xf32>, vector<16x32xf32>, vector<16x32xf32>, vector<16x32xf32>, vector<16x32xf32>, vector<16x32xf32>, vector<16x32xf32>, vector<16x32xf32>, vector<16x32xf32>, vector<16x32xf32> -> vector<16x512xf32>
    %482 = tpu.concatenate %466, %467, %468, %469, %470, %471, %472, %473, %474, %475, %476, %477, %478, %479, %480 in 1 : vector<16x32xf32>, vector<16x32xf32>, vector<16x32xf32>, vector<16x32xf32>, vector<16x32xf32>, vector<16x32xf32>, vector<16x32xf32>, vector<16x32xf32>, vector<16x32xf32>, vector<16x32xf32>, vector<16x32xf32>, vector<16x32xf32>, vector<16x32xf32>, vector<16x32xf32>, vector<16x32xf32> -> vector<16x480xf32>
    %483 = tpu.concatenate %481, %482 in 1 : vector<16x512xf32>, vector<16x480xf32> -> vector<16x992xf32>
    %484 = vector.extract_strided_slice %445 {offsets = [16, 0], sizes = [16, 32], strides = [1, 1]} : vector<32x32xf32> to vector<16x32xf32>
    %cst_89 = arith.constant 0.000000e+00 : f32
    %485 = vector.broadcast %cst_89 : f32 to vector<15x32xf32>
    %cst_90 = arith.constant 0.000000e+00 : f32
    %486 = vector.broadcast %cst_90 : f32 to vector<15x32xf32>
    %487 = tpu.concatenate %485, %484, %486 in 0 : vector<15x32xf32>, vector<16x32xf32>, vector<15x32xf32> -> vector<46x32xf32>
    %488 = vector.extract_strided_slice %487 {offsets = [0, 0], sizes = [16, 32], strides = [1, 1]} : vector<46x32xf32> to vector<16x32xf32>
    %489 = vector.extract_strided_slice %487 {offsets = [1, 0], sizes = [16, 32], strides = [1, 1]} : vector<46x32xf32> to vector<16x32xf32>
    %490 = vector.extract_strided_slice %487 {offsets = [2, 0], sizes = [16, 32], strides = [1, 1]} : vector<46x32xf32> to vector<16x32xf32>
    %491 = vector.extract_strided_slice %487 {offsets = [3, 0], sizes = [16, 32], strides = [1, 1]} : vector<46x32xf32> to vector<16x32xf32>
    %492 = vector.extract_strided_slice %487 {offsets = [4, 0], sizes = [16, 32], strides = [1, 1]} : vector<46x32xf32> to vector<16x32xf32>
    %493 = vector.extract_strided_slice %487 {offsets = [5, 0], sizes = [16, 32], strides = [1, 1]} : vector<46x32xf32> to vector<16x32xf32>
    %494 = vector.extract_strided_slice %487 {offsets = [6, 0], sizes = [16, 32], strides = [1, 1]} : vector<46x32xf32> to vector<16x32xf32>
    %495 = vector.extract_strided_slice %487 {offsets = [7, 0], sizes = [16, 32], strides = [1, 1]} : vector<46x32xf32> to vector<16x32xf32>
    %496 = vector.extract_strided_slice %487 {offsets = [8, 0], sizes = [16, 32], strides = [1, 1]} : vector<46x32xf32> to vector<16x32xf32>
    %497 = vector.extract_strided_slice %487 {offsets = [9, 0], sizes = [16, 32], strides = [1, 1]} : vector<46x32xf32> to vector<16x32xf32>
    %498 = vector.extract_strided_slice %487 {offsets = [10, 0], sizes = [16, 32], strides = [1, 1]} : vector<46x32xf32> to vector<16x32xf32>
    %499 = vector.extract_strided_slice %487 {offsets = [11, 0], sizes = [16, 32], strides = [1, 1]} : vector<46x32xf32> to vector<16x32xf32>
    %500 = vector.extract_strided_slice %487 {offsets = [12, 0], sizes = [16, 32], strides = [1, 1]} : vector<46x32xf32> to vector<16x32xf32>
    %501 = vector.extract_strided_slice %487 {offsets = [13, 0], sizes = [16, 32], strides = [1, 1]} : vector<46x32xf32> to vector<16x32xf32>
    %502 = vector.extract_strided_slice %487 {offsets = [14, 0], sizes = [16, 32], strides = [1, 1]} : vector<46x32xf32> to vector<16x32xf32>
    %503 = vector.extract_strided_slice %487 {offsets = [15, 0], sizes = [16, 32], strides = [1, 1]} : vector<46x32xf32> to vector<16x32xf32>
    %504 = vector.extract_strided_slice %487 {offsets = [16, 0], sizes = [16, 32], strides = [1, 1]} : vector<46x32xf32> to vector<16x32xf32>
    %505 = vector.extract_strided_slice %487 {offsets = [17, 0], sizes = [16, 32], strides = [1, 1]} : vector<46x32xf32> to vector<16x32xf32>
    %506 = vector.extract_strided_slice %487 {offsets = [18, 0], sizes = [16, 32], strides = [1, 1]} : vector<46x32xf32> to vector<16x32xf32>
    %507 = vector.extract_strided_slice %487 {offsets = [19, 0], sizes = [16, 32], strides = [1, 1]} : vector<46x32xf32> to vector<16x32xf32>
    %508 = vector.extract_strided_slice %487 {offsets = [20, 0], sizes = [16, 32], strides = [1, 1]} : vector<46x32xf32> to vector<16x32xf32>
    %509 = vector.extract_strided_slice %487 {offsets = [21, 0], sizes = [16, 32], strides = [1, 1]} : vector<46x32xf32> to vector<16x32xf32>
    %510 = vector.extract_strided_slice %487 {offsets = [22, 0], sizes = [16, 32], strides = [1, 1]} : vector<46x32xf32> to vector<16x32xf32>
    %511 = vector.extract_strided_slice %487 {offsets = [23, 0], sizes = [16, 32], strides = [1, 1]} : vector<46x32xf32> to vector<16x32xf32>
    %512 = vector.extract_strided_slice %487 {offsets = [24, 0], sizes = [16, 32], strides = [1, 1]} : vector<46x32xf32> to vector<16x32xf32>
    %513 = vector.extract_strided_slice %487 {offsets = [25, 0], sizes = [16, 32], strides = [1, 1]} : vector<46x32xf32> to vector<16x32xf32>
    %514 = vector.extract_strided_slice %487 {offsets = [26, 0], sizes = [16, 32], strides = [1, 1]} : vector<46x32xf32> to vector<16x32xf32>
    %515 = vector.extract_strided_slice %487 {offsets = [27, 0], sizes = [16, 32], strides = [1, 1]} : vector<46x32xf32> to vector<16x32xf32>
    %516 = vector.extract_strided_slice %487 {offsets = [28, 0], sizes = [16, 32], strides = [1, 1]} : vector<46x32xf32> to vector<16x32xf32>
    %517 = vector.extract_strided_slice %487 {offsets = [29, 0], sizes = [16, 32], strides = [1, 1]} : vector<46x32xf32> to vector<16x32xf32>
    %518 = vector.extract_strided_slice %487 {offsets = [30, 0], sizes = [16, 32], strides = [1, 1]} : vector<46x32xf32> to vector<16x32xf32>
    %519 = tpu.concatenate %488, %489, %490, %491, %492, %493, %494, %495, %496, %497, %498, %499, %500, %501, %502, %503 in 1 : vector<16x32xf32>, vector<16x32xf32>, vector<16x32xf32>, vector<16x32xf32>, vector<16x32xf32>, vector<16x32xf32>, vector<16x32xf32>, vector<16x32xf32>, vector<16x32xf32>, vector<16x32xf32>, vector<16x32xf32>, vector<16x32xf32>, vector<16x32xf32>, vector<16x32xf32>, vector<16x32xf32>, vector<16x32xf32> -> vector<16x512xf32>
    %520 = tpu.concatenate %504, %505, %506, %507, %508, %509, %510, %511, %512, %513, %514, %515, %516, %517, %518 in 1 : vector<16x32xf32>, vector<16x32xf32>, vector<16x32xf32>, vector<16x32xf32>, vector<16x32xf32>, vector<16x32xf32>, vector<16x32xf32>, vector<16x32xf32>, vector<16x32xf32>, vector<16x32xf32>, vector<16x32xf32>, vector<16x32xf32>, vector<16x32xf32>, vector<16x32xf32>, vector<16x32xf32> -> vector<16x480xf32>
    %521 = tpu.concatenate %519, %520 in 1 : vector<16x512xf32>, vector<16x480xf32> -> vector<16x992xf32>
    %522 = tpu.concatenate %483, %521 in 0 : vector<16x992xf32>, vector<16x992xf32> -> vector<32x992xf32>
    %c0_91 = arith.constant 0 : index
    %c0_92 = arith.constant 0 : index
    %523 = vector.load %arg22[%c0_91, %c0_92] : memref<992x96xf32, #tpu.memory_space<vmem>>, vector<992x96xf32>
    %cst_93 = arith.constant dense<0.000000e+00> : vector<32x96xf32>
    %524 = tpu.matmul %522, %523, %cst_93 {dimension_numbers = #tpu.dot_dimension_numbers<[1], [0], [0], [1], [0, 0, 1, 1], [], []>} : vector<32x992xf32>, vector<992x96xf32>, vector<32x96xf32> -> vector<32x96xf32>
    %cst_94 = arith.constant 0xFF800000 : f32
    %525 = vector.broadcast %cst_94 : f32 to vector<1x128xf32>
    %526 = vector.extract_strided_slice %443 {offsets = [0, 0], sizes = [16, 128], strides = [1, 1]} : vector<32x128xf32> to vector<16x128xf32>
    %527 = vector.extract_strided_slice %526 {offsets = [1, 0], sizes = [15, 128], strides = [1, 1]} : vector<16x128xf32> to vector<15x128xf32>
    %528 = tpu.concatenate %527, %525 in 0 : vector<15x128xf32>, vector<1x128xf32> -> vector<16x128xf32>
    %529 = vector.extract_strided_slice %526 {offsets = [0, 0], sizes = [15, 128], strides = [1, 1]} : vector<16x128xf32> to vector<15x128xf32>
    %530 = tpu.concatenate %525, %529 in 0 : vector<1x128xf32>, vector<15x128xf32> -> vector<16x128xf32>
    %531 = arith.maximumf %528, %526 : vector<16x128xf32>
    %532 = arith.maximumf %531, %530 : vector<16x128xf32>
    %533 = vector.extract_strided_slice %443 {offsets = [16, 0], sizes = [16, 128], strides = [1, 1]} : vector<32x128xf32> to vector<16x128xf32>
    %534 = vector.extract_strided_slice %533 {offsets = [1, 0], sizes = [15, 128], strides = [1, 1]} : vector<16x128xf32> to vector<15x128xf32>
    %535 = tpu.concatenate %534, %525 in 0 : vector<15x128xf32>, vector<1x128xf32> -> vector<16x128xf32>
    %536 = vector.extract_strided_slice %533 {offsets = [0, 0], sizes = [15, 128], strides = [1, 1]} : vector<16x128xf32> to vector<15x128xf32>
    %537 = tpu.concatenate %525, %536 in 0 : vector<1x128xf32>, vector<15x128xf32> -> vector<16x128xf32>
    %538 = arith.maximumf %535, %533 : vector<16x128xf32>
    %539 = arith.maximumf %538, %537 : vector<16x128xf32>
    %540 = tpu.concatenate %532, %539 in 0 : vector<16x128xf32>, vector<16x128xf32> -> vector<32x128xf32>
    %c0_95 = arith.constant 0 : index
    %c0_96 = arith.constant 0 : index
    %541 = vector.load %arg23[%c0_95, %c0_96] : memref<128x32xf32, #tpu.memory_space<vmem>>, vector<128x32xf32>
    %cst_97 = arith.constant dense<0.000000e+00> : vector<32x32xf32>
    %542 = tpu.matmul %540, %541, %cst_97 {dimension_numbers = #tpu.dot_dimension_numbers<[1], [0], [0], [1], [0, 0, 1, 1], [], []>} : vector<32x128xf32>, vector<128x32xf32>, vector<32x32xf32> -> vector<32x32xf32>
    %543 = tpu.concatenate %524, %542 in 1 : vector<32x96xf32>, vector<32x32xf32> -> vector<32x128xf32>
    %c0_98 = arith.constant 0 : index
    %c0_99 = arith.constant 0 : index
    %544 = vector.load %arg24[%c0_98, %c0_99] : memref<1x128xf32, #tpu.memory_space<vmem>>, vector<1x128xf32>
    %545 = vector.broadcast %544 : vector<1x128xf32> to vector<32x128xf32>
    %546 = arith.mulf %543, %545 : vector<32x128xf32>
    %c0_100 = arith.constant 0 : index
    %c0_101 = arith.constant 0 : index
    %547 = vector.load %arg25[%c0_100, %c0_101] : memref<1x128xf32, #tpu.memory_space<vmem>>, vector<1x128xf32>
    %548 = vector.broadcast %547 : vector<1x128xf32> to vector<32x128xf32>
    %549 = arith.addf %546, %548 : vector<32x128xf32>
    %cst_102 = arith.constant 0.000000e+00 : f32
    %550 = vector.broadcast %cst_102 : f32 to vector<32x128xf32>
    %551 = arith.maximumf %549, %550 : vector<32x128xf32>
    %c0_103 = arith.constant 0 : index
    %c0_104 = arith.constant 0 : index
    %552 = vector.load %arg26[%c0_103, %c0_104] : memref<128x32xf32, #tpu.memory_space<vmem>>, vector<128x32xf32>
    %cst_105 = arith.constant dense<0.000000e+00> : vector<32x32xf32>
    %553 = tpu.matmul %551, %552, %cst_105 {dimension_numbers = #tpu.dot_dimension_numbers<[1], [0], [0], [1], [0, 0, 1, 1], [], []>} : vector<32x128xf32>, vector<128x32xf32>, vector<32x32xf32> -> vector<32x32xf32>
    %554 = vector.extract_strided_slice %553 {offsets = [0, 0], sizes = [16, 32], strides = [1, 1]} : vector<32x32xf32> to vector<16x32xf32>
    %cst_106 = arith.constant 0.000000e+00 : f32
    %555 = vector.broadcast %cst_106 : f32 to vector<15x32xf32>
    %cst_107 = arith.constant 0.000000e+00 : f32
    %556 = vector.broadcast %cst_107 : f32 to vector<15x32xf32>
    %557 = tpu.concatenate %555, %554, %556 in 0 : vector<15x32xf32>, vector<16x32xf32>, vector<15x32xf32> -> vector<46x32xf32>
    %558 = vector.extract_strided_slice %557 {offsets = [0, 0], sizes = [16, 32], strides = [1, 1]} : vector<46x32xf32> to vector<16x32xf32>
    %559 = vector.extract_strided_slice %557 {offsets = [1, 0], sizes = [16, 32], strides = [1, 1]} : vector<46x32xf32> to vector<16x32xf32>
    %560 = vector.extract_strided_slice %557 {offsets = [2, 0], sizes = [16, 32], strides = [1, 1]} : vector<46x32xf32> to vector<16x32xf32>
    %561 = vector.extract_strided_slice %557 {offsets = [3, 0], sizes = [16, 32], strides = [1, 1]} : vector<46x32xf32> to vector<16x32xf32>
    %562 = vector.extract_strided_slice %557 {offsets = [4, 0], sizes = [16, 32], strides = [1, 1]} : vector<46x32xf32> to vector<16x32xf32>
    %563 = vector.extract_strided_slice %557 {offsets = [5, 0], sizes = [16, 32], strides = [1, 1]} : vector<46x32xf32> to vector<16x32xf32>
    %564 = vector.extract_strided_slice %557 {offsets = [6, 0], sizes = [16, 32], strides = [1, 1]} : vector<46x32xf32> to vector<16x32xf32>
    %565 = vector.extract_strided_slice %557 {offsets = [7, 0], sizes = [16, 32], strides = [1, 1]} : vector<46x32xf32> to vector<16x32xf32>
    %566 = vector.extract_strided_slice %557 {offsets = [8, 0], sizes = [16, 32], strides = [1, 1]} : vector<46x32xf32> to vector<16x32xf32>
    %567 = vector.extract_strided_slice %557 {offsets = [9, 0], sizes = [16, 32], strides = [1, 1]} : vector<46x32xf32> to vector<16x32xf32>
    %568 = vector.extract_strided_slice %557 {offsets = [10, 0], sizes = [16, 32], strides = [1, 1]} : vector<46x32xf32> to vector<16x32xf32>
    %569 = vector.extract_strided_slice %557 {offsets = [11, 0], sizes = [16, 32], strides = [1, 1]} : vector<46x32xf32> to vector<16x32xf32>
    %570 = vector.extract_strided_slice %557 {offsets = [12, 0], sizes = [16, 32], strides = [1, 1]} : vector<46x32xf32> to vector<16x32xf32>
    %571 = vector.extract_strided_slice %557 {offsets = [13, 0], sizes = [16, 32], strides = [1, 1]} : vector<46x32xf32> to vector<16x32xf32>
    %572 = vector.extract_strided_slice %557 {offsets = [14, 0], sizes = [16, 32], strides = [1, 1]} : vector<46x32xf32> to vector<16x32xf32>
    %573 = vector.extract_strided_slice %557 {offsets = [15, 0], sizes = [16, 32], strides = [1, 1]} : vector<46x32xf32> to vector<16x32xf32>
    %574 = vector.extract_strided_slice %557 {offsets = [16, 0], sizes = [16, 32], strides = [1, 1]} : vector<46x32xf32> to vector<16x32xf32>
    %575 = vector.extract_strided_slice %557 {offsets = [17, 0], sizes = [16, 32], strides = [1, 1]} : vector<46x32xf32> to vector<16x32xf32>
    %576 = vector.extract_strided_slice %557 {offsets = [18, 0], sizes = [16, 32], strides = [1, 1]} : vector<46x32xf32> to vector<16x32xf32>
    %577 = vector.extract_strided_slice %557 {offsets = [19, 0], sizes = [16, 32], strides = [1, 1]} : vector<46x32xf32> to vector<16x32xf32>
    %578 = vector.extract_strided_slice %557 {offsets = [20, 0], sizes = [16, 32], strides = [1, 1]} : vector<46x32xf32> to vector<16x32xf32>
    %579 = vector.extract_strided_slice %557 {offsets = [21, 0], sizes = [16, 32], strides = [1, 1]} : vector<46x32xf32> to vector<16x32xf32>
    %580 = vector.extract_strided_slice %557 {offsets = [22, 0], sizes = [16, 32], strides = [1, 1]} : vector<46x32xf32> to vector<16x32xf32>
    %581 = vector.extract_strided_slice %557 {offsets = [23, 0], sizes = [16, 32], strides = [1, 1]} : vector<46x32xf32> to vector<16x32xf32>
    %582 = vector.extract_strided_slice %557 {offsets = [24, 0], sizes = [16, 32], strides = [1, 1]} : vector<46x32xf32> to vector<16x32xf32>
    %583 = vector.extract_strided_slice %557 {offsets = [25, 0], sizes = [16, 32], strides = [1, 1]} : vector<46x32xf32> to vector<16x32xf32>
    %584 = vector.extract_strided_slice %557 {offsets = [26, 0], sizes = [16, 32], strides = [1, 1]} : vector<46x32xf32> to vector<16x32xf32>
    %585 = vector.extract_strided_slice %557 {offsets = [27, 0], sizes = [16, 32], strides = [1, 1]} : vector<46x32xf32> to vector<16x32xf32>
    %586 = vector.extract_strided_slice %557 {offsets = [28, 0], sizes = [16, 32], strides = [1, 1]} : vector<46x32xf32> to vector<16x32xf32>
    %587 = vector.extract_strided_slice %557 {offsets = [29, 0], sizes = [16, 32], strides = [1, 1]} : vector<46x32xf32> to vector<16x32xf32>
    %588 = vector.extract_strided_slice %557 {offsets = [30, 0], sizes = [16, 32], strides = [1, 1]} : vector<46x32xf32> to vector<16x32xf32>
    %589 = tpu.concatenate %558, %559, %560, %561, %562, %563, %564, %565, %566, %567, %568, %569, %570, %571, %572, %573 in 1 : vector<16x32xf32>, vector<16x32xf32>, vector<16x32xf32>, vector<16x32xf32>, vector<16x32xf32>, vector<16x32xf32>, vector<16x32xf32>, vector<16x32xf32>, vector<16x32xf32>, vector<16x32xf32>, vector<16x32xf32>, vector<16x32xf32>, vector<16x32xf32>, vector<16x32xf32>, vector<16x32xf32>, vector<16x32xf32> -> vector<16x512xf32>
    %590 = tpu.concatenate %574, %575, %576, %577, %578, %579, %580, %581, %582, %583, %584, %585, %586, %587, %588 in 1 : vector<16x32xf32>, vector<16x32xf32>, vector<16x32xf32>, vector<16x32xf32>, vector<16x32xf32>, vector<16x32xf32>, vector<16x32xf32>, vector<16x32xf32>, vector<16x32xf32>, vector<16x32xf32>, vector<16x32xf32>, vector<16x32xf32>, vector<16x32xf32>, vector<16x32xf32>, vector<16x32xf32> -> vector<16x480xf32>
    %591 = tpu.concatenate %589, %590 in 1 : vector<16x512xf32>, vector<16x480xf32> -> vector<16x992xf32>
    %592 = vector.extract_strided_slice %553 {offsets = [16, 0], sizes = [16, 32], strides = [1, 1]} : vector<32x32xf32> to vector<16x32xf32>
    %cst_108 = arith.constant 0.000000e+00 : f32
    %593 = vector.broadcast %cst_108 : f32 to vector<15x32xf32>
    %cst_109 = arith.constant 0.000000e+00 : f32
    %594 = vector.broadcast %cst_109 : f32 to vector<15x32xf32>
    %595 = tpu.concatenate %593, %592, %594 in 0 : vector<15x32xf32>, vector<16x32xf32>, vector<15x32xf32> -> vector<46x32xf32>
    %596 = vector.extract_strided_slice %595 {offsets = [0, 0], sizes = [16, 32], strides = [1, 1]} : vector<46x32xf32> to vector<16x32xf32>
    %597 = vector.extract_strided_slice %595 {offsets = [1, 0], sizes = [16, 32], strides = [1, 1]} : vector<46x32xf32> to vector<16x32xf32>
    %598 = vector.extract_strided_slice %595 {offsets = [2, 0], sizes = [16, 32], strides = [1, 1]} : vector<46x32xf32> to vector<16x32xf32>
    %599 = vector.extract_strided_slice %595 {offsets = [3, 0], sizes = [16, 32], strides = [1, 1]} : vector<46x32xf32> to vector<16x32xf32>
    %600 = vector.extract_strided_slice %595 {offsets = [4, 0], sizes = [16, 32], strides = [1, 1]} : vector<46x32xf32> to vector<16x32xf32>
    %601 = vector.extract_strided_slice %595 {offsets = [5, 0], sizes = [16, 32], strides = [1, 1]} : vector<46x32xf32> to vector<16x32xf32>
    %602 = vector.extract_strided_slice %595 {offsets = [6, 0], sizes = [16, 32], strides = [1, 1]} : vector<46x32xf32> to vector<16x32xf32>
    %603 = vector.extract_strided_slice %595 {offsets = [7, 0], sizes = [16, 32], strides = [1, 1]} : vector<46x32xf32> to vector<16x32xf32>
    %604 = vector.extract_strided_slice %595 {offsets = [8, 0], sizes = [16, 32], strides = [1, 1]} : vector<46x32xf32> to vector<16x32xf32>
    %605 = vector.extract_strided_slice %595 {offsets = [9, 0], sizes = [16, 32], strides = [1, 1]} : vector<46x32xf32> to vector<16x32xf32>
    %606 = vector.extract_strided_slice %595 {offsets = [10, 0], sizes = [16, 32], strides = [1, 1]} : vector<46x32xf32> to vector<16x32xf32>
    %607 = vector.extract_strided_slice %595 {offsets = [11, 0], sizes = [16, 32], strides = [1, 1]} : vector<46x32xf32> to vector<16x32xf32>
    %608 = vector.extract_strided_slice %595 {offsets = [12, 0], sizes = [16, 32], strides = [1, 1]} : vector<46x32xf32> to vector<16x32xf32>
    %609 = vector.extract_strided_slice %595 {offsets = [13, 0], sizes = [16, 32], strides = [1, 1]} : vector<46x32xf32> to vector<16x32xf32>
    %610 = vector.extract_strided_slice %595 {offsets = [14, 0], sizes = [16, 32], strides = [1, 1]} : vector<46x32xf32> to vector<16x32xf32>
    %611 = vector.extract_strided_slice %595 {offsets = [15, 0], sizes = [16, 32], strides = [1, 1]} : vector<46x32xf32> to vector<16x32xf32>
    %612 = vector.extract_strided_slice %595 {offsets = [16, 0], sizes = [16, 32], strides = [1, 1]} : vector<46x32xf32> to vector<16x32xf32>
    %613 = vector.extract_strided_slice %595 {offsets = [17, 0], sizes = [16, 32], strides = [1, 1]} : vector<46x32xf32> to vector<16x32xf32>
    %614 = vector.extract_strided_slice %595 {offsets = [18, 0], sizes = [16, 32], strides = [1, 1]} : vector<46x32xf32> to vector<16x32xf32>
    %615 = vector.extract_strided_slice %595 {offsets = [19, 0], sizes = [16, 32], strides = [1, 1]} : vector<46x32xf32> to vector<16x32xf32>
    %616 = vector.extract_strided_slice %595 {offsets = [20, 0], sizes = [16, 32], strides = [1, 1]} : vector<46x32xf32> to vector<16x32xf32>
    %617 = vector.extract_strided_slice %595 {offsets = [21, 0], sizes = [16, 32], strides = [1, 1]} : vector<46x32xf32> to vector<16x32xf32>
    %618 = vector.extract_strided_slice %595 {offsets = [22, 0], sizes = [16, 32], strides = [1, 1]} : vector<46x32xf32> to vector<16x32xf32>
    %619 = vector.extract_strided_slice %595 {offsets = [23, 0], sizes = [16, 32], strides = [1, 1]} : vector<46x32xf32> to vector<16x32xf32>
    %620 = vector.extract_strided_slice %595 {offsets = [24, 0], sizes = [16, 32], strides = [1, 1]} : vector<46x32xf32> to vector<16x32xf32>
    %621 = vector.extract_strided_slice %595 {offsets = [25, 0], sizes = [16, 32], strides = [1, 1]} : vector<46x32xf32> to vector<16x32xf32>
    %622 = vector.extract_strided_slice %595 {offsets = [26, 0], sizes = [16, 32], strides = [1, 1]} : vector<46x32xf32> to vector<16x32xf32>
    %623 = vector.extract_strided_slice %595 {offsets = [27, 0], sizes = [16, 32], strides = [1, 1]} : vector<46x32xf32> to vector<16x32xf32>
    %624 = vector.extract_strided_slice %595 {offsets = [28, 0], sizes = [16, 32], strides = [1, 1]} : vector<46x32xf32> to vector<16x32xf32>
    %625 = vector.extract_strided_slice %595 {offsets = [29, 0], sizes = [16, 32], strides = [1, 1]} : vector<46x32xf32> to vector<16x32xf32>
    %626 = vector.extract_strided_slice %595 {offsets = [30, 0], sizes = [16, 32], strides = [1, 1]} : vector<46x32xf32> to vector<16x32xf32>
    %627 = tpu.concatenate %596, %597, %598, %599, %600, %601, %602, %603, %604, %605, %606, %607, %608, %609, %610, %611 in 1 : vector<16x32xf32>, vector<16x32xf32>, vector<16x32xf32>, vector<16x32xf32>, vector<16x32xf32>, vector<16x32xf32>, vector<16x32xf32>, vector<16x32xf32>, vector<16x32xf32>, vector<16x32xf32>, vector<16x32xf32>, vector<16x32xf32>, vector<16x32xf32>, vector<16x32xf32>, vector<16x32xf32>, vector<16x32xf32> -> vector<16x512xf32>
    %628 = tpu.concatenate %612, %613, %614, %615, %616, %617, %618, %619, %620, %621, %622, %623, %624, %625, %626 in 1 : vector<16x32xf32>, vector<16x32xf32>, vector<16x32xf32>, vector<16x32xf32>, vector<16x32xf32>, vector<16x32xf32>, vector<16x32xf32>, vector<16x32xf32>, vector<16x32xf32>, vector<16x32xf32>, vector<16x32xf32>, vector<16x32xf32>, vector<16x32xf32>, vector<16x32xf32>, vector<16x32xf32> -> vector<16x480xf32>
    %629 = tpu.concatenate %627, %628 in 1 : vector<16x512xf32>, vector<16x480xf32> -> vector<16x992xf32>
    %630 = tpu.concatenate %591, %629 in 0 : vector<16x992xf32>, vector<16x992xf32> -> vector<32x992xf32>
    %c0_110 = arith.constant 0 : index
    %c0_111 = arith.constant 0 : index
    %631 = vector.load %arg27[%c0_110, %c0_111] : memref<992x96xf32, #tpu.memory_space<vmem>>, vector<992x96xf32>
    %cst_112 = arith.constant dense<0.000000e+00> : vector<32x96xf32>
    %632 = tpu.matmul %630, %631, %cst_112 {dimension_numbers = #tpu.dot_dimension_numbers<[1], [0], [0], [1], [0, 0, 1, 1], [], []>} : vector<32x992xf32>, vector<992x96xf32>, vector<32x96xf32> -> vector<32x96xf32>
    %cst_113 = arith.constant 0xFF800000 : f32
    %633 = vector.broadcast %cst_113 : f32 to vector<1x128xf32>
    %634 = vector.extract_strided_slice %551 {offsets = [0, 0], sizes = [16, 128], strides = [1, 1]} : vector<32x128xf32> to vector<16x128xf32>
    %635 = vector.extract_strided_slice %634 {offsets = [1, 0], sizes = [15, 128], strides = [1, 1]} : vector<16x128xf32> to vector<15x128xf32>
    %636 = tpu.concatenate %635, %633 in 0 : vector<15x128xf32>, vector<1x128xf32> -> vector<16x128xf32>
    %637 = vector.extract_strided_slice %634 {offsets = [0, 0], sizes = [15, 128], strides = [1, 1]} : vector<16x128xf32> to vector<15x128xf32>
    %638 = tpu.concatenate %633, %637 in 0 : vector<1x128xf32>, vector<15x128xf32> -> vector<16x128xf32>
    %639 = arith.maximumf %636, %634 : vector<16x128xf32>
    %640 = arith.maximumf %639, %638 : vector<16x128xf32>
    %641 = vector.extract_strided_slice %551 {offsets = [16, 0], sizes = [16, 128], strides = [1, 1]} : vector<32x128xf32> to vector<16x128xf32>
    %642 = vector.extract_strided_slice %641 {offsets = [1, 0], sizes = [15, 128], strides = [1, 1]} : vector<16x128xf32> to vector<15x128xf32>
    %643 = tpu.concatenate %642, %633 in 0 : vector<15x128xf32>, vector<1x128xf32> -> vector<16x128xf32>
    %644 = vector.extract_strided_slice %641 {offsets = [0, 0], sizes = [15, 128], strides = [1, 1]} : vector<16x128xf32> to vector<15x128xf32>
    %645 = tpu.concatenate %633, %644 in 0 : vector<1x128xf32>, vector<15x128xf32> -> vector<16x128xf32>
    %646 = arith.maximumf %643, %641 : vector<16x128xf32>
    %647 = arith.maximumf %646, %645 : vector<16x128xf32>
    %648 = tpu.concatenate %640, %647 in 0 : vector<16x128xf32>, vector<16x128xf32> -> vector<32x128xf32>
    %c0_114 = arith.constant 0 : index
    %c0_115 = arith.constant 0 : index
    %649 = vector.load %arg28[%c0_114, %c0_115] : memref<128x32xf32, #tpu.memory_space<vmem>>, vector<128x32xf32>
    %cst_116 = arith.constant dense<0.000000e+00> : vector<32x32xf32>
    %650 = tpu.matmul %648, %649, %cst_116 {dimension_numbers = #tpu.dot_dimension_numbers<[1], [0], [0], [1], [0, 0, 1, 1], [], []>} : vector<32x128xf32>, vector<128x32xf32>, vector<32x32xf32> -> vector<32x32xf32>
    %651 = tpu.concatenate %632, %650 in 1 : vector<32x96xf32>, vector<32x32xf32> -> vector<32x128xf32>
    %c0_117 = arith.constant 0 : index
    %c0_118 = arith.constant 0 : index
    %652 = vector.load %arg29[%c0_117, %c0_118] : memref<1x128xf32, #tpu.memory_space<vmem>>, vector<1x128xf32>
    %653 = vector.broadcast %652 : vector<1x128xf32> to vector<32x128xf32>
    %654 = arith.mulf %651, %653 : vector<32x128xf32>
    %c0_119 = arith.constant 0 : index
    %c0_120 = arith.constant 0 : index
    %655 = vector.load %arg30[%c0_119, %c0_120] : memref<1x128xf32, #tpu.memory_space<vmem>>, vector<1x128xf32>
    %656 = vector.broadcast %655 : vector<1x128xf32> to vector<32x128xf32>
    %657 = arith.addf %654, %656 : vector<32x128xf32>
    %cst_121 = arith.constant 0.000000e+00 : f32
    %658 = vector.broadcast %cst_121 : f32 to vector<32x128xf32>
    %659 = arith.maximumf %657, %658 : vector<32x128xf32>
    %c0_122 = arith.constant 0 : index
    %c0_123 = arith.constant 0 : index
    %660 = vector.load %arg34[%c0_122, %c0_123] : memref<1x128xf32, #tpu.memory_space<vmem>>, vector<1x128xf32>
    %661 = vector.broadcast %660 : vector<1x128xf32> to vector<32x128xf32>
    %662 = arith.mulf %335, %661 : vector<32x128xf32>
    %c0_124 = arith.constant 0 : index
    %c0_125 = arith.constant 0 : index
    %663 = vector.load %arg35[%c0_124, %c0_125] : memref<1x128xf32, #tpu.memory_space<vmem>>, vector<1x128xf32>
    %664 = vector.broadcast %663 : vector<1x128xf32> to vector<32x128xf32>
    %665 = arith.addf %662, %664 : vector<32x128xf32>
    %666 = arith.addf %659, %665 : vector<32x128xf32>
    %cst_126 = arith.constant 0.000000e+00 : f32
    %667 = vector.broadcast %cst_126 : f32 to vector<32x128xf32>
    %668 = arith.maximumf %666, %667 : vector<32x128xf32>
    %669 = vector.extract_strided_slice %668 {offsets = [0, 0], sizes = [16, 128], strides = [1, 1]} : vector<32x128xf32> to vector<16x128xf32>
    %cst_127 = arith.constant dense<0.000000e+00> : vector<128xf32>
    %670 = vector.multi_reduction <add>, %669, %cst_127 [0] : vector<16x128xf32> to vector<128xf32>
    %671 = vector.shape_cast %670 : vector<128xf32> to vector<1x128xf32>
    %cst_128 = arith.constant 1.600000e+01 : f32
    %672 = vector.broadcast %cst_128 : f32 to vector<1x128xf32>
    %673 = arith.divf %671, %672 : vector<1x128xf32>
    %674 = vector.extract_strided_slice %668 {offsets = [16, 0], sizes = [16, 128], strides = [1, 1]} : vector<32x128xf32> to vector<16x128xf32>
    %cst_129 = arith.constant dense<0.000000e+00> : vector<128xf32>
    %675 = vector.multi_reduction <add>, %674, %cst_129 [0] : vector<16x128xf32> to vector<128xf32>
    %676 = vector.shape_cast %675 : vector<128xf32> to vector<1x128xf32>
    %cst_130 = arith.constant 1.600000e+01 : f32
    %677 = vector.broadcast %cst_130 : f32 to vector<1x128xf32>
    %678 = arith.divf %676, %677 : vector<1x128xf32>
    %679 = tpu.concatenate %673, %678 in 0 : vector<1x128xf32>, vector<1x128xf32> -> vector<2x128xf32>
    %c0_131 = arith.constant 0 : index
    %c0_132 = arith.constant 0 : index
    %680 = vector.load %arg36[%c0_131, %c0_132] : memref<128x5xf32, #tpu.memory_space<vmem>>, vector<128x5xf32>
    %cst_133 = arith.constant dense<0.000000e+00> : vector<2x5xf32>
    %681 = tpu.matmul %679, %680, %cst_133 {dimension_numbers = #tpu.dot_dimension_numbers<[1], [0], [0], [1], [0, 0, 1, 1], [], []>} : vector<2x128xf32>, vector<128x5xf32>, vector<2x5xf32> -> vector<2x5xf32>
    %c0_134 = arith.constant 0 : index
    %c0_135 = arith.constant 0 : index
    %682 = vector.load %arg37[%c0_134, %c0_135] : memref<1x5xf32, #tpu.memory_space<vmem>>, vector<1x5xf32>
    %683 = vector.broadcast %682 : vector<1x5xf32> to vector<2x5xf32>
    %684 = arith.addf %681, %683 : vector<2x5xf32>
    %c0_136 = arith.constant 0 : index
    %c0_137 = arith.constant 0 : index
    %685 = vector.load %arg38[%c0_136, %c0_137] : memref<2x5xf32, #tpu.memory_space<vmem>>, vector<2x5xf32>
    tpu.vector_store %arg38[%c0_136, %c0_137], %684 {strides = array<i32>} : memref<2x5xf32, #tpu.memory_space<vmem>>, vector<2x5xf32>,
    return
  }
}

</mosaic_0001>

<llo_original>
// kernel: tpu_custom_call.1
$region0: #{tpu_custom_call.1}
  #allocation0 [shape = 'u32[]', space=smem, size = 0x4, offset = 0x4, fixed_abs, tag = 'smem constant byte address 0x4 - core index']
  #allocation1 [shape = 'u32[144,128]{1,0:T(1,128)}', space=vmem, size = 0x12000, scoped, tag = 'internal scratch']
  %s0 = inlined_call_operand.smem [shape: u32[39], index: -1, kind: input, shape index: {}]
  %s1 = sld [smem:[%s0]]
  %s2 = scalar_lea.smem %s0, 1
  %s3 = sld [smem:[%s2]]
  %s4 = scalar_lea.smem %s0, 2
  %s5 = sld [smem:[%s4]]
  %s6 = scalar_lea.smem %s0, 3
  %s7 = sld [smem:[%s6]]
  %s8 = scalar_lea.smem %s0, 4
  %s9 = sld [smem:[%s8]]
  %s10 = scalar_lea.smem %s0, 5
  %s11 = sld [smem:[%s10]]
  %s12 = scalar_lea.smem %s0, 6
  %s13 = sld [smem:[%s12]]
  %s14 = scalar_lea.smem %s0, 7
  %s15 = sld [smem:[%s14]]
  %s16 = scalar_lea.smem %s0, 8
  %s17 = sld [smem:[%s16]]
  %s18 = scalar_lea.smem %s0, 9
  %s19 = sld [smem:[%s18]]
  %s20 = scalar_lea.smem %s0, 10
  %s21 = sld [smem:[%s20]]
  %s22 = scalar_lea.smem %s0, 11
  %s23 = sld [smem:[%s22]]
  %s24 = scalar_lea.smem %s0, 12
  %s25 = sld [smem:[%s24]]
  %s26 = scalar_lea.smem %s0, 13
  %s27 = sld [smem:[%s26]]
  %s28 = scalar_lea.smem %s0, 14
  %s29 = sld [smem:[%s28]]
  %s30 = scalar_lea.smem %s0, 15
  %s31 = sld [smem:[%s30]]
  %s32 = scalar_lea.smem %s0, 16
  %s33 = sld [smem:[%s32]]
  %s34 = scalar_lea.smem %s0, 17
  %s35 = sld [smem:[%s34]]
  %s36 = scalar_lea.smem %s0, 18
  %s37 = sld [smem:[%s36]]
  %s38 = scalar_lea.smem %s0, 19
  %s39 = sld [smem:[%s38]]
  %s40 = scalar_lea.smem %s0, 20
  %s41 = sld [smem:[%s40]]
  %s42 = scalar_lea.smem %s0, 21
  %s43 = sld [smem:[%s42]]
  %s44 = scalar_lea.smem %s0, 22
  %s45 = sld [smem:[%s44]]
  %s46 = scalar_lea.smem %s0, 23
  %s47 = sld [smem:[%s46]]
  %s48 = scalar_lea.smem %s0, 24
  %s49 = sld [smem:[%s48]]
  %s50 = scalar_lea.smem %s0, 25
  %s51 = sld [smem:[%s50]]
  %s52 = scalar_lea.smem %s0, 26
  %s53 = sld [smem:[%s52]]
  %s54 = scalar_lea.smem %s0, 27
  %s55 = sld [smem:[%s54]]
  %s56 = scalar_lea.smem %s0, 28
  %s57 = sld [smem:[%s56]]
  %s58 = scalar_lea.smem %s0, 29
  %s59 = sld [smem:[%s58]]
  %s60 = scalar_lea.smem %s0, 30
  %s61 = sld [smem:[%s60]]
  %s62 = scalar_lea.smem %s0, 31
  %s63 = sld [smem:[%s62]]
  %s64 = scalar_lea.smem %s0, 32
  %s65 = sld [smem:[%s64]]
  %s66 = scalar_lea.smem %s0, 33
  %s67 = sld [smem:[%s66]]
  %s68 = scalar_lea.smem %s0, 34
  %s69 = sld [smem:[%s68]]
  %s70 = scalar_lea.smem %s0, 35
  %s71 = sld [smem:[%s70]]
  %s72 = scalar_lea.smem %s0, 36
  %s73 = sld [smem:[%s72]]
  %s74 = scalar_lea.smem %s0, 37
  %s75 = sld [smem:[%s74]]
  %s76 = scalar_lea.smem %s0, 38
  %s77 = sld [smem:[%s76]]
  %s78 = sld [smem:[#allocation0]]
  $region162: #{tpu_custom_call.1} parent=0
    _
  %s80 = ssub.s32 1, %s78
  %s81 = scalar_select 0, %s80, %s78
  $region1: #{tpu_custom_call.1} parent=0
    #allocation2 [shape = 'u8[1024]{0}', space=vmem, size = 0x400, scoped, tag = 'output window, operand 0, single buffered']
    #allocation3 [shape = 's32[1]{0}', space=sflag, size = 0x4, scoped, tag = 'scoped memory for tpu_custom_call.1']
    %82 = vsyncpa [#allocation3], 0
    // Predicated region
    $region2: #{tpu_custom_call.1} parent=1 // pred_check
      _
    $region3: #{tpu_custom_call.1} parent=1 // pred_check_branch
      %84 = sbr.rel (0) target = $region5
    $region4: #{tpu_custom_call.1} parent=1 // pred_region
      _
    $region5: #{tpu_custom_call.1} parent=1 // pred_fallthru
      _
    // Predicated region
    $region6: #{tpu_custom_call.1} parent=1 // pred_check
      _
    $region7: #{tpu_custom_call.1} parent=1 // pred_check_branch
      %86 = sbr.rel (0) target = $region9
    $region8: #{tpu_custom_call.1} parent=1 // pred_region
      _
    $region9: #{tpu_custom_call.1} parent=1 // pred_fallthru
      _
    // Predicated region
    $region10: #{tpu_custom_call.1} parent=1 // pred_check
      _
    $region11: #{tpu_custom_call.1} parent=1 // pred_check_branch
      %88 = sbr.rel (0) target = $region13
    $region12: #{tpu_custom_call.1} parent=1 // pred_region
      _
    $region13: #{tpu_custom_call.1} parent=1 // pred_fallthru
      _
    // Predicated region
    $region14: #{tpu_custom_call.1} parent=1 // pred_check
      _
    $region15: #{tpu_custom_call.1} parent=1 // pred_check_branch
      %90 = sbr.rel (0) target = $region17
    $region16: #{tpu_custom_call.1} parent=1 // pred_region
      _
    $region17: #{tpu_custom_call.1} parent=1 // pred_fallthru
      _
    // Predicated region
    $region18: #{tpu_custom_call.1} parent=1 // pred_check
      _
    $region19: #{tpu_custom_call.1} parent=1 // pred_check_branch
      %92 = sbr.rel (0) target = $region21
    $region20: #{tpu_custom_call.1} parent=1 // pred_region
      _
    $region21: #{tpu_custom_call.1} parent=1 // pred_fallthru
      _
    // Predicated region
    $region22: #{tpu_custom_call.1} parent=1 // pred_check
      _
    $region23: #{tpu_custom_call.1} parent=1 // pred_check_branch
      %94 = sbr.rel (0) target = $region25
    $region24: #{tpu_custom_call.1} parent=1 // pred_region
      _
    $region25: #{tpu_custom_call.1} parent=1 // pred_fallthru
      _
    // Predicated region
    $region26: #{tpu_custom_call.1} parent=1 // pred_check
      _
    $region27: #{tpu_custom_call.1} parent=1 // pred_check_branch
      %96 = sbr.rel (0) target = $region29
    $region28: #{tpu_custom_call.1} parent=1 // pred_region
      _
    $region29: #{tpu_custom_call.1} parent=1 // pred_fallthru
      _
    // Predicated region
    $region30: #{tpu_custom_call.1} parent=1 // pred_check
      _
    $region31: #{tpu_custom_call.1} parent=1 // pred_check_branch
      %98 = sbr.rel (0) target = $region33
    $region32: #{tpu_custom_call.1} parent=1 // pred_region
      _
    $region33: #{tpu_custom_call.1} parent=1 // pred_fallthru
      _
    // Predicated region
    $region34: #{tpu_custom_call.1} parent=1 // pred_check
      _
    $region35: #{tpu_custom_call.1} parent=1 // pred_check_branch
      %100 = sbr.rel (0) target = $region37
    $region36: #{tpu_custom_call.1} parent=1 // pred_region
      _
    $region37: #{tpu_custom_call.1} parent=1 // pred_fallthru
      _
    // Predicated region
    $region38: #{tpu_custom_call.1} parent=1 // pred_check
      _
    $region39: #{tpu_custom_call.1} parent=1 // pred_check_branch
      %102 = sbr.rel (0) target = $region41
    $region40: #{tpu_custom_call.1} parent=1 // pred_region
      _
    $region41: #{tpu_custom_call.1} parent=1 // pred_fallthru
      _
    // Predicated region
    $region42: #{tpu_custom_call.1} parent=1 // pred_check
      _
    $region43: #{tpu_custom_call.1} parent=1 // pred_check_branch
      %104 = sbr.rel (0) target = $region45
    $region44: #{tpu_custom_call.1} parent=1 // pred_region
      _
    $region45: #{tpu_custom_call.1} parent=1 // pred_fallthru
      _
    // Predicated region
    $region46: #{tpu_custom_call.1} parent=1 // pred_check
      _
    $region47: #{tpu_custom_call.1} parent=1 // pred_check_branch
      %106 = sbr.rel (0) target = $region49
    $region48: #{tpu_custom_call.1} parent=1 // pred_region
      _
    $region49: #{tpu_custom_call.1} parent=1 // pred_fallthru
      _
    // Predicated region
    $region50: #{tpu_custom_call.1} parent=1 // pred_check
      _
    $region51: #{tpu_custom_call.1} parent=1 // pred_check_branch
      %108 = sbr.rel (0) target = $region53
    $region52: #{tpu_custom_call.1} parent=1 // pred_region
      _
    $region53: #{tpu_custom_call.1} parent=1 // pred_fallthru
      _
    // Predicated region
    $region54: #{tpu_custom_call.1} parent=1 // pred_check
      _
    $region55: #{tpu_custom_call.1} parent=1 // pred_check_branch
      %110 = sbr.rel (0) target = $region57
    $region56: #{tpu_custom_call.1} parent=1 // pred_region
      _
    $region57: #{tpu_custom_call.1} parent=1 // pred_fallthru
      _
    // Predicated region
    $region58: #{tpu_custom_call.1} parent=1 // pred_check
      _
    $region59: #{tpu_custom_call.1} parent=1 // pred_check_branch
      %112 = sbr.rel (0) target = $region61
    $region60: #{tpu_custom_call.1} parent=1 // pred_region
      _
    $region61: #{tpu_custom_call.1} parent=1 // pred_fallthru
      _
    // Predicated region
    $region62: #{tpu_custom_call.1} parent=1 // pred_check
      _
    $region63: #{tpu_custom_call.1} parent=1 // pred_check_branch
      %114 = sbr.rel (0) target = $region65
    $region64: #{tpu_custom_call.1} parent=1 // pred_region
      _
    $region65: #{tpu_custom_call.1} parent=1 // pred_fallthru
      _
    // Predicated region
    $region66: #{tpu_custom_call.1} parent=1 // pred_check
      _
    $region67: #{tpu_custom_call.1} parent=1 // pred_check_branch
      %116 = sbr.rel (0) target = $region69
    $region68: #{tpu_custom_call.1} parent=1 // pred_region
      _
    $region69: #{tpu_custom_call.1} parent=1 // pred_fallthru
      _
    // Predicated region
    $region70: #{tpu_custom_call.1} parent=1 // pred_check
      _
    $region71: #{tpu_custom_call.1} parent=1 // pred_check_branch
      %118 = sbr.rel (0) target = $region73
    $region72: #{tpu_custom_call.1} parent=1 // pred_region
      _
    $region73: #{tpu_custom_call.1} parent=1 // pred_fallthru
      _
    // Predicated region
    $region74: #{tpu_custom_call.1} parent=1 // pred_check
      _
    $region75: #{tpu_custom_call.1} parent=1 // pred_check_branch
      %120 = sbr.rel (0) target = $region77
    $region76: #{tpu_custom_call.1} parent=1 // pred_region
      _
    $region77: #{tpu_custom_call.1} parent=1 // pred_fallthru
      _
    // Predicated region
    $region78: #{tpu_custom_call.1} parent=1 // pred_check
      _
    $region79: #{tpu_custom_call.1} parent=1 // pred_check_branch
      %122 = sbr.rel (0) target = $region81
    $region80: #{tpu_custom_call.1} parent=1 // pred_region
      _
    $region81: #{tpu_custom_call.1} parent=1 // pred_fallthru
      _
    // Predicated region
    $region82: #{tpu_custom_call.1} parent=1 // pred_check
      _
    $region83: #{tpu_custom_call.1} parent=1 // pred_check_branch
      %124 = sbr.rel (0) target = $region85
    $region84: #{tpu_custom_call.1} parent=1 // pred_region
      _
    $region85: #{tpu_custom_call.1} parent=1 // pred_fallthru
      _
    // Predicated region
    $region86: #{tpu_custom_call.1} parent=1 // pred_check
      _
    $region87: #{tpu_custom_call.1} parent=1 // pred_check_branch
      %126 = sbr.rel (0) target = $region89
    $region88: #{tpu_custom_call.1} parent=1 // pred_region
      _
    $region89: #{tpu_custom_call.1} parent=1 // pred_fallthru
      _
    // Predicated region
    $region90: #{tpu_custom_call.1} parent=1 // pred_check
      _
    $region91: #{tpu_custom_call.1} parent=1 // pred_check_branch
      %128 = sbr.rel (0) target = $region93
    $region92: #{tpu_custom_call.1} parent=1 // pred_region
      _
    $region93: #{tpu_custom_call.1} parent=1 // pred_fallthru
      _
    // Predicated region
    $region94: #{tpu_custom_call.1} parent=1 // pred_check
      _
    $region95: #{tpu_custom_call.1} parent=1 // pred_check_branch
      %130 = sbr.rel (0) target = $region97
    $region96: #{tpu_custom_call.1} parent=1 // pred_region
      _
    $region97: #{tpu_custom_call.1} parent=1 // pred_fallthru
      _
    // Predicated region
    $region98: #{tpu_custom_call.1} parent=1 // pred_check
      _
    $region99: #{tpu_custom_call.1} parent=1 // pred_check_branch
      %132 = sbr.rel (0) target = $region101
    $region100: #{tpu_custom_call.1} parent=1 // pred_region
      _
    $region101: #{tpu_custom_call.1} parent=1 // pred_fallthru
      _
    // Predicated region
    $region102: #{tpu_custom_call.1} parent=1 // pred_check
      _
    $region103: #{tpu_custom_call.1} parent=1 // pred_check_branch
      %134 = sbr.rel (0) target = $region105
    $region104: #{tpu_custom_call.1} parent=1 // pred_region
      _
    $region105: #{tpu_custom_call.1} parent=1 // pred_fallthru
      _
    // Predicated region
    $region106: #{tpu_custom_call.1} parent=1 // pred_check
      _
    $region107: #{tpu_custom_call.1} parent=1 // pred_check_branch
      %136 = sbr.rel (0) target = $region109
    $region108: #{tpu_custom_call.1} parent=1 // pred_region
      _
    $region109: #{tpu_custom_call.1} parent=1 // pred_fallthru
      _
    // Predicated region
    $region110: #{tpu_custom_call.1} parent=1 // pred_check
      _
    $region111: #{tpu_custom_call.1} parent=1 // pred_check_branch
      %138 = sbr.rel (0) target = $region113
    $region112: #{tpu_custom_call.1} parent=1 // pred_region
      _
    $region113: #{tpu_custom_call.1} parent=1 // pred_fallthru
      _
    // Predicated region
    $region114: #{tpu_custom_call.1} parent=1 // pred_check
      _
    $region115: #{tpu_custom_call.1} parent=1 // pred_check_branch
      %140 = sbr.rel (0) target = $region117
    $region116: #{tpu_custom_call.1} parent=1 // pred_region
      _
    $region117: #{tpu_custom_call.1} parent=1 // pred_fallthru
      _
    // Predicated region
    $region118: #{tpu_custom_call.1} parent=1 // pred_check
      _
    $region119: #{tpu_custom_call.1} parent=1 // pred_check_branch
      %142 = sbr.rel (0) target = $region121
    $region120: #{tpu_custom_call.1} parent=1 // pred_region
      _
    $region121: #{tpu_custom_call.1} parent=1 // pred_fallthru
      _
    // Predicated region
    $region122: #{tpu_custom_call.1} parent=1 // pred_check
      _
    $region123: #{tpu_custom_call.1} parent=1 // pred_check_branch
      %144 = sbr.rel (0) target = $region125
    $region124: #{tpu_custom_call.1} parent=1 // pred_region
      _
    $region125: #{tpu_custom_call.1} parent=1 // pred_fallthru
      _
    // Predicated region
    $region126: #{tpu_custom_call.1} parent=1 // pred_check
      _
    $region127: #{tpu_custom_call.1} parent=1 // pred_check_branch
      %146 = sbr.rel (0) target = $region129
    $region128: #{tpu_custom_call.1} parent=1 // pred_region
      _
    $region129: #{tpu_custom_call.1} parent=1 // pred_fallthru
      _
    // Predicated region
    $region130: #{tpu_custom_call.1} parent=1 // pred_check
      _
    $region131: #{tpu_custom_call.1} parent=1 // pred_check_branch
      %148 = sbr.rel (0) target = $region133
    $region132: #{tpu_custom_call.1} parent=1 // pred_region
      _
    $region133: #{tpu_custom_call.1} parent=1 // pred_fallthru
      _
    // Predicated region
    $region134: #{tpu_custom_call.1} parent=1 // pred_check
      _
    $region135: #{tpu_custom_call.1} parent=1 // pred_check_branch
      %150 = sbr.rel (0) target = $region137
    $region136: #{tpu_custom_call.1} parent=1 // pred_region
      _
    $region137: #{tpu_custom_call.1} parent=1 // pred_fallthru
      _
    // Predicated region
    $region138: #{tpu_custom_call.1} parent=1 // pred_check
      _
    $region139: #{tpu_custom_call.1} parent=1 // pred_check_branch
      %152 = sbr.rel (0) target = $region141
    $region140: #{tpu_custom_call.1} parent=1 // pred_region
      _
    $region141: #{tpu_custom_call.1} parent=1 // pred_fallthru
      _
    // Predicated region
    $region142: #{tpu_custom_call.1} parent=1 // pred_check
      _
    $region143: #{tpu_custom_call.1} parent=1 // pred_check_branch
      %154 = sbr.rel (0) target = $region145
    $region144: #{tpu_custom_call.1} parent=1 // pred_region
      _
    $region145: #{tpu_custom_call.1} parent=1 // pred_fallthru
      _
    // Predicated region
    $region146: #{tpu_custom_call.1} parent=1 // pred_check
      _
    $region147: #{tpu_custom_call.1} parent=1 // pred_check_branch
      %156 = sbr.rel (0) target = $region149
    $region148: #{tpu_custom_call.1} parent=1 // pred_region
      _
    $region149: #{tpu_custom_call.1} parent=1 // pred_fallthru
      _
    // Predicated region
    $region150: #{tpu_custom_call.1} parent=1 // pred_check
      _
    $region151: #{tpu_custom_call.1} parent=1 // pred_check_branch
      %158 = sbr.rel (0) target = $region153
    $region152: #{tpu_custom_call.1} parent=1 // pred_region
      _
    $region153: #{tpu_custom_call.1} parent=1 // pred_fallthru
      _
    %v159 = vld [vmem:[%s1] sm:$0xff]
    %v160 = vld [vmem:[%s1 + $0x8] sm:$0xff]
    %v161 = vld [vmem:[%s1 + $0x10] sm:$0xff]
    %v162 = vld [vmem:[%s1 + $0x18] sm:$0xff]
    %v163 = vld [vmem:[%s3] sm:$0xf]
    %vm164 = vcmask 31744
    %v166 = vsel %vm164, %v159, 0
    %v169 = vsel %vm164, %v160, 0
    %v172 = vsel %vm164, %v161, 0
    %v175 = vsel %vm164, %v162, 0
    %vm177 = vcmask 1043456
    %v179 = vsel %vm177, %v163, 0
    %181 = vmatprep.subr.mxu0 0.0
    %182 = vmatpush1.msra.mxu0 %v179
    %183 = vmatprep.subr.mxu0 0.0
    %184 = vmatpush1.msra.mxu0 0.0
    %185 = vmatprep.subr.mxu0 0.0
    %186 = vmatpush1.msra.mxu0 0.0
    %187 = vmatprep.subr.mxu0 0.0
    %188 = vmatpush1.msra.mxu0 0.0
    %189 = vmatprep.subr.mxu0 0.0
    %190 = vmatpush1.msra.mxu0 0.0
    %191 = vmatprep.subr.mxu0 0.0
    %192 = vmatpush1.msra.mxu0 0.0
    %193 = vmatprep.subr.mxu0 0.0
    %194 = vmatpush1.msra.mxu0 0.0
    %195 = vmatprep.subr.mxu0 0.0
    %196 = vmatpush1.msra.mxu0 0.0
    %197 = vmatprep.subr.mxu0 0.0
    %198 = vmatpush1.msra.mxu0 0.0
    %199 = vmatprep.subr.mxu0 0.0
    %200 = vmatpush1.msra.mxu0 0.0
    %201 = vmatprep.subr.mxu0 0.0
    %202 = vmatpush1.msra.mxu0 0.0
    %203 = vmatprep.subr.mxu0 0.0
    %204 = vmatpush1.msra.mxu0 0.0
    %205 = vmatprep.subr.mxu0 0.0
    %206 = vmatpush1.msra.mxu0 0.0
    %207 = vmatprep.subr.mxu0 0.0
    %208 = vmatpush1.msra.mxu0 0.0
    %209 = vmatprep.subr.mxu0 0.0
    %210 = vmatpush1.msra.mxu0 0.0
    %211 = vmatprep.subr.mxu0 0.0
    %212 = vmatpush1.msra.mxu0 0.0
    %213 = vmatprep.subr.mxu0 0.0
    %214 = vmatpush1.msra.mxu0 0.0
    %215 = vmatprep.subr.mxu0 0.0
    %216 = vmatpush1.msra.mxu0 0.0
    %217 = vmatprep.subr.mxu0 0.0
    %218 = vmatpush1.msra.mxu0 0.0
    %219 = vmatprep.subr.mxu0 0.0
    %220 = vmatpush1.msra.mxu0 0.0
    %221 = vmatprep.subr.mxu0 0.0
    %222 = vmatpush1.msra.mxu0 0.0
    %223 = vmatprep.subr.mxu0 0.0
    %224 = vmatpush1.msra.mxu0 0.0
    %225 = vmatprep.subr.mxu0 0.0
    %226 = vmatpush1.msra.mxu0 0.0
    %227 = vmatprep.subr.mxu0 0.0
    %228 = vmatpush1.msra.mxu0 0.0
    %229 = vmatprep.subr.mxu0 0.0
    %230 = vmatpush1.msra.mxu0 0.0
    %231 = vmatprep.subr.mxu0 0.0
    %232 = vmatpush1.msra.mxu0 0.0
    %233 = vmatprep.subr.mxu0 0.0
    %234 = vmatpush1.msra.mxu0 0.0
    %235 = vmatprep.subr.mxu0 0.0
    %236 = vmatpush1.msra.mxu0 0.0
    %237 = vmatprep.subr.mxu0 0.0
    %238 = vmatpush1.msra.mxu0 0.0
    %239 = vmatprep.subr.mxu0 0.0
    %240 = vmatpush1.msra.mxu0 0.0
    %241 = vmatprep.subr.mxu0 0.0
    %242 = vmatpush1.msra.mxu0 0.0
    %243 = vmatprep.subr.mxu0 0.0
    %244 = vmatpush1.msra.mxu0 0.0
    %245 = vmatprep.mubr.f32.mxu0 0.0
    %246 = vmatmul.mubr.f32.gmra.mrb[0].mxu0 %v166
    %v247 = vpop.f32.mrb[0].mxu0
    %v248 = vadd.f32 0.0, %v247
    %v249 = vpop.f32.mrb[0].mxu0
    %250 = vmatprep.mubr.f32.mxu0 0.0
    %251 = vmatmul.mubr.f32.gmra.mrb[0].mxu0 %v169
    %v252 = vpop.f32.mrb[0].mxu0
    %v253 = vadd.f32 0.0, %v252
    %v254 = vpop.f32.mrb[0].mxu0
    %255 = vmatprep.mubr.f32.mxu0 0.0
    %256 = vmatmul.mubr.f32.gmra.mrb[0].mxu0 %v172
    %v257 = vpop.f32.mrb[0].mxu0
    %v258 = vadd.f32 0.0, %v257
    %v259 = vpop.f32.mrb[0].mxu0
    %260 = vmatprep.mubr.f32.mxu0 0.0
    %261 = vmatmul.mubr.f32.gmra.mrb[0].mxu0 %v175
    %v262 = vpop.f32.mrb[0].mxu0
    %v263 = vadd.f32 0.0, %v262
    %v264 = vpop.f32.mrb[0].mxu0
    %265 = vdwg.mxu0
    %vm268 = vcmask 1046528
    %v269 = vrot.slane %v248, 1
    %v270 = vrot.slane %v253, 1
    %v271 = vsel %vm268, %v269, %v270
    %v275 = vsel %vm268, 0.0, %v269
    %v276 = vsel %vm268, %v270, 0.0
    %v279 = vrot.slane 0.0, 1
    %v280 = vrot.slane %v275, 1
    %v281 = vsel %vm268, %v279, %v280
    %v282 = vrot.slane %v271, 1
    %v283 = vsel %vm268, %v280, %v282
    %284 = vrot.lane.b32.xlu0 %v281, 32
    %v285 = vpop.permute.xlu0 %284
    %286 = vrot.lane.b32.xlu0 %v283, 32
    %v287 = vpop.permute.xlu0 %286
    %vm290 = vcmask 1045504
    %v291 = vrot.slane 0.0, 2
    %v292 = vrot.slane %v275, 2
    %v293 = vsel %vm290, %v291, %v292
    %v294 = vrot.slane %v271, 2
    %v295 = vsel %vm290, %v292, %v294
    %296 = vrot.lane.b32.xlu0 %v293, 64
    %v297 = vpop.permute.xlu0 %296
    %298 = vrot.lane.b32.xlu0 %v295, 64
    %v299 = vpop.permute.xlu0 %298
    %vm302 = vcmask 1044480
    %v303 = vrot.slane 0.0, 3
    %v304 = vrot.slane %v275, 3
    %v305 = vsel %vm302, %v303, %v304
    %v306 = vrot.slane %v271, 3
    %v307 = vsel %vm302, %v304, %v306
    %308 = vrot.lane.b32.xlu0 %v305, 96
    %v309 = vpop.permute.xlu0 %308
    %310 = vrot.lane.b32.xlu0 %v307, 96
    %v311 = vpop.permute.xlu0 %310
    %v314 = vrot.slane 0.0, 4
    %v315 = vrot.slane %v275, 4
    %v316 = vsel %vm177, %v314, %v315
    %v317 = vrot.slane %v271, 4
    %v318 = vsel %vm177, %v315, %v317
    %vm321 = vcmask 1042432
    %v322 = vrot.slane 0.0, 5
    %v323 = vrot.slane %v275, 5
    %v324 = vsel %vm321, %v322, %v323
    %v325 = vrot.slane %v271, 5
    %v326 = vsel %vm321, %v323, %v325
    %327 = vrot.lane.b32.xlu0 %v324, 32
    %v328 = vpop.permute.xlu0 %327
    %329 = vrot.lane.b32.xlu0 %v326, 32
    %v330 = vpop.permute.xlu0 %329
    %vm333 = vcmask 1041408
    %v334 = vrot.slane 0.0, 6
    %v335 = vrot.slane %v275, 6
    %v336 = vsel %vm333, %v334, %v335
    %v337 = vrot.slane %v271, 6
    %v338 = vsel %vm333, %v335, %v337
    %339 = vrot.lane.b32.xlu0 %v336, 64
    %v340 = vpop.permute.xlu0 %339
    %341 = vrot.lane.b32.xlu0 %v338, 64
    %v342 = vpop.permute.xlu0 %341
    %vm345 = vcmask 1040384
    %v346 = vrot.slane 0.0, 7
    %v347 = vrot.slane %v275, 7
    %v348 = vsel %vm345, %v346, %v347
    %v349 = vrot.slane %v271, 7
    %v350 = vsel %vm345, %v347, %v349
    %351 = vrot.lane.b32.xlu0 %v348, 96
    %v352 = vpop.permute.xlu0 %351
    %353 = vrot.lane.b32.xlu0 %v350, 96
    %v354 = vpop.permute.xlu0 %353
    %v358 = vrot.slane %v276, 1
    %v359 = vsel %vm268, %v282, %v358
    %360 = vrot.lane.b32.xlu0 %v359, 32
    %v361 = vpop.permute.xlu0 %360
    %v363 = vrot.slane %v276, 2
    %v364 = vsel %vm290, %v294, %v363
    %365 = vrot.lane.b32.xlu0 %v364, 64
    %v366 = vpop.permute.xlu0 %365
    %v368 = vrot.slane %v276, 3
    %v369 = vsel %vm302, %v306, %v368
    %370 = vrot.lane.b32.xlu0 %v369, 96
    %v371 = vpop.permute.xlu0 %370
    %v373 = vrot.slane %v276, 4
    %v374 = vsel %vm177, %v317, %v373
    %v376 = vrot.slane %v276, 5
    %v377 = vsel %vm321, %v325, %v376
    %378 = vrot.lane.b32.xlu0 %v377, 32
    %v379 = vpop.permute.xlu0 %378
    %v381 = vrot.slane %v276, 6
    %v382 = vsel %vm333, %v337, %v381
    %383 = vrot.lane.b32.xlu0 %v382, 64
    %v384 = vpop.permute.xlu0 %383
    %v386 = vrot.slane %v276, 7
    %v387 = vsel %vm345, %v349, %v386
    %388 = vrot.lane.b32.xlu0 %v387, 96
    %v389 = vpop.permute.xlu0 %388
    %vm391 = vcmask 261120
    %v392 = vsel %vm391, 0.0, %v285
    %v393 = vsel %vm391, %v275, %v287
    %vm394 = vcmask 523264
    %v395 = vsel %vm394, %v392, %v297
    %v396 = vsel %vm394, %v393, %v299
    %vm397 = vcmask 785408
    %v398 = vsel %vm397, %v395, %v309
    %v399 = vsel %vm397, %v396, %v311
    %v400 = vsel %vm391, %v316, %v328
    %v401 = vsel %vm391, %v318, %v330
    %v402 = vsel %vm394, %v400, %v340
    %v403 = vsel %vm394, %v401, %v342
    %v404 = vsel %vm397, %v402, %v352
    %v405 = vsel %vm397, %v403, %v354
    %v406 = vsel %vm391, %v271, %v361
    %v407 = vsel %vm394, %v406, %v366
    %v408 = vsel %vm397, %v407, %v371
    %v409 = vsel %vm391, %v374, %v379
    %v410 = vsel %vm394, %v409, %v384
    %v411 = vsel %vm397, %v410, %v389
    %v412 = vsel %vm268, %v358, %v279
    %413 = vrot.lane.b32.xlu0 %v412, 32
    %v414 = vpop.permute.xlu0 %413
    %v416 = vsel %vm290, %v363, %v291
    %417 = vrot.lane.b32.xlu0 %v416, 64
    %v418 = vpop.permute.xlu0 %417
    %v420 = vsel %vm302, %v368, %v303
    %421 = vrot.lane.b32.xlu0 %v420, 96
    %v422 = vpop.permute.xlu0 %421
    %v424 = vsel %vm177, %v373, %v314
    %v426 = vsel %vm321, %v376, %v322
    %427 = vrot.lane.b32.xlu0 %v426, 32
    %v428 = vpop.permute.xlu0 %427
    %v430 = vsel %vm333, %v381, %v334
    %431 = vrot.lane.b32.xlu0 %v430, 64
    %v432 = vpop.permute.xlu0 %431
    %v434 = vsel %vm345, %v386, %v346
    %435 = vrot.lane.b32.xlu0 %v434, 96
    %v436 = vpop.permute.xlu0 %435
    %v438 = vsel %vm268, %v279, %v279
    %439 = vrot.lane.b32.xlu0 %v438, 32
    %v440 = vpop.permute.xlu0 %439
    %v442 = vsel %vm290, %v291, %v291
    %443 = vrot.lane.b32.xlu0 %v442, 64
    %v444 = vpop.permute.xlu0 %443
    %v446 = vsel %vm302, %v303, %v303
    %447 = vrot.lane.b32.xlu0 %v446, 96
    %v448 = vpop.permute.xlu0 %447
    %v450 = vsel %vm177, %v314, %v314
    %v452 = vsel %vm321, %v322, %v322
    %453 = vrot.lane.b32.xlu0 %v452, 32
    %v454 = vpop.permute.xlu0 %453
    %v456 = vsel %vm333, %v334, %v334
    %457 = vrot.lane.b32.xlu0 %v456, 64
    %v458 = vpop.permute.xlu0 %457
    %v460 = vsel %vm391, %v276, %v414
    %v461 = vsel %vm394, %v460, %v418
    %v462 = vsel %vm397, %v461, %v422
    %v463 = vsel %vm391, %v424, %v428
    %v464 = vsel %vm394, %v463, %v432
    %v465 = vsel %vm397, %v464, %v436
    %v466 = vsel %vm391, 0.0, %v440
    %v467 = vsel %vm394, %v466, %v444
    %v468 = vsel %vm397, %v467, %v448
    %v469 = vsel %vm391, %v450, %v454
    %v470 = vsel %vm394, %v469, %v458
    %v473 = vrot.slane %v258, 1
    %v474 = vrot.slane %v263, 1
    %v475 = vsel %vm268, %v473, %v474
    %v479 = vsel %vm268, 0.0, %v473
    %v480 = vsel %vm268, %v474, 0.0
    %v482 = vrot.slane %v479, 1
    %v483 = vsel %vm268, %v279, %v482
    %v484 = vrot.slane %v475, 1
    %v485 = vsel %vm268, %v482, %v484
    %486 = vrot.lane.b32.xlu0 %v483, 32
    %v487 = vpop.permute.xlu0 %486
    %488 = vrot.lane.b32.xlu0 %v485, 32
    %v489 = vpop.permute.xlu0 %488
    %v492 = vrot.slane %v479, 2
    %v493 = vsel %vm290, %v291, %v492
    %v494 = vrot.slane %v475, 2
    %v495 = vsel %vm290, %v492, %v494
    %496 = vrot.lane.b32.xlu0 %v493, 64
    %v497 = vpop.permute.xlu0 %496
    %498 = vrot.lane.b32.xlu0 %v495, 64
    %v499 = vpop.permute.xlu0 %498
    %v502 = vrot.slane %v479, 3
    %v503 = vsel %vm302, %v303, %v502
    %v504 = vrot.slane %v475, 3
    %v505 = vsel %vm302, %v502, %v504
    %506 = vrot.lane.b32.xlu0 %v503, 96
    %v507 = vpop.permute.xlu0 %506
    %508 = vrot.lane.b32.xlu0 %v505, 96
    %v509 = vpop.permute.xlu0 %508
    %v512 = vrot.slane %v479, 4
    %v513 = vsel %vm177, %v314, %v512
    %v514 = vrot.slane %v475, 4
    %v515 = vsel %vm177, %v512, %v514
    %v518 = vrot.slane %v479, 5
    %v519 = vsel %vm321, %v322, %v518
    %v520 = vrot.slane %v475, 5
    %v521 = vsel %vm321, %v518, %v520
    %522 = vrot.lane.b32.xlu0 %v519, 32
    %v523 = vpop.permute.xlu0 %522
    %524 = vrot.lane.b32.xlu0 %v521, 32
    %v525 = vpop.permute.xlu0 %524
    %v528 = vrot.slane %v479, 6
    %v529 = vsel %vm333, %v334, %v528
    %v530 = vrot.slane %v475, 6
    %v531 = vsel %vm333, %v528, %v530
    %532 = vrot.lane.b32.xlu0 %v529, 64
    %v533 = vpop.permute.xlu0 %532
    %534 = vrot.lane.b32.xlu0 %v531, 64
    %v535 = vpop.permute.xlu0 %534
    %v538 = vrot.slane %v479, 7
    %v539 = vsel %vm345, %v346, %v538
    %v540 = vrot.slane %v475, 7
    %v541 = vsel %vm345, %v538, %v540
    %542 = vrot.lane.b32.xlu0 %v539, 96
    %v543 = vpop.permute.xlu0 %542
    %544 = vrot.lane.b32.xlu0 %v541, 96
    %v545 = vpop.permute.xlu0 %544
    %v549 = vrot.slane %v480, 1
    %v550 = vsel %vm268, %v484, %v549
    %551 = vrot.lane.b32.xlu0 %v550, 32
    %v552 = vpop.permute.xlu0 %551
    %v554 = vrot.slane %v480, 2
    %v555 = vsel %vm290, %v494, %v554
    %556 = vrot.lane.b32.xlu0 %v555, 64
    %v557 = vpop.permute.xlu0 %556
    %v559 = vrot.slane %v480, 3
    %v560 = vsel %vm302, %v504, %v559
    %561 = vrot.lane.b32.xlu0 %v560, 96
    %v562 = vpop.permute.xlu0 %561
    %v564 = vrot.slane %v480, 4
    %v565 = vsel %vm177, %v514, %v564
    %v567 = vrot.slane %v480, 5
    %v568 = vsel %vm321, %v520, %v567
    %569 = vrot.lane.b32.xlu0 %v568, 32
    %v570 = vpop.permute.xlu0 %569
    %v572 = vrot.slane %v480, 6
    %v573 = vsel %vm333, %v530, %v572
    %574 = vrot.lane.b32.xlu0 %v573, 64
    %v575 = vpop.permute.xlu0 %574
    %v577 = vrot.slane %v480, 7
    %v578 = vsel %vm345, %v540, %v577
    %579 = vrot.lane.b32.xlu0 %v578, 96
    %v580 = vpop.permute.xlu0 %579
    %v582 = vsel %vm391, 0.0, %v487
    %v583 = vsel %vm391, %v479, %v489
    %v584 = vsel %vm394, %v582, %v497
    %v585 = vsel %vm394, %v583, %v499
    %v586 = vsel %vm397, %v584, %v507
    %v587 = vsel %vm397, %v585, %v509
    %v588 = vsel %vm391, %v513, %v523
    %v589 = vsel %vm391, %v515, %v525
    %v590 = vsel %vm394, %v588, %v533
    %v591 = vsel %vm394, %v589, %v535
    %v592 = vsel %vm397, %v590, %v543
    %v593 = vsel %vm397, %v591, %v545
    %v594 = vsel %vm391, %v475, %v552
    %v595 = vsel %vm394, %v594, %v557
    %v596 = vsel %vm397, %v595, %v562
    %v597 = vsel %vm391, %v565, %v570
    %v598 = vsel %vm394, %v597, %v575
    %v599 = vsel %vm397, %v598, %v580
    %v600 = vsel %vm268, %v549, %v279
    %601 = vrot.lane.b32.xlu0 %v600, 32
    %v602 = vpop.permute.xlu0 %601
    %v604 = vsel %vm290, %v554, %v291
    %605 = vrot.lane.b32.xlu0 %v604, 64
    %v606 = vpop.permute.xlu0 %605
    %v608 = vsel %vm302, %v559, %v303
    %609 = vrot.lane.b32.xlu0 %v608, 96
    %v610 = vpop.permute.xlu0 %609
    %v612 = vsel %vm177, %v564, %v314
    %v614 = vsel %vm321, %v567, %v322
    %615 = vrot.lane.b32.xlu0 %v614, 32
    %v616 = vpop.permute.xlu0 %615
    %v618 = vsel %vm333, %v572, %v334
    %619 = vrot.lane.b32.xlu0 %v618, 64
    %v620 = vpop.permute.xlu0 %619
    %v622 = vsel %vm345, %v577, %v346
    %623 = vrot.lane.b32.xlu0 %v622, 96
    %v624 = vpop.permute.xlu0 %623
    %v626 = vsel %vm391, %v480, %v602
    %v627 = vsel %vm394, %v626, %v606
    %v628 = vsel %vm397, %v627, %v610
    %v629 = vsel %vm391, %v612, %v616
    %v630 = vsel %vm394, %v629, %v620
    %v631 = vsel %vm397, %v630, %v624
    %v632 = vld [vmem:[%s5] sm:$0xff]
    %v633 = vld [vmem:[%s5 + $0x8] sm:$0xff]
    %v634 = vld [vmem:[%s5 + $0x10] sm:$0xff]
    %v635 = vld [vmem:[%s5 + $0x18] sm:$0xff]
    %v636 = vld [vmem:[%s5 + $0x20] sm:$0xff]
    %v637 = vld [vmem:[%s5 + $0x28] sm:$0xff]
    %v638 = vld [vmem:[%s5 + $0x30] sm:$0xff]
    %v639 = vld [vmem:[%s5 + $0x38] sm:$0xff]
    %v640 = vld [vmem:[%s5 + $0x40] sm:$0xff]
    %v641 = vld [vmem:[%s5 + $0x48] sm:$0xff]
    %v642 = vld [vmem:[%s5 + $0x50] sm:$0xff]
    %v643 = vld [vmem:[%s5 + $0x58] sm:$0xff]
    %v644 = vld [vmem:[%s5 + $0x60] sm:$0xff]
    %v645 = vld [vmem:[%s5 + $0x68] sm:$0xff]
    %v646 = vld [vmem:[%s5 + $0x70] sm:$0xff]
    %v647 = vld [vmem:[%s5 + $0x78] sm:$0xff]
    %v648 = vld [vmem:[%s5 + $0x80] sm:$0xff]
    %v649 = vld [vmem:[%s5 + $0x88] sm:$0xff]
    %v650 = vld [vmem:[%s5 + $0x90] sm:$0xff]
    %v651 = vld [vmem:[%s5 + $0x98] sm:$0xff]
    %v652 = vld [vmem:[%s5 + $0xa0] sm:$0xff]
    %v653 = vld [vmem:[%s5 + $0xa8] sm:$0xff]
    %v654 = vld [vmem:[%s5 + $0xb0] sm:$0xff]
    %v655 = vld [vmem:[%s5 + $0xb8] sm:$0xff]
    %v656 = vld [vmem:[%s5 + $0xc0] sm:$0xff]
    %v657 = vld [vmem:[%s5 + $0xc8] sm:$0xff]
    %v658 = vld [vmem:[%s5 + $0xd0] sm:$0xff]
    %v659 = vld [vmem:[%s5 + $0xd8] sm:$0xff]
    %v660 = vld [vmem:[%s5 + $0xe0] sm:$0xff]
    %v661 = vld [vmem:[%s5 + $0xe8] sm:$0xff]
    %v662 = vld [vmem:[%s5 + $0xf0] sm:$0xff]
    %v663 = vld [vmem:[%s5 + $0xf8] sm:$0xff]
    %v664 = vld [vmem:[%s5 + $0x100] sm:$0xff]
    %v665 = vld [vmem:[%s5 + $0x108] sm:$0xff]
    %v666 = vld [vmem:[%s5 + $0x110] sm:$0xff]
    %v667 = vld [vmem:[%s5 + $0x118] sm:$0xff]
    %v668 = vld [vmem:[%s5 + $0x120] sm:$0xff]
    %v669 = vld [vmem:[%s5 + $0x128] sm:$0xff]
    %v670 = vld [vmem:[%s5 + $0x130] sm:$0xff]
    %v671 = vld [vmem:[%s5 + $0x138] sm:$0xff]
    %v672 = vld [vmem:[%s5 + $0x140] sm:$0xff]
    %v673 = vld [vmem:[%s5 + $0x148] sm:$0xff]
    %v674 = vld [vmem:[%s5 + $0x150] sm:$0xff]
    %v675 = vld [vmem:[%s5 + $0x158] sm:$0xff]
    %v676 = vld [vmem:[%s5 + $0x160] sm:$0xff]
    %v677 = vld [vmem:[%s5 + $0x168] sm:$0xff]
    %v678 = vld [vmem:[%s5 + $0x170] sm:$0xff]
    %v679 = vld [vmem:[%s5 + $0x178] sm:$0xff]
    %v680 = vld [vmem:[%s5 + $0x180] sm:$0xff]
    %v681 = vld [vmem:[%s5 + $0x188] sm:$0xff]
    %v682 = vld [vmem:[%s5 + $0x190] sm:$0xff]
    %v683 = vld [vmem:[%s5 + $0x198] sm:$0xff]
    %v684 = vld [vmem:[%s5 + $0x1a0] sm:$0xff]
    %v685 = vld [vmem:[%s5 + $0x1a8] sm:$0xff]
    %v686 = vld [vmem:[%s5 + $0x1b0] sm:$0xff]
    %v687 = vld [vmem:[%s5 + $0x1b8] sm:$0xff]
    %v688 = vld [vmem:[%s5 + $0x1c0] sm:$0xff]
    %v689 = vld [vmem:[%s5 + $0x1c8] sm:$0xff]
    %v690 = vld [vmem:[%s5 + $0x1d0] sm:$0xff]
    %v691 = vld [vmem:[%s5 + $0x1d8] sm:$0xff]
    %v692 = vld [vmem:[%s5 + $0x1e0] sm:$0xff]
    %v693 = vld [vmem:[%s5 + $0x1e8] sm:$0xff]
    %v694 = vld [vmem:[%s5 + $0x1f0] sm:$0xff]
    %v695 = vld [vmem:[%s5 + $0x1f8] sm:$0xff]
    %v696 = vld [vmem:[%s5 + $0x200] sm:$0xff]
    %v697 = vld [vmem:[%s5 + $0x208] sm:$0xff]
    %v698 = vld [vmem:[%s5 + $0x210] sm:$0xff]
    %v699 = vld [vmem:[%s5 + $0x218] sm:$0xff]
    %v700 = vld [vmem:[%s5 + $0x220] sm:$0xff]
    %v701 = vld [vmem:[%s5 + $0x228] sm:$0xff]
    %v702 = vld [vmem:[%s5 + $0x230] sm:$0xff]
    %v703 = vld [vmem:[%s5 + $0x238] sm:$0xff]
    %v704 = vld [vmem:[%s5 + $0x240] sm:$0xff]
    %v705 = vld [vmem:[%s5 + $0x248] sm:$0xff]
    %v706 = vld [vmem:[%s5 + $0x250] sm:$0xff]
    %v707 = vld [vmem:[%s5 + $0x258] sm:$0xff]
    %v708 = vld [vmem:[%s5 + $0x260] sm:$0xff]
    %v709 = vld [vmem:[%s5 + $0x268] sm:$0xff]
    %v710 = vld [vmem:[%s5 + $0x270] sm:$0xff]
    %v711 = vld [vmem:[%s5 + $0x278] sm:$0xff]
    %v712 = vld [vmem:[%s5 + $0x280] sm:$0xff]
    %v713 = vld [vmem:[%s5 + $0x288] sm:$0xff]
    %v714 = vld [vmem:[%s5 + $0x290] sm:$0xff]
    %v715 = vld [vmem:[%s5 + $0x298] sm:$0xff]
    %v716 = vld [vmem:[%s5 + $0x2a0] sm:$0xff]
    %v717 = vld [vmem:[%s5 + $0x2a8] sm:$0xff]
    %v718 = vld [vmem:[%s5 + $0x2b0] sm:$0xff]
    %v719 = vld [vmem:[%s5 + $0x2b8] sm:$0xff]
    %v720 = vld [vmem:[%s5 + $0x2c0] sm:$0xff]
    %v721 = vld [vmem:[%s5 + $0x2c8] sm:$0xff]
    %v722 = vld [vmem:[%s5 + $0x2d0] sm:$0xff]
    %v723 = vld [vmem:[%s5 + $0x2d8] sm:$0xff]
    %v724 = vld [vmem:[%s5 + $0x2e0] sm:$0xff]
    %v725 = vld [vmem:[%s5 + $0x2e8] sm:$0xff]
    %v726 = vld [vmem:[%s5 + $0x2f0] sm:$0xff]
    %v727 = vld [vmem:[%s5 + $0x2f8] sm:$0xff]
    %v728 = vld [vmem:[%s5 + $0x300] sm:$0xff]
    %v729 = vld [vmem:[%s5 + $0x308] sm:$0xff]
    %v730 = vld [vmem:[%s5 + $0x310] sm:$0xff]
    %v731 = vld [vmem:[%s5 + $0x318] sm:$0xff]
    %v732 = vld [vmem:[%s5 + $0x320] sm:$0xff]
    %v733 = vld [vmem:[%s5 + $0x328] sm:$0xff]
    %v734 = vld [vmem:[%s5 + $0x330] sm:$0xff]
    %v735 = vld [vmem:[%s5 + $0x338] sm:$0xff]
    %v736 = vld [vmem:[%s5 + $0x340] sm:$0xff]
    %v737 = vld [vmem:[%s5 + $0x348] sm:$0xff]
    %v738 = vld [vmem:[%s5 + $0x350] sm:$0xff]
    %v739 = vld [vmem:[%s5 + $0x358] sm:$0xff]
    %v740 = vld [vmem:[%s5 + $0x360] sm:$0xff]
    %v741 = vld [vmem:[%s5 + $0x368] sm:$0xff]
    %v742 = vld [vmem:[%s5 + $0x370] sm:$0xff]
    %v743 = vld [vmem:[%s5 + $0x378] sm:$0xff]
    %v744 = vld [vmem:[%s5 + $0x380] sm:$0xff]
    %v745 = vld [vmem:[%s5 + $0x388] sm:$0xff]
    %v746 = vld [vmem:[%s5 + $0x390] sm:$0xff]
    %v747 = vld [vmem:[%s5 + $0x398] sm:$0xff]
    %v748 = vld [vmem:[%s5 + $0x3a0] sm:$0xff]
    %v749 = vld [vmem:[%s5 + $0x3a8] sm:$0xff]
    %v750 = vld [vmem:[%s5 + $0x3b0] sm:$0xff]
    %v751 = vld [vmem:[%s5 + $0x3b8] sm:$0xff]
    %v752 = vld [vmem:[%s5 + $0x3c0] sm:$0xff]
    %v753 = vld [vmem:[%s5 + $0x3c8] sm:$0xff]
    %v754 = vld [vmem:[%s5 + $0x3d0] sm:$0xff]
    %v755 = vld [vmem:[%s5 + $0x3d8] sm:$0xff]
    %v757 = vsel %vm397, %v464, 0
    %v760 = vsel %vm397, %v470, 0
    %v763 = vsel %vm397, %v630, 0
    %765 = vmatprep.subr.mxu0 0.0
    %766 = vmatpush1.msra.mxu0 %v632
    %767 = vmatprep.subr.mxu0 0.0
    %768 = vmatpush1.msra.mxu0 %v633
    %769 = vmatprep.subr.mxu0 0.0
    %770 = vmatpush1.msra.mxu0 %v634
    %771 = vmatprep.subr.mxu0 0.0
    %772 = vmatpush1.msra.mxu0 %v635
    %773 = vmatprep.subr.mxu0 0.0
    %774 = vmatpush1.msra.mxu0 %v636
    %775 = vmatprep.subr.mxu0 0.0
    %776 = vmatpush1.msra.mxu0 %v637
    %777 = vmatprep.subr.mxu0 0.0
    %778 = vmatpush1.msra.mxu0 %v638
    %779 = vmatprep.subr.mxu0 0.0
    %780 = vmatpush1.msra.mxu0 %v639
    %781 = vmatprep.subr.mxu0 0.0
    %782 = vmatpush1.msra.mxu0 %v640
    %783 = vmatprep.subr.mxu0 0.0
    %784 = vmatpush1.msra.mxu0 %v641
    %785 = vmatprep.subr.mxu0 0.0
    %786 = vmatpush1.msra.mxu0 %v642
    %787 = vmatprep.subr.mxu0 0.0
    %788 = vmatpush1.msra.mxu0 %v643
    %789 = vmatprep.subr.mxu0 0.0
    %790 = vmatpush1.msra.mxu0 %v644
    %791 = vmatprep.subr.mxu0 0.0
    %792 = vmatpush1.msra.mxu0 %v645
    %793 = vmatprep.subr.mxu0 0.0
    %794 = vmatpush1.msra.mxu0 %v646
    %795 = vmatprep.subr.mxu0 0.0
    %796 = vmatpush1.msra.mxu0 %v647
    %797 = vmatprep.subr.mxu0 0.0
    %798 = vmatpush1.msra.mxu0 %v648
    %799 = vmatprep.subr.mxu0 0.0
    %800 = vmatpush1.msra.mxu0 %v649
    %801 = vmatprep.subr.mxu0 0.0
    %802 = vmatpush1.msra.mxu0 %v650
    %803 = vmatprep.subr.mxu0 0.0
    %804 = vmatpush1.msra.mxu0 %v651
    %805 = vmatprep.subr.mxu0 0.0
    %806 = vmatpush1.msra.mxu0 %v652
    %807 = vmatprep.subr.mxu0 0.0
    %808 = vmatpush1.msra.mxu0 %v653
    %809 = vmatprep.subr.mxu0 0.0
    %810 = vmatpush1.msra.mxu0 %v654
    %811 = vmatprep.subr.mxu0 0.0
    %812 = vmatpush1.msra.mxu0 %v655
    %813 = vmatprep.subr.mxu0 0.0
    %814 = vmatpush1.msra.mxu0 %v656
    %815 = vmatprep.subr.mxu0 0.0
    %816 = vmatpush1.msra.mxu0 %v657
    %817 = vmatprep.subr.mxu0 0.0
    %818 = vmatpush1.msra.mxu0 %v658
    %819 = vmatprep.subr.mxu0 0.0
    %820 = vmatpush1.msra.mxu0 %v659
    %821 = vmatprep.subr.mxu0 0.0
    %822 = vmatpush1.msra.mxu0 %v660
    %823 = vmatprep.subr.mxu0 0.0
    %824 = vmatpush1.msra.mxu0 %v661
    %825 = vmatprep.subr.mxu0 0.0
    %826 = vmatpush1.msra.mxu0 %v662
    %827 = vmatprep.subr.mxu0 0.0
    %828 = vmatpush1.msra.mxu0 %v663
    %829 = vmatprep.mubr.f32.mxu0 %v404
    %830 = vmatmul.mubr.f32.gmra.mrb[0].mxu0 %v398
    %v831 = vpop.f32.mrb[0].mxu0
    %v832 = vadd.f32 0.0, %v831
    %v833 = vpop.f32.mrb[0].mxu0
    %834 = vmatprep.mubr.f32.mxu0 %v405
    %835 = vmatmul.mubr.f32.gmra.mrb[0].mxu0 %v399
    %v836 = vpop.f32.mrb[0].mxu0
    %v837 = vadd.f32 0.0, %v836
    %v838 = vpop.f32.mrb[0].mxu0
    %839 = vmatprep.mubr.f32.mxu0 %v592
    %840 = vmatmul.mubr.f32.gmra.mrb[0].mxu0 %v586
    %v841 = vpop.f32.mrb[0].mxu0
    %v842 = vadd.f32 0.0, %v841
    %v843 = vpop.f32.mrb[0].mxu0
    %844 = vmatprep.mubr.f32.mxu0 %v593
    %845 = vmatmul.mubr.f32.gmra.mrb[0].mxu0 %v587
    %v846 = vpop.f32.mrb[0].mxu0
    %v847 = vadd.f32 0.0, %v846
    %v848 = vpop.f32.mrb[0].mxu0
    %849 = vdwg.mxu0
    %850 = vmatprep.subr.mxu0 0.0
    %851 = vmatpush1.msra.mxu0 %v664
    %852 = vmatprep.subr.mxu0 0.0
    %853 = vmatpush1.msra.mxu0 %v665
    %854 = vmatprep.subr.mxu0 0.0
    %855 = vmatpush1.msra.mxu0 %v666
    %856 = vmatprep.subr.mxu0 0.0
    %857 = vmatpush1.msra.mxu0 %v667
    %858 = vmatprep.subr.mxu0 0.0
    %859 = vmatpush1.msra.mxu0 %v668
    %860 = vmatprep.subr.mxu0 0.0
    %861 = vmatpush1.msra.mxu0 %v669
    %862 = vmatprep.subr.mxu0 0.0
    %863 = vmatpush1.msra.mxu0 %v670
    %864 = vmatprep.subr.mxu0 0.0
    %865 = vmatpush1.msra.mxu0 %v671
    %866 = vmatprep.subr.mxu0 0.0
    %867 = vmatpush1.msra.mxu0 %v672
    %868 = vmatprep.subr.mxu0 0.0
    %869 = vmatpush1.msra.mxu0 %v673
    %870 = vmatprep.subr.mxu0 0.0
    %871 = vmatpush1.msra.mxu0 %v674
    %872 = vmatprep.subr.mxu0 0.0
    %873 = vmatpush1.msra.mxu0 %v675
    %874 = vmatprep.subr.mxu0 0.0
    %875 = vmatpush1.msra.mxu0 %v676
    %876 = vmatprep.subr.mxu0 0.0
    %877 = vmatpush1.msra.mxu0 %v677
    %878 = vmatprep.subr.mxu0 0.0
    %879 = vmatpush1.msra.mxu0 %v678
    %880 = vmatprep.subr.mxu0 0.0
    %881 = vmatpush1.msra.mxu0 %v679
    %882 = vmatprep.subr.mxu0 0.0
    %883 = vmatpush1.msra.mxu0 %v680
    %884 = vmatprep.subr.mxu0 0.0
    %885 = vmatpush1.msra.mxu0 %v681
    %886 = vmatprep.subr.mxu0 0.0
    %887 = vmatpush1.msra.mxu0 %v682
    %888 = vmatprep.subr.mxu0 0.0
    %889 = vmatpush1.msra.mxu0 %v683
    %890 = vmatprep.subr.mxu0 0.0
    %891 = vmatpush1.msra.mxu0 %v684
    %892 = vmatprep.subr.mxu0 0.0
    %893 = vmatpush1.msra.mxu0 %v685
    %894 = vmatprep.subr.mxu0 0.0
    %895 = vmatpush1.msra.mxu0 %v686
    %896 = vmatprep.subr.mxu0 0.0
    %897 = vmatpush1.msra.mxu0 %v687
    %898 = vmatprep.subr.mxu0 0.0
    %899 = vmatpush1.msra.mxu0 %v688
    %900 = vmatprep.subr.mxu0 0.0
    %901 = vmatpush1.msra.mxu0 %v689
    %902 = vmatprep.subr.mxu0 0.0
    %903 = vmatpush1.msra.mxu0 %v690
    %904 = vmatprep.subr.mxu0 0.0
    %905 = vmatpush1.msra.mxu0 %v691
    %906 = vmatprep.subr.mxu0 0.0
    %907 = vmatpush1.msra.mxu0 %v692
    %908 = vmatprep.subr.mxu0 0.0
    %909 = vmatpush1.msra.mxu0 %v693
    %910 = vmatprep.subr.mxu0 0.0
    %911 = vmatpush1.msra.mxu0 %v694
    %912 = vmatprep.subr.mxu0 0.0
    %913 = vmatpush1.msra.mxu0 %v695
    %914 = vmatprep.mubr.f32.mxu0 %v405
    %915 = vmatmul.mubr.f32.gmra.mrb[0].mxu0 %v399
    %v916 = vpop.f32.mrb[0].mxu0
    %v917 = vadd.f32 %v832, %v916
    %v918 = vpop.f32.mrb[0].mxu0
    %919 = vmatprep.mubr.f32.mxu0 %v411
    %920 = vmatmul.mubr.f32.gmra.mrb[0].mxu0 %v408
    %v921 = vpop.f32.mrb[0].mxu0
    %v922 = vadd.f32 %v837, %v921
    %v923 = vpop.f32.mrb[0].mxu0
    %924 = vmatprep.mubr.f32.mxu0 %v593
    %925 = vmatmul.mubr.f32.gmra.mrb[0].mxu0 %v587
    %v926 = vpop.f32.mrb[0].mxu0
    %v927 = vadd.f32 %v842, %v926
    %v928 = vpop.f32.mrb[0].mxu0
    %929 = vmatprep.mubr.f32.mxu0 %v599
    %930 = vmatmul.mubr.f32.gmra.mrb[0].mxu0 %v596
    %v931 = vpop.f32.mrb[0].mxu0
    %v932 = vadd.f32 %v847, %v931
    %v933 = vpop.f32.mrb[0].mxu0
    %934 = vdwg.mxu0
    %935 = vmatprep.subr.mxu0 0.0
    %936 = vmatpush1.msra.mxu0 %v696
    %937 = vmatprep.subr.mxu0 0.0
    %938 = vmatpush1.msra.mxu0 %v697
    %939 = vmatprep.subr.mxu0 0.0
    %940 = vmatpush1.msra.mxu0 %v698
    %941 = vmatprep.subr.mxu0 0.0
    %942 = vmatpush1.msra.mxu0 %v699
    %943 = vmatprep.subr.mxu0 0.0
    %944 = vmatpush1.msra.mxu0 %v700
    %945 = vmatprep.subr.mxu0 0.0
    %946 = vmatpush1.msra.mxu0 %v701
    %947 = vmatprep.subr.mxu0 0.0
    %948 = vmatpush1.msra.mxu0 %v702
    %949 = vmatprep.subr.mxu0 0.0
    %950 = vmatpush1.msra.mxu0 %v703
    %951 = vmatprep.subr.mxu0 0.0
    %952 = vmatpush1.msra.mxu0 %v704
    %953 = vmatprep.subr.mxu0 0.0
    %954 = vmatpush1.msra.mxu0 %v705
    %955 = vmatprep.subr.mxu0 0.0
    %956 = vmatpush1.msra.mxu0 %v706
    %957 = vmatprep.subr.mxu0 0.0
    %958 = vmatpush1.msra.mxu0 %v707
    %959 = vmatprep.subr.mxu0 0.0
    %960 = vmatpush1.msra.mxu0 %v708
    %961 = vmatprep.subr.mxu0 0.0
    %962 = vmatpush1.msra.mxu0 %v709
    %963 = vmatprep.subr.mxu0 0.0
    %964 = vmatpush1.msra.mxu0 %v710
    %965 = vmatprep.subr.mxu0 0.0
    %966 = vmatpush1.msra.mxu0 %v711
    %967 = vmatprep.subr.mxu0 0.0
    %968 = vmatpush1.msra.mxu0 %v712
    %969 = vmatprep.subr.mxu0 0.0
    %970 = vmatpush1.msra.mxu0 %v713
    %971 = vmatprep.subr.mxu0 0.0
    %972 = vmatpush1.msra.mxu0 %v714
    %973 = vmatprep.subr.mxu0 0.0
    %974 = vmatpush1.msra.mxu0 %v715
    %975 = vmatprep.subr.mxu0 0.0
    %976 = vmatpush1.msra.mxu0 %v716
    %977 = vmatprep.subr.mxu0 0.0
    %978 = vmatpush1.msra.mxu0 %v717
    %979 = vmatprep.subr.mxu0 0.0
    %980 = vmatpush1.msra.mxu0 %v718
    %981 = vmatprep.subr.mxu0 0.0
    %982 = vmatpush1.msra.mxu0 %v719
    %983 = vmatprep.subr.mxu0 0.0
    %984 = vmatpush1.msra.mxu0 %v720
    %985 = vmatprep.subr.mxu0 0.0
    %986 = vmatpush1.msra.mxu0 %v721
    %987 = vmatprep.subr.mxu0 0.0
    %988 = vmatpush1.msra.mxu0 %v722
    %989 = vmatprep.subr.mxu0 0.0
    %990 = vmatpush1.msra.mxu0 %v723
    %991 = vmatprep.subr.mxu0 0.0
    %992 = vmatpush1.msra.mxu0 %v724
    %993 = vmatprep.subr.mxu0 0.0
    %994 = vmatpush1.msra.mxu0 %v725
    %995 = vmatprep.subr.mxu0 0.0
    %996 = vmatpush1.msra.mxu0 %v726
    %997 = vmatprep.subr.mxu0 0.0
    %998 = vmatpush1.msra.mxu0 %v727
    %999 = vmatprep.mubr.f32.mxu0 %v411
    %1000 = vmatmul.mubr.f32.gmra.mrb[0].mxu0 %v408
    %v1001 = vpop.f32.mrb[0].mxu0
    %v1002 = vadd.f32 %v917, %v1001
    %v1003 = vpop.f32.mrb[0].mxu0
    %1004 = vmatprep.mubr.f32.mxu0 %v465
    %1005 = vmatmul.mubr.f32.gmra.mrb[0].mxu0 %v462
    %v1006 = vpop.f32.mrb[0].mxu0
    %v1007 = vadd.f32 %v922, %v1006
    %v1008 = vpop.f32.mrb[0].mxu0
    %1009 = vmatprep.mubr.f32.mxu0 %v599
    %1010 = vmatmul.mubr.f32.gmra.mrb[0].mxu0 %v596
    %v1011 = vpop.f32.mrb[0].mxu0
    %v1012 = vadd.f32 %v927, %v1011
    %v1013 = vpop.f32.mrb[0].mxu0
    %1014 = vmatprep.mubr.f32.mxu0 %v631
    %1015 = vmatmul.mubr.f32.gmra.mrb[0].mxu0 %v628
    %v1016 = vpop.f32.mrb[0].mxu0
    %v1017 = vadd.f32 %v932, %v1016
    %v1018 = vpop.f32.mrb[0].mxu0
    %1019 = vdwg.mxu0
    %1020 = vmatprep.subr.mxu0 0.0
    %1021 = vmatpush1.msra.mxu0 %v728
    %1022 = vmatprep.subr.mxu0 0.0
    %1023 = vmatpush1.msra.mxu0 %v729
    %1024 = vmatprep.subr.mxu0 0.0
    %1025 = vmatpush1.msra.mxu0 %v730
    %1026 = vmatprep.subr.mxu0 0.0
    %1027 = vmatpush1.msra.mxu0 %v731
    %1028 = vmatprep.subr.mxu0 0.0
    %1029 = vmatpush1.msra.mxu0 %v732
    %1030 = vmatprep.subr.mxu0 0.0
    %1031 = vmatpush1.msra.mxu0 %v733
    %1032 = vmatprep.subr.mxu0 0.0
    %1033 = vmatpush1.msra.mxu0 %v734
    %1034 = vmatprep.subr.mxu0 0.0
    %1035 = vmatpush1.msra.mxu0 %v735
    %1036 = vmatprep.subr.mxu0 0.0
    %1037 = vmatpush1.msra.mxu0 %v736
    %1038 = vmatprep.subr.mxu0 0.0
    %1039 = vmatpush1.msra.mxu0 %v737
    %1040 = vmatprep.subr.mxu0 0.0
    %1041 = vmatpush1.msra.mxu0 %v738
    %1042 = vmatprep.subr.mxu0 0.0
    %1043 = vmatpush1.msra.mxu0 %v739
    %1044 = vmatprep.subr.mxu0 0.0
    %1045 = vmatpush1.msra.mxu0 %v740
    %1046 = vmatprep.subr.mxu0 0.0
    %1047 = vmatpush1.msra.mxu0 %v741
    %1048 = vmatprep.subr.mxu0 0.0
    %1049 = vmatpush1.msra.mxu0 %v742
    %1050 = vmatprep.subr.mxu0 0.0
    %1051 = vmatpush1.msra.mxu0 %v743
    %1052 = vmatprep.subr.mxu0 0.0
    %1053 = vmatpush1.msra.mxu0 %v744
    %1054 = vmatprep.subr.mxu0 0.0
    %1055 = vmatpush1.msra.mxu0 %v745
    %1056 = vmatprep.subr.mxu0 0.0
    %1057 = vmatpush1.msra.mxu0 %v746
    %1058 = vmatprep.subr.mxu0 0.0
    %1059 = vmatpush1.msra.mxu0 %v747
    %1060 = vmatprep.subr.mxu0 0.0
    %1061 = vmatpush1.msra.mxu0 %v748
    %1062 = vmatprep.subr.mxu0 0.0
    %1063 = vmatpush1.msra.mxu0 %v749
    %1064 = vmatprep.subr.mxu0 0.0
    %1065 = vmatpush1.msra.mxu0 %v750
    %1066 = vmatprep.subr.mxu0 0.0
    %1067 = vmatpush1.msra.mxu0 %v751
    %1068 = vmatprep.subr.mxu0 0.0
    %1069 = vmatpush1.msra.mxu0 %v752
    %1070 = vmatprep.subr.mxu0 0.0
    %1071 = vmatpush1.msra.mxu0 %v753
    %1072 = vmatprep.subr.mxu0 0.0
    %1073 = vmatpush1.msra.mxu0 %v754
    %1074 = vmatprep.subr.mxu0 0.0
    %1075 = vmatpush1.msra.mxu0 %v755
    %1076 = vmatprep.subr.mxu0 0.0
    %1077 = vmatpush1.msra.mxu0 0.0
    %1078 = vmatprep.subr.mxu0 0.0
    %1079 = vmatpush1.msra.mxu0 0.0
    %1080 = vmatprep.subr.mxu0 0.0
    %1081 = vmatpush1.msra.mxu0 0.0
    %1082 = vmatprep.subr.mxu0 0.0
    %1083 = vmatpush1.msra.mxu0 0.0
    %1084 = vmatprep.mubr.f32.mxu0 %v757
    %1085 = vmatmul.mubr.f32.gmra.mrb[0].mxu0 %v462
    %v1086 = vpop.f32.mrb[0].mxu0
    %v1087 = vadd.f32 %v1002, %v1086
    %v1088 = vpop.f32.mrb[0].mxu0
    %1089 = vmatprep.mubr.f32.mxu0 %v760
    %1090 = vmatmul.mubr.f32.gmra.mrb[0].mxu0 %v468
    %v1091 = vpop.f32.mrb[0].mxu0
    %v1092 = vadd.f32 %v1007, %v1091
    %v1093 = vpop.f32.mrb[0].mxu0
    %1094 = vmatprep.mubr.f32.mxu0 %v763
    %1095 = vmatmul.mubr.f32.gmra.mrb[0].mxu0 %v628
    %v1096 = vpop.f32.mrb[0].mxu0
    %v1097 = vadd.f32 %v1012, %v1096
    %v1098 = vpop.f32.mrb[0].mxu0
    %1099 = vmatprep.mubr.f32.mxu0 %v760
    %1100 = vmatmul.mubr.f32.gmra.mrb[0].mxu0 %v468
    %v1101 = vpop.f32.mrb[0].mxu0
    %v1102 = vadd.f32 %v1017, %v1101
    %v1103 = vpop.f32.mrb[0].mxu0
    %1104 = vdwg.mxu0
    %v1105 = vrot.slane %v159, 1
    %v1106 = vrot.slane %v160, 1
    %v1107 = vsel %vm268, %v1105, %v1106
    %v1110 = vsel %vm268, %v1106, -inf
    %v1111 = vrot.slane %v159, 7
    %v1112 = vrot.slane %v160, 7
    %v1113 = vsel %vm345, %v1111, %v1112
    %v1116 = vsel %vm345, -inf, %v1111
    %v1117 = vmax.f32 %v1107, %v159
    %v1118 = vmax.f32 %v1110, %v160
    %v1119 = vmax.f32 %v1117, %v1116
    %v1120 = vmax.f32 %v1118, %v1113
    %v1121 = vrot.slane %v161, 1
    %v1122 = vrot.slane %v162, 1
    %v1123 = vsel %vm268, %v1121, %v1122
    %v1126 = vsel %vm268, %v1122, -inf
    %v1127 = vrot.slane %v161, 7
    %v1128 = vrot.slane %v162, 7
    %v1129 = vsel %vm345, %v1127, %v1128
    %v1132 = vsel %vm345, -inf, %v1127
    %v1133 = vmax.f32 %v1123, %v161
    %v1134 = vmax.f32 %v1126, %v162
    %v1135 = vmax.f32 %v1133, %v1132
    %v1136 = vmax.f32 %v1134, %v1129
    %v1137 = vld [vmem:[%s7] sm:$0xf]
    %v1139 = vsel %vm164, %v1119, 0
    %v1142 = vsel %vm164, %v1120, 0
    %v1145 = vsel %vm164, %v1135, 0
    %v1148 = vsel %vm164, %v1136, 0
    %v1151 = vsel %vm177, %v1137, 0
    %1153 = vmatprep.subr.mxu0 0.0
    %1154 = vmatpush1.msra.mxu0 %v1151
    %1155 = vmatprep.subr.mxu0 0.0
    %1156 = vmatpush1.msra.mxu0 0.0
    %1157 = vmatprep.subr.mxu0 0.0
    %1158 = vmatpush1.msra.mxu0 0.0
    %1159 = vmatprep.subr.mxu0 0.0
    %1160 = vmatpush1.msra.mxu0 0.0
    %1161 = vmatprep.subr.mxu0 0.0
    %1162 = vmatpush1.msra.mxu0 0.0
    %1163 = vmatprep.subr.mxu0 0.0
    %1164 = vmatpush1.msra.mxu0 0.0
    %1165 = vmatprep.subr.mxu0 0.0
    %1166 = vmatpush1.msra.mxu0 0.0
    %1167 = vmatprep.subr.mxu0 0.0
    %1168 = vmatpush1.msra.mxu0 0.0
    %1169 = vmatprep.subr.mxu0 0.0
    %1170 = vmatpush1.msra.mxu0 0.0
    %1171 = vmatprep.subr.mxu0 0.0
    %1172 = vmatpush1.msra.mxu0 0.0
    %1173 = vmatprep.subr.mxu0 0.0
    %1174 = vmatpush1.msra.mxu0 0.0
    %1175 = vmatprep.subr.mxu0 0.0
    %1176 = vmatpush1.msra.mxu0 0.0
    %1177 = vmatprep.subr.mxu0 0.0
    %1178 = vmatpush1.msra.mxu0 0.0
    %1179 = vmatprep.subr.mxu0 0.0
    %1180 = vmatpush1.msra.mxu0 0.0
    %1181 = vmatprep.subr.mxu0 0.0
    %1182 = vmatpush1.msra.mxu0 0.0
    %1183 = vmatprep.subr.mxu0 0.0
    %1184 = vmatpush1.msra.mxu0 0.0
    %1185 = vmatprep.subr.mxu0 0.0
    %1186 = vmatpush1.msra.mxu0 0.0
    %1187 = vmatprep.subr.mxu0 0.0
    %1188 = vmatpush1.msra.mxu0 0.0
    %1189 = vmatprep.subr.mxu0 0.0
    %1190 = vmatpush1.msra.mxu0 0.0
    %1191 = vmatprep.subr.mxu0 0.0
    %1192 = vmatpush1.msra.mxu0 0.0
    %1193 = vmatprep.subr.mxu0 0.0
    %1194 = vmatpush1.msra.mxu0 0.0
    %1195 = vmatprep.subr.mxu0 0.0
    %1196 = vmatpush1.msra.mxu0 0.0
    %1197 = vmatprep.subr.mxu0 0.0
    %1198 = vmatpush1.msra.mxu0 0.0
    %1199 = vmatprep.subr.mxu0 0.0
    %1200 = vmatpush1.msra.mxu0 0.0
    %1201 = vmatprep.subr.mxu0 0.0
    %1202 = vmatpush1.msra.mxu0 0.0
    %1203 = vmatprep.subr.mxu0 0.0
    %1204 = vmatpush1.msra.mxu0 0.0
    %1205 = vmatprep.subr.mxu0 0.0
    %1206 = vmatpush1.msra.mxu0 0.0
    %1207 = vmatprep.subr.mxu0 0.0
    %1208 = vmatpush1.msra.mxu0 0.0
    %1209 = vmatprep.subr.mxu0 0.0
    %1210 = vmatpush1.msra.mxu0 0.0
    %1211 = vmatprep.subr.mxu0 0.0
    %1212 = vmatpush1.msra.mxu0 0.0
    %1213 = vmatprep.subr.mxu0 0.0
    %1214 = vmatpush1.msra.mxu0 0.0
    %1215 = vmatprep.subr.mxu0 0.0
    %1216 = vmatpush1.msra.mxu0 0.0
    %1217 = vmatprep.mubr.f32.mxu0 0.0
    %1218 = vmatmul.mubr.f32.gmra.mrb[0].mxu0 %v1139
    %v1219 = vpop.f32.mrb[0].mxu0
    %v1220 = vadd.f32 0.0, %v1219
    %v1221 = vpop.f32.mrb[0].mxu0
    %1222 = vmatprep.mubr.f32.mxu0 0.0
    %1223 = vmatmul.mubr.f32.gmra.mrb[0].mxu0 %v1142
    %v1224 = vpop.f32.mrb[0].mxu0
    %v1225 = vadd.f32 0.0, %v1224
    %v1226 = vpop.f32.mrb[0].mxu0
    %1227 = vmatprep.mubr.f32.mxu0 0.0
    %1228 = vmatmul.mubr.f32.gmra.mrb[0].mxu0 %v1145
    %v1229 = vpop.f32.mrb[0].mxu0
    %v1230 = vadd.f32 0.0, %v1229
    %v1231 = vpop.f32.mrb[0].mxu0
    %1232 = vmatprep.mubr.f32.mxu0 0.0
    %1233 = vmatmul.mubr.f32.gmra.mrb[0].mxu0 %v1148
    %v1234 = vpop.f32.mrb[0].mxu0
    %v1235 = vadd.f32 0.0, %v1234
    %v1236 = vpop.f32.mrb[0].mxu0
    %1237 = vdwg.mxu0
    %1242 = vrot.lane.b32.xlu0 %v1220, 96
    %v1243 = vpop.permute.xlu0 %1242
    %1244 = vrot.lane.b32.xlu0 %v1225, 96
    %v1245 = vpop.permute.xlu0 %1244
    %1246 = vrot.lane.b32.xlu0 %v1230, 96
    %v1247 = vpop.permute.xlu0 %1246
    %1248 = vrot.lane.b32.xlu0 %v1235, 96
    %v1249 = vpop.permute.xlu0 %1248
    %v1254 = vsel %vm397, %v1087, %v1243
    %v1255 = vsel %vm397, %v1092, %v1245
    %v1256 = vsel %vm397, %v1097, %v1247
    %v1257 = vsel %vm397, %v1102, %v1249
    %v1258 = vld [vmem:[%s9] sm:$0x1]
    %v1260 = vlaneseq
    %v1261 = vshrl.u32 %v1260, 7
    %v1262 = vsub.s32 0, %v1261
    %v1263 = vrot.slane %v1258, %v1262
    %v1265 = vmul.f32 %v1254, %v1263
    %v1266 = vmul.f32 %v1255, %v1263
    %v1267 = vmul.f32 %v1256, %v1263
    %v1268 = vmul.f32 %v1257, %v1263
    %v1269 = vld [vmem:[%s11] sm:$0x1]
    %v1271 = vlaneseq
    %v1272 = vshrl.u32 %v1271, 7
    %v1273 = vsub.s32 0, %v1272
    %v1274 = vrot.slane %v1269, %v1273
    %v1276 = vadd.f32 %v1265, %v1274
    %v1277 = vadd.f32 %v1266, %v1274
    %v1278 = vadd.f32 %v1267, %v1274
    %v1279 = vadd.f32 %v1268, %v1274
    %v1280 = vmax.f32 %v1276, 0.0
    %v1281 = vmax.f32 %v1277, 0.0
    %v1282 = vmax.f32 %v1278, 0.0
    %v1283 = vmax.f32 %v1279, 0.0
    %v1284 = vld [vmem:[%s13] sm:$0xff]
    %v1285 = vld [vmem:[%s13 + $0x8] sm:$0xff]
    %v1286 = vld [vmem:[%s13 + $0x10] sm:$0xff]
    %v1287 = vld [vmem:[%s13 + $0x18] sm:$0xff]
    %v1288 = vld [vmem:[%s13 + $0x20] sm:$0xff]
    %v1289 = vld [vmem:[%s13 + $0x28] sm:$0xff]
    %v1290 = vld [vmem:[%s13 + $0x30] sm:$0xff]
    %v1291 = vld [vmem:[%s13 + $0x38] sm:$0xff]
    %v1292 = vld [vmem:[%s13 + $0x40] sm:$0xff]
    %v1293 = vld [vmem:[%s13 + $0x48] sm:$0xff]
    %v1294 = vld [vmem:[%s13 + $0x50] sm:$0xff]
    %v1295 = vld [vmem:[%s13 + $0x58] sm:$0xff]
    %v1296 = vld [vmem:[%s13 + $0x60] sm:$0xff]
    %v1297 = vld [vmem:[%s13 + $0x68] sm:$0xff]
    %v1298 = vld [vmem:[%s13 + $0x70] sm:$0xff]
    %v1299 = vld [vmem:[%s13 + $0x78] sm:$0xff]
    %1300 = vmatprep.subr.mxu0 0.0
    %1301 = vmatpush1.msra.mxu0 %v1284
    %1302 = vmatprep.subr.mxu0 0.0
    %1303 = vmatpush1.msra.mxu0 %v1285
    %1304 = vmatprep.subr.mxu0 0.0
    %1305 = vmatpush1.msra.mxu0 %v1286
    %1306 = vmatprep.subr.mxu0 0.0
    %1307 = vmatpush1.msra.mxu0 %v1287
    %1308 = vmatprep.subr.mxu0 0.0
    %1309 = vmatpush1.msra.mxu0 %v1288
    %1310 = vmatprep.subr.mxu0 0.0
    %1311 = vmatpush1.msra.mxu0 %v1289
    %1312 = vmatprep.subr.mxu0 0.0
    %1313 = vmatpush1.msra.mxu0 %v1290
    %1314 = vmatprep.subr.mxu0 0.0
    %1315 = vmatpush1.msra.mxu0 %v1291
    %1316 = vmatprep.subr.mxu0 0.0
    %1317 = vmatpush1.msra.mxu0 %v1292
    %1318 = vmatprep.subr.mxu0 0.0
    %1319 = vmatpush1.msra.mxu0 %v1293
    %1320 = vmatprep.subr.mxu0 0.0
    %1321 = vmatpush1.msra.mxu0 %v1294
    %1322 = vmatprep.subr.mxu0 0.0
    %1323 = vmatpush1.msra.mxu0 %v1295
    %1324 = vmatprep.subr.mxu0 0.0
    %1325 = vmatpush1.msra.mxu0 %v1296
    %1326 = vmatprep.subr.mxu0 0.0
    %1327 = vmatpush1.msra.mxu0 %v1297
    %1328 = vmatprep.subr.mxu0 0.0
    %1329 = vmatpush1.msra.mxu0 %v1298
    %1330 = vmatprep.subr.mxu0 0.0
    %1331 = vmatpush1.msra.mxu0 %v1299
    %1332 = vmatprep.subr.mxu0 0.0
    %1333 = vmatpush1.msra.mxu0 0.0
    %1334 = vmatprep.subr.mxu0 0.0
    %1335 = vmatpush1.msra.mxu0 0.0
    %1336 = vmatprep.subr.mxu0 0.0
    %1337 = vmatpush1.msra.mxu0 0.0
    %1338 = vmatprep.subr.mxu0 0.0
    %1339 = vmatpush1.msra.mxu0 0.0
    %1340 = vmatprep.subr.mxu0 0.0
    %1341 = vmatpush1.msra.mxu0 0.0
    %1342 = vmatprep.subr.mxu0 0.0
    %1343 = vmatpush1.msra.mxu0 0.0
    %1344 = vmatprep.subr.mxu0 0.0
    %1345 = vmatpush1.msra.mxu0 0.0
    %1346 = vmatprep.subr.mxu0 0.0
    %1347 = vmatpush1.msra.mxu0 0.0
    %1348 = vmatprep.subr.mxu0 0.0
    %1349 = vmatpush1.msra.mxu0 0.0
    %1350 = vmatprep.subr.mxu0 0.0
    %1351 = vmatpush1.msra.mxu0 0.0
    %1352 = vmatprep.subr.mxu0 0.0
    %1353 = vmatpush1.msra.mxu0 0.0
    %1354 = vmatprep.subr.mxu0 0.0
    %1355 = vmatpush1.msra.mxu0 0.0
    %1356 = vmatprep.subr.mxu0 0.0
    %1357 = vmatpush1.msra.mxu0 0.0
    %1358 = vmatprep.subr.mxu0 0.0
    %1359 = vmatpush1.msra.mxu0 0.0
    %1360 = vmatprep.subr.mxu0 0.0
    %1361 = vmatpush1.msra.mxu0 0.0
    %1362 = vmatprep.subr.mxu0 0.0
    %1363 = vmatpush1.msra.mxu0 0.0
    %1364 = vmatprep.mubr.f32.mxu0 0.0
    %1365 = vmatmul.mubr.f32.gmra.mrb[0].mxu0 %v1280
    %v1366 = vpop.f32.mrb[0].mxu0
    %v1367 = vadd.f32 0.0, %v1366
    %v1368 = vpop.f32.mrb[0].mxu0
    %1369 = vmatprep.mubr.f32.mxu0 0.0
    %1370 = vmatmul.mubr.f32.gmra.mrb[0].mxu0 %v1281
    %v1371 = vpop.f32.mrb[0].mxu0
    %v1372 = vadd.f32 0.0, %v1371
    %v1373 = vpop.f32.mrb[0].mxu0
    %1374 = vmatprep.mubr.f32.mxu0 0.0
    %1375 = vmatmul.mubr.f32.gmra.mrb[0].mxu0 %v1282
    %v1376 = vpop.f32.mrb[0].mxu0
    %v1377 = vadd.f32 0.0, %v1376
    %v1378 = vpop.f32.mrb[0].mxu0
    %1379 = vmatprep.mubr.f32.mxu0 0.0
    %1380 = vmatmul.mubr.f32.gmra.mrb[0].mxu0 %v1283
    %v1381 = vpop.f32.mrb[0].mxu0
    %v1382 = vadd.f32 0.0, %v1381
    %v1383 = vpop.f32.mrb[0].mxu0
    %1384 = vdwg.mxu0
    %v1387 = vrot.slane %v1367, 1
    %v1388 = vrot.slane %v1372, 1
    %v1389 = vsel %vm268, %v1387, %v1388
    %v1393 = vsel %vm268, 0.0, %v1387
    %v1394 = vsel %vm268, %v1388, 0.0
    %v1396 = vrot.slane %v1393, 1
    %v1397 = vsel %vm268, %v279, %v1396
    %v1398 = vrot.slane %v1389, 1
    %v1399 = vsel %vm268, %v1396, %v1398
    %1400 = vrot.lane.b32.xlu0 %v1397, 32
    %v1401 = vpop.permute.xlu0 %1400
    %1402 = vrot.lane.b32.xlu0 %v1399, 32
    %v1403 = vpop.permute.xlu0 %1402
    %v1406 = vrot.slane %v1393, 2
    %v1407 = vsel %vm290, %v291, %v1406
    %v1408 = vrot.slane %v1389, 2
    %v1409 = vsel %vm290, %v1406, %v1408
    %1410 = vrot.lane.b32.xlu0 %v1407, 64
    %v1411 = vpop.permute.xlu0 %1410
    %1412 = vrot.lane.b32.xlu0 %v1409, 64
    %v1413 = vpop.permute.xlu0 %1412
    %v1416 = vrot.slane %v1393, 3
    %v1417 = vsel %vm302, %v303, %v1416
    %v1418 = vrot.slane %v1389, 3
    %v1419 = vsel %vm302, %v1416, %v1418
    %1420 = vrot.lane.b32.xlu0 %v1417, 96
    %v1421 = vpop.permute.xlu0 %1420
    %1422 = vrot.lane.b32.xlu0 %v1419, 96
    %v1423 = vpop.permute.xlu0 %1422
    %v1426 = vrot.slane %v1393, 4
    %v1427 = vsel %vm177, %v314, %v1426
    %v1428 = vrot.slane %v1389, 4
    %v1429 = vsel %vm177, %v1426, %v1428
    %v1432 = vrot.slane %v1393, 5
    %v1433 = vsel %vm321, %v322, %v1432
    %v1434 = vrot.slane %v1389, 5
    %v1435 = vsel %vm321, %v1432, %v1434
    %1436 = vrot.lane.b32.xlu0 %v1433, 32
    %v1437 = vpop.permute.xlu0 %1436
    %1438 = vrot.lane.b32.xlu0 %v1435, 32
    %v1439 = vpop.permute.xlu0 %1438
    %v1442 = vrot.slane %v1393, 6
    %v1443 = vsel %vm333, %v334, %v1442
    %v1444 = vrot.slane %v1389, 6
    %v1445 = vsel %vm333, %v1442, %v1444
    %1446 = vrot.lane.b32.xlu0 %v1443, 64
    %v1447 = vpop.permute.xlu0 %1446
    %1448 = vrot.lane.b32.xlu0 %v1445, 64
    %v1449 = vpop.permute.xlu0 %1448
    %v1452 = vrot.slane %v1393, 7
    %v1453 = vsel %vm345, %v346, %v1452
    %v1454 = vrot.slane %v1389, 7
    %v1455 = vsel %vm345, %v1452, %v1454
    %1456 = vrot.lane.b32.xlu0 %v1453, 96
    %v1457 = vpop.permute.xlu0 %1456
    %1458 = vrot.lane.b32.xlu0 %v1455, 96
    %v1459 = vpop.permute.xlu0 %1458
    %v1463 = vrot.slane %v1394, 1
    %v1464 = vsel %vm268, %v1398, %v1463
    %1465 = vrot.lane.b32.xlu0 %v1464, 32
    %v1466 = vpop.permute.xlu0 %1465
    %v1468 = vrot.slane %v1394, 2
    %v1469 = vsel %vm290, %v1408, %v1468
    %1470 = vrot.lane.b32.xlu0 %v1469, 64
    %v1471 = vpop.permute.xlu0 %1470
    %v1473 = vrot.slane %v1394, 3
    %v1474 = vsel %vm302, %v1418, %v1473
    %1475 = vrot.lane.b32.xlu0 %v1474, 96
    %v1476 = vpop.permute.xlu0 %1475
    %v1478 = vrot.slane %v1394, 4
    %v1479 = vsel %vm177, %v1428, %v1478
    %v1481 = vrot.slane %v1394, 5
    %v1482 = vsel %vm321, %v1434, %v1481
    %1483 = vrot.lane.b32.xlu0 %v1482, 32
    %v1484 = vpop.permute.xlu0 %1483
    %v1486 = vrot.slane %v1394, 6
    %v1487 = vsel %vm333, %v1444, %v1486
    %1488 = vrot.lane.b32.xlu0 %v1487, 64
    %v1489 = vpop.permute.xlu0 %1488
    %v1491 = vrot.slane %v1394, 7
    %v1492 = vsel %vm345, %v1454, %v1491
    %1493 = vrot.lane.b32.xlu0 %v1492, 96
    %v1494 = vpop.permute.xlu0 %1493
    %v1496 = vsel %vm391, 0.0, %v1401
    %v1497 = vsel %vm391, %v1393, %v1403
    %v1498 = vsel %vm394, %v1496, %v1411
    %v1499 = vsel %vm394, %v1497, %v1413
    %v1500 = vsel %vm397, %v1498, %v1421
    %v1501 = vsel %vm397, %v1499, %v1423
    %v1502 = vsel %vm391, %v1427, %v1437
    %v1503 = vsel %vm391, %v1429, %v1439
    %v1504 = vsel %vm394, %v1502, %v1447
    %v1505 = vsel %vm394, %v1503, %v1449
    %v1506 = vsel %vm397, %v1504, %v1457
    %v1507 = vsel %vm397, %v1505, %v1459
    %v1508 = vsel %vm391, %v1389, %v1466
    %v1509 = vsel %vm394, %v1508, %v1471
    %v1510 = vsel %vm397, %v1509, %v1476
    %v1511 = vsel %vm391, %v1479, %v1484
    %v1512 = vsel %vm394, %v1511, %v1489
    %v1513 = vsel %vm397, %v1512, %v1494
    %v1514 = vsel %vm268, %v1463, %v279
    %1515 = vrot.lane.b32.xlu0 %v1514, 32
    %v1516 = vpop.permute.xlu0 %1515
    %v1518 = vsel %vm290, %v1468, %v291
    %1519 = vrot.lane.b32.xlu0 %v1518, 64
    %v1520 = vpop.permute.xlu0 %1519
    %v1522 = vsel %vm302, %v1473, %v303
    %1523 = vrot.lane.b32.xlu0 %v1522, 96
    %v1524 = vpop.permute.xlu0 %1523
    %v1526 = vsel %vm177, %v1478, %v314
    %v1528 = vsel %vm321, %v1481, %v322
    %1529 = vrot.lane.b32.xlu0 %v1528, 32
    %v1530 = vpop.permute.xlu0 %1529
    %v1532 = vsel %vm333, %v1486, %v334
    %1533 = vrot.lane.b32.xlu0 %v1532, 64
    %v1534 = vpop.permute.xlu0 %1533
    %v1536 = vsel %vm345, %v1491, %v346
    %1537 = vrot.lane.b32.xlu0 %v1536, 96
    %v1538 = vpop.permute.xlu0 %1537
    %v1540 = vsel %vm391, %v1394, %v1516
    %v1541 = vsel %vm394, %v1540, %v1520
    %v1542 = vsel %vm397, %v1541, %v1524
    %v1543 = vsel %vm391, %v1526, %v1530
    %v1544 = vsel %vm394, %v1543, %v1534
    %v1545 = vsel %vm397, %v1544, %v1538
    %v1548 = vrot.slane %v1377, 1
    %v1549 = vrot.slane %v1382, 1
    %v1550 = vsel %vm268, %v1548, %v1549
    %v1554 = vsel %vm268, 0.0, %v1548
    %v1555 = vsel %vm268, %v1549, 0.0
    %v1557 = vrot.slane %v1554, 1
    %v1558 = vsel %vm268, %v279, %v1557
    %v1559 = vrot.slane %v1550, 1
    %v1560 = vsel %vm268, %v1557, %v1559
    %1561 = vrot.lane.b32.xlu0 %v1558, 32
    %v1562 = vpop.permute.xlu0 %1561
    %1563 = vrot.lane.b32.xlu0 %v1560, 32
    %v1564 = vpop.permute.xlu0 %1563
    %v1567 = vrot.slane %v1554, 2
    %v1568 = vsel %vm290, %v291, %v1567
    %v1569 = vrot.slane %v1550, 2
    %v1570 = vsel %vm290, %v1567, %v1569
    %1571 = vrot.lane.b32.xlu0 %v1568, 64
    %v1572 = vpop.permute.xlu0 %1571
    %1573 = vrot.lane.b32.xlu0 %v1570, 64
    %v1574 = vpop.permute.xlu0 %1573
    %v1577 = vrot.slane %v1554, 3
    %v1578 = vsel %vm302, %v303, %v1577
    %v1579 = vrot.slane %v1550, 3
    %v1580 = vsel %vm302, %v1577, %v1579
    %1581 = vrot.lane.b32.xlu0 %v1578, 96
    %v1582 = vpop.permute.xlu0 %1581
    %1583 = vrot.lane.b32.xlu0 %v1580, 96
    %v1584 = vpop.permute.xlu0 %1583
    %v1587 = vrot.slane %v1554, 4
    %v1588 = vsel %vm177, %v314, %v1587
    %v1589 = vrot.slane %v1550, 4
    %v1590 = vsel %vm177, %v1587, %v1589
    %v1593 = vrot.slane %v1554, 5
    %v1594 = vsel %vm321, %v322, %v1593
    %v1595 = vrot.slane %v1550, 5
    %v1596 = vsel %vm321, %v1593, %v1595
    %1597 = vrot.lane.b32.xlu0 %v1594, 32
    %v1598 = vpop.permute.xlu0 %1597
    %1599 = vrot.lane.b32.xlu0 %v1596, 32
    %v1600 = vpop.permute.xlu0 %1599
    %v1603 = vrot.slane %v1554, 6
    %v1604 = vsel %vm333, %v334, %v1603
    %v1605 = vrot.slane %v1550, 6
    %v1606 = vsel %vm333, %v1603, %v1605
    %1607 = vrot.lane.b32.xlu0 %v1604, 64
    %v1608 = vpop.permute.xlu0 %1607
    %1609 = vrot.lane.b32.xlu0 %v1606, 64
    %v1610 = vpop.permute.xlu0 %1609
    %v1613 = vrot.slane %v1554, 7
    %v1614 = vsel %vm345, %v346, %v1613
    %v1615 = vrot.slane %v1550, 7
    %v1616 = vsel %vm345, %v1613, %v1615
    %1617 = vrot.lane.b32.xlu0 %v1614, 96
    %v1618 = vpop.permute.xlu0 %1617
    %1619 = vrot.lane.b32.xlu0 %v1616, 96
    %v1620 = vpop.permute.xlu0 %1619
    %v1624 = vrot.slane %v1555, 1
    %v1625 = vsel %vm268, %v1559, %v1624
    %1626 = vrot.lane.b32.xlu0 %v1625, 32
    %v1627 = vpop.permute.xlu0 %1626
    %v1629 = vrot.slane %v1555, 2
    %v1630 = vsel %vm290, %v1569, %v1629
    %1631 = vrot.lane.b32.xlu0 %v1630, 64
    %v1632 = vpop.permute.xlu0 %1631
    %v1634 = vrot.slane %v1555, 3
    %v1635 = vsel %vm302, %v1579, %v1634
    %1636 = vrot.lane.b32.xlu0 %v1635, 96
    %v1637 = vpop.permute.xlu0 %1636
    %v1639 = vrot.slane %v1555, 4
    %v1640 = vsel %vm177, %v1589, %v1639
    %v1642 = vrot.slane %v1555, 5
    %v1643 = vsel %vm321, %v1595, %v1642
    %1644 = vrot.lane.b32.xlu0 %v1643, 32
    %v1645 = vpop.permute.xlu0 %1644
    %v1647 = vrot.slane %v1555, 6
    %v1648 = vsel %vm333, %v1605, %v1647
    %1649 = vrot.lane.b32.xlu0 %v1648, 64
    %v1650 = vpop.permute.xlu0 %1649
    %v1652 = vrot.slane %v1555, 7
    %v1653 = vsel %vm345, %v1615, %v1652
    %1654 = vrot.lane.b32.xlu0 %v1653, 96
    %v1655 = vpop.permute.xlu0 %1654
    %v1657 = vsel %vm391, 0.0, %v1562
    %v1658 = vsel %vm391, %v1554, %v1564
    %v1659 = vsel %vm394, %v1657, %v1572
    %v1660 = vsel %vm394, %v1658, %v1574
    %v1661 = vsel %vm397, %v1659, %v1582
    %v1662 = vsel %vm397, %v1660, %v1584
    %v1663 = vsel %vm391, %v1588, %v1598
    %v1664 = vsel %vm391, %v1590, %v1600
    %v1665 = vsel %vm394, %v1663, %v1608
    %v1666 = vsel %vm394, %v1664, %v1610
    %v1667 = vsel %vm397, %v1665, %v1618
    %v1668 = vsel %vm397, %v1666, %v1620
    %v1669 = vsel %vm391, %v1550, %v1627
    %v1670 = vsel %vm394, %v1669, %v1632
    %v1671 = vsel %vm397, %v1670, %v1637
    %v1672 = vsel %vm391, %v1640, %v1645
    %v1673 = vsel %vm394, %v1672, %v1650
    %v1674 = vsel %vm397, %v1673, %v1655
    %v1675 = vsel %vm268, %v1624, %v279
    %1676 = vrot.lane.b32.xlu0 %v1675, 32
    %v1677 = vpop.permute.xlu0 %1676
    %v1679 = vsel %vm290, %v1629, %v291
    %1680 = vrot.lane.b32.xlu0 %v1679, 64
    %v1681 = vpop.permute.xlu0 %1680
    %v1683 = vsel %vm302, %v1634, %v303
    %1684 = vrot.lane.b32.xlu0 %v1683, 96
    %v1685 = vpop.permute.xlu0 %1684
    %v1687 = vsel %vm177, %v1639, %v314
    %v1689 = vsel %vm321, %v1642, %v322
    %1690 = vrot.lane.b32.xlu0 %v1689, 32
    %v1691 = vpop.permute.xlu0 %1690
    %v1693 = vsel %vm333, %v1647, %v334
    %1694 = vrot.lane.b32.xlu0 %v1693, 64
    %v1695 = vpop.permute.xlu0 %1694
    %v1697 = vsel %vm345, %v1652, %v346
    %1698 = vrot.lane.b32.xlu0 %v1697, 96
    %v1699 = vpop.permute.xlu0 %1698
    %v1701 = vsel %vm391, %v1555, %v1677
    %v1702 = vsel %vm394, %v1701, %v1681
    %v1703 = vsel %vm397, %v1702, %v1685
    %v1704 = vsel %vm391, %v1687, %v1691
    %v1705 = vsel %vm394, %v1704, %v1695
    %v1706 = vsel %vm397, %v1705, %v1699
    %v1707 = vld [vmem:[%s15] sm:$0xff]
    %v1708 = vld [vmem:[%s15 + $0x8] sm:$0xff]
    %v1709 = vld [vmem:[%s15 + $0x10] sm:$0xff]
    %v1710 = vld [vmem:[%s15 + $0x18] sm:$0xff]
    %v1711 = vld [vmem:[%s15 + $0x20] sm:$0xff]
    %v1712 = vld [vmem:[%s15 + $0x28] sm:$0xff]
    %v1713 = vld [vmem:[%s15 + $0x30] sm:$0xff]
    %v1714 = vld [vmem:[%s15 + $0x38] sm:$0xff]
    %v1715 = vld [vmem:[%s15 + $0x40] sm:$0xff]
    %v1716 = vld [vmem:[%s15 + $0x48] sm:$0xff]
    %v1717 = vld [vmem:[%s15 + $0x50] sm:$0xff]
    %v1718 = vld [vmem:[%s15 + $0x58] sm:$0xff]
    %v1719 = vld [vmem:[%s15 + $0x60] sm:$0xff]
    %v1720 = vld [vmem:[%s15 + $0x68] sm:$0xff]
    %v1721 = vld [vmem:[%s15 + $0x70] sm:$0xff]
    %v1722 = vld [vmem:[%s15 + $0x78] sm:$0xff]
    %v1723 = vld [vmem:[%s15 + $0x80] sm:$0xff]
    %v1724 = vld [vmem:[%s15 + $0x88] sm:$0xff]
    %v1725 = vld [vmem:[%s15 + $0x90] sm:$0xff]
    %v1726 = vld [vmem:[%s15 + $0x98] sm:$0xff]
    %v1727 = vld [vmem:[%s15 + $0xa0] sm:$0xff]
    %v1728 = vld [vmem:[%s15 + $0xa8] sm:$0xff]
    %v1729 = vld [vmem:[%s15 + $0xb0] sm:$0xff]
    %v1730 = vld [vmem:[%s15 + $0xb8] sm:$0xff]
    %v1731 = vld [vmem:[%s15 + $0xc0] sm:$0xff]
    %v1732 = vld [vmem:[%s15 + $0xc8] sm:$0xff]
    %v1733 = vld [vmem:[%s15 + $0xd0] sm:$0xff]
    %v1734 = vld [vmem:[%s15 + $0xd8] sm:$0xff]
    %v1735 = vld [vmem:[%s15 + $0xe0] sm:$0xff]
    %v1736 = vld [vmem:[%s15 + $0xe8] sm:$0xff]
    %v1737 = vld [vmem:[%s15 + $0xf0] sm:$0xff]
    %v1738 = vld [vmem:[%s15 + $0xf8] sm:$0xff]
    %v1739 = vld [vmem:[%s15 + $0x100] sm:$0xff]
    %v1740 = vld [vmem:[%s15 + $0x108] sm:$0xff]
    %v1741 = vld [vmem:[%s15 + $0x110] sm:$0xff]
    %v1742 = vld [vmem:[%s15 + $0x118] sm:$0xff]
    %v1743 = vld [vmem:[%s15 + $0x120] sm:$0xff]
    %v1744 = vld [vmem:[%s15 + $0x128] sm:$0xff]
    %v1745 = vld [vmem:[%s15 + $0x130] sm:$0xff]
    %v1746 = vld [vmem:[%s15 + $0x138] sm:$0xff]
    %v1747 = vld [vmem:[%s15 + $0x140] sm:$0xff]
    %v1748 = vld [vmem:[%s15 + $0x148] sm:$0xff]
    %v1749 = vld [vmem:[%s15 + $0x150] sm:$0xff]
    %v1750 = vld [vmem:[%s15 + $0x158] sm:$0xff]
    %v1751 = vld [vmem:[%s15 + $0x160] sm:$0xff]
    %v1752 = vld [vmem:[%s15 + $0x168] sm:$0xff]
    %v1753 = vld [vmem:[%s15 + $0x170] sm:$0xff]
    %v1754 = vld [vmem:[%s15 + $0x178] sm:$0xff]
    %v1755 = vld [vmem:[%s15 + $0x180] sm:$0xff]
    %v1756 = vld [vmem:[%s15 + $0x188] sm:$0xff]
    %v1757 = vld [vmem:[%s15 + $0x190] sm:$0xff]
    %v1758 = vld [vmem:[%s15 + $0x198] sm:$0xff]
    %v1759 = vld [vmem:[%s15 + $0x1a0] sm:$0xff]
    %v1760 = vld [vmem:[%s15 + $0x1a8] sm:$0xff]
    %v1761 = vld [vmem:[%s15 + $0x1b0] sm:$0xff]
    %v1762 = vld [vmem:[%s15 + $0x1b8] sm:$0xff]
    %v1763 = vld [vmem:[%s15 + $0x1c0] sm:$0xff]
    %v1764 = vld [vmem:[%s15 + $0x1c8] sm:$0xff]
    %v1765 = vld [vmem:[%s15 + $0x1d0] sm:$0xff]
    %v1766 = vld [vmem:[%s15 + $0x1d8] sm:$0xff]
    %v1767 = vld [vmem:[%s15 + $0x1e0] sm:$0xff]
    %v1768 = vld [vmem:[%s15 + $0x1e8] sm:$0xff]
    %v1769 = vld [vmem:[%s15 + $0x1f0] sm:$0xff]
    %v1770 = vld [vmem:[%s15 + $0x1f8] sm:$0xff]
    %v1771 = vld [vmem:[%s15 + $0x200] sm:$0xff]
    %v1772 = vld [vmem:[%s15 + $0x208] sm:$0xff]
    %v1773 = vld [vmem:[%s15 + $0x210] sm:$0xff]
    %v1774 = vld [vmem:[%s15 + $0x218] sm:$0xff]
    %v1775 = vld [vmem:[%s15 + $0x220] sm:$0xff]
    %v1776 = vld [vmem:[%s15 + $0x228] sm:$0xff]
    %v1777 = vld [vmem:[%s15 + $0x230] sm:$0xff]
    %v1778 = vld [vmem:[%s15 + $0x238] sm:$0xff]
    %v1779 = vld [vmem:[%s15 + $0x240] sm:$0xff]
    %v1780 = vld [vmem:[%s15 + $0x248] sm:$0xff]
    %v1781 = vld [vmem:[%s15 + $0x250] sm:$0xff]
    %v1782 = vld [vmem:[%s15 + $0x258] sm:$0xff]
    %v1783 = vld [vmem:[%s15 + $0x260] sm:$0xff]
    %v1784 = vld [vmem:[%s15 + $0x268] sm:$0xff]
    %v1785 = vld [vmem:[%s15 + $0x270] sm:$0xff]
    %v1786 = vld [vmem:[%s15 + $0x278] sm:$0xff]
    %v1787 = vld [vmem:[%s15 + $0x280] sm:$0xff]
    %v1788 = vld [vmem:[%s15 + $0x288] sm:$0xff]
    %v1789 = vld [vmem:[%s15 + $0x290] sm:$0xff]
    %v1790 = vld [vmem:[%s15 + $0x298] sm:$0xff]
    %v1791 = vld [vmem:[%s15 + $0x2a0] sm:$0xff]
    %v1792 = vld [vmem:[%s15 + $0x2a8] sm:$0xff]
    %v1793 = vld [vmem:[%s15 + $0x2b0] sm:$0xff]
    %v1794 = vld [vmem:[%s15 + $0x2b8] sm:$0xff]
    %v1795 = vld [vmem:[%s15 + $0x2c0] sm:$0xff]
    %v1796 = vld [vmem:[%s15 + $0x2c8] sm:$0xff]
    %v1797 = vld [vmem:[%s15 + $0x2d0] sm:$0xff]
    %v1798 = vld [vmem:[%s15 + $0x2d8] sm:$0xff]
    %v1799 = vld [vmem:[%s15 + $0x2e0] sm:$0xff]
    %v1800 = vld [vmem:[%s15 + $0x2e8] sm:$0xff]
    %v1801 = vld [vmem:[%s15 + $0x2f0] sm:$0xff]
    %v1802 = vld [vmem:[%s15 + $0x2f8] sm:$0xff]
    %v1803 = vld [vmem:[%s15 + $0x300] sm:$0xff]
    %v1804 = vld [vmem:[%s15 + $0x308] sm:$0xff]
    %v1805 = vld [vmem:[%s15 + $0x310] sm:$0xff]
    %v1806 = vld [vmem:[%s15 + $0x318] sm:$0xff]
    %v1807 = vld [vmem:[%s15 + $0x320] sm:$0xff]
    %v1808 = vld [vmem:[%s15 + $0x328] sm:$0xff]
    %v1809 = vld [vmem:[%s15 + $0x330] sm:$0xff]
    %v1810 = vld [vmem:[%s15 + $0x338] sm:$0xff]
    %v1811 = vld [vmem:[%s15 + $0x340] sm:$0xff]
    %v1812 = vld [vmem:[%s15 + $0x348] sm:$0xff]
    %v1813 = vld [vmem:[%s15 + $0x350] sm:$0xff]
    %v1814 = vld [vmem:[%s15 + $0x358] sm:$0xff]
    %v1815 = vld [vmem:[%s15 + $0x360] sm:$0xff]
    %v1816 = vld [vmem:[%s15 + $0x368] sm:$0xff]
    %v1817 = vld [vmem:[%s15 + $0x370] sm:$0xff]
    %v1818 = vld [vmem:[%s15 + $0x378] sm:$0xff]
    %v1819 = vld [vmem:[%s15 + $0x380] sm:$0xff]
    %v1820 = vld [vmem:[%s15 + $0x388] sm:$0xff]
    %v1821 = vld [vmem:[%s15 + $0x390] sm:$0xff]
    %v1822 = vld [vmem:[%s15 + $0x398] sm:$0xff]
    %v1823 = vld [vmem:[%s15 + $0x3a0] sm:$0xff]
    %v1824 = vld [vmem:[%s15 + $0x3a8] sm:$0xff]
    %v1825 = vld [vmem:[%s15 + $0x3b0] sm:$0xff]
    %v1826 = vld [vmem:[%s15 + $0x3b8] sm:$0xff]
    %v1827 = vld [vmem:[%s15 + $0x3c0] sm:$0xff]
    %v1828 = vld [vmem:[%s15 + $0x3c8] sm:$0xff]
    %v1829 = vld [vmem:[%s15 + $0x3d0] sm:$0xff]
    %v1830 = vld [vmem:[%s15 + $0x3d8] sm:$0xff]
    %v1832 = vsel %vm397, %v1544, 0
    %v1835 = vsel %vm397, %v1705, 0
    %1837 = vmatprep.subr.mxu0 0.0
    %1838 = vmatpush1.msra.mxu0 %v1707
    %1839 = vmatprep.subr.mxu0 0.0
    %1840 = vmatpush1.msra.mxu0 %v1708
    %1841 = vmatprep.subr.mxu0 0.0
    %1842 = vmatpush1.msra.mxu0 %v1709
    %1843 = vmatprep.subr.mxu0 0.0
    %1844 = vmatpush1.msra.mxu0 %v1710
    %1845 = vmatprep.subr.mxu0 0.0
    %1846 = vmatpush1.msra.mxu0 %v1711
    %1847 = vmatprep.subr.mxu0 0.0
    %1848 = vmatpush1.msra.mxu0 %v1712
    %1849 = vmatprep.subr.mxu0 0.0
    %1850 = vmatpush1.msra.mxu0 %v1713
    %1851 = vmatprep.subr.mxu0 0.0
    %1852 = vmatpush1.msra.mxu0 %v1714
    %1853 = vmatprep.subr.mxu0 0.0
    %1854 = vmatpush1.msra.mxu0 %v1715
    %1855 = vmatprep.subr.mxu0 0.0
    %1856 = vmatpush1.msra.mxu0 %v1716
    %1857 = vmatprep.subr.mxu0 0.0
    %1858 = vmatpush1.msra.mxu0 %v1717
    %1859 = vmatprep.subr.mxu0 0.0
    %1860 = vmatpush1.msra.mxu0 %v1718
    %1861 = vmatprep.subr.mxu0 0.0
    %1862 = vmatpush1.msra.mxu0 %v1719
    %1863 = vmatprep.subr.mxu0 0.0
    %1864 = vmatpush1.msra.mxu0 %v1720
    %1865 = vmatprep.subr.mxu0 0.0
    %1866 = vmatpush1.msra.mxu0 %v1721
    %1867 = vmatprep.subr.mxu0 0.0
    %1868 = vmatpush1.msra.mxu0 %v1722
    %1869 = vmatprep.subr.mxu0 0.0
    %1870 = vmatpush1.msra.mxu0 %v1723
    %1871 = vmatprep.subr.mxu0 0.0
    %1872 = vmatpush1.msra.mxu0 %v1724
    %1873 = vmatprep.subr.mxu0 0.0
    %1874 = vmatpush1.msra.mxu0 %v1725
    %1875 = vmatprep.subr.mxu0 0.0
    %1876 = vmatpush1.msra.mxu0 %v1726
    %1877 = vmatprep.subr.mxu0 0.0
    %1878 = vmatpush1.msra.mxu0 %v1727
    %1879 = vmatprep.subr.mxu0 0.0
    %1880 = vmatpush1.msra.mxu0 %v1728
    %1881 = vmatprep.subr.mxu0 0.0
    %1882 = vmatpush1.msra.mxu0 %v1729
    %1883 = vmatprep.subr.mxu0 0.0
    %1884 = vmatpush1.msra.mxu0 %v1730
    %1885 = vmatprep.subr.mxu0 0.0
    %1886 = vmatpush1.msra.mxu0 %v1731
    %1887 = vmatprep.subr.mxu0 0.0
    %1888 = vmatpush1.msra.mxu0 %v1732
    %1889 = vmatprep.subr.mxu0 0.0
    %1890 = vmatpush1.msra.mxu0 %v1733
    %1891 = vmatprep.subr.mxu0 0.0
    %1892 = vmatpush1.msra.mxu0 %v1734
    %1893 = vmatprep.subr.mxu0 0.0
    %1894 = vmatpush1.msra.mxu0 %v1735
    %1895 = vmatprep.subr.mxu0 0.0
    %1896 = vmatpush1.msra.mxu0 %v1736
    %1897 = vmatprep.subr.mxu0 0.0
    %1898 = vmatpush1.msra.mxu0 %v1737
    %1899 = vmatprep.subr.mxu0 0.0
    %1900 = vmatpush1.msra.mxu0 %v1738
    %1901 = vmatprep.mubr.f32.mxu0 %v1506
    %1902 = vmatmul.mubr.f32.gmra.mrb[0].mxu0 %v1500
    %v1903 = vpop.f32.mrb[0].mxu0
    %v1904 = vadd.f32 0.0, %v1903
    %v1905 = vpop.f32.mrb[0].mxu0
    %1906 = vmatprep.mubr.f32.mxu0 %v1507
    %1907 = vmatmul.mubr.f32.gmra.mrb[0].mxu0 %v1501
    %v1908 = vpop.f32.mrb[0].mxu0
    %v1909 = vadd.f32 0.0, %v1908
    %v1910 = vpop.f32.mrb[0].mxu0
    %1911 = vmatprep.mubr.f32.mxu0 %v1667
    %1912 = vmatmul.mubr.f32.gmra.mrb[0].mxu0 %v1661
    %v1913 = vpop.f32.mrb[0].mxu0
    %v1914 = vadd.f32 0.0, %v1913
    %v1915 = vpop.f32.mrb[0].mxu0
    %1916 = vmatprep.mubr.f32.mxu0 %v1668
    %1917 = vmatmul.mubr.f32.gmra.mrb[0].mxu0 %v1662
    %v1918 = vpop.f32.mrb[0].mxu0
    %v1919 = vadd.f32 0.0, %v1918
    %v1920 = vpop.f32.mrb[0].mxu0
    %1921 = vdwg.mxu0
    %1922 = vmatprep.subr.mxu0 0.0
    %1923 = vmatpush1.msra.mxu0 %v1739
    %1924 = vmatprep.subr.mxu0 0.0
    %1925 = vmatpush1.msra.mxu0 %v1740
    %1926 = vmatprep.subr.mxu0 0.0
    %1927 = vmatpush1.msra.mxu0 %v1741
    %1928 = vmatprep.subr.mxu0 0.0
    %1929 = vmatpush1.msra.mxu0 %v1742
    %1930 = vmatprep.subr.mxu0 0.0
    %1931 = vmatpush1.msra.mxu0 %v1743
    %1932 = vmatprep.subr.mxu0 0.0
    %1933 = vmatpush1.msra.mxu0 %v1744
    %1934 = vmatprep.subr.mxu0 0.0
    %1935 = vmatpush1.msra.mxu0 %v1745
    %1936 = vmatprep.subr.mxu0 0.0
    %1937 = vmatpush1.msra.mxu0 %v1746
    %1938 = vmatprep.subr.mxu0 0.0
    %1939 = vmatpush1.msra.mxu0 %v1747
    %1940 = vmatprep.subr.mxu0 0.0
    %1941 = vmatpush1.msra.mxu0 %v1748
    %1942 = vmatprep.subr.mxu0 0.0
    %1943 = vmatpush1.msra.mxu0 %v1749
    %1944 = vmatprep.subr.mxu0 0.0
    %1945 = vmatpush1.msra.mxu0 %v1750
    %1946 = vmatprep.subr.mxu0 0.0
    %1947 = vmatpush1.msra.mxu0 %v1751
    %1948 = vmatprep.subr.mxu0 0.0
    %1949 = vmatpush1.msra.mxu0 %v1752
    %1950 = vmatprep.subr.mxu0 0.0
    %1951 = vmatpush1.msra.mxu0 %v1753
    %1952 = vmatprep.subr.mxu0 0.0
    %1953 = vmatpush1.msra.mxu0 %v1754
    %1954 = vmatprep.subr.mxu0 0.0
    %1955 = vmatpush1.msra.mxu0 %v1755
    %1956 = vmatprep.subr.mxu0 0.0
    %1957 = vmatpush1.msra.mxu0 %v1756
    %1958 = vmatprep.subr.mxu0 0.0
    %1959 = vmatpush1.msra.mxu0 %v1757
    %1960 = vmatprep.subr.mxu0 0.0
    %1961 = vmatpush1.msra.mxu0 %v1758
    %1962 = vmatprep.subr.mxu0 0.0
    %1963 = vmatpush1.msra.mxu0 %v1759
    %1964 = vmatprep.subr.mxu0 0.0
    %1965 = vmatpush1.msra.mxu0 %v1760
    %1966 = vmatprep.subr.mxu0 0.0
    %1967 = vmatpush1.msra.mxu0 %v1761
    %1968 = vmatprep.subr.mxu0 0.0
    %1969 = vmatpush1.msra.mxu0 %v1762
    %1970 = vmatprep.subr.mxu0 0.0
    %1971 = vmatpush1.msra.mxu0 %v1763
    %1972 = vmatprep.subr.mxu0 0.0
    %1973 = vmatpush1.msra.mxu0 %v1764
    %1974 = vmatprep.subr.mxu0 0.0
    %1975 = vmatpush1.msra.mxu0 %v1765
    %1976 = vmatprep.subr.mxu0 0.0
    %1977 = vmatpush1.msra.mxu0 %v1766
    %1978 = vmatprep.subr.mxu0 0.0
    %1979 = vmatpush1.msra.mxu0 %v1767
    %1980 = vmatprep.subr.mxu0 0.0
    %1981 = vmatpush1.msra.mxu0 %v1768
    %1982 = vmatprep.subr.mxu0 0.0
    %1983 = vmatpush1.msra.mxu0 %v1769
    %1984 = vmatprep.subr.mxu0 0.0
    %1985 = vmatpush1.msra.mxu0 %v1770
    %1986 = vmatprep.mubr.f32.mxu0 %v1507
    %1987 = vmatmul.mubr.f32.gmra.mrb[0].mxu0 %v1501
    %v1988 = vpop.f32.mrb[0].mxu0
    %v1989 = vadd.f32 %v1904, %v1988
    %v1990 = vpop.f32.mrb[0].mxu0
    %1991 = vmatprep.mubr.f32.mxu0 %v1513
    %1992 = vmatmul.mubr.f32.gmra.mrb[0].mxu0 %v1510
    %v1993 = vpop.f32.mrb[0].mxu0
    %v1994 = vadd.f32 %v1909, %v1993
    %v1995 = vpop.f32.mrb[0].mxu0
    %1996 = vmatprep.mubr.f32.mxu0 %v1668
    %1997 = vmatmul.mubr.f32.gmra.mrb[0].mxu0 %v1662
    %v1998 = vpop.f32.mrb[0].mxu0
    %v1999 = vadd.f32 %v1914, %v1998
    %v2000 = vpop.f32.mrb[0].mxu0
    %2001 = vmatprep.mubr.f32.mxu0 %v1674
    %2002 = vmatmul.mubr.f32.gmra.mrb[0].mxu0 %v1671
    %v2003 = vpop.f32.mrb[0].mxu0
    %v2004 = vadd.f32 %v1919, %v2003
    %v2005 = vpop.f32.mrb[0].mxu0
    %2006 = vdwg.mxu0
    %2007 = vmatprep.subr.mxu0 0.0
    %2008 = vmatpush1.msra.mxu0 %v1771
    %2009 = vmatprep.subr.mxu0 0.0
    %2010 = vmatpush1.msra.mxu0 %v1772
    %2011 = vmatprep.subr.mxu0 0.0
    %2012 = vmatpush1.msra.mxu0 %v1773
    %2013 = vmatprep.subr.mxu0 0.0
    %2014 = vmatpush1.msra.mxu0 %v1774
    %2015 = vmatprep.subr.mxu0 0.0
    %2016 = vmatpush1.msra.mxu0 %v1775
    %2017 = vmatprep.subr.mxu0 0.0
    %2018 = vmatpush1.msra.mxu0 %v1776
    %2019 = vmatprep.subr.mxu0 0.0
    %2020 = vmatpush1.msra.mxu0 %v1777
    %2021 = vmatprep.subr.mxu0 0.0
    %2022 = vmatpush1.msra.mxu0 %v1778
    %2023 = vmatprep.subr.mxu0 0.0
    %2024 = vmatpush1.msra.mxu0 %v1779
    %2025 = vmatprep.subr.mxu0 0.0
    %2026 = vmatpush1.msra.mxu0 %v1780
    %2027 = vmatprep.subr.mxu0 0.0
    %2028 = vmatpush1.msra.mxu0 %v1781
    %2029 = vmatprep.subr.mxu0 0.0
    %2030 = vmatpush1.msra.mxu0 %v1782
    %2031 = vmatprep.subr.mxu0 0.0
    %2032 = vmatpush1.msra.mxu0 %v1783
    %2033 = vmatprep.subr.mxu0 0.0
    %2034 = vmatpush1.msra.mxu0 %v1784
    %2035 = vmatprep.subr.mxu0 0.0
    %2036 = vmatpush1.msra.mxu0 %v1785
    %2037 = vmatprep.subr.mxu0 0.0
    %2038 = vmatpush1.msra.mxu0 %v1786
    %2039 = vmatprep.subr.mxu0 0.0
    %2040 = vmatpush1.msra.mxu0 %v1787
    %2041 = vmatprep.subr.mxu0 0.0
    %2042 = vmatpush1.msra.mxu0 %v1788
    %2043 = vmatprep.subr.mxu0 0.0
    %2044 = vmatpush1.msra.mxu0 %v1789
    %2045 = vmatprep.subr.mxu0 0.0
    %2046 = vmatpush1.msra.mxu0 %v1790
    %2047 = vmatprep.subr.mxu0 0.0
    %2048 = vmatpush1.msra.mxu0 %v1791
    %2049 = vmatprep.subr.mxu0 0.0
    %2050 = vmatpush1.msra.mxu0 %v1792
    %2051 = vmatprep.subr.mxu0 0.0
    %2052 = vmatpush1.msra.mxu0 %v1793
    %2053 = vmatprep.subr.mxu0 0.0
    %2054 = vmatpush1.msra.mxu0 %v1794
    %2055 = vmatprep.subr.mxu0 0.0
    %2056 = vmatpush1.msra.mxu0 %v1795
    %2057 = vmatprep.subr.mxu0 0.0
    %2058 = vmatpush1.msra.mxu0 %v1796
    %2059 = vmatprep.subr.mxu0 0.0
    %2060 = vmatpush1.msra.mxu0 %v1797
    %2061 = vmatprep.subr.mxu0 0.0
    %2062 = vmatpush1.msra.mxu0 %v1798
    %2063 = vmatprep.subr.mxu0 0.0
    %2064 = vmatpush1.msra.mxu0 %v1799
    %2065 = vmatprep.subr.mxu0 0.0
    %2066 = vmatpush1.msra.mxu0 %v1800
    %2067 = vmatprep.subr.mxu0 0.0
    %2068 = vmatpush1.msra.mxu0 %v1801
    %2069 = vmatprep.subr.mxu0 0.0
    %2070 = vmatpush1.msra.mxu0 %v1802
    %2071 = vmatprep.mubr.f32.mxu0 %v1513
    %2072 = vmatmul.mubr.f32.gmra.mrb[0].mxu0 %v1510
    %v2073 = vpop.f32.mrb[0].mxu0
    %v2074 = vadd.f32 %v1989, %v2073
    %v2075 = vpop.f32.mrb[0].mxu0
    %2076 = vmatprep.mubr.f32.mxu0 %v1545
    %2077 = vmatmul.mubr.f32.gmra.mrb[0].mxu0 %v1542
    %v2078 = vpop.f32.mrb[0].mxu0
    %v2079 = vadd.f32 %v1994, %v2078
    %v2080 = vpop.f32.mrb[0].mxu0
    %2081 = vmatprep.mubr.f32.mxu0 %v1674
    %2082 = vmatmul.mubr.f32.gmra.mrb[0].mxu0 %v1671
    %v2083 = vpop.f32.mrb[0].mxu0
    %v2084 = vadd.f32 %v1999, %v2083
    %v2085 = vpop.f32.mrb[0].mxu0
    %2086 = vmatprep.mubr.f32.mxu0 %v1706
    %2087 = vmatmul.mubr.f32.gmra.mrb[0].mxu0 %v1703
    %v2088 = vpop.f32.mrb[0].mxu0
    %v2089 = vadd.f32 %v2004, %v2088
    %v2090 = vpop.f32.mrb[0].mxu0
    %2091 = vdwg.mxu0
    %2092 = vmatprep.subr.mxu0 0.0
    %2093 = vmatpush1.msra.mxu0 %v1803
    %2094 = vmatprep.subr.mxu0 0.0
    %2095 = vmatpush1.msra.mxu0 %v1804
    %2096 = vmatprep.subr.mxu0 0.0
    %2097 = vmatpush1.msra.mxu0 %v1805
    %2098 = vmatprep.subr.mxu0 0.0
    %2099 = vmatpush1.msra.mxu0 %v1806
    %2100 = vmatprep.subr.mxu0 0.0
    %2101 = vmatpush1.msra.mxu0 %v1807
    %2102 = vmatprep.subr.mxu0 0.0
    %2103 = vmatpush1.msra.mxu0 %v1808
    %2104 = vmatprep.subr.mxu0 0.0
    %2105 = vmatpush1.msra.mxu0 %v1809
    %2106 = vmatprep.subr.mxu0 0.0
    %2107 = vmatpush1.msra.mxu0 %v1810
    %2108 = vmatprep.subr.mxu0 0.0
    %2109 = vmatpush1.msra.mxu0 %v1811
    %2110 = vmatprep.subr.mxu0 0.0
    %2111 = vmatpush1.msra.mxu0 %v1812
    %2112 = vmatprep.subr.mxu0 0.0
    %2113 = vmatpush1.msra.mxu0 %v1813
    %2114 = vmatprep.subr.mxu0 0.0
    %2115 = vmatpush1.msra.mxu0 %v1814
    %2116 = vmatprep.subr.mxu0 0.0
    %2117 = vmatpush1.msra.mxu0 %v1815
    %2118 = vmatprep.subr.mxu0 0.0
    %2119 = vmatpush1.msra.mxu0 %v1816
    %2120 = vmatprep.subr.mxu0 0.0
    %2121 = vmatpush1.msra.mxu0 %v1817
    %2122 = vmatprep.subr.mxu0 0.0
    %2123 = vmatpush1.msra.mxu0 %v1818
    %2124 = vmatprep.subr.mxu0 0.0
    %2125 = vmatpush1.msra.mxu0 %v1819
    %2126 = vmatprep.subr.mxu0 0.0
    %2127 = vmatpush1.msra.mxu0 %v1820
    %2128 = vmatprep.subr.mxu0 0.0
    %2129 = vmatpush1.msra.mxu0 %v1821
    %2130 = vmatprep.subr.mxu0 0.0
    %2131 = vmatpush1.msra.mxu0 %v1822
    %2132 = vmatprep.subr.mxu0 0.0
    %2133 = vmatpush1.msra.mxu0 %v1823
    %2134 = vmatprep.subr.mxu0 0.0
    %2135 = vmatpush1.msra.mxu0 %v1824
    %2136 = vmatprep.subr.mxu0 0.0
    %2137 = vmatpush1.msra.mxu0 %v1825
    %2138 = vmatprep.subr.mxu0 0.0
    %2139 = vmatpush1.msra.mxu0 %v1826
    %2140 = vmatprep.subr.mxu0 0.0
    %2141 = vmatpush1.msra.mxu0 %v1827
    %2142 = vmatprep.subr.mxu0 0.0
    %2143 = vmatpush1.msra.mxu0 %v1828
    %2144 = vmatprep.subr.mxu0 0.0
    %2145 = vmatpush1.msra.mxu0 %v1829
    %2146 = vmatprep.subr.mxu0 0.0
    %2147 = vmatpush1.msra.mxu0 %v1830
    %2148 = vmatprep.subr.mxu0 0.0
    %2149 = vmatpush1.msra.mxu0 0.0
    %2150 = vmatprep.subr.mxu0 0.0
    %2151 = vmatpush1.msra.mxu0 0.0
    %2152 = vmatprep.subr.mxu0 0.0
    %2153 = vmatpush1.msra.mxu0 0.0
    %2154 = vmatprep.subr.mxu0 0.0
    %2155 = vmatpush1.msra.mxu0 0.0
    %2156 = vmatprep.mubr.f32.mxu0 %v1832
    %2157 = vmatmul.mubr.f32.gmra.mrb[0].mxu0 %v1542
    %v2158 = vpop.f32.mrb[0].mxu0
    %v2159 = vadd.f32 %v2074, %v2158
    %v2160 = vpop.f32.mrb[0].mxu0
    %2161 = vmatprep.mubr.f32.mxu0 %v760
    %2162 = vmatmul.mubr.f32.gmra.mrb[0].mxu0 %v468
    %v2163 = vpop.f32.mrb[0].mxu0
    %v2164 = vadd.f32 %v2079, %v2163
    %v2165 = vpop.f32.mrb[0].mxu0
    %2166 = vmatprep.mubr.f32.mxu0 %v1835
    %2167 = vmatmul.mubr.f32.gmra.mrb[0].mxu0 %v1703
    %v2168 = vpop.f32.mrb[0].mxu0
    %v2169 = vadd.f32 %v2084, %v2168
    %v2170 = vpop.f32.mrb[0].mxu0
    %2171 = vmatprep.mubr.f32.mxu0 %v760
    %2172 = vmatmul.mubr.f32.gmra.mrb[0].mxu0 %v468
    %v2173 = vpop.f32.mrb[0].mxu0
    %v2174 = vadd.f32 %v2089, %v2173
    %v2175 = vpop.f32.mrb[0].mxu0
    %2176 = vdwg.mxu0
    %v2179 = vrot.slane %v1280, 1
    %v2180 = vrot.slane %v1281, 1
    %v2181 = vsel %vm268, %v2179, %v2180
    %v2184 = vsel %vm268, %v2180, -inf
    %v2185 = vrot.slane %v1280, 7
    %v2186 = vrot.slane %v1281, 7
    %v2187 = vsel %vm345, %v2185, %v2186
    %v2190 = vsel %vm345, -inf, %v2185
    %v2191 = vmax.f32 %v2181, %v1280
    %v2192 = vmax.f32 %v2184, %v1281
    %v2193 = vmax.f32 %v2191, %v2190
    %v2194 = vmax.f32 %v2192, %v2187
    %v2197 = vrot.slane %v1282, 1
    %v2198 = vrot.slane %v1283, 1
    %v2199 = vsel %vm268, %v2197, %v2198
    %v2202 = vsel %vm268, %v2198, -inf
    %v2203 = vrot.slane %v1282, 7
    %v2204 = vrot.slane %v1283, 7
    %v2205 = vsel %vm345, %v2203, %v2204
    %v2208 = vsel %vm345, -inf, %v2203
    %v2209 = vmax.f32 %v2199, %v1282
    %v2210 = vmax.f32 %v2202, %v1283
    %v2211 = vmax.f32 %v2209, %v2208
    %v2212 = vmax.f32 %v2210, %v2205
    %v2213 = vld [vmem:[%s17] sm:$0xff]
    %v2214 = vld [vmem:[%s17 + $0x8] sm:$0xff]
    %v2215 = vld [vmem:[%s17 + $0x10] sm:$0xff]
    %v2216 = vld [vmem:[%s17 + $0x18] sm:$0xff]
    %v2217 = vld [vmem:[%s17 + $0x20] sm:$0xff]
    %v2218 = vld [vmem:[%s17 + $0x28] sm:$0xff]
    %v2219 = vld [vmem:[%s17 + $0x30] sm:$0xff]
    %v2220 = vld [vmem:[%s17 + $0x38] sm:$0xff]
    %v2221 = vld [vmem:[%s17 + $0x40] sm:$0xff]
    %v2222 = vld [vmem:[%s17 + $0x48] sm:$0xff]
    %v2223 = vld [vmem:[%s17 + $0x50] sm:$0xff]
    %v2224 = vld [vmem:[%s17 + $0x58] sm:$0xff]
    %v2225 = vld [vmem:[%s17 + $0x60] sm:$0xff]
    %v2226 = vld [vmem:[%s17 + $0x68] sm:$0xff]
    %v2227 = vld [vmem:[%s17 + $0x70] sm:$0xff]
    %v2228 = vld [vmem:[%s17 + $0x78] sm:$0xff]
    %2229 = vmatprep.subr.mxu0 0.0
    %2230 = vmatpush1.msra.mxu0 %v2213
    %2231 = vmatprep.subr.mxu0 0.0
    %2232 = vmatpush1.msra.mxu0 %v2214
    %2233 = vmatprep.subr.mxu0 0.0
    %2234 = vmatpush1.msra.mxu0 %v2215
    %2235 = vmatprep.subr.mxu0 0.0
    %2236 = vmatpush1.msra.mxu0 %v2216
    %2237 = vmatprep.subr.mxu0 0.0
    %2238 = vmatpush1.msra.mxu0 %v2217
    %2239 = vmatprep.subr.mxu0 0.0
    %2240 = vmatpush1.msra.mxu0 %v2218
    %2241 = vmatprep.subr.mxu0 0.0
    %2242 = vmatpush1.msra.mxu0 %v2219
    %2243 = vmatprep.subr.mxu0 0.0
    %2244 = vmatpush1.msra.mxu0 %v2220
    %2245 = vmatprep.subr.mxu0 0.0
    %2246 = vmatpush1.msra.mxu0 %v2221
    %2247 = vmatprep.subr.mxu0 0.0
    %2248 = vmatpush1.msra.mxu0 %v2222
    %2249 = vmatprep.subr.mxu0 0.0
    %2250 = vmatpush1.msra.mxu0 %v2223
    %2251 = vmatprep.subr.mxu0 0.0
    %2252 = vmatpush1.msra.mxu0 %v2224
    %2253 = vmatprep.subr.mxu0 0.0
    %2254 = vmatpush1.msra.mxu0 %v2225
    %2255 = vmatprep.subr.mxu0 0.0
    %2256 = vmatpush1.msra.mxu0 %v2226
    %2257 = vmatprep.subr.mxu0 0.0
    %2258 = vmatpush1.msra.mxu0 %v2227
    %2259 = vmatprep.subr.mxu0 0.0
    %2260 = vmatpush1.msra.mxu0 %v2228
    %2261 = vmatprep.subr.mxu0 0.0
    %2262 = vmatpush1.msra.mxu0 0.0
    %2263 = vmatprep.subr.mxu0 0.0
    %2264 = vmatpush1.msra.mxu0 0.0
    %2265 = vmatprep.subr.mxu0 0.0
    %2266 = vmatpush1.msra.mxu0 0.0
    %2267 = vmatprep.subr.mxu0 0.0
    %2268 = vmatpush1.msra.mxu0 0.0
    %2269 = vmatprep.subr.mxu0 0.0
    %2270 = vmatpush1.msra.mxu0 0.0
    %2271 = vmatprep.subr.mxu0 0.0
    %2272 = vmatpush1.msra.mxu0 0.0
    %2273 = vmatprep.subr.mxu0 0.0
    %2274 = vmatpush1.msra.mxu0 0.0
    %2275 = vmatprep.subr.mxu0 0.0
    %2276 = vmatpush1.msra.mxu0 0.0
    %2277 = vmatprep.subr.mxu0 0.0
    %2278 = vmatpush1.msra.mxu0 0.0
    %2279 = vmatprep.subr.mxu0 0.0
    %2280 = vmatpush1.msra.mxu0 0.0
    %2281 = vmatprep.subr.mxu0 0.0
    %2282 = vmatpush1.msra.mxu0 0.0
    %2283 = vmatprep.subr.mxu0 0.0
    %2284 = vmatpush1.msra.mxu0 0.0
    %2285 = vmatprep.subr.mxu0 0.0
    %2286 = vmatpush1.msra.mxu0 0.0
    %2287 = vmatprep.subr.mxu0 0.0
    %2288 = vmatpush1.msra.mxu0 0.0
    %2289 = vmatprep.subr.mxu0 0.0
    %2290 = vmatpush1.msra.mxu0 0.0
    %2291 = vmatprep.subr.mxu0 0.0
    %2292 = vmatpush1.msra.mxu0 0.0
    %2293 = vmatprep.mubr.f32.mxu0 0.0
    %2294 = vmatmul.mubr.f32.gmra.mrb[0].mxu0 %v2193
    %v2295 = vpop.f32.mrb[0].mxu0
    %v2296 = vadd.f32 0.0, %v2295
    %v2297 = vpop.f32.mrb[0].mxu0
    %2298 = vmatprep.mubr.f32.mxu0 0.0
    %2299 = vmatmul.mubr.f32.gmra.mrb[0].mxu0 %v2194
    %v2300 = vpop.f32.mrb[0].mxu0
    %v2301 = vadd.f32 0.0, %v2300
    %v2302 = vpop.f32.mrb[0].mxu0
    %2303 = vmatprep.mubr.f32.mxu0 0.0
    %2304 = vmatmul.mubr.f32.gmra.mrb[0].mxu0 %v2211
    %v2305 = vpop.f32.mrb[0].mxu0
    %v2306 = vadd.f32 0.0, %v2305
    %v2307 = vpop.f32.mrb[0].mxu0
    %2308 = vmatprep.mubr.f32.mxu0 0.0
    %2309 = vmatmul.mubr.f32.gmra.mrb[0].mxu0 %v2212
    %v2310 = vpop.f32.mrb[0].mxu0
    %v2311 = vadd.f32 0.0, %v2310
    %v2312 = vpop.f32.mrb[0].mxu0
    %2313 = vdwg.mxu0
    %2318 = vrot.lane.b32.xlu0 %v2296, 96
    %v2319 = vpop.permute.xlu0 %2318
    %2320 = vrot.lane.b32.xlu0 %v2301, 96
    %v2321 = vpop.permute.xlu0 %2320
    %2322 = vrot.lane.b32.xlu0 %v2306, 96
    %v2323 = vpop.permute.xlu0 %2322
    %2324 = vrot.lane.b32.xlu0 %v2311, 96
    %v2325 = vpop.permute.xlu0 %2324
    %v2330 = vsel %vm397, %v2159, %v2319
    %v2331 = vsel %vm397, %v2164, %v2321
    %v2332 = vsel %vm397, %v2169, %v2323
    %v2333 = vsel %vm397, %v2174, %v2325
    %v2334 = vld [vmem:[%s19] sm:$0x1]
    %v2336 = vlaneseq
    %v2337 = vshrl.u32 %v2336, 7
    %v2338 = vsub.s32 0, %v2337
    %v2339 = vrot.slane %v2334, %v2338
    %v2341 = vmul.f32 %v2330, %v2339
    %v2342 = vmul.f32 %v2331, %v2339
    %v2343 = vmul.f32 %v2332, %v2339
    %v2344 = vmul.f32 %v2333, %v2339
    %v2345 = vld [vmem:[%s21] sm:$0x1]
    %v2347 = vlaneseq
    %v2348 = vshrl.u32 %v2347, 7
    %v2349 = vsub.s32 0, %v2348
    %v2350 = vrot.slane %v2345, %v2349
    %v2352 = vadd.f32 %v2341, %v2350
    %v2353 = vadd.f32 %v2342, %v2350
    %v2354 = vadd.f32 %v2343, %v2350
    %v2355 = vadd.f32 %v2344, %v2350
    %v2356 = vmax.f32 %v2352, 0.0
    %v2357 = vmax.f32 %v2353, 0.0
    %v2358 = vmax.f32 %v2354, 0.0
    %v2359 = vmax.f32 %v2355, 0.0
    %v2360 = vld [vmem:[%s23] sm:$0xff]
    %v2361 = vld [vmem:[%s23 + $0x8] sm:$0xff]
    %v2362 = vld [vmem:[%s23 + $0x10] sm:$0xff]
    %v2363 = vld [vmem:[%s23 + $0x18] sm:$0xff]
    %v2364 = vld [vmem:[%s23 + $0x20] sm:$0xff]
    %v2365 = vld [vmem:[%s23 + $0x28] sm:$0xff]
    %v2366 = vld [vmem:[%s23 + $0x30] sm:$0xff]
    %v2367 = vld [vmem:[%s23 + $0x38] sm:$0xff]
    %v2368 = vld [vmem:[%s23 + $0x40] sm:$0xff]
    %v2369 = vld [vmem:[%s23 + $0x48] sm:$0xff]
    %v2370 = vld [vmem:[%s23 + $0x50] sm:$0xff]
    %v2371 = vld [vmem:[%s23 + $0x58] sm:$0xff]
    %v2372 = vld [vmem:[%s23 + $0x60] sm:$0xff]
    %v2373 = vld [vmem:[%s23 + $0x68] sm:$0xff]
    %v2374 = vld [vmem:[%s23 + $0x70] sm:$0xff]
    %v2375 = vld [vmem:[%s23 + $0x78] sm:$0xff]
    %2376 = vmatprep.subr.mxu0 0.0
    %2377 = vmatpush1.msra.mxu0 %v2360
    %2378 = vmatprep.subr.mxu0 0.0
    %2379 = vmatpush1.msra.mxu0 %v2361
    %2380 = vmatprep.subr.mxu0 0.0
    %2381 = vmatpush1.msra.mxu0 %v2362
    %2382 = vmatprep.subr.mxu0 0.0
    %2383 = vmatpush1.msra.mxu0 %v2363
    %2384 = vmatprep.subr.mxu0 0.0
    %2385 = vmatpush1.msra.mxu0 %v2364
    %2386 = vmatprep.subr.mxu0 0.0
    %2387 = vmatpush1.msra.mxu0 %v2365
    %2388 = vmatprep.subr.mxu0 0.0
    %2389 = vmatpush1.msra.mxu0 %v2366
    %2390 = vmatprep.subr.mxu0 0.0
    %2391 = vmatpush1.msra.mxu0 %v2367
    %2392 = vmatprep.subr.mxu0 0.0
    %2393 = vmatpush1.msra.mxu0 %v2368
    %2394 = vmatprep.subr.mxu0 0.0
    %2395 = vmatpush1.msra.mxu0 %v2369
    %2396 = vmatprep.subr.mxu0 0.0
    %2397 = vmatpush1.msra.mxu0 %v2370
    %2398 = vmatprep.subr.mxu0 0.0
    %2399 = vmatpush1.msra.mxu0 %v2371
    %2400 = vmatprep.subr.mxu0 0.0
    %2401 = vmatpush1.msra.mxu0 %v2372
    %2402 = vmatprep.subr.mxu0 0.0
    %2403 = vmatpush1.msra.mxu0 %v2373
    %2404 = vmatprep.subr.mxu0 0.0
    %2405 = vmatpush1.msra.mxu0 %v2374
    %2406 = vmatprep.subr.mxu0 0.0
    %2407 = vmatpush1.msra.mxu0 %v2375
    %2408 = vmatprep.subr.mxu0 0.0
    %2409 = vmatpush1.msra.mxu0 0.0
    %2410 = vmatprep.subr.mxu0 0.0
    %2411 = vmatpush1.msra.mxu0 0.0
    %2412 = vmatprep.subr.mxu0 0.0
    %2413 = vmatpush1.msra.mxu0 0.0
    %2414 = vmatprep.subr.mxu0 0.0
    %2415 = vmatpush1.msra.mxu0 0.0
    %2416 = vmatprep.subr.mxu0 0.0
    %2417 = vmatpush1.msra.mxu0 0.0
    %2418 = vmatprep.subr.mxu0 0.0
    %2419 = vmatpush1.msra.mxu0 0.0
    %2420 = vmatprep.subr.mxu0 0.0
    %2421 = vmatpush1.msra.mxu0 0.0
    %2422 = vmatprep.subr.mxu0 0.0
    %2423 = vmatpush1.msra.mxu0 0.0
    %2424 = vmatprep.subr.mxu0 0.0
    %2425 = vmatpush1.msra.mxu0 0.0
    %2426 = vmatprep.subr.mxu0 0.0
    %2427 = vmatpush1.msra.mxu0 0.0
    %2428 = vmatprep.subr.mxu0 0.0
    %2429 = vmatpush1.msra.mxu0 0.0
    %2430 = vmatprep.subr.mxu0 0.0
    %2431 = vmatpush1.msra.mxu0 0.0
    %2432 = vmatprep.subr.mxu0 0.0
    %2433 = vmatpush1.msra.mxu0 0.0
    %2434 = vmatprep.subr.mxu0 0.0
    %2435 = vmatpush1.msra.mxu0 0.0
    %2436 = vmatprep.subr.mxu0 0.0
    %2437 = vmatpush1.msra.mxu0 0.0
    %2438 = vmatprep.subr.mxu0 0.0
    %2439 = vmatpush1.msra.mxu0 0.0
    %2440 = vmatprep.mubr.f32.mxu0 0.0
    %2441 = vmatmul.mubr.f32.gmra.mrb[0].mxu0 %v2356
    %v2442 = vpop.f32.mrb[0].mxu0
    %v2443 = vadd.f32 0.0, %v2442
    %v2444 = vpop.f32.mrb[0].mxu0
    %2445 = vmatprep.mubr.f32.mxu0 0.0
    %2446 = vmatmul.mubr.f32.gmra.mrb[0].mxu0 %v2357
    %v2447 = vpop.f32.mrb[0].mxu0
    %v2448 = vadd.f32 0.0, %v2447
    %v2449 = vpop.f32.mrb[0].mxu0
    %2450 = vmatprep.mubr.f32.mxu0 0.0
    %2451 = vmatmul.mubr.f32.gmra.mrb[0].mxu0 %v2358
    %v2452 = vpop.f32.mrb[0].mxu0
    %v2453 = vadd.f32 0.0, %v2452
    %v2454 = vpop.f32.mrb[0].mxu0
    %2455 = vmatprep.mubr.f32.mxu0 0.0
    %2456 = vmatmul.mubr.f32.gmra.mrb[0].mxu0 %v2359
    %v2457 = vpop.f32.mrb[0].mxu0
    %v2458 = vadd.f32 0.0, %v2457
    %v2459 = vpop.f32.mrb[0].mxu0
    %2460 = vdwg.mxu0
    %v2463 = vrot.slane %v2443, 1
    %v2464 = vrot.slane %v2448, 1
    %v2465 = vsel %vm268, %v2463, %v2464
    %v2469 = vsel %vm268, 0.0, %v2463
    %v2470 = vsel %vm268, %v2464, 0.0
    %v2472 = vrot.slane %v2469, 1
    %v2473 = vsel %vm268, %v279, %v2472
    %v2474 = vrot.slane %v2465, 1
    %v2475 = vsel %vm268, %v2472, %v2474
    %2476 = vrot.lane.b32.xlu0 %v2473, 32
    %v2477 = vpop.permute.xlu0 %2476
    %2478 = vrot.lane.b32.xlu0 %v2475, 32
    %v2479 = vpop.permute.xlu0 %2478
    %v2482 = vrot.slane %v2469, 2
    %v2483 = vsel %vm290, %v291, %v2482
    %v2484 = vrot.slane %v2465, 2
    %v2485 = vsel %vm290, %v2482, %v2484
    %2486 = vrot.lane.b32.xlu0 %v2483, 64
    %v2487 = vpop.permute.xlu0 %2486
    %2488 = vrot.lane.b32.xlu0 %v2485, 64
    %v2489 = vpop.permute.xlu0 %2488
    %v2492 = vrot.slane %v2469, 3
    %v2493 = vsel %vm302, %v303, %v2492
    %v2494 = vrot.slane %v2465, 3
    %v2495 = vsel %vm302, %v2492, %v2494
    %2496 = vrot.lane.b32.xlu0 %v2493, 96
    %v2497 = vpop.permute.xlu0 %2496
    %2498 = vrot.lane.b32.xlu0 %v2495, 96
    %v2499 = vpop.permute.xlu0 %2498
    %v2502 = vrot.slane %v2469, 4
    %v2503 = vsel %vm177, %v314, %v2502
    %v2504 = vrot.slane %v2465, 4
    %v2505 = vsel %vm177, %v2502, %v2504
    %v2508 = vrot.slane %v2469, 5
    %v2509 = vsel %vm321, %v322, %v2508
    %v2510 = vrot.slane %v2465, 5
    %v2511 = vsel %vm321, %v2508, %v2510
    %2512 = vrot.lane.b32.xlu0 %v2509, 32
    %v2513 = vpop.permute.xlu0 %2512
    %2514 = vrot.lane.b32.xlu0 %v2511, 32
    %v2515 = vpop.permute.xlu0 %2514
    %v2518 = vrot.slane %v2469, 6
    %v2519 = vsel %vm333, %v334, %v2518
    %v2520 = vrot.slane %v2465, 6
    %v2521 = vsel %vm333, %v2518, %v2520
    %2522 = vrot.lane.b32.xlu0 %v2519, 64
    %v2523 = vpop.permute.xlu0 %2522
    %2524 = vrot.lane.b32.xlu0 %v2521, 64
    %v2525 = vpop.permute.xlu0 %2524
    %v2528 = vrot.slane %v2469, 7
    %v2529 = vsel %vm345, %v346, %v2528
    %v2530 = vrot.slane %v2465, 7
    %v2531 = vsel %vm345, %v2528, %v2530
    %2532 = vrot.lane.b32.xlu0 %v2529, 96
    %v2533 = vpop.permute.xlu0 %2532
    %2534 = vrot.lane.b32.xlu0 %v2531, 96
    %v2535 = vpop.permute.xlu0 %2534
    %v2539 = vrot.slane %v2470, 1
    %v2540 = vsel %vm268, %v2474, %v2539
    %2541 = vrot.lane.b32.xlu0 %v2540, 32
    %v2542 = vpop.permute.xlu0 %2541
    %v2544 = vrot.slane %v2470, 2
    %v2545 = vsel %vm290, %v2484, %v2544
    %2546 = vrot.lane.b32.xlu0 %v2545, 64
    %v2547 = vpop.permute.xlu0 %2546
    %v2549 = vrot.slane %v2470, 3
    %v2550 = vsel %vm302, %v2494, %v2549
    %2551 = vrot.lane.b32.xlu0 %v2550, 96
    %v2552 = vpop.permute.xlu0 %2551
    %v2554 = vrot.slane %v2470, 4
    %v2555 = vsel %vm177, %v2504, %v2554
    %v2557 = vrot.slane %v2470, 5
    %v2558 = vsel %vm321, %v2510, %v2557
    %2559 = vrot.lane.b32.xlu0 %v2558, 32
    %v2560 = vpop.permute.xlu0 %2559
    %v2562 = vrot.slane %v2470, 6
    %v2563 = vsel %vm333, %v2520, %v2562
    %2564 = vrot.lane.b32.xlu0 %v2563, 64
    %v2565 = vpop.permute.xlu0 %2564
    %v2567 = vrot.slane %v2470, 7
    %v2568 = vsel %vm345, %v2530, %v2567
    %2569 = vrot.lane.b32.xlu0 %v2568, 96
    %v2570 = vpop.permute.xlu0 %2569
    %v2572 = vsel %vm391, 0.0, %v2477
    %v2573 = vsel %vm391, %v2469, %v2479
    %v2574 = vsel %vm394, %v2572, %v2487
    %v2575 = vsel %vm394, %v2573, %v2489
    %v2576 = vsel %vm397, %v2574, %v2497
    %v2577 = vsel %vm397, %v2575, %v2499
    %v2578 = vsel %vm391, %v2503, %v2513
    %v2579 = vsel %vm391, %v2505, %v2515
    %v2580 = vsel %vm394, %v2578, %v2523
    %v2581 = vsel %vm394, %v2579, %v2525
    %v2582 = vsel %vm397, %v2580, %v2533
    %v2583 = vsel %vm397, %v2581, %v2535
    %v2584 = vsel %vm391, %v2465, %v2542
    %v2585 = vsel %vm394, %v2584, %v2547
    %v2586 = vsel %vm397, %v2585, %v2552
    %v2587 = vsel %vm391, %v2555, %v2560
    %v2588 = vsel %vm394, %v2587, %v2565
    %v2589 = vsel %vm397, %v2588, %v2570
    %v2590 = vsel %vm268, %v2539, %v279
    %2591 = vrot.lane.b32.xlu0 %v2590, 32
    %v2592 = vpop.permute.xlu0 %2591
    %v2594 = vsel %vm290, %v2544, %v291
    %2595 = vrot.lane.b32.xlu0 %v2594, 64
    %v2596 = vpop.permute.xlu0 %2595
    %v2598 = vsel %vm302, %v2549, %v303
    %2599 = vrot.lane.b32.xlu0 %v2598, 96
    %v2600 = vpop.permute.xlu0 %2599
    %v2602 = vsel %vm177, %v2554, %v314
    %v2604 = vsel %vm321, %v2557, %v322
    %2605 = vrot.lane.b32.xlu0 %v2604, 32
    %v2606 = vpop.permute.xlu0 %2605
    %v2608 = vsel %vm333, %v2562, %v334
    %2609 = vrot.lane.b32.xlu0 %v2608, 64
    %v2610 = vpop.permute.xlu0 %2609
    %v2612 = vsel %vm345, %v2567, %v346
    %2613 = vrot.lane.b32.xlu0 %v2612, 96
    %v2614 = vpop.permute.xlu0 %2613
    %v2616 = vsel %vm391, %v2470, %v2592
    %v2617 = vsel %vm394, %v2616, %v2596
    %v2618 = vsel %vm397, %v2617, %v2600
    %v2619 = vsel %vm391, %v2602, %v2606
    %v2620 = vsel %vm394, %v2619, %v2610
    %v2621 = vsel %vm397, %v2620, %v2614
    %v2624 = vrot.slane %v2453, 1
    %v2625 = vrot.slane %v2458, 1
    %v2626 = vsel %vm268, %v2624, %v2625
    %v2630 = vsel %vm268, 0.0, %v2624
    %v2631 = vsel %vm268, %v2625, 0.0
    %v2633 = vrot.slane %v2630, 1
    %v2634 = vsel %vm268, %v279, %v2633
    %v2635 = vrot.slane %v2626, 1
    %v2636 = vsel %vm268, %v2633, %v2635
    %2637 = vrot.lane.b32.xlu0 %v2634, 32
    %v2638 = vpop.permute.xlu0 %2637
    %2639 = vrot.lane.b32.xlu0 %v2636, 32
    %v2640 = vpop.permute.xlu0 %2639
    %v2643 = vrot.slane %v2630, 2
    %v2644 = vsel %vm290, %v291, %v2643
    %v2645 = vrot.slane %v2626, 2
    %v2646 = vsel %vm290, %v2643, %v2645
    %2647 = vrot.lane.b32.xlu0 %v2644, 64
    %v2648 = vpop.permute.xlu0 %2647
    %2649 = vrot.lane.b32.xlu0 %v2646, 64
    %v2650 = vpop.permute.xlu0 %2649
    %v2653 = vrot.slane %v2630, 3
    %v2654 = vsel %vm302, %v303, %v2653
    %v2655 = vrot.slane %v2626, 3
    %v2656 = vsel %vm302, %v2653, %v2655
    %2657 = vrot.lane.b32.xlu0 %v2654, 96
    %v2658 = vpop.permute.xlu0 %2657
    %2659 = vrot.lane.b32.xlu0 %v2656, 96
    %v2660 = vpop.permute.xlu0 %2659
    %v2663 = vrot.slane %v2630, 4
    %v2664 = vsel %vm177, %v314, %v2663
    %v2665 = vrot.slane %v2626, 4
    %v2666 = vsel %vm177, %v2663, %v2665
    %v2669 = vrot.slane %v2630, 5
    %v2670 = vsel %vm321, %v322, %v2669
    %v2671 = vrot.slane %v2626, 5
    %v2672 = vsel %vm321, %v2669, %v2671
    %2673 = vrot.lane.b32.xlu0 %v2670, 32
    %v2674 = vpop.permute.xlu0 %2673
    %2675 = vrot.lane.b32.xlu0 %v2672, 32
    %v2676 = vpop.permute.xlu0 %2675
    %v2679 = vrot.slane %v2630, 6
    %v2680 = vsel %vm333, %v334, %v2679
    %v2681 = vrot.slane %v2626, 6
    %v2682 = vsel %vm333, %v2679, %v2681
    %2683 = vrot.lane.b32.xlu0 %v2680, 64
    %v2684 = vpop.permute.xlu0 %2683
    %2685 = vrot.lane.b32.xlu0 %v2682, 64
    %v2686 = vpop.permute.xlu0 %2685
    %v2689 = vrot.slane %v2630, 7
    %v2690 = vsel %vm345, %v346, %v2689
    %v2691 = vrot.slane %v2626, 7
    %v2692 = vsel %vm345, %v2689, %v2691
    %2693 = vrot.lane.b32.xlu0 %v2690, 96
    %v2694 = vpop.permute.xlu0 %2693
    %2695 = vrot.lane.b32.xlu0 %v2692, 96
    %v2696 = vpop.permute.xlu0 %2695
    %v2700 = vrot.slane %v2631, 1
    %v2701 = vsel %vm268, %v2635, %v2700
    %2702 = vrot.lane.b32.xlu0 %v2701, 32
    %v2703 = vpop.permute.xlu0 %2702
    %v2705 = vrot.slane %v2631, 2
    %v2706 = vsel %vm290, %v2645, %v2705
    %2707 = vrot.lane.b32.xlu0 %v2706, 64
    %v2708 = vpop.permute.xlu0 %2707
    %v2710 = vrot.slane %v2631, 3
    %v2711 = vsel %vm302, %v2655, %v2710
    %2712 = vrot.lane.b32.xlu0 %v2711, 96
    %v2713 = vpop.permute.xlu0 %2712
    %v2715 = vrot.slane %v2631, 4
    %v2716 = vsel %vm177, %v2665, %v2715
    %v2718 = vrot.slane %v2631, 5
    %v2719 = vsel %vm321, %v2671, %v2718
    %2720 = vrot.lane.b32.xlu0 %v2719, 32
    %v2721 = vpop.permute.xlu0 %2720
    %v2723 = vrot.slane %v2631, 6
    %v2724 = vsel %vm333, %v2681, %v2723
    %2725 = vrot.lane.b32.xlu0 %v2724, 64
    %v2726 = vpop.permute.xlu0 %2725
    %v2728 = vrot.slane %v2631, 7
    %v2729 = vsel %vm345, %v2691, %v2728
    %2730 = vrot.lane.b32.xlu0 %v2729, 96
    %v2731 = vpop.permute.xlu0 %2730
    %v2733 = vsel %vm391, 0.0, %v2638
    %v2734 = vsel %vm391, %v2630, %v2640
    %v2735 = vsel %vm394, %v2733, %v2648
    %v2736 = vsel %vm394, %v2734, %v2650
    %v2737 = vsel %vm397, %v2735, %v2658
    %v2738 = vsel %vm397, %v2736, %v2660
    %v2739 = vsel %vm391, %v2664, %v2674
    %v2740 = vsel %vm391, %v2666, %v2676
    %v2741 = vsel %vm394, %v2739, %v2684
    %v2742 = vsel %vm394, %v2740, %v2686
    %v2743 = vsel %vm397, %v2741, %v2694
    %v2744 = vsel %vm397, %v2742, %v2696
    %v2745 = vsel %vm391, %v2626, %v2703
    %v2746 = vsel %vm394, %v2745, %v2708
    %v2747 = vsel %vm397, %v2746, %v2713
    %v2748 = vsel %vm391, %v2716, %v2721
    %v2749 = vsel %vm394, %v2748, %v2726
    %v2750 = vsel %vm397, %v2749, %v2731
    %v2751 = vsel %vm268, %v2700, %v279
    %2752 = vrot.lane.b32.xlu0 %v2751, 32
    %v2753 = vpop.permute.xlu0 %2752
    %v2755 = vsel %vm290, %v2705, %v291
    %2756 = vrot.lane.b32.xlu0 %v2755, 64
    %v2757 = vpop.permute.xlu0 %2756
    %v2759 = vsel %vm302, %v2710, %v303
    %2760 = vrot.lane.b32.xlu0 %v2759, 96
    %v2761 = vpop.permute.xlu0 %2760
    %v2763 = vsel %vm177, %v2715, %v314
    %v2765 = vsel %vm321, %v2718, %v322
    %2766 = vrot.lane.b32.xlu0 %v2765, 32
    %v2767 = vpop.permute.xlu0 %2766
    %v2769 = vsel %vm333, %v2723, %v334
    %2770 = vrot.lane.b32.xlu0 %v2769, 64
    %v2771 = vpop.permute.xlu0 %2770
    %v2773 = vsel %vm345, %v2728, %v346
    %2774 = vrot.lane.b32.xlu0 %v2773, 96
    %v2775 = vpop.permute.xlu0 %2774
    %v2777 = vsel %vm391, %v2631, %v2753
    %v2778 = vsel %vm394, %v2777, %v2757
    %v2779 = vsel %vm397, %v2778, %v2761
    %v2780 = vsel %vm391, %v2763, %v2767
    %v2781 = vsel %vm394, %v2780, %v2771
    %v2782 = vsel %vm397, %v2781, %v2775
    %v2783 = vld [vmem:[%s25] sm:$0xff]
    %v2784 = vld [vmem:[%s25 + $0x8] sm:$0xff]
    %v2785 = vld [vmem:[%s25 + $0x10] sm:$0xff]
    %v2786 = vld [vmem:[%s25 + $0x18] sm:$0xff]
    %v2787 = vld [vmem:[%s25 + $0x20] sm:$0xff]
    %v2788 = vld [vmem:[%s25 + $0x28] sm:$0xff]
    %v2789 = vld [vmem:[%s25 + $0x30] sm:$0xff]
    %v2790 = vld [vmem:[%s25 + $0x38] sm:$0xff]
    %v2791 = vld [vmem:[%s25 + $0x40] sm:$0xff]
    %v2792 = vld [vmem:[%s25 + $0x48] sm:$0xff]
    %v2793 = vld [vmem:[%s25 + $0x50] sm:$0xff]
    %v2794 = vld [vmem:[%s25 + $0x58] sm:$0xff]
    %v2795 = vld [vmem:[%s25 + $0x60] sm:$0xff]
    %v2796 = vld [vmem:[%s25 + $0x68] sm:$0xff]
    %v2797 = vld [vmem:[%s25 + $0x70] sm:$0xff]
    %v2798 = vld [vmem:[%s25 + $0x78] sm:$0xff]
    %v2799 = vld [vmem:[%s25 + $0x80] sm:$0xff]
    %v2800 = vld [vmem:[%s25 + $0x88] sm:$0xff]
    %v2801 = vld [vmem:[%s25 + $0x90] sm:$0xff]
    %v2802 = vld [vmem:[%s25 + $0x98] sm:$0xff]
    %v2803 = vld [vmem:[%s25 + $0xa0] sm:$0xff]
    %v2804 = vld [vmem:[%s25 + $0xa8] sm:$0xff]
    %v2805 = vld [vmem:[%s25 + $0xb0] sm:$0xff]
    %v2806 = vld [vmem:[%s25 + $0xb8] sm:$0xff]
    %v2807 = vld [vmem:[%s25 + $0xc0] sm:$0xff]
    %v2808 = vld [vmem:[%s25 + $0xc8] sm:$0xff]
    %v2809 = vld [vmem:[%s25 + $0xd0] sm:$0xff]
    %v2810 = vld [vmem:[%s25 + $0xd8] sm:$0xff]
    %v2811 = vld [vmem:[%s25 + $0xe0] sm:$0xff]
    %v2812 = vld [vmem:[%s25 + $0xe8] sm:$0xff]
    %v2813 = vld [vmem:[%s25 + $0xf0] sm:$0xff]
    %v2814 = vld [vmem:[%s25 + $0xf8] sm:$0xff]
    %v2815 = vld [vmem:[%s25 + $0x100] sm:$0xff]
    %v2816 = vld [vmem:[%s25 + $0x108] sm:$0xff]
    %v2817 = vld [vmem:[%s25 + $0x110] sm:$0xff]
    %v2818 = vld [vmem:[%s25 + $0x118] sm:$0xff]
    %v2819 = vld [vmem:[%s25 + $0x120] sm:$0xff]
    %v2820 = vld [vmem:[%s25 + $0x128] sm:$0xff]
    %v2821 = vld [vmem:[%s25 + $0x130] sm:$0xff]
    %v2822 = vld [vmem:[%s25 + $0x138] sm:$0xff]
    %v2823 = vld [vmem:[%s25 + $0x140] sm:$0xff]
    %v2824 = vld [vmem:[%s25 + $0x148] sm:$0xff]
    %v2825 = vld [vmem:[%s25 + $0x150] sm:$0xff]
    %v2826 = vld [vmem:[%s25 + $0x158] sm:$0xff]
    %v2827 = vld [vmem:[%s25 + $0x160] sm:$0xff]
    %v2828 = vld [vmem:[%s25 + $0x168] sm:$0xff]
    %v2829 = vld [vmem:[%s25 + $0x170] sm:$0xff]
    %v2830 = vld [vmem:[%s25 + $0x178] sm:$0xff]
    %v2831 = vld [vmem:[%s25 + $0x180] sm:$0xff]
    %v2832 = vld [vmem:[%s25 + $0x188] sm:$0xff]
    %v2833 = vld [vmem:[%s25 + $0x190] sm:$0xff]
    %v2834 = vld [vmem:[%s25 + $0x198] sm:$0xff]
    %v2835 = vld [vmem:[%s25 + $0x1a0] sm:$0xff]
    %v2836 = vld [vmem:[%s25 + $0x1a8] sm:$0xff]
    %v2837 = vld [vmem:[%s25 + $0x1b0] sm:$0xff]
    %v2838 = vld [vmem:[%s25 + $0x1b8] sm:$0xff]
    %v2839 = vld [vmem:[%s25 + $0x1c0] sm:$0xff]
    %v2840 = vld [vmem:[%s25 + $0x1c8] sm:$0xff]
    %v2841 = vld [vmem:[%s25 + $0x1d0] sm:$0xff]
    %v2842 = vld [vmem:[%s25 + $0x1d8] sm:$0xff]
    %v2843 = vld [vmem:[%s25 + $0x1e0] sm:$0xff]
    %v2844 = vld [vmem:[%s25 + $0x1e8] sm:$0xff]
    %v2845 = vld [vmem:[%s25 + $0x1f0] sm:$0xff]
    %v2846 = vld [vmem:[%s25 + $0x1f8] sm:$0xff]
    %v2847 = vld [vmem:[%s25 + $0x200] sm:$0xff]
    %v2848 = vld [vmem:[%s25 + $0x208] sm:$0xff]
    %v2849 = vld [vmem:[%s25 + $0x210] sm:$0xff]
    %v2850 = vld [vmem:[%s25 + $0x218] sm:$0xff]
    %v2851 = vld [vmem:[%s25 + $0x220] sm:$0xff]
    %v2852 = vld [vmem:[%s25 + $0x228] sm:$0xff]
    %v2853 = vld [vmem:[%s25 + $0x230] sm:$0xff]
    %v2854 = vld [vmem:[%s25 + $0x238] sm:$0xff]
    %v2855 = vld [vmem:[%s25 + $0x240] sm:$0xff]
    %v2856 = vld [vmem:[%s25 + $0x248] sm:$0xff]
    %v2857 = vld [vmem:[%s25 + $0x250] sm:$0xff]
    %v2858 = vld [vmem:[%s25 + $0x258] sm:$0xff]
    %v2859 = vld [vmem:[%s25 + $0x260] sm:$0xff]
    %v2860 = vld [vmem:[%s25 + $0x268] sm:$0xff]
    %v2861 = vld [vmem:[%s25 + $0x270] sm:$0xff]
    %v2862 = vld [vmem:[%s25 + $0x278] sm:$0xff]
    %v2863 = vld [vmem:[%s25 + $0x280] sm:$0xff]
    %v2864 = vld [vmem:[%s25 + $0x288] sm:$0xff]
    %v2865 = vld [vmem:[%s25 + $0x290] sm:$0xff]
    %v2866 = vld [vmem:[%s25 + $0x298] sm:$0xff]
    %v2867 = vld [vmem:[%s25 + $0x2a0] sm:$0xff]
    %v2868 = vld [vmem:[%s25 + $0x2a8] sm:$0xff]
    %v2869 = vld [vmem:[%s25 + $0x2b0] sm:$0xff]
    %v2870 = vld [vmem:[%s25 + $0x2b8] sm:$0xff]
    %v2871 = vld [vmem:[%s25 + $0x2c0] sm:$0xff]
    %v2872 = vld [vmem:[%s25 + $0x2c8] sm:$0xff]
    %v2873 = vld [vmem:[%s25 + $0x2d0] sm:$0xff]
    %v2874 = vld [vmem:[%s25 + $0x2d8] sm:$0xff]
    %v2875 = vld [vmem:[%s25 + $0x2e0] sm:$0xff]
    %v2876 = vld [vmem:[%s25 + $0x2e8] sm:$0xff]
    %v2877 = vld [vmem:[%s25 + $0x2f0] sm:$0xff]
    %v2878 = vld [vmem:[%s25 + $0x2f8] sm:$0xff]
    %v2879 = vld [vmem:[%s25 + $0x300] sm:$0xff]
    %v2880 = vld [vmem:[%s25 + $0x308] sm:$0xff]
    %v2881 = vld [vmem:[%s25 + $0x310] sm:$0xff]
    %v2882 = vld [vmem:[%s25 + $0x318] sm:$0xff]
    %v2883 = vld [vmem:[%s25 + $0x320] sm:$0xff]
    %v2884 = vld [vmem:[%s25 + $0x328] sm:$0xff]
    %v2885 = vld [vmem:[%s25 + $0x330] sm:$0xff]
    %v2886 = vld [vmem:[%s25 + $0x338] sm:$0xff]
    %v2887 = vld [vmem:[%s25 + $0x340] sm:$0xff]
    %v2888 = vld [vmem:[%s25 + $0x348] sm:$0xff]
    %v2889 = vld [vmem:[%s25 + $0x350] sm:$0xff]
    %v2890 = vld [vmem:[%s25 + $0x358] sm:$0xff]
    %v2891 = vld [vmem:[%s25 + $0x360] sm:$0xff]
    %v2892 = vld [vmem:[%s25 + $0x368] sm:$0xff]
    %v2893 = vld [vmem:[%s25 + $0x370] sm:$0xff]
    %v2894 = vld [vmem:[%s25 + $0x378] sm:$0xff]
    %v2895 = vld [vmem:[%s25 + $0x380] sm:$0xff]
    %v2896 = vld [vmem:[%s25 + $0x388] sm:$0xff]
    %v2897 = vld [vmem:[%s25 + $0x390] sm:$0xff]
    %v2898 = vld [vmem:[%s25 + $0x398] sm:$0xff]
    %v2899 = vld [vmem:[%s25 + $0x3a0] sm:$0xff]
    %v2900 = vld [vmem:[%s25 + $0x3a8] sm:$0xff]
    %v2901 = vld [vmem:[%s25 + $0x3b0] sm:$0xff]
    %v2902 = vld [vmem:[%s25 + $0x3b8] sm:$0xff]
    %v2903 = vld [vmem:[%s25 + $0x3c0] sm:$0xff]
    %v2904 = vld [vmem:[%s25 + $0x3c8] sm:$0xff]
    %v2905 = vld [vmem:[%s25 + $0x3d0] sm:$0xff]
    %v2906 = vld [vmem:[%s25 + $0x3d8] sm:$0xff]
    %v2908 = vsel %vm397, %v2620, 0
    %v2911 = vsel %vm397, %v2781, 0
    %2913 = vmatprep.subr.mxu0 0.0
    %2914 = vmatpush1.msra.mxu0 %v2783
    %2915 = vmatprep.subr.mxu0 0.0
    %2916 = vmatpush1.msra.mxu0 %v2784
    %2917 = vmatprep.subr.mxu0 0.0
    %2918 = vmatpush1.msra.mxu0 %v2785
    %2919 = vmatprep.subr.mxu0 0.0
    %2920 = vmatpush1.msra.mxu0 %v2786
    %2921 = vmatprep.subr.mxu0 0.0
    %2922 = vmatpush1.msra.mxu0 %v2787
    %2923 = vmatprep.subr.mxu0 0.0
    %2924 = vmatpush1.msra.mxu0 %v2788
    %2925 = vmatprep.subr.mxu0 0.0
    %2926 = vmatpush1.msra.mxu0 %v2789
    %2927 = vmatprep.subr.mxu0 0.0
    %2928 = vmatpush1.msra.mxu0 %v2790
    %2929 = vmatprep.subr.mxu0 0.0
    %2930 = vmatpush1.msra.mxu0 %v2791
    %2931 = vmatprep.subr.mxu0 0.0
    %2932 = vmatpush1.msra.mxu0 %v2792
    %2933 = vmatprep.subr.mxu0 0.0
    %2934 = vmatpush1.msra.mxu0 %v2793
    %2935 = vmatprep.subr.mxu0 0.0
    %2936 = vmatpush1.msra.mxu0 %v2794
    %2937 = vmatprep.subr.mxu0 0.0
    %2938 = vmatpush1.msra.mxu0 %v2795
    %2939 = vmatprep.subr.mxu0 0.0
    %2940 = vmatpush1.msra.mxu0 %v2796
    %2941 = vmatprep.subr.mxu0 0.0
    %2942 = vmatpush1.msra.mxu0 %v2797
    %2943 = vmatprep.subr.mxu0 0.0
    %2944 = vmatpush1.msra.mxu0 %v2798
    %2945 = vmatprep.subr.mxu0 0.0
    %2946 = vmatpush1.msra.mxu0 %v2799
    %2947 = vmatprep.subr.mxu0 0.0
    %2948 = vmatpush1.msra.mxu0 %v2800
    %2949 = vmatprep.subr.mxu0 0.0
    %2950 = vmatpush1.msra.mxu0 %v2801
    %2951 = vmatprep.subr.mxu0 0.0
    %2952 = vmatpush1.msra.mxu0 %v2802
    %2953 = vmatprep.subr.mxu0 0.0
    %2954 = vmatpush1.msra.mxu0 %v2803
    %2955 = vmatprep.subr.mxu0 0.0
    %2956 = vmatpush1.msra.mxu0 %v2804
    %2957 = vmatprep.subr.mxu0 0.0
    %2958 = vmatpush1.msra.mxu0 %v2805
    %2959 = vmatprep.subr.mxu0 0.0
    %2960 = vmatpush1.msra.mxu0 %v2806
    %2961 = vmatprep.subr.mxu0 0.0
    %2962 = vmatpush1.msra.mxu0 %v2807
    %2963 = vmatprep.subr.mxu0 0.0
    %2964 = vmatpush1.msra.mxu0 %v2808
    %2965 = vmatprep.subr.mxu0 0.0
    %2966 = vmatpush1.msra.mxu0 %v2809
    %2967 = vmatprep.subr.mxu0 0.0
    %2968 = vmatpush1.msra.mxu0 %v2810
    %2969 = vmatprep.subr.mxu0 0.0
    %2970 = vmatpush1.msra.mxu0 %v2811
    %2971 = vmatprep.subr.mxu0 0.0
    %2972 = vmatpush1.msra.mxu0 %v2812
    %2973 = vmatprep.subr.mxu0 0.0
    %2974 = vmatpush1.msra.mxu0 %v2813
    %2975 = vmatprep.subr.mxu0 0.0
    %2976 = vmatpush1.msra.mxu0 %v2814
    %2977 = vmatprep.mubr.f32.mxu0 %v2582
    %2978 = vmatmul.mubr.f32.gmra.mrb[0].mxu0 %v2576
    %v2979 = vpop.f32.mrb[0].mxu0
    %v2980 = vadd.f32 0.0, %v2979
    %v2981 = vpop.f32.mrb[0].mxu0
    %2982 = vmatprep.mubr.f32.mxu0 %v2583
    %2983 = vmatmul.mubr.f32.gmra.mrb[0].mxu0 %v2577
    %v2984 = vpop.f32.mrb[0].mxu0
    %v2985 = vadd.f32 0.0, %v2984
    %v2986 = vpop.f32.mrb[0].mxu0
    %2987 = vmatprep.mubr.f32.mxu0 %v2743
    %2988 = vmatmul.mubr.f32.gmra.mrb[0].mxu0 %v2737
    %v2989 = vpop.f32.mrb[0].mxu0
    %v2990 = vadd.f32 0.0, %v2989
    %v2991 = vpop.f32.mrb[0].mxu0
    %2992 = vmatprep.mubr.f32.mxu0 %v2744
    %2993 = vmatmul.mubr.f32.gmra.mrb[0].mxu0 %v2738
    %v2994 = vpop.f32.mrb[0].mxu0
    %v2995 = vadd.f32 0.0, %v2994
    %v2996 = vpop.f32.mrb[0].mxu0
    %2997 = vdwg.mxu0
    %2998 = vmatprep.subr.mxu0 0.0
    %2999 = vmatpush1.msra.mxu0 %v2815
    %3000 = vmatprep.subr.mxu0 0.0
    %3001 = vmatpush1.msra.mxu0 %v2816
    %3002 = vmatprep.subr.mxu0 0.0
    %3003 = vmatpush1.msra.mxu0 %v2817
    %3004 = vmatprep.subr.mxu0 0.0
    %3005 = vmatpush1.msra.mxu0 %v2818
    %3006 = vmatprep.subr.mxu0 0.0
    %3007 = vmatpush1.msra.mxu0 %v2819
    %3008 = vmatprep.subr.mxu0 0.0
    %3009 = vmatpush1.msra.mxu0 %v2820
    %3010 = vmatprep.subr.mxu0 0.0
    %3011 = vmatpush1.msra.mxu0 %v2821
    %3012 = vmatprep.subr.mxu0 0.0
    %3013 = vmatpush1.msra.mxu0 %v2822
    %3014 = vmatprep.subr.mxu0 0.0
    %3015 = vmatpush1.msra.mxu0 %v2823
    %3016 = vmatprep.subr.mxu0 0.0
    %3017 = vmatpush1.msra.mxu0 %v2824
    %3018 = vmatprep.subr.mxu0 0.0
    %3019 = vmatpush1.msra.mxu0 %v2825
    %3020 = vmatprep.subr.mxu0 0.0
    %3021 = vmatpush1.msra.mxu0 %v2826
    %3022 = vmatprep.subr.mxu0 0.0
    %3023 = vmatpush1.msra.mxu0 %v2827
    %3024 = vmatprep.subr.mxu0 0.0
    %3025 = vmatpush1.msra.mxu0 %v2828
    %3026 = vmatprep.subr.mxu0 0.0
    %3027 = vmatpush1.msra.mxu0 %v2829
    %3028 = vmatprep.subr.mxu0 0.0
    %3029 = vmatpush1.msra.mxu0 %v2830
    %3030 = vmatprep.subr.mxu0 0.0
    %3031 = vmatpush1.msra.mxu0 %v2831
    %3032 = vmatprep.subr.mxu0 0.0
    %3033 = vmatpush1.msra.mxu0 %v2832
    %3034 = vmatprep.subr.mxu0 0.0
    %3035 = vmatpush1.msra.mxu0 %v2833
    %3036 = vmatprep.subr.mxu0 0.0
    %3037 = vmatpush1.msra.mxu0 %v2834
    %3038 = vmatprep.subr.mxu0 0.0
    %3039 = vmatpush1.msra.mxu0 %v2835
    %3040 = vmatprep.subr.mxu0 0.0
    %3041 = vmatpush1.msra.mxu0 %v2836
    %3042 = vmatprep.subr.mxu0 0.0
    %3043 = vmatpush1.msra.mxu0 %v2837
    %3044 = vmatprep.subr.mxu0 0.0
    %3045 = vmatpush1.msra.mxu0 %v2838
    %3046 = vmatprep.subr.mxu0 0.0
    %3047 = vmatpush1.msra.mxu0 %v2839
    %3048 = vmatprep.subr.mxu0 0.0
    %3049 = vmatpush1.msra.mxu0 %v2840
    %3050 = vmatprep.subr.mxu0 0.0
    %3051 = vmatpush1.msra.mxu0 %v2841
    %3052 = vmatprep.subr.mxu0 0.0
    %3053 = vmatpush1.msra.mxu0 %v2842
    %3054 = vmatprep.subr.mxu0 0.0
    %3055 = vmatpush1.msra.mxu0 %v2843
    %3056 = vmatprep.subr.mxu0 0.0
    %3057 = vmatpush1.msra.mxu0 %v2844
    %3058 = vmatprep.subr.mxu0 0.0
    %3059 = vmatpush1.msra.mxu0 %v2845
    %3060 = vmatprep.subr.mxu0 0.0
    %3061 = vmatpush1.msra.mxu0 %v2846
    %3062 = vmatprep.mubr.f32.mxu0 %v2583
    %3063 = vmatmul.mubr.f32.gmra.mrb[0].mxu0 %v2577
    %v3064 = vpop.f32.mrb[0].mxu0
    %v3065 = vadd.f32 %v2980, %v3064
    %v3066 = vpop.f32.mrb[0].mxu0
    %3067 = vmatprep.mubr.f32.mxu0 %v2589
    %3068 = vmatmul.mubr.f32.gmra.mrb[0].mxu0 %v2586
    %v3069 = vpop.f32.mrb[0].mxu0
    %v3070 = vadd.f32 %v2985, %v3069
    %v3071 = vpop.f32.mrb[0].mxu0
    %3072 = vmatprep.mubr.f32.mxu0 %v2744
    %3073 = vmatmul.mubr.f32.gmra.mrb[0].mxu0 %v2738
    %v3074 = vpop.f32.mrb[0].mxu0
    %v3075 = vadd.f32 %v2990, %v3074
    %v3076 = vpop.f32.mrb[0].mxu0
    %3077 = vmatprep.mubr.f32.mxu0 %v2750
    %3078 = vmatmul.mubr.f32.gmra.mrb[0].mxu0 %v2747
    %v3079 = vpop.f32.mrb[0].mxu0
    %v3080 = vadd.f32 %v2995, %v3079
    %v3081 = vpop.f32.mrb[0].mxu0
    %3082 = vdwg.mxu0
    %3083 = vmatprep.subr.mxu0 0.0
    %3084 = vmatpush1.msra.mxu0 %v2847
    %3085 = vmatprep.subr.mxu0 0.0
    %3086 = vmatpush1.msra.mxu0 %v2848
    %3087 = vmatprep.subr.mxu0 0.0
    %3088 = vmatpush1.msra.mxu0 %v2849
    %3089 = vmatprep.subr.mxu0 0.0
    %3090 = vmatpush1.msra.mxu0 %v2850
    %3091 = vmatprep.subr.mxu0 0.0
    %3092 = vmatpush1.msra.mxu0 %v2851
    %3093 = vmatprep.subr.mxu0 0.0
    %3094 = vmatpush1.msra.mxu0 %v2852
    %3095 = vmatprep.subr.mxu0 0.0
    %3096 = vmatpush1.msra.mxu0 %v2853
    %3097 = vmatprep.subr.mxu0 0.0
    %3098 = vmatpush1.msra.mxu0 %v2854
    %3099 = vmatprep.subr.mxu0 0.0
    %3100 = vmatpush1.msra.mxu0 %v2855
    %3101 = vmatprep.subr.mxu0 0.0
    %3102 = vmatpush1.msra.mxu0 %v2856
    %3103 = vmatprep.subr.mxu0 0.0
    %3104 = vmatpush1.msra.mxu0 %v2857
    %3105 = vmatprep.subr.mxu0 0.0
    %3106 = vmatpush1.msra.mxu0 %v2858
    %3107 = vmatprep.subr.mxu0 0.0
    %3108 = vmatpush1.msra.mxu0 %v2859
    %3109 = vmatprep.subr.mxu0 0.0
    %3110 = vmatpush1.msra.mxu0 %v2860
    %3111 = vmatprep.subr.mxu0 0.0
    %3112 = vmatpush1.msra.mxu0 %v2861
    %3113 = vmatprep.subr.mxu0 0.0
    %3114 = vmatpush1.msra.mxu0 %v2862
    %3115 = vmatprep.subr.mxu0 0.0
    %3116 = vmatpush1.msra.mxu0 %v2863
    %3117 = vmatprep.subr.mxu0 0.0
    %3118 = vmatpush1.msra.mxu0 %v2864
    %3119 = vmatprep.subr.mxu0 0.0
    %3120 = vmatpush1.msra.mxu0 %v2865
    %3121 = vmatprep.subr.mxu0 0.0
    %3122 = vmatpush1.msra.mxu0 %v2866
    %3123 = vmatprep.subr.mxu0 0.0
    %3124 = vmatpush1.msra.mxu0 %v2867
    %3125 = vmatprep.subr.mxu0 0.0
    %3126 = vmatpush1.msra.mxu0 %v2868
    %3127 = vmatprep.subr.mxu0 0.0
    %3128 = vmatpush1.msra.mxu0 %v2869
    %3129 = vmatprep.subr.mxu0 0.0
    %3130 = vmatpush1.msra.mxu0 %v2870
    %3131 = vmatprep.subr.mxu0 0.0
    %3132 = vmatpush1.msra.mxu0 %v2871
    %3133 = vmatprep.subr.mxu0 0.0
    %3134 = vmatpush1.msra.mxu0 %v2872
    %3135 = vmatprep.subr.mxu0 0.0
    %3136 = vmatpush1.msra.mxu0 %v2873
    %3137 = vmatprep.subr.mxu0 0.0
    %3138 = vmatpush1.msra.mxu0 %v2874
    %3139 = vmatprep.subr.mxu0 0.0
    %3140 = vmatpush1.msra.mxu0 %v2875
    %3141 = vmatprep.subr.mxu0 0.0
    %3142 = vmatpush1.msra.mxu0 %v2876
    %3143 = vmatprep.subr.mxu0 0.0
    %3144 = vmatpush1.msra.mxu0 %v2877
    %3145 = vmatprep.subr.mxu0 0.0
    %3146 = vmatpush1.msra.mxu0 %v2878
    %3147 = vmatprep.mubr.f32.mxu0 %v2589
    %3148 = vmatmul.mubr.f32.gmra.mrb[0].mxu0 %v2586
    %v3149 = vpop.f32.mrb[0].mxu0
    %v3150 = vadd.f32 %v3065, %v3149
    %v3151 = vpop.f32.mrb[0].mxu0
    %3152 = vmatprep.mubr.f32.mxu0 %v2621
    %3153 = vmatmul.mubr.f32.gmra.mrb[0].mxu0 %v2618
    %v3154 = vpop.f32.mrb[0].mxu0
    %v3155 = vadd.f32 %v3070, %v3154
    %v3156 = vpop.f32.mrb[0].mxu0
    %3157 = vmatprep.mubr.f32.mxu0 %v2750
    %3158 = vmatmul.mubr.f32.gmra.mrb[0].mxu0 %v2747
    %v3159 = vpop.f32.mrb[0].mxu0
    %v3160 = vadd.f32 %v3075, %v3159
    %v3161 = vpop.f32.mrb[0].mxu0
    %3162 = vmatprep.mubr.f32.mxu0 %v2782
    %3163 = vmatmul.mubr.f32.gmra.mrb[0].mxu0 %v2779
    %v3164 = vpop.f32.mrb[0].mxu0
    %v3165 = vadd.f32 %v3080, %v3164
    %v3166 = vpop.f32.mrb[0].mxu0
    %3167 = vdwg.mxu0
    %3168 = vmatprep.subr.mxu0 0.0
    %3169 = vmatpush1.msra.mxu0 %v2879
    %3170 = vmatprep.subr.mxu0 0.0
    %3171 = vmatpush1.msra.mxu0 %v2880
    %3172 = vmatprep.subr.mxu0 0.0
    %3173 = vmatpush1.msra.mxu0 %v2881
    %3174 = vmatprep.subr.mxu0 0.0
    %3175 = vmatpush1.msra.mxu0 %v2882
    %3176 = vmatprep.subr.mxu0 0.0
    %3177 = vmatpush1.msra.mxu0 %v2883
    %3178 = vmatprep.subr.mxu0 0.0
    %3179 = vmatpush1.msra.mxu0 %v2884
    %3180 = vmatprep.subr.mxu0 0.0
    %3181 = vmatpush1.msra.mxu0 %v2885
    %3182 = vmatprep.subr.mxu0 0.0
    %3183 = vmatpush1.msra.mxu0 %v2886
    %3184 = vmatprep.subr.mxu0 0.0
    %3185 = vmatpush1.msra.mxu0 %v2887
    %3186 = vmatprep.subr.mxu0 0.0
    %3187 = vmatpush1.msra.mxu0 %v2888
    %3188 = vmatprep.subr.mxu0 0.0
    %3189 = vmatpush1.msra.mxu0 %v2889
    %3190 = vmatprep.subr.mxu0 0.0
    %3191 = vmatpush1.msra.mxu0 %v2890
    %3192 = vmatprep.subr.mxu0 0.0
    %3193 = vmatpush1.msra.mxu0 %v2891
    %3194 = vmatprep.subr.mxu0 0.0
    %3195 = vmatpush1.msra.mxu0 %v2892
    %3196 = vmatprep.subr.mxu0 0.0
    %3197 = vmatpush1.msra.mxu0 %v2893
    %3198 = vmatprep.subr.mxu0 0.0
    %3199 = vmatpush1.msra.mxu0 %v2894
    %3200 = vmatprep.subr.mxu0 0.0
    %3201 = vmatpush1.msra.mxu0 %v2895
    %3202 = vmatprep.subr.mxu0 0.0
    %3203 = vmatpush1.msra.mxu0 %v2896
    %3204 = vmatprep.subr.mxu0 0.0
    %3205 = vmatpush1.msra.mxu0 %v2897
    %3206 = vmatprep.subr.mxu0 0.0
    %3207 = vmatpush1.msra.mxu0 %v2898
    %3208 = vmatprep.subr.mxu0 0.0
    %3209 = vmatpush1.msra.mxu0 %v2899
    %3210 = vmatprep.subr.mxu0 0.0
    %3211 = vmatpush1.msra.mxu0 %v2900
    %3212 = vmatprep.subr.mxu0 0.0
    %3213 = vmatpush1.msra.mxu0 %v2901
    %3214 = vmatprep.subr.mxu0 0.0
    %3215 = vmatpush1.msra.mxu0 %v2902
    %3216 = vmatprep.subr.mxu0 0.0
    %3217 = vmatpush1.msra.mxu0 %v2903
    %3218 = vmatprep.subr.mxu0 0.0
    %3219 = vmatpush1.msra.mxu0 %v2904
    %3220 = vmatprep.subr.mxu0 0.0
    %3221 = vmatpush1.msra.mxu0 %v2905
    %3222 = vmatprep.subr.mxu0 0.0
    %3223 = vmatpush1.msra.mxu0 %v2906
    %3224 = vmatprep.subr.mxu0 0.0
    %3225 = vmatpush1.msra.mxu0 0.0
    %3226 = vmatprep.subr.mxu0 0.0
    %3227 = vmatpush1.msra.mxu0 0.0
    %3228 = vmatprep.subr.mxu0 0.0
    %3229 = vmatpush1.msra.mxu0 0.0
    %3230 = vmatprep.subr.mxu0 0.0
    %3231 = vmatpush1.msra.mxu0 0.0
    %3232 = vmatprep.mubr.f32.mxu0 %v2908
    %3233 = vmatmul.mubr.f32.gmra.mrb[0].mxu0 %v2618
    %v3234 = vpop.f32.mrb[0].mxu0
    %v3235 = vadd.f32 %v3150, %v3234
    %v3236 = vpop.f32.mrb[0].mxu0
    %3237 = vmatprep.mubr.f32.mxu0 %v760
    %3238 = vmatmul.mubr.f32.gmra.mrb[0].mxu0 %v468
    %v3239 = vpop.f32.mrb[0].mxu0
    %v3240 = vadd.f32 %v3155, %v3239
    %v3241 = vpop.f32.mrb[0].mxu0
    %3242 = vmatprep.mubr.f32.mxu0 %v2911
    %3243 = vmatmul.mubr.f32.gmra.mrb[0].mxu0 %v2779
    %v3244 = vpop.f32.mrb[0].mxu0
    %v3245 = vadd.f32 %v3160, %v3244
    %v3246 = vpop.f32.mrb[0].mxu0
    %3247 = vmatprep.mubr.f32.mxu0 %v760
    %3248 = vmatmul.mubr.f32.gmra.mrb[0].mxu0 %v468
    %v3249 = vpop.f32.mrb[0].mxu0
    %v3250 = vadd.f32 %v3165, %v3249
    %v3251 = vpop.f32.mrb[0].mxu0
    %3252 = vdwg.mxu0
    %v3255 = vrot.slane %v2356, 1
    %v3256 = vrot.slane %v2357, 1
    %v3257 = vsel %vm268, %v3255, %v3256
    %v3260 = vsel %vm268, %v3256, -inf
    %v3261 = vrot.slane %v2356, 7
    %v3262 = vrot.slane %v2357, 7
    %v3263 = vsel %vm345, %v3261, %v3262
    %v3266 = vsel %vm345, -inf, %v3261
    %v3267 = vmax.f32 %v3257, %v2356
    %v3268 = vmax.f32 %v3260, %v2357
    %v3269 = vmax.f32 %v3267, %v3266
    %v3270 = vmax.f32 %v3268, %v3263
    %v3273 = vrot.slane %v2358, 1
    %v3274 = vrot.slane %v2359, 1
    %v3275 = vsel %vm268, %v3273, %v3274
    %v3278 = vsel %vm268, %v3274, -inf
    %v3279 = vrot.slane %v2358, 7
    %v3280 = vrot.slane %v2359, 7
    %v3281 = vsel %vm345, %v3279, %v3280
    %v3284 = vsel %vm345, -inf, %v3279
    %v3285 = vmax.f32 %v3275, %v2358
    %v3286 = vmax.f32 %v3278, %v2359
    %v3287 = vmax.f32 %v3285, %v3284
    %v3288 = vmax.f32 %v3286, %v3281
    %v3289 = vld [vmem:[%s27] sm:$0xff]
    %v3290 = vld [vmem:[%s27 + $0x8] sm:$0xff]
    %v3291 = vld [vmem:[%s27 + $0x10] sm:$0xff]
    %v3292 = vld [vmem:[%s27 + $0x18] sm:$0xff]
    %v3293 = vld [vmem:[%s27 + $0x20] sm:$0xff]
    %v3294 = vld [vmem:[%s27 + $0x28] sm:$0xff]
    %v3295 = vld [vmem:[%s27 + $0x30] sm:$0xff]
    %v3296 = vld [vmem:[%s27 + $0x38] sm:$0xff]
    %v3297 = vld [vmem:[%s27 + $0x40] sm:$0xff]
    %v3298 = vld [vmem:[%s27 + $0x48] sm:$0xff]
    %v3299 = vld [vmem:[%s27 + $0x50] sm:$0xff]
    %v3300 = vld [vmem:[%s27 + $0x58] sm:$0xff]
    %v3301 = vld [vmem:[%s27 + $0x60] sm:$0xff]
    %v3302 = vld [vmem:[%s27 + $0x68] sm:$0xff]
    %v3303 = vld [vmem:[%s27 + $0x70] sm:$0xff]
    %v3304 = vld [vmem:[%s27 + $0x78] sm:$0xff]
    %3305 = vmatprep.subr.mxu0 0.0
    %3306 = vmatpush1.msra.mxu0 %v3289
    %3307 = vmatprep.subr.mxu0 0.0
    %3308 = vmatpush1.msra.mxu0 %v3290
    %3309 = vmatprep.subr.mxu0 0.0
    %3310 = vmatpush1.msra.mxu0 %v3291
    %3311 = vmatprep.subr.mxu0 0.0
    %3312 = vmatpush1.msra.mxu0 %v3292
    %3313 = vmatprep.subr.mxu0 0.0
    %3314 = vmatpush1.msra.mxu0 %v3293
    %3315 = vmatprep.subr.mxu0 0.0
    %3316 = vmatpush1.msra.mxu0 %v3294
    %3317 = vmatprep.subr.mxu0 0.0
    %3318 = vmatpush1.msra.mxu0 %v3295
    %3319 = vmatprep.subr.mxu0 0.0
    %3320 = vmatpush1.msra.mxu0 %v3296
    %3321 = vmatprep.subr.mxu0 0.0
    %3322 = vmatpush1.msra.mxu0 %v3297
    %3323 = vmatprep.subr.mxu0 0.0
    %3324 = vmatpush1.msra.mxu0 %v3298
    %3325 = vmatprep.subr.mxu0 0.0
    %3326 = vmatpush1.msra.mxu0 %v3299
    %3327 = vmatprep.subr.mxu0 0.0
    %3328 = vmatpush1.msra.mxu0 %v3300
    %3329 = vmatprep.subr.mxu0 0.0
    %3330 = vmatpush1.msra.mxu0 %v3301
    %3331 = vmatprep.subr.mxu0 0.0
    %3332 = vmatpush1.msra.mxu0 %v3302
    %3333 = vmatprep.subr.mxu0 0.0
    %3334 = vmatpush1.msra.mxu0 %v3303
    %3335 = vmatprep.subr.mxu0 0.0
    %3336 = vmatpush1.msra.mxu0 %v3304
    %3337 = vmatprep.subr.mxu0 0.0
    %3338 = vmatpush1.msra.mxu0 0.0
    %3339 = vmatprep.subr.mxu0 0.0
    %3340 = vmatpush1.msra.mxu0 0.0
    %3341 = vmatprep.subr.mxu0 0.0
    %3342 = vmatpush1.msra.mxu0 0.0
    %3343 = vmatprep.subr.mxu0 0.0
    %3344 = vmatpush1.msra.mxu0 0.0
    %3345 = vmatprep.subr.mxu0 0.0
    %3346 = vmatpush1.msra.mxu0 0.0
    %3347 = vmatprep.subr.mxu0 0.0
    %3348 = vmatpush1.msra.mxu0 0.0
    %3349 = vmatprep.subr.mxu0 0.0
    %3350 = vmatpush1.msra.mxu0 0.0
    %3351 = vmatprep.subr.mxu0 0.0
    %3352 = vmatpush1.msra.mxu0 0.0
    %3353 = vmatprep.subr.mxu0 0.0
    %3354 = vmatpush1.msra.mxu0 0.0
    %3355 = vmatprep.subr.mxu0 0.0
    %3356 = vmatpush1.msra.mxu0 0.0
    %3357 = vmatprep.subr.mxu0 0.0
    %3358 = vmatpush1.msra.mxu0 0.0
    %3359 = vmatprep.subr.mxu0 0.0
    %3360 = vmatpush1.msra.mxu0 0.0
    %3361 = vmatprep.subr.mxu0 0.0
    %3362 = vmatpush1.msra.mxu0 0.0
    %3363 = vmatprep.subr.mxu0 0.0
    %3364 = vmatpush1.msra.mxu0 0.0
    %3365 = vmatprep.subr.mxu0 0.0
    %3366 = vmatpush1.msra.mxu0 0.0
    %3367 = vmatprep.subr.mxu0 0.0
    %3368 = vmatpush1.msra.mxu0 0.0
    %3369 = vmatprep.mubr.f32.mxu0 0.0
    %3370 = vmatmul.mubr.f32.gmra.mrb[0].mxu0 %v3269
    %v3371 = vpop.f32.mrb[0].mxu0
    %v3372 = vadd.f32 0.0, %v3371
    %v3373 = vpop.f32.mrb[0].mxu0
    %3374 = vmatprep.mubr.f32.mxu0 0.0
    %3375 = vmatmul.mubr.f32.gmra.mrb[0].mxu0 %v3270
    %v3376 = vpop.f32.mrb[0].mxu0
    %v3377 = vadd.f32 0.0, %v3376
    %v3378 = vpop.f32.mrb[0].mxu0
    %3379 = vmatprep.mubr.f32.mxu0 0.0
    %3380 = vmatmul.mubr.f32.gmra.mrb[0].mxu0 %v3287
    %v3381 = vpop.f32.mrb[0].mxu0
    %v3382 = vadd.f32 0.0, %v3381
    %v3383 = vpop.f32.mrb[0].mxu0
    %3384 = vmatprep.mubr.f32.mxu0 0.0
    %3385 = vmatmul.mubr.f32.gmra.mrb[0].mxu0 %v3288
    %v3386 = vpop.f32.mrb[0].mxu0
    %v3387 = vadd.f32 0.0, %v3386
    %v3388 = vpop.f32.mrb[0].mxu0
    %3389 = vdwg.mxu0
    %3394 = vrot.lane.b32.xlu0 %v3372, 96
    %v3395 = vpop.permute.xlu0 %3394
    %3396 = vrot.lane.b32.xlu0 %v3377, 96
    %v3397 = vpop.permute.xlu0 %3396
    %3398 = vrot.lane.b32.xlu0 %v3382, 96
    %v3399 = vpop.permute.xlu0 %3398
    %3400 = vrot.lane.b32.xlu0 %v3387, 96
    %v3401 = vpop.permute.xlu0 %3400
    %v3406 = vsel %vm397, %v3235, %v3395
    %v3407 = vsel %vm397, %v3240, %v3397
    %v3408 = vsel %vm397, %v3245, %v3399
    %v3409 = vsel %vm397, %v3250, %v3401
    %v3410 = vld [vmem:[%s29] sm:$0x1]
    %v3412 = vlaneseq
    %v3413 = vshrl.u32 %v3412, 7
    %v3414 = vsub.s32 0, %v3413
    %v3415 = vrot.slane %v3410, %v3414
    %v3417 = vmul.f32 %v3406, %v3415
    %v3418 = vmul.f32 %v3407, %v3415
    %v3419 = vmul.f32 %v3408, %v3415
    %v3420 = vmul.f32 %v3409, %v3415
    %v3421 = vld [vmem:[%s31] sm:$0x1]
    %v3423 = vlaneseq
    %v3424 = vshrl.u32 %v3423, 7
    %v3425 = vsub.s32 0, %v3424
    %v3426 = vrot.slane %v3421, %v3425
    %v3428 = vadd.f32 %v3417, %v3426
    %v3429 = vadd.f32 %v3418, %v3426
    %v3430 = vadd.f32 %v3419, %v3426
    %v3431 = vadd.f32 %v3420, %v3426
    %v3432 = vmax.f32 %v3428, 0.0
    %v3433 = vmax.f32 %v3429, 0.0
    %v3434 = vmax.f32 %v3430, 0.0
    %v3435 = vmax.f32 %v3431, 0.0
    %v3436 = vld [vmem:[%s63] sm:$0xf]
    %v3438 = vsel %vm177, %v3436, 0
    %3440 = vmatprep.subr.mxu0 0.0
    %3441 = vmatpush1.msra.mxu0 %v3438
    %3442 = vmatprep.subr.mxu0 0.0
    %3443 = vmatpush1.msra.mxu0 0.0
    %3444 = vmatprep.subr.mxu0 0.0
    %3445 = vmatpush1.msra.mxu0 0.0
    %3446 = vmatprep.subr.mxu0 0.0
    %3447 = vmatpush1.msra.mxu0 0.0
    %3448 = vmatprep.subr.mxu0 0.0
    %3449 = vmatpush1.msra.mxu0 0.0
    %3450 = vmatprep.subr.mxu0 0.0
    %3451 = vmatpush1.msra.mxu0 0.0
    %3452 = vmatprep.subr.mxu0 0.0
    %3453 = vmatpush1.msra.mxu0 0.0
    %3454 = vmatprep.subr.mxu0 0.0
    %3455 = vmatpush1.msra.mxu0 0.0
    %3456 = vmatprep.subr.mxu0 0.0
    %3457 = vmatpush1.msra.mxu0 0.0
    %3458 = vmatprep.subr.mxu0 0.0
    %3459 = vmatpush1.msra.mxu0 0.0
    %3460 = vmatprep.subr.mxu0 0.0
    %3461 = vmatpush1.msra.mxu0 0.0
    %3462 = vmatprep.subr.mxu0 0.0
    %3463 = vmatpush1.msra.mxu0 0.0
    %3464 = vmatprep.subr.mxu0 0.0
    %3465 = vmatpush1.msra.mxu0 0.0
    %3466 = vmatprep.subr.mxu0 0.0
    %3467 = vmatpush1.msra.mxu0 0.0
    %3468 = vmatprep.subr.mxu0 0.0
    %3469 = vmatpush1.msra.mxu0 0.0
    %3470 = vmatprep.subr.mxu0 0.0
    %3471 = vmatpush1.msra.mxu0 0.0
    %3472 = vmatprep.subr.mxu0 0.0
    %3473 = vmatpush1.msra.mxu0 0.0
    %3474 = vmatprep.subr.mxu0 0.0
    %3475 = vmatpush1.msra.mxu0 0.0
    %3476 = vmatprep.subr.mxu0 0.0
    %3477 = vmatpush1.msra.mxu0 0.0
    %3478 = vmatprep.subr.mxu0 0.0
    %3479 = vmatpush1.msra.mxu0 0.0
    %3480 = vmatprep.subr.mxu0 0.0
    %3481 = vmatpush1.msra.mxu0 0.0
    %3482 = vmatprep.subr.mxu0 0.0
    %3483 = vmatpush1.msra.mxu0 0.0
    %3484 = vmatprep.subr.mxu0 0.0
    %3485 = vmatpush1.msra.mxu0 0.0
    %3486 = vmatprep.subr.mxu0 0.0
    %3487 = vmatpush1.msra.mxu0 0.0
    %3488 = vmatprep.subr.mxu0 0.0
    %3489 = vmatpush1.msra.mxu0 0.0
    %3490 = vmatprep.subr.mxu0 0.0
    %3491 = vmatpush1.msra.mxu0 0.0
    %3492 = vmatprep.subr.mxu0 0.0
    %3493 = vmatpush1.msra.mxu0 0.0
    %3494 = vmatprep.subr.mxu0 0.0
    %3495 = vmatpush1.msra.mxu0 0.0
    %3496 = vmatprep.subr.mxu0 0.0
    %3497 = vmatpush1.msra.mxu0 0.0
    %3498 = vmatprep.subr.mxu0 0.0
    %3499 = vmatpush1.msra.mxu0 0.0
    %3500 = vmatprep.subr.mxu0 0.0
    %3501 = vmatpush1.msra.mxu0 0.0
    %3502 = vmatprep.subr.mxu0 0.0
    %3503 = vmatpush1.msra.mxu0 0.0
    %3504 = vmatprep.mubr.f32.mxu0 0.0
    %3505 = vmatmul.mubr.f32.gmra.mrb[0].mxu0 %v166
    %v3506 = vpop.f32.mrb[0].mxu0
    %v3507 = vadd.f32 0.0, %v3506
    %v3508 = vpop.f32.mrb[0].mxu0
    %3509 = vmatprep.mubr.f32.mxu0 0.0
    %3510 = vmatmul.mubr.f32.gmra.mrb[0].mxu0 %v169
    %v3511 = vpop.f32.mrb[0].mxu0
    %v3512 = vadd.f32 0.0, %v3511
    %v3513 = vpop.f32.mrb[0].mxu0
    %3514 = vmatprep.mubr.f32.mxu0 0.0
    %3515 = vmatmul.mubr.f32.gmra.mrb[0].mxu0 %v172
    %v3516 = vpop.f32.mrb[0].mxu0
    %v3517 = vadd.f32 0.0, %v3516
    %v3518 = vpop.f32.mrb[0].mxu0
    %3519 = vmatprep.mubr.f32.mxu0 0.0
    %3520 = vmatmul.mubr.f32.gmra.mrb[0].mxu0 %v175
    %v3521 = vpop.f32.mrb[0].mxu0
    %v3522 = vadd.f32 0.0, %v3521
    %v3523 = vpop.f32.mrb[0].mxu0
    %3524 = vdwg.mxu0
    %v3525 = vld [vmem:[%s65] sm:$0x1]
    %v3527 = vlaneseq
    %v3528 = vshrl.u32 %v3527, 7
    %v3529 = vsub.s32 0, %v3528
    %v3530 = vrot.slane %v3525, %v3529
    %v3532 = vmul.f32 %v3507, %v3530
    %v3533 = vmul.f32 %v3512, %v3530
    %v3534 = vmul.f32 %v3517, %v3530
    %v3535 = vmul.f32 %v3522, %v3530
    %v3536 = vld [vmem:[%s67] sm:$0x1]
    %v3538 = vlaneseq
    %v3539 = vshrl.u32 %v3538, 7
    %v3540 = vsub.s32 0, %v3539
    %v3541 = vrot.slane %v3536, %v3540
    %v3543 = vadd.f32 %v3532, %v3541
    %v3544 = vadd.f32 %v3533, %v3541
    %v3545 = vadd.f32 %v3534, %v3541
    %v3546 = vadd.f32 %v3535, %v3541
    %v3547 = vadd.f32 %v3432, %v3543
    %v3548 = vadd.f32 %v3433, %v3544
    %v3549 = vadd.f32 %v3434, %v3545
    %v3550 = vadd.f32 %v3435, %v3546
    %v3551 = vmax.f32 %v3547, 0.0
    %v3552 = vmax.f32 %v3548, 0.0
    %v3553 = vmax.f32 %v3549, 0.0
    %v3554 = vmax.f32 %v3550, 0.0
    %v3555 = vld [vmem:[%s33] sm:$0xff]
    %v3556 = vld [vmem:[%s33 + $0x8] sm:$0xff]
    %v3557 = vld [vmem:[%s33 + $0x10] sm:$0xff]
    %v3558 = vld [vmem:[%s33 + $0x18] sm:$0xff]
    %v3559 = vld [vmem:[%s33 + $0x20] sm:$0xff]
    %v3560 = vld [vmem:[%s33 + $0x28] sm:$0xff]
    %v3561 = vld [vmem:[%s33 + $0x30] sm:$0xff]
    %v3562 = vld [vmem:[%s33 + $0x38] sm:$0xff]
    %v3563 = vld [vmem:[%s33 + $0x40] sm:$0xff]
    %v3564 = vld [vmem:[%s33 + $0x48] sm:$0xff]
    %v3565 = vld [vmem:[%s33 + $0x50] sm:$0xff]
    %v3566 = vld [vmem:[%s33 + $0x58] sm:$0xff]
    %v3567 = vld [vmem:[%s33 + $0x60] sm:$0xff]
    %v3568 = vld [vmem:[%s33 + $0x68] sm:$0xff]
    %v3569 = vld [vmem:[%s33 + $0x70] sm:$0xff]
    %v3570 = vld [vmem:[%s33 + $0x78] sm:$0xff]
    %3571 = vmatprep.subr.mxu0 0.0
    %3572 = vmatpush1.msra.mxu0 %v3555
    %3573 = vmatprep.subr.mxu0 0.0
    %3574 = vmatpush1.msra.mxu0 %v3556
    %3575 = vmatprep.subr.mxu0 0.0
    %3576 = vmatpush1.msra.mxu0 %v3557
    %3577 = vmatprep.subr.mxu0 0.0
    %3578 = vmatpush1.msra.mxu0 %v3558
    %3579 = vmatprep.subr.mxu0 0.0
    %3580 = vmatpush1.msra.mxu0 %v3559
    %3581 = vmatprep.subr.mxu0 0.0
    %3582 = vmatpush1.msra.mxu0 %v3560
    %3583 = vmatprep.subr.mxu0 0.0
    %3584 = vmatpush1.msra.mxu0 %v3561
    %3585 = vmatprep.subr.mxu0 0.0
    %3586 = vmatpush1.msra.mxu0 %v3562
    %3587 = vmatprep.subr.mxu0 0.0
    %3588 = vmatpush1.msra.mxu0 %v3563
    %3589 = vmatprep.subr.mxu0 0.0
    %3590 = vmatpush1.msra.mxu0 %v3564
    %3591 = vmatprep.subr.mxu0 0.0
    %3592 = vmatpush1.msra.mxu0 %v3565
    %3593 = vmatprep.subr.mxu0 0.0
    %3594 = vmatpush1.msra.mxu0 %v3566
    %3595 = vmatprep.subr.mxu0 0.0
    %3596 = vmatpush1.msra.mxu0 %v3567
    %3597 = vmatprep.subr.mxu0 0.0
    %3598 = vmatpush1.msra.mxu0 %v3568
    %3599 = vmatprep.subr.mxu0 0.0
    %3600 = vmatpush1.msra.mxu0 %v3569
    %3601 = vmatprep.subr.mxu0 0.0
    %3602 = vmatpush1.msra.mxu0 %v3570
    %3603 = vmatprep.subr.mxu0 0.0
    %3604 = vmatpush1.msra.mxu0 0.0
    %3605 = vmatprep.subr.mxu0 0.0
    %3606 = vmatpush1.msra.mxu0 0.0
    %3607 = vmatprep.subr.mxu0 0.0
    %3608 = vmatpush1.msra.mxu0 0.0
    %3609 = vmatprep.subr.mxu0 0.0
    %3610 = vmatpush1.msra.mxu0 0.0
    %3611 = vmatprep.subr.mxu0 0.0
    %3612 = vmatpush1.msra.mxu0 0.0
    %3613 = vmatprep.subr.mxu0 0.0
    %3614 = vmatpush1.msra.mxu0 0.0
    %3615 = vmatprep.subr.mxu0 0.0
    %3616 = vmatpush1.msra.mxu0 0.0
    %3617 = vmatprep.subr.mxu0 0.0
    %3618 = vmatpush1.msra.mxu0 0.0
    %3619 = vmatprep.subr.mxu0 0.0
    %3620 = vmatpush1.msra.mxu0 0.0
    %3621 = vmatprep.subr.mxu0 0.0
    %3622 = vmatpush1.msra.mxu0 0.0
    %3623 = vmatprep.subr.mxu0 0.0
    %3624 = vmatpush1.msra.mxu0 0.0
    %3625 = vmatprep.subr.mxu0 0.0
    %3626 = vmatpush1.msra.mxu0 0.0
    %3627 = vmatprep.subr.mxu0 0.0
    %3628 = vmatpush1.msra.mxu0 0.0
    %3629 = vmatprep.subr.mxu0 0.0
    %3630 = vmatpush1.msra.mxu0 0.0
    %3631 = vmatprep.subr.mxu0 0.0
    %3632 = vmatpush1.msra.mxu0 0.0
    %3633 = vmatprep.subr.mxu0 0.0
    %3634 = vmatpush1.msra.mxu0 0.0
    %3635 = vmatprep.mubr.f32.mxu0 0.0
    %3636 = vmatmul.mubr.f32.gmra.mrb[0].mxu0 %v3551
    %v3637 = vpop.f32.mrb[0].mxu0
    %v3638 = vadd.f32 0.0, %v3637
    %v3639 = vpop.f32.mrb[0].mxu0
    %3640 = vmatprep.mubr.f32.mxu0 0.0
    %3641 = vmatmul.mubr.f32.gmra.mrb[0].mxu0 %v3552
    %v3642 = vpop.f32.mrb[0].mxu0
    %v3643 = vadd.f32 0.0, %v3642
    %v3644 = vpop.f32.mrb[0].mxu0
    %3645 = vmatprep.mubr.f32.mxu0 0.0
    %3646 = vmatmul.mubr.f32.gmra.mrb[0].mxu0 %v3553
    %v3647 = vpop.f32.mrb[0].mxu0
    %v3648 = vadd.f32 0.0, %v3647
    %v3649 = vpop.f32.mrb[0].mxu0
    %3650 = vmatprep.mubr.f32.mxu0 0.0
    %3651 = vmatmul.mubr.f32.gmra.mrb[0].mxu0 %v3554
    %v3652 = vpop.f32.mrb[0].mxu0
    %v3653 = vadd.f32 0.0, %v3652
    %v3654 = vpop.f32.mrb[0].mxu0
    %3655 = vdwg.mxu0
    %v3658 = vrot.slane %v3638, 1
    %v3659 = vrot.slane %v3643, 1
    %v3660 = vsel %vm268, %v3658, %v3659
    %v3664 = vsel %vm268, 0.0, %v3658
    %v3665 = vsel %vm268, %v3659, 0.0
    %v3667 = vrot.slane %v3664, 1
    %v3668 = vsel %vm268, %v279, %v3667
    %v3669 = vrot.slane %v3660, 1
    %v3670 = vsel %vm268, %v3667, %v3669
    %3671 = vrot.lane.b32.xlu0 %v3668, 32
    %v3672 = vpop.permute.xlu0 %3671
    %3673 = vrot.lane.b32.xlu0 %v3670, 32
    %v3674 = vpop.permute.xlu0 %3673
    %v3677 = vrot.slane %v3664, 2
    %v3678 = vsel %vm290, %v291, %v3677
    %v3679 = vrot.slane %v3660, 2
    %v3680 = vsel %vm290, %v3677, %v3679
    %3681 = vrot.lane.b32.xlu0 %v3678, 64
    %v3682 = vpop.permute.xlu0 %3681
    %3683 = vrot.lane.b32.xlu0 %v3680, 64
    %v3684 = vpop.permute.xlu0 %3683
    %v3687 = vrot.slane %v3664, 3
    %v3688 = vsel %vm302, %v303, %v3687
    %v3689 = vrot.slane %v3660, 3
    %v3690 = vsel %vm302, %v3687, %v3689
    %3691 = vrot.lane.b32.xlu0 %v3688, 96
    %v3692 = vpop.permute.xlu0 %3691
    %3693 = vrot.lane.b32.xlu0 %v3690, 96
    %v3694 = vpop.permute.xlu0 %3693
    %v3697 = vrot.slane %v3664, 4
    %v3698 = vsel %vm177, %v314, %v3697
    %v3699 = vrot.slane %v3660, 4
    %v3700 = vsel %vm177, %v3697, %v3699
    %v3703 = vrot.slane %v3664, 5
    %v3704 = vsel %vm321, %v322, %v3703
    %v3705 = vrot.slane %v3660, 5
    %v3706 = vsel %vm321, %v3703, %v3705
    %3707 = vrot.lane.b32.xlu0 %v3704, 32
    %v3708 = vpop.permute.xlu0 %3707
    %3709 = vrot.lane.b32.xlu0 %v3706, 32
    %v3710 = vpop.permute.xlu0 %3709
    %v3713 = vrot.slane %v3664, 6
    %v3714 = vsel %vm333, %v334, %v3713
    %v3715 = vrot.slane %v3660, 6
    %v3716 = vsel %vm333, %v3713, %v3715
    %3717 = vrot.lane.b32.xlu0 %v3714, 64
    %v3718 = vpop.permute.xlu0 %3717
    %3719 = vrot.lane.b32.xlu0 %v3716, 64
    %v3720 = vpop.permute.xlu0 %3719
    %v3723 = vrot.slane %v3664, 7
    %v3724 = vsel %vm345, %v346, %v3723
    %v3725 = vrot.slane %v3660, 7
    %v3726 = vsel %vm345, %v3723, %v3725
    %3727 = vrot.lane.b32.xlu0 %v3724, 96
    %v3728 = vpop.permute.xlu0 %3727
    %3729 = vrot.lane.b32.xlu0 %v3726, 96
    %v3730 = vpop.permute.xlu0 %3729
    %v3734 = vrot.slane %v3665, 1
    %v3735 = vsel %vm268, %v3669, %v3734
    %3736 = vrot.lane.b32.xlu0 %v3735, 32
    %v3737 = vpop.permute.xlu0 %3736
    %v3739 = vrot.slane %v3665, 2
    %v3740 = vsel %vm290, %v3679, %v3739
    %3741 = vrot.lane.b32.xlu0 %v3740, 64
    %v3742 = vpop.permute.xlu0 %3741
    %v3744 = vrot.slane %v3665, 3
    %v3745 = vsel %vm302, %v3689, %v3744
    %3746 = vrot.lane.b32.xlu0 %v3745, 96
    %v3747 = vpop.permute.xlu0 %3746
    %v3749 = vrot.slane %v3665, 4
    %v3750 = vsel %vm177, %v3699, %v3749
    %v3752 = vrot.slane %v3665, 5
    %v3753 = vsel %vm321, %v3705, %v3752
    %3754 = vrot.lane.b32.xlu0 %v3753, 32
    %v3755 = vpop.permute.xlu0 %3754
    %v3757 = vrot.slane %v3665, 6
    %v3758 = vsel %vm333, %v3715, %v3757
    %3759 = vrot.lane.b32.xlu0 %v3758, 64
    %v3760 = vpop.permute.xlu0 %3759
    %v3762 = vrot.slane %v3665, 7
    %v3763 = vsel %vm345, %v3725, %v3762
    %3764 = vrot.lane.b32.xlu0 %v3763, 96
    %v3765 = vpop.permute.xlu0 %3764
    %v3767 = vsel %vm391, 0.0, %v3672
    %v3768 = vsel %vm391, %v3664, %v3674
    %v3769 = vsel %vm394, %v3767, %v3682
    %v3770 = vsel %vm394, %v3768, %v3684
    %v3771 = vsel %vm397, %v3769, %v3692
    %v3772 = vsel %vm397, %v3770, %v3694
    %v3773 = vsel %vm391, %v3698, %v3708
    %v3774 = vsel %vm391, %v3700, %v3710
    %v3775 = vsel %vm394, %v3773, %v3718
    %v3776 = vsel %vm394, %v3774, %v3720
    %v3777 = vsel %vm397, %v3775, %v3728
    %v3778 = vsel %vm397, %v3776, %v3730
    %v3779 = vsel %vm391, %v3660, %v3737
    %v3780 = vsel %vm394, %v3779, %v3742
    %v3781 = vsel %vm397, %v3780, %v3747
    %v3782 = vsel %vm391, %v3750, %v3755
    %v3783 = vsel %vm394, %v3782, %v3760
    %v3784 = vsel %vm397, %v3783, %v3765
    %v3785 = vsel %vm268, %v3734, %v279
    %3786 = vrot.lane.b32.xlu0 %v3785, 32
    %v3787 = vpop.permute.xlu0 %3786
    %v3789 = vsel %vm290, %v3739, %v291
    %3790 = vrot.lane.b32.xlu0 %v3789, 64
    %v3791 = vpop.permute.xlu0 %3790
    %v3793 = vsel %vm302, %v3744, %v303
    %3794 = vrot.lane.b32.xlu0 %v3793, 96
    %v3795 = vpop.permute.xlu0 %3794
    %v3797 = vsel %vm177, %v3749, %v314
    %v3799 = vsel %vm321, %v3752, %v322
    %3800 = vrot.lane.b32.xlu0 %v3799, 32
    %v3801 = vpop.permute.xlu0 %3800
    %v3803 = vsel %vm333, %v3757, %v334
    %3804 = vrot.lane.b32.xlu0 %v3803, 64
    %v3805 = vpop.permute.xlu0 %3804
    %v3807 = vsel %vm345, %v3762, %v346
    %3808 = vrot.lane.b32.xlu0 %v3807, 96
    %v3809 = vpop.permute.xlu0 %3808
    %v3811 = vsel %vm391, %v3665, %v3787
    %v3812 = vsel %vm394, %v3811, %v3791
    %v3813 = vsel %vm397, %v3812, %v3795
    %v3814 = vsel %vm391, %v3797, %v3801
    %v3815 = vsel %vm394, %v3814, %v3805
    %v3816 = vsel %vm397, %v3815, %v3809
    %v3819 = vrot.slane %v3648, 1
    %v3820 = vrot.slane %v3653, 1
    %v3821 = vsel %vm268, %v3819, %v3820
    %v3825 = vsel %vm268, 0.0, %v3819
    %v3826 = vsel %vm268, %v3820, 0.0
    %v3828 = vrot.slane %v3825, 1
    %v3829 = vsel %vm268, %v279, %v3828
    %v3830 = vrot.slane %v3821, 1
    %v3831 = vsel %vm268, %v3828, %v3830
    %3832 = vrot.lane.b32.xlu0 %v3829, 32
    %v3833 = vpop.permute.xlu0 %3832
    %3834 = vrot.lane.b32.xlu0 %v3831, 32
    %v3835 = vpop.permute.xlu0 %3834
    %v3838 = vrot.slane %v3825, 2
    %v3839 = vsel %vm290, %v291, %v3838
    %v3840 = vrot.slane %v3821, 2
    %v3841 = vsel %vm290, %v3838, %v3840
    %3842 = vrot.lane.b32.xlu0 %v3839, 64
    %v3843 = vpop.permute.xlu0 %3842
    %3844 = vrot.lane.b32.xlu0 %v3841, 64
    %v3845 = vpop.permute.xlu0 %3844
    %v3848 = vrot.slane %v3825, 3
    %v3849 = vsel %vm302, %v303, %v3848
    %v3850 = vrot.slane %v3821, 3
    %v3851 = vsel %vm302, %v3848, %v3850
    %3852 = vrot.lane.b32.xlu0 %v3849, 96
    %v3853 = vpop.permute.xlu0 %3852
    %3854 = vrot.lane.b32.xlu0 %v3851, 96
    %v3855 = vpop.permute.xlu0 %3854
    %v3858 = vrot.slane %v3825, 4
    %v3859 = vsel %vm177, %v314, %v3858
    %v3860 = vrot.slane %v3821, 4
    %v3861 = vsel %vm177, %v3858, %v3860
    %v3864 = vrot.slane %v3825, 5
    %v3865 = vsel %vm321, %v322, %v3864
    %v3866 = vrot.slane %v3821, 5
    %v3867 = vsel %vm321, %v3864, %v3866
    %3868 = vrot.lane.b32.xlu0 %v3865, 32
    %v3869 = vpop.permute.xlu0 %3868
    %3870 = vrot.lane.b32.xlu0 %v3867, 32
    %v3871 = vpop.permute.xlu0 %3870
    %v3874 = vrot.slane %v3825, 6
    %v3875 = vsel %vm333, %v334, %v3874
    %v3876 = vrot.slane %v3821, 6
    %v3877 = vsel %vm333, %v3874, %v3876
    %3878 = vrot.lane.b32.xlu0 %v3875, 64
    %v3879 = vpop.permute.xlu0 %3878
    %3880 = vrot.lane.b32.xlu0 %v3877, 64
    %v3881 = vpop.permute.xlu0 %3880
    %v3884 = vrot.slane %v3825, 7
    %v3885 = vsel %vm345, %v346, %v3884
    %v3886 = vrot.slane %v3821, 7
    %v3887 = vsel %vm345, %v3884, %v3886
    %3888 = vrot.lane.b32.xlu0 %v3885, 96
    %v3889 = vpop.permute.xlu0 %3888
    %3890 = vrot.lane.b32.xlu0 %v3887, 96
    %v3891 = vpop.permute.xlu0 %3890
    %v3895 = vrot.slane %v3826, 1
    %v3896 = vsel %vm268, %v3830, %v3895
    %3897 = vrot.lane.b32.xlu0 %v3896, 32
    %v3898 = vpop.permute.xlu0 %3897
    %v3900 = vrot.slane %v3826, 2
    %v3901 = vsel %vm290, %v3840, %v3900
    %3902 = vrot.lane.b32.xlu0 %v3901, 64
    %v3903 = vpop.permute.xlu0 %3902
    %v3905 = vrot.slane %v3826, 3
    %v3906 = vsel %vm302, %v3850, %v3905
    %3907 = vrot.lane.b32.xlu0 %v3906, 96
    %v3908 = vpop.permute.xlu0 %3907
    %v3910 = vrot.slane %v3826, 4
    %v3911 = vsel %vm177, %v3860, %v3910
    %v3913 = vrot.slane %v3826, 5
    %v3914 = vsel %vm321, %v3866, %v3913
    %3915 = vrot.lane.b32.xlu0 %v3914, 32
    %v3916 = vpop.permute.xlu0 %3915
    %v3918 = vrot.slane %v3826, 6
    %v3919 = vsel %vm333, %v3876, %v3918
    %3920 = vrot.lane.b32.xlu0 %v3919, 64
    %v3921 = vpop.permute.xlu0 %3920
    %v3923 = vrot.slane %v3826, 7
    %v3924 = vsel %vm345, %v3886, %v3923
    %3925 = vrot.lane.b32.xlu0 %v3924, 96
    %v3926 = vpop.permute.xlu0 %3925
    %v3928 = vsel %vm391, 0.0, %v3833
    %v3929 = vsel %vm391, %v3825, %v3835
    %v3930 = vsel %vm394, %v3928, %v3843
    %v3931 = vsel %vm394, %v3929, %v3845
    %v3932 = vsel %vm397, %v3930, %v3853
    %v3933 = vsel %vm397, %v3931, %v3855
    %v3934 = vsel %vm391, %v3859, %v3869
    %v3935 = vsel %vm391, %v3861, %v3871
    %v3936 = vsel %vm394, %v3934, %v3879
    %v3937 = vsel %vm394, %v3935, %v3881
    %v3938 = vsel %vm397, %v3936, %v3889
    %v3939 = vsel %vm397, %v3937, %v3891
    %v3940 = vsel %vm391, %v3821, %v3898
    %v3941 = vsel %vm394, %v3940, %v3903
    %v3942 = vsel %vm397, %v3941, %v3908
    %v3943 = vsel %vm391, %v3911, %v3916
    %v3944 = vsel %vm394, %v3943, %v3921
    %v3945 = vsel %vm397, %v3944, %v3926
    %v3946 = vsel %vm268, %v3895, %v279
    %3947 = vrot.lane.b32.xlu0 %v3946, 32
    %v3948 = vpop.permute.xlu0 %3947
    %v3950 = vsel %vm290, %v3900, %v291
    %3951 = vrot.lane.b32.xlu0 %v3950, 64
    %v3952 = vpop.permute.xlu0 %3951
    %v3954 = vsel %vm302, %v3905, %v303
    %3955 = vrot.lane.b32.xlu0 %v3954, 96
    %v3956 = vpop.permute.xlu0 %3955
    %v3958 = vsel %vm177, %v3910, %v314
    %v3960 = vsel %vm321, %v3913, %v322
    %3961 = vrot.lane.b32.xlu0 %v3960, 32
    %v3962 = vpop.permute.xlu0 %3961
    %v3964 = vsel %vm333, %v3918, %v334
    %3965 = vrot.lane.b32.xlu0 %v3964, 64
    %v3966 = vpop.permute.xlu0 %3965
    %v3968 = vsel %vm345, %v3923, %v346
    %3969 = vrot.lane.b32.xlu0 %v3968, 96
    %v3970 = vpop.permute.xlu0 %3969
    %v3972 = vsel %vm391, %v3826, %v3948
    %v3973 = vsel %vm394, %v3972, %v3952
    %v3974 = vsel %vm397, %v3973, %v3956
    %v3975 = vsel %vm391, %v3958, %v3962
    %v3976 = vsel %vm394, %v3975, %v3966
    %v3977 = vsel %vm397, %v3976, %v3970
    %v3978 = vld [vmem:[%s35] sm:$0xff]
    %v3979 = vld [vmem:[%s35 + $0x8] sm:$0xff]
    %v3980 = vld [vmem:[%s35 + $0x10] sm:$0xff]
    %v3981 = vld [vmem:[%s35 + $0x18] sm:$0xff]
    %v3982 = vld [vmem:[%s35 + $0x20] sm:$0xff]
    %v3983 = vld [vmem:[%s35 + $0x28] sm:$0xff]
    %v3984 = vld [vmem:[%s35 + $0x30] sm:$0xff]
    %v3985 = vld [vmem:[%s35 + $0x38] sm:$0xff]
    %v3986 = vld [vmem:[%s35 + $0x40] sm:$0xff]
    %v3987 = vld [vmem:[%s35 + $0x48] sm:$0xff]
    %v3988 = vld [vmem:[%s35 + $0x50] sm:$0xff]
    %v3989 = vld [vmem:[%s35 + $0x58] sm:$0xff]
    %v3990 = vld [vmem:[%s35 + $0x60] sm:$0xff]
    %v3991 = vld [vmem:[%s35 + $0x68] sm:$0xff]
    %v3992 = vld [vmem:[%s35 + $0x70] sm:$0xff]
    %v3993 = vld [vmem:[%s35 + $0x78] sm:$0xff]
    %v3994 = vld [vmem:[%s35 + $0x80] sm:$0xff]
    %v3995 = vld [vmem:[%s35 + $0x88] sm:$0xff]
    %v3996 = vld [vmem:[%s35 + $0x90] sm:$0xff]
    %v3997 = vld [vmem:[%s35 + $0x98] sm:$0xff]
    %v3998 = vld [vmem:[%s35 + $0xa0] sm:$0xff]
    %v3999 = vld [vmem:[%s35 + $0xa8] sm:$0xff]
    %v4000 = vld [vmem:[%s35 + $0xb0] sm:$0xff]
    %v4001 = vld [vmem:[%s35 + $0xb8] sm:$0xff]
    %v4002 = vld [vmem:[%s35 + $0xc0] sm:$0xff]
    %v4003 = vld [vmem:[%s35 + $0xc8] sm:$0xff]
    %v4004 = vld [vmem:[%s35 + $0xd0] sm:$0xff]
    %v4005 = vld [vmem:[%s35 + $0xd8] sm:$0xff]
    %v4006 = vld [vmem:[%s35 + $0xe0] sm:$0xff]
    %v4007 = vld [vmem:[%s35 + $0xe8] sm:$0xff]
    %v4008 = vld [vmem:[%s35 + $0xf0] sm:$0xff]
    %v4009 = vld [vmem:[%s35 + $0xf8] sm:$0xff]
    %v4010 = vld [vmem:[%s35 + $0x100] sm:$0xff]
    %v4011 = vld [vmem:[%s35 + $0x108] sm:$0xff]
    %v4012 = vld [vmem:[%s35 + $0x110] sm:$0xff]
    %v4013 = vld [vmem:[%s35 + $0x118] sm:$0xff]
    %v4014 = vld [vmem:[%s35 + $0x120] sm:$0xff]
    %v4015 = vld [vmem:[%s35 + $0x128] sm:$0xff]
    %v4016 = vld [vmem:[%s35 + $0x130] sm:$0xff]
    %v4017 = vld [vmem:[%s35 + $0x138] sm:$0xff]
    %v4018 = vld [vmem:[%s35 + $0x140] sm:$0xff]
    %v4019 = vld [vmem:[%s35 + $0x148] sm:$0xff]
    %v4020 = vld [vmem:[%s35 + $0x150] sm:$0xff]
    %v4021 = vld [vmem:[%s35 + $0x158] sm:$0xff]
    %v4022 = vld [vmem:[%s35 + $0x160] sm:$0xff]
    %v4023 = vld [vmem:[%s35 + $0x168] sm:$0xff]
    %v4024 = vld [vmem:[%s35 + $0x170] sm:$0xff]
    %v4025 = vld [vmem:[%s35 + $0x178] sm:$0xff]
    %v4026 = vld [vmem:[%s35 + $0x180] sm:$0xff]
    %v4027 = vld [vmem:[%s35 + $0x188] sm:$0xff]
    %v4028 = vld [vmem:[%s35 + $0x190] sm:$0xff]
    %v4029 = vld [vmem:[%s35 + $0x198] sm:$0xff]
    %v4030 = vld [vmem:[%s35 + $0x1a0] sm:$0xff]
    %v4031 = vld [vmem:[%s35 + $0x1a8] sm:$0xff]
    %v4032 = vld [vmem:[%s35 + $0x1b0] sm:$0xff]
    %v4033 = vld [vmem:[%s35 + $0x1b8] sm:$0xff]
    %v4034 = vld [vmem:[%s35 + $0x1c0] sm:$0xff]
    %v4035 = vld [vmem:[%s35 + $0x1c8] sm:$0xff]
    %v4036 = vld [vmem:[%s35 + $0x1d0] sm:$0xff]
    %v4037 = vld [vmem:[%s35 + $0x1d8] sm:$0xff]
    %v4038 = vld [vmem:[%s35 + $0x1e0] sm:$0xff]
    %v4039 = vld [vmem:[%s35 + $0x1e8] sm:$0xff]
    %v4040 = vld [vmem:[%s35 + $0x1f0] sm:$0xff]
    %v4041 = vld [vmem:[%s35 + $0x1f8] sm:$0xff]
    %v4042 = vld [vmem:[%s35 + $0x200] sm:$0xff]
    %v4043 = vld [vmem:[%s35 + $0x208] sm:$0xff]
    %v4044 = vld [vmem:[%s35 + $0x210] sm:$0xff]
    %v4045 = vld [vmem:[%s35 + $0x218] sm:$0xff]
    %v4046 = vld [vmem:[%s35 + $0x220] sm:$0xff]
    %v4047 = vld [vmem:[%s35 + $0x228] sm:$0xff]
    %v4048 = vld [vmem:[%s35 + $0x230] sm:$0xff]
    %v4049 = vld [vmem:[%s35 + $0x238] sm:$0xff]
    %v4050 = vld [vmem:[%s35 + $0x240] sm:$0xff]
    %v4051 = vld [vmem:[%s35 + $0x248] sm:$0xff]
    %v4052 = vld [vmem:[%s35 + $0x250] sm:$0xff]
    %v4053 = vld [vmem:[%s35 + $0x258] sm:$0xff]
    %v4054 = vld [vmem:[%s35 + $0x260] sm:$0xff]
    %v4055 = vld [vmem:[%s35 + $0x268] sm:$0xff]
    %v4056 = vld [vmem:[%s35 + $0x270] sm:$0xff]
    %v4057 = vld [vmem:[%s35 + $0x278] sm:$0xff]
    %v4058 = vld [vmem:[%s35 + $0x280] sm:$0xff]
    %v4059 = vld [vmem:[%s35 + $0x288] sm:$0xff]
    %v4060 = vld [vmem:[%s35 + $0x290] sm:$0xff]
    %v4061 = vld [vmem:[%s35 + $0x298] sm:$0xff]
    %v4062 = vld [vmem:[%s35 + $0x2a0] sm:$0xff]
    %v4063 = vld [vmem:[%s35 + $0x2a8] sm:$0xff]
    %v4064 = vld [vmem:[%s35 + $0x2b0] sm:$0xff]
    %v4065 = vld [vmem:[%s35 + $0x2b8] sm:$0xff]
    %v4066 = vld [vmem:[%s35 + $0x2c0] sm:$0xff]
    %v4067 = vld [vmem:[%s35 + $0x2c8] sm:$0xff]
    %v4068 = vld [vmem:[%s35 + $0x2d0] sm:$0xff]
    %v4069 = vld [vmem:[%s35 + $0x2d8] sm:$0xff]
    %v4070 = vld [vmem:[%s35 + $0x2e0] sm:$0xff]
    %v4071 = vld [vmem:[%s35 + $0x2e8] sm:$0xff]
    %v4072 = vld [vmem:[%s35 + $0x2f0] sm:$0xff]
    %v4073 = vld [vmem:[%s35 + $0x2f8] sm:$0xff]
    %v4074 = vld [vmem:[%s35 + $0x300] sm:$0xff]
    %v4075 = vld [vmem:[%s35 + $0x308] sm:$0xff]
    %v4076 = vld [vmem:[%s35 + $0x310] sm:$0xff]
    %v4077 = vld [vmem:[%s35 + $0x318] sm:$0xff]
    %v4078 = vld [vmem:[%s35 + $0x320] sm:$0xff]
    %v4079 = vld [vmem:[%s35 + $0x328] sm:$0xff]
    %v4080 = vld [vmem:[%s35 + $0x330] sm:$0xff]
    %v4081 = vld [vmem:[%s35 + $0x338] sm:$0xff]
    %v4082 = vld [vmem:[%s35 + $0x340] sm:$0xff]
    %v4083 = vld [vmem:[%s35 + $0x348] sm:$0xff]
    %v4084 = vld [vmem:[%s35 + $0x350] sm:$0xff]
    %v4085 = vld [vmem:[%s35 + $0x358] sm:$0xff]
    %v4086 = vld [vmem:[%s35 + $0x360] sm:$0xff]
    %v4087 = vld [vmem:[%s35 + $0x368] sm:$0xff]
    %v4088 = vld [vmem:[%s35 + $0x370] sm:$0xff]
    %v4089 = vld [vmem:[%s35 + $0x378] sm:$0xff]
    %v4090 = vld [vmem:[%s35 + $0x380] sm:$0xff]
    %v4091 = vld [vmem:[%s35 + $0x388] sm:$0xff]
    %v4092 = vld [vmem:[%s35 + $0x390] sm:$0xff]
    %v4093 = vld [vmem:[%s35 + $0x398] sm:$0xff]
    %v4094 = vld [vmem:[%s35 + $0x3a0] sm:$0xff]
    %v4095 = vld [vmem:[%s35 + $0x3a8] sm:$0xff]
    %v4096 = vld [vmem:[%s35 + $0x3b0] sm:$0xff]
    %v4097 = vld [vmem:[%s35 + $0x3b8] sm:$0xff]
    %v4098 = vld [vmem:[%s35 + $0x3c0] sm:$0xff]
    %v4099 = vld [vmem:[%s35 + $0x3c8] sm:$0xff]
    %v4100 = vld [vmem:[%s35 + $0x3d0] sm:$0xff]
    %v4101 = vld [vmem:[%s35 + $0x3d8] sm:$0xff]
    %v4103 = vsel %vm397, %v3815, 0
    %v4106 = vsel %vm397, %v3976, 0
    %4108 = vmatprep.subr.mxu0 0.0
    %4109 = vmatpush1.msra.mxu0 %v3978
    %4110 = vmatprep.subr.mxu0 0.0
    %4111 = vmatpush1.msra.mxu0 %v3979
    %4112 = vmatprep.subr.mxu0 0.0
    %4113 = vmatpush1.msra.mxu0 %v3980
    %4114 = vmatprep.subr.mxu0 0.0
    %4115 = vmatpush1.msra.mxu0 %v3981
    %4116 = vmatprep.subr.mxu0 0.0
    %4117 = vmatpush1.msra.mxu0 %v3982
    %4118 = vmatprep.subr.mxu0 0.0
    %4119 = vmatpush1.msra.mxu0 %v3983
    %4120 = vmatprep.subr.mxu0 0.0
    %4121 = vmatpush1.msra.mxu0 %v3984
    %4122 = vmatprep.subr.mxu0 0.0
    %4123 = vmatpush1.msra.mxu0 %v3985
    %4124 = vmatprep.subr.mxu0 0.0
    %4125 = vmatpush1.msra.mxu0 %v3986
    %4126 = vmatprep.subr.mxu0 0.0
    %4127 = vmatpush1.msra.mxu0 %v3987
    %4128 = vmatprep.subr.mxu0 0.0
    %4129 = vmatpush1.msra.mxu0 %v3988
    %4130 = vmatprep.subr.mxu0 0.0
    %4131 = vmatpush1.msra.mxu0 %v3989
    %4132 = vmatprep.subr.mxu0 0.0
    %4133 = vmatpush1.msra.mxu0 %v3990
    %4134 = vmatprep.subr.mxu0 0.0
    %4135 = vmatpush1.msra.mxu0 %v3991
    %4136 = vmatprep.subr.mxu0 0.0
    %4137 = vmatpush1.msra.mxu0 %v3992
    %4138 = vmatprep.subr.mxu0 0.0
    %4139 = vmatpush1.msra.mxu0 %v3993
    %4140 = vmatprep.subr.mxu0 0.0
    %4141 = vmatpush1.msra.mxu0 %v3994
    %4142 = vmatprep.subr.mxu0 0.0
    %4143 = vmatpush1.msra.mxu0 %v3995
    %4144 = vmatprep.subr.mxu0 0.0
    %4145 = vmatpush1.msra.mxu0 %v3996
    %4146 = vmatprep.subr.mxu0 0.0
    %4147 = vmatpush1.msra.mxu0 %v3997
    %4148 = vmatprep.subr.mxu0 0.0
    %4149 = vmatpush1.msra.mxu0 %v3998
    %4150 = vmatprep.subr.mxu0 0.0
    %4151 = vmatpush1.msra.mxu0 %v3999
    %4152 = vmatprep.subr.mxu0 0.0
    %4153 = vmatpush1.msra.mxu0 %v4000
    %4154 = vmatprep.subr.mxu0 0.0
    %4155 = vmatpush1.msra.mxu0 %v4001
    %4156 = vmatprep.subr.mxu0 0.0
    %4157 = vmatpush1.msra.mxu0 %v4002
    %4158 = vmatprep.subr.mxu0 0.0
    %4159 = vmatpush1.msra.mxu0 %v4003
    %4160 = vmatprep.subr.mxu0 0.0
    %4161 = vmatpush1.msra.mxu0 %v4004
    %4162 = vmatprep.subr.mxu0 0.0
    %4163 = vmatpush1.msra.mxu0 %v4005
    %4164 = vmatprep.subr.mxu0 0.0
    %4165 = vmatpush1.msra.mxu0 %v4006
    %4166 = vmatprep.subr.mxu0 0.0
    %4167 = vmatpush1.msra.mxu0 %v4007
    %4168 = vmatprep.subr.mxu0 0.0
    %4169 = vmatpush1.msra.mxu0 %v4008
    %4170 = vmatprep.subr.mxu0 0.0
    %4171 = vmatpush1.msra.mxu0 %v4009
    %4172 = vmatprep.mubr.f32.mxu0 %v3777
    %4173 = vmatmul.mubr.f32.gmra.mrb[0].mxu0 %v3771
    %v4174 = vpop.f32.mrb[0].mxu0
    %v4175 = vadd.f32 0.0, %v4174
    %v4176 = vpop.f32.mrb[0].mxu0
    %4177 = vmatprep.mubr.f32.mxu0 %v3778
    %4178 = vmatmul.mubr.f32.gmra.mrb[0].mxu0 %v3772
    %v4179 = vpop.f32.mrb[0].mxu0
    %v4180 = vadd.f32 0.0, %v4179
    %v4181 = vpop.f32.mrb[0].mxu0
    %4182 = vmatprep.mubr.f32.mxu0 %v3938
    %4183 = vmatmul.mubr.f32.gmra.mrb[0].mxu0 %v3932
    %v4184 = vpop.f32.mrb[0].mxu0
    %v4185 = vadd.f32 0.0, %v4184
    %v4186 = vpop.f32.mrb[0].mxu0
    %4187 = vmatprep.mubr.f32.mxu0 %v3939
    %4188 = vmatmul.mubr.f32.gmra.mrb[0].mxu0 %v3933
    %v4189 = vpop.f32.mrb[0].mxu0
    %v4190 = vadd.f32 0.0, %v4189
    %v4191 = vpop.f32.mrb[0].mxu0
    %4192 = vdwg.mxu0
    %4193 = vmatprep.subr.mxu0 0.0
    %4194 = vmatpush1.msra.mxu0 %v4010
    %4195 = vmatprep.subr.mxu0 0.0
    %4196 = vmatpush1.msra.mxu0 %v4011
    %4197 = vmatprep.subr.mxu0 0.0
    %4198 = vmatpush1.msra.mxu0 %v4012
    %4199 = vmatprep.subr.mxu0 0.0
    %4200 = vmatpush1.msra.mxu0 %v4013
    %4201 = vmatprep.subr.mxu0 0.0
    %4202 = vmatpush1.msra.mxu0 %v4014
    %4203 = vmatprep.subr.mxu0 0.0
    %4204 = vmatpush1.msra.mxu0 %v4015
    %4205 = vmatprep.subr.mxu0 0.0
    %4206 = vmatpush1.msra.mxu0 %v4016
    %4207 = vmatprep.subr.mxu0 0.0
    %4208 = vmatpush1.msra.mxu0 %v4017
    %4209 = vmatprep.subr.mxu0 0.0
    %4210 = vmatpush1.msra.mxu0 %v4018
    %4211 = vmatprep.subr.mxu0 0.0
    %4212 = vmatpush1.msra.mxu0 %v4019
    %4213 = vmatprep.subr.mxu0 0.0
    %4214 = vmatpush1.msra.mxu0 %v4020
    %4215 = vmatprep.subr.mxu0 0.0
    %4216 = vmatpush1.msra.mxu0 %v4021
    %4217 = vmatprep.subr.mxu0 0.0
    %4218 = vmatpush1.msra.mxu0 %v4022
    %4219 = vmatprep.subr.mxu0 0.0
    %4220 = vmatpush1.msra.mxu0 %v4023
    %4221 = vmatprep.subr.mxu0 0.0
    %4222 = vmatpush1.msra.mxu0 %v4024
    %4223 = vmatprep.subr.mxu0 0.0
    %4224 = vmatpush1.msra.mxu0 %v4025
    %4225 = vmatprep.subr.mxu0 0.0
    %4226 = vmatpush1.msra.mxu0 %v4026
    %4227 = vmatprep.subr.mxu0 0.0
    %4228 = vmatpush1.msra.mxu0 %v4027
    %4229 = vmatprep.subr.mxu0 0.0
    %4230 = vmatpush1.msra.mxu0 %v4028
    %4231 = vmatprep.subr.mxu0 0.0
    %4232 = vmatpush1.msra.mxu0 %v4029
    %4233 = vmatprep.subr.mxu0 0.0
    %4234 = vmatpush1.msra.mxu0 %v4030
    %4235 = vmatprep.subr.mxu0 0.0
    %4236 = vmatpush1.msra.mxu0 %v4031
    %4237 = vmatprep.subr.mxu0 0.0
    %4238 = vmatpush1.msra.mxu0 %v4032
    %4239 = vmatprep.subr.mxu0 0.0
    %4240 = vmatpush1.msra.mxu0 %v4033
    %4241 = vmatprep.subr.mxu0 0.0
    %4242 = vmatpush1.msra.mxu0 %v4034
    %4243 = vmatprep.subr.mxu0 0.0
    %4244 = vmatpush1.msra.mxu0 %v4035
    %4245 = vmatprep.subr.mxu0 0.0
    %4246 = vmatpush1.msra.mxu0 %v4036
    %4247 = vmatprep.subr.mxu0 0.0
    %4248 = vmatpush1.msra.mxu0 %v4037
    %4249 = vmatprep.subr.mxu0 0.0
    %4250 = vmatpush1.msra.mxu0 %v4038
    %4251 = vmatprep.subr.mxu0 0.0
    %4252 = vmatpush1.msra.mxu0 %v4039
    %4253 = vmatprep.subr.mxu0 0.0
    %4254 = vmatpush1.msra.mxu0 %v4040
    %4255 = vmatprep.subr.mxu0 0.0
    %4256 = vmatpush1.msra.mxu0 %v4041
    %4257 = vmatprep.mubr.f32.mxu0 %v3778
    %4258 = vmatmul.mubr.f32.gmra.mrb[0].mxu0 %v3772
    %v4259 = vpop.f32.mrb[0].mxu0
    %v4260 = vadd.f32 %v4175, %v4259
    %v4261 = vpop.f32.mrb[0].mxu0
    %4262 = vmatprep.mubr.f32.mxu0 %v3784
    %4263 = vmatmul.mubr.f32.gmra.mrb[0].mxu0 %v3781
    %v4264 = vpop.f32.mrb[0].mxu0
    %v4265 = vadd.f32 %v4180, %v4264
    %v4266 = vpop.f32.mrb[0].mxu0
    %4267 = vmatprep.mubr.f32.mxu0 %v3939
    %4268 = vmatmul.mubr.f32.gmra.mrb[0].mxu0 %v3933
    %v4269 = vpop.f32.mrb[0].mxu0
    %v4270 = vadd.f32 %v4185, %v4269
    %v4271 = vpop.f32.mrb[0].mxu0
    %4272 = vmatprep.mubr.f32.mxu0 %v3945
    %4273 = vmatmul.mubr.f32.gmra.mrb[0].mxu0 %v3942
    %v4274 = vpop.f32.mrb[0].mxu0
    %v4275 = vadd.f32 %v4190, %v4274
    %v4276 = vpop.f32.mrb[0].mxu0
    %4277 = vdwg.mxu0
    %4278 = vmatprep.subr.mxu0 0.0
    %4279 = vmatpush1.msra.mxu0 %v4042
    %4280 = vmatprep.subr.mxu0 0.0
    %4281 = vmatpush1.msra.mxu0 %v4043
    %4282 = vmatprep.subr.mxu0 0.0
    %4283 = vmatpush1.msra.mxu0 %v4044
    %4284 = vmatprep.subr.mxu0 0.0
    %4285 = vmatpush1.msra.mxu0 %v4045
    %4286 = vmatprep.subr.mxu0 0.0
    %4287 = vmatpush1.msra.mxu0 %v4046
    %4288 = vmatprep.subr.mxu0 0.0
    %4289 = vmatpush1.msra.mxu0 %v4047
    %4290 = vmatprep.subr.mxu0 0.0
    %4291 = vmatpush1.msra.mxu0 %v4048
    %4292 = vmatprep.subr.mxu0 0.0
    %4293 = vmatpush1.msra.mxu0 %v4049
    %4294 = vmatprep.subr.mxu0 0.0
    %4295 = vmatpush1.msra.mxu0 %v4050
    %4296 = vmatprep.subr.mxu0 0.0
    %4297 = vmatpush1.msra.mxu0 %v4051
    %4298 = vmatprep.subr.mxu0 0.0
    %4299 = vmatpush1.msra.mxu0 %v4052
    %4300 = vmatprep.subr.mxu0 0.0
    %4301 = vmatpush1.msra.mxu0 %v4053
    %4302 = vmatprep.subr.mxu0 0.0
    %4303 = vmatpush1.msra.mxu0 %v4054
    %4304 = vmatprep.subr.mxu0 0.0
    %4305 = vmatpush1.msra.mxu0 %v4055
    %4306 = vmatprep.subr.mxu0 0.0
    %4307 = vmatpush1.msra.mxu0 %v4056
    %4308 = vmatprep.subr.mxu0 0.0
    %4309 = vmatpush1.msra.mxu0 %v4057
    %4310 = vmatprep.subr.mxu0 0.0
    %4311 = vmatpush1.msra.mxu0 %v4058
    %4312 = vmatprep.subr.mxu0 0.0
    %4313 = vmatpush1.msra.mxu0 %v4059
    %4314 = vmatprep.subr.mxu0 0.0
    %4315 = vmatpush1.msra.mxu0 %v4060
    %4316 = vmatprep.subr.mxu0 0.0
    %4317 = vmatpush1.msra.mxu0 %v4061
    %4318 = vmatprep.subr.mxu0 0.0
    %4319 = vmatpush1.msra.mxu0 %v4062
    %4320 = vmatprep.subr.mxu0 0.0
    %4321 = vmatpush1.msra.mxu0 %v4063
    %4322 = vmatprep.subr.mxu0 0.0
    %4323 = vmatpush1.msra.mxu0 %v4064
    %4324 = vmatprep.subr.mxu0 0.0
    %4325 = vmatpush1.msra.mxu0 %v4065
    %4326 = vmatprep.subr.mxu0 0.0
    %4327 = vmatpush1.msra.mxu0 %v4066
    %4328 = vmatprep.subr.mxu0 0.0
    %4329 = vmatpush1.msra.mxu0 %v4067
    %4330 = vmatprep.subr.mxu0 0.0
    %4331 = vmatpush1.msra.mxu0 %v4068
    %4332 = vmatprep.subr.mxu0 0.0
    %4333 = vmatpush1.msra.mxu0 %v4069
    %4334 = vmatprep.subr.mxu0 0.0
    %4335 = vmatpush1.msra.mxu0 %v4070
    %4336 = vmatprep.subr.mxu0 0.0
    %4337 = vmatpush1.msra.mxu0 %v4071
    %4338 = vmatprep.subr.mxu0 0.0
    %4339 = vmatpush1.msra.mxu0 %v4072
    %4340 = vmatprep.subr.mxu0 0.0
    %4341 = vmatpush1.msra.mxu0 %v4073
    %4342 = vmatprep.mubr.f32.mxu0 %v3784
    %4343 = vmatmul.mubr.f32.gmra.mrb[0].mxu0 %v3781
    %v4344 = vpop.f32.mrb[0].mxu0
    %v4345 = vadd.f32 %v4260, %v4344
    %v4346 = vpop.f32.mrb[0].mxu0
    %4347 = vmatprep.mubr.f32.mxu0 %v3816
    %4348 = vmatmul.mubr.f32.gmra.mrb[0].mxu0 %v3813
    %v4349 = vpop.f32.mrb[0].mxu0
    %v4350 = vadd.f32 %v4265, %v4349
    %v4351 = vpop.f32.mrb[0].mxu0
    %4352 = vmatprep.mubr.f32.mxu0 %v3945
    %4353 = vmatmul.mubr.f32.gmra.mrb[0].mxu0 %v3942
    %v4354 = vpop.f32.mrb[0].mxu0
    %v4355 = vadd.f32 %v4270, %v4354
    %v4356 = vpop.f32.mrb[0].mxu0
    %4357 = vmatprep.mubr.f32.mxu0 %v3977
    %4358 = vmatmul.mubr.f32.gmra.mrb[0].mxu0 %v3974
    %v4359 = vpop.f32.mrb[0].mxu0
    %v4360 = vadd.f32 %v4275, %v4359
    %v4361 = vpop.f32.mrb[0].mxu0
    %4362 = vdwg.mxu0
    %4363 = vmatprep.subr.mxu0 0.0
    %4364 = vmatpush1.msra.mxu0 %v4074
    %4365 = vmatprep.subr.mxu0 0.0
    %4366 = vmatpush1.msra.mxu0 %v4075
    %4367 = vmatprep.subr.mxu0 0.0
    %4368 = vmatpush1.msra.mxu0 %v4076
    %4369 = vmatprep.subr.mxu0 0.0
    %4370 = vmatpush1.msra.mxu0 %v4077
    %4371 = vmatprep.subr.mxu0 0.0
    %4372 = vmatpush1.msra.mxu0 %v4078
    %4373 = vmatprep.subr.mxu0 0.0
    %4374 = vmatpush1.msra.mxu0 %v4079
    %4375 = vmatprep.subr.mxu0 0.0
    %4376 = vmatpush1.msra.mxu0 %v4080
    %4377 = vmatprep.subr.mxu0 0.0
    %4378 = vmatpush1.msra.mxu0 %v4081
    %4379 = vmatprep.subr.mxu0 0.0
    %4380 = vmatpush1.msra.mxu0 %v4082
    %4381 = vmatprep.subr.mxu0 0.0
    %4382 = vmatpush1.msra.mxu0 %v4083
    %4383 = vmatprep.subr.mxu0 0.0
    %4384 = vmatpush1.msra.mxu0 %v4084
    %4385 = vmatprep.subr.mxu0 0.0
    %4386 = vmatpush1.msra.mxu0 %v4085
    %4387 = vmatprep.subr.mxu0 0.0
    %4388 = vmatpush1.msra.mxu0 %v4086
    %4389 = vmatprep.subr.mxu0 0.0
    %4390 = vmatpush1.msra.mxu0 %v4087
    %4391 = vmatprep.subr.mxu0 0.0
    %4392 = vmatpush1.msra.mxu0 %v4088
    %4393 = vmatprep.subr.mxu0 0.0
    %4394 = vmatpush1.msra.mxu0 %v4089
    %4395 = vmatprep.subr.mxu0 0.0
    %4396 = vmatpush1.msra.mxu0 %v4090
    %4397 = vmatprep.subr.mxu0 0.0
    %4398 = vmatpush1.msra.mxu0 %v4091
    %4399 = vmatprep.subr.mxu0 0.0
    %4400 = vmatpush1.msra.mxu0 %v4092
    %4401 = vmatprep.subr.mxu0 0.0
    %4402 = vmatpush1.msra.mxu0 %v4093
    %4403 = vmatprep.subr.mxu0 0.0
    %4404 = vmatpush1.msra.mxu0 %v4094
    %4405 = vmatprep.subr.mxu0 0.0
    %4406 = vmatpush1.msra.mxu0 %v4095
    %4407 = vmatprep.subr.mxu0 0.0
    %4408 = vmatpush1.msra.mxu0 %v4096
    %4409 = vmatprep.subr.mxu0 0.0
    %4410 = vmatpush1.msra.mxu0 %v4097
    %4411 = vmatprep.subr.mxu0 0.0
    %4412 = vmatpush1.msra.mxu0 %v4098
    %4413 = vmatprep.subr.mxu0 0.0
    %4414 = vmatpush1.msra.mxu0 %v4099
    %4415 = vmatprep.subr.mxu0 0.0
    %4416 = vmatpush1.msra.mxu0 %v4100
    %4417 = vmatprep.subr.mxu0 0.0
    %4418 = vmatpush1.msra.mxu0 %v4101
    %4419 = vmatprep.subr.mxu0 0.0
    %4420 = vmatpush1.msra.mxu0 0.0
    %4421 = vmatprep.subr.mxu0 0.0
    %4422 = vmatpush1.msra.mxu0 0.0
    %4423 = vmatprep.subr.mxu0 0.0
    %4424 = vmatpush1.msra.mxu0 0.0
    %4425 = vmatprep.subr.mxu0 0.0
    %4426 = vmatpush1.msra.mxu0 0.0
    %4427 = vmatprep.mubr.f32.mxu0 %v4103
    %4428 = vmatmul.mubr.f32.gmra.mrb[0].mxu0 %v3813
    %v4429 = vpop.f32.mrb[0].mxu0
    %v4430 = vadd.f32 %v4345, %v4429
    %v4431 = vpop.f32.mrb[0].mxu0
    %4432 = vmatprep.mubr.f32.mxu0 %v760
    %4433 = vmatmul.mubr.f32.gmra.mrb[0].mxu0 %v468
    %v4434 = vpop.f32.mrb[0].mxu0
    %v4435 = vadd.f32 %v4350, %v4434
    %v4436 = vpop.f32.mrb[0].mxu0
    %4437 = vmatprep.mubr.f32.mxu0 %v4106
    %4438 = vmatmul.mubr.f32.gmra.mrb[0].mxu0 %v3974
    %v4439 = vpop.f32.mrb[0].mxu0
    %v4440 = vadd.f32 %v4355, %v4439
    %v4441 = vpop.f32.mrb[0].mxu0
    %4442 = vmatprep.mubr.f32.mxu0 %v760
    %4443 = vmatmul.mubr.f32.gmra.mrb[0].mxu0 %v468
    %v4444 = vpop.f32.mrb[0].mxu0
    %v4445 = vadd.f32 %v4360, %v4444
    %v4446 = vpop.f32.mrb[0].mxu0
    %4447 = vdwg.mxu0
    %v4450 = vrot.slane %v3551, 1
    %v4451 = vrot.slane %v3552, 1
    %v4452 = vsel %vm268, %v4450, %v4451
    %v4455 = vsel %vm268, %v4451, -inf
    %v4456 = vrot.slane %v3551, 7
    %v4457 = vrot.slane %v3552, 7
    %v4458 = vsel %vm345, %v4456, %v4457
    %v4461 = vsel %vm345, -inf, %v4456
    %v4462 = vmax.f32 %v4452, %v3551
    %v4463 = vmax.f32 %v4455, %v3552
    %v4464 = vmax.f32 %v4462, %v4461
    %v4465 = vmax.f32 %v4463, %v4458
    %v4468 = vrot.slane %v3553, 1
    %v4469 = vrot.slane %v3554, 1
    %v4470 = vsel %vm268, %v4468, %v4469
    %v4473 = vsel %vm268, %v4469, -inf
    %v4474 = vrot.slane %v3553, 7
    %v4475 = vrot.slane %v3554, 7
    %v4476 = vsel %vm345, %v4474, %v4475
    %v4479 = vsel %vm345, -inf, %v4474
    %v4480 = vmax.f32 %v4470, %v3553
    %v4481 = vmax.f32 %v4473, %v3554
    %v4482 = vmax.f32 %v4480, %v4479
    %v4483 = vmax.f32 %v4481, %v4476
    %v4484 = vld [vmem:[%s37] sm:$0xff]
    %v4485 = vld [vmem:[%s37 + $0x8] sm:$0xff]
    %v4486 = vld [vmem:[%s37 + $0x10] sm:$0xff]
    %v4487 = vld [vmem:[%s37 + $0x18] sm:$0xff]
    %v4488 = vld [vmem:[%s37 + $0x20] sm:$0xff]
    %v4489 = vld [vmem:[%s37 + $0x28] sm:$0xff]
    %v4490 = vld [vmem:[%s37 + $0x30] sm:$0xff]
    %v4491 = vld [vmem:[%s37 + $0x38] sm:$0xff]
    %v4492 = vld [vmem:[%s37 + $0x40] sm:$0xff]
    %v4493 = vld [vmem:[%s37 + $0x48] sm:$0xff]
    %v4494 = vld [vmem:[%s37 + $0x50] sm:$0xff]
    %v4495 = vld [vmem:[%s37 + $0x58] sm:$0xff]
    %v4496 = vld [vmem:[%s37 + $0x60] sm:$0xff]
    %v4497 = vld [vmem:[%s37 + $0x68] sm:$0xff]
    %v4498 = vld [vmem:[%s37 + $0x70] sm:$0xff]
    %v4499 = vld [vmem:[%s37 + $0x78] sm:$0xff]
    %4500 = vmatprep.subr.mxu0 0.0
    %4501 = vmatpush1.msra.mxu0 %v4484
    %4502 = vmatprep.subr.mxu0 0.0
    %4503 = vmatpush1.msra.mxu0 %v4485
    %4504 = vmatprep.subr.mxu0 0.0
    %4505 = vmatpush1.msra.mxu0 %v4486
    %4506 = vmatprep.subr.mxu0 0.0
    %4507 = vmatpush1.msra.mxu0 %v4487
    %4508 = vmatprep.subr.mxu0 0.0
    %4509 = vmatpush1.msra.mxu0 %v4488
    %4510 = vmatprep.subr.mxu0 0.0
    %4511 = vmatpush1.msra.mxu0 %v4489
    %4512 = vmatprep.subr.mxu0 0.0
    %4513 = vmatpush1.msra.mxu0 %v4490
    %4514 = vmatprep.subr.mxu0 0.0
    %4515 = vmatpush1.msra.mxu0 %v4491
    %4516 = vmatprep.subr.mxu0 0.0
    %4517 = vmatpush1.msra.mxu0 %v4492
    %4518 = vmatprep.subr.mxu0 0.0
    %4519 = vmatpush1.msra.mxu0 %v4493
    %4520 = vmatprep.subr.mxu0 0.0
    %4521 = vmatpush1.msra.mxu0 %v4494
    %4522 = vmatprep.subr.mxu0 0.0
    %4523 = vmatpush1.msra.mxu0 %v4495
    %4524 = vmatprep.subr.mxu0 0.0
    %4525 = vmatpush1.msra.mxu0 %v4496
    %4526 = vmatprep.subr.mxu0 0.0
    %4527 = vmatpush1.msra.mxu0 %v4497
    %4528 = vmatprep.subr.mxu0 0.0
    %4529 = vmatpush1.msra.mxu0 %v4498
    %4530 = vmatprep.subr.mxu0 0.0
    %4531 = vmatpush1.msra.mxu0 %v4499
    %4532 = vmatprep.subr.mxu0 0.0
    %4533 = vmatpush1.msra.mxu0 0.0
    %4534 = vmatprep.subr.mxu0 0.0
    %4535 = vmatpush1.msra.mxu0 0.0
    %4536 = vmatprep.subr.mxu0 0.0
    %4537 = vmatpush1.msra.mxu0 0.0
    %4538 = vmatprep.subr.mxu0 0.0
    %4539 = vmatpush1.msra.mxu0 0.0
    %4540 = vmatprep.subr.mxu0 0.0
    %4541 = vmatpush1.msra.mxu0 0.0
    %4542 = vmatprep.subr.mxu0 0.0
    %4543 = vmatpush1.msra.mxu0 0.0
    %4544 = vmatprep.subr.mxu0 0.0
    %4545 = vmatpush1.msra.mxu0 0.0
    %4546 = vmatprep.subr.mxu0 0.0
    %4547 = vmatpush1.msra.mxu0 0.0
    %4548 = vmatprep.subr.mxu0 0.0
    %4549 = vmatpush1.msra.mxu0 0.0
    %4550 = vmatprep.subr.mxu0 0.0
    %4551 = vmatpush1.msra.mxu0 0.0
    %4552 = vmatprep.subr.mxu0 0.0
    %4553 = vmatpush1.msra.mxu0 0.0
    %4554 = vmatprep.subr.mxu0 0.0
    %4555 = vmatpush1.msra.mxu0 0.0
    %4556 = vmatprep.subr.mxu0 0.0
    %4557 = vmatpush1.msra.mxu0 0.0
    %4558 = vmatprep.subr.mxu0 0.0
    %4559 = vmatpush1.msra.mxu0 0.0
    %4560 = vmatprep.subr.mxu0 0.0
    %4561 = vmatpush1.msra.mxu0 0.0
    %4562 = vmatprep.subr.mxu0 0.0
    %4563 = vmatpush1.msra.mxu0 0.0
    %4564 = vmatprep.mubr.f32.mxu0 0.0
    %4565 = vmatmul.mubr.f32.gmra.mrb[0].mxu0 %v4464
    %v4566 = vpop.f32.mrb[0].mxu0
    %v4567 = vadd.f32 0.0, %v4566
    %v4568 = vpop.f32.mrb[0].mxu0
    %4569 = vmatprep.mubr.f32.mxu0 0.0
    %4570 = vmatmul.mubr.f32.gmra.mrb[0].mxu0 %v4465
    %v4571 = vpop.f32.mrb[0].mxu0
    %v4572 = vadd.f32 0.0, %v4571
    %v4573 = vpop.f32.mrb[0].mxu0
    %4574 = vmatprep.mubr.f32.mxu0 0.0
    %4575 = vmatmul.mubr.f32.gmra.mrb[0].mxu0 %v4482
    %v4576 = vpop.f32.mrb[0].mxu0
    %v4577 = vadd.f32 0.0, %v4576
    %v4578 = vpop.f32.mrb[0].mxu0
    %4579 = vmatprep.mubr.f32.mxu0 0.0
    %4580 = vmatmul.mubr.f32.gmra.mrb[0].mxu0 %v4483
    %v4581 = vpop.f32.mrb[0].mxu0
    %v4582 = vadd.f32 0.0, %v4581
    %v4583 = vpop.f32.mrb[0].mxu0
    %4584 = vdwg.mxu0
    %4589 = vrot.lane.b32.xlu0 %v4567, 96
    %v4590 = vpop.permute.xlu0 %4589
    %4591 = vrot.lane.b32.xlu0 %v4572, 96
    %v4592 = vpop.permute.xlu0 %4591
    %4593 = vrot.lane.b32.xlu0 %v4577, 96
    %v4594 = vpop.permute.xlu0 %4593
    %4595 = vrot.lane.b32.xlu0 %v4582, 96
    %v4596 = vpop.permute.xlu0 %4595
    %v4601 = vsel %vm397, %v4430, %v4590
    %v4602 = vsel %vm397, %v4435, %v4592
    %v4603 = vsel %vm397, %v4440, %v4594
    %v4604 = vsel %vm397, %v4445, %v4596
    %v4605 = vld [vmem:[%s39] sm:$0x1]
    %v4607 = vlaneseq
    %v4608 = vshrl.u32 %v4607, 7
    %v4609 = vsub.s32 0, %v4608
    %v4610 = vrot.slane %v4605, %v4609
    %v4612 = vmul.f32 %v4601, %v4610
    %v4613 = vmul.f32 %v4602, %v4610
    %v4614 = vmul.f32 %v4603, %v4610
    %v4615 = vmul.f32 %v4604, %v4610
    %v4616 = vld [vmem:[%s41] sm:$0x1]
    %v4618 = vlaneseq
    %v4619 = vshrl.u32 %v4618, 7
    %v4620 = vsub.s32 0, %v4619
    %v4621 = vrot.slane %v4616, %v4620
    %v4623 = vadd.f32 %v4612, %v4621
    %v4624 = vadd.f32 %v4613, %v4621
    %v4625 = vadd.f32 %v4614, %v4621
    %v4626 = vadd.f32 %v4615, %v4621
    %v4627 = vmax.f32 %v4623, 0.0
    %v4628 = vmax.f32 %v4624, 0.0
    %v4629 = vmax.f32 %v4625, 0.0
    %v4630 = vmax.f32 %v4626, 0.0
    %v4631 = vld [vmem:[%s43] sm:$0xff]
    %v4632 = vld [vmem:[%s43 + $0x8] sm:$0xff]
    %v4633 = vld [vmem:[%s43 + $0x10] sm:$0xff]
    %v4634 = vld [vmem:[%s43 + $0x18] sm:$0xff]
    %v4635 = vld [vmem:[%s43 + $0x20] sm:$0xff]
    %v4636 = vld [vmem:[%s43 + $0x28] sm:$0xff]
    %v4637 = vld [vmem:[%s43 + $0x30] sm:$0xff]
    %v4638 = vld [vmem:[%s43 + $0x38] sm:$0xff]
    %v4639 = vld [vmem:[%s43 + $0x40] sm:$0xff]
    %v4640 = vld [vmem:[%s43 + $0x48] sm:$0xff]
    %v4641 = vld [vmem:[%s43 + $0x50] sm:$0xff]
    %v4642 = vld [vmem:[%s43 + $0x58] sm:$0xff]
    %v4643 = vld [vmem:[%s43 + $0x60] sm:$0xff]
    %v4644 = vld [vmem:[%s43 + $0x68] sm:$0xff]
    %v4645 = vld [vmem:[%s43 + $0x70] sm:$0xff]
    %v4646 = vld [vmem:[%s43 + $0x78] sm:$0xff]
    %4647 = vmatprep.subr.mxu0 0.0
    %4648 = vmatpush1.msra.mxu0 %v4631
    %4649 = vmatprep.subr.mxu0 0.0
    %4650 = vmatpush1.msra.mxu0 %v4632
    %4651 = vmatprep.subr.mxu0 0.0
    %4652 = vmatpush1.msra.mxu0 %v4633
    %4653 = vmatprep.subr.mxu0 0.0
    %4654 = vmatpush1.msra.mxu0 %v4634
    %4655 = vmatprep.subr.mxu0 0.0
    %4656 = vmatpush1.msra.mxu0 %v4635
    %4657 = vmatprep.subr.mxu0 0.0
    %4658 = vmatpush1.msra.mxu0 %v4636
    %4659 = vmatprep.subr.mxu0 0.0
    %4660 = vmatpush1.msra.mxu0 %v4637
    %4661 = vmatprep.subr.mxu0 0.0
    %4662 = vmatpush1.msra.mxu0 %v4638
    %4663 = vmatprep.subr.mxu0 0.0
    %4664 = vmatpush1.msra.mxu0 %v4639
    %4665 = vmatprep.subr.mxu0 0.0
    %4666 = vmatpush1.msra.mxu0 %v4640
    %4667 = vmatprep.subr.mxu0 0.0
    %4668 = vmatpush1.msra.mxu0 %v4641
    %4669 = vmatprep.subr.mxu0 0.0
    %4670 = vmatpush1.msra.mxu0 %v4642
    %4671 = vmatprep.subr.mxu0 0.0
    %4672 = vmatpush1.msra.mxu0 %v4643
    %4673 = vmatprep.subr.mxu0 0.0
    %4674 = vmatpush1.msra.mxu0 %v4644
    %4675 = vmatprep.subr.mxu0 0.0
    %4676 = vmatpush1.msra.mxu0 %v4645
    %4677 = vmatprep.subr.mxu0 0.0
    %4678 = vmatpush1.msra.mxu0 %v4646
    %4679 = vmatprep.subr.mxu0 0.0
    %4680 = vmatpush1.msra.mxu0 0.0
    %4681 = vmatprep.subr.mxu0 0.0
    %4682 = vmatpush1.msra.mxu0 0.0
    %4683 = vmatprep.subr.mxu0 0.0
    %4684 = vmatpush1.msra.mxu0 0.0
    %4685 = vmatprep.subr.mxu0 0.0
    %4686 = vmatpush1.msra.mxu0 0.0
    %4687 = vmatprep.subr.mxu0 0.0
    %4688 = vmatpush1.msra.mxu0 0.0
    %4689 = vmatprep.subr.mxu0 0.0
    %4690 = vmatpush1.msra.mxu0 0.0
    %4691 = vmatprep.subr.mxu0 0.0
    %4692 = vmatpush1.msra.mxu0 0.0
    %4693 = vmatprep.subr.mxu0 0.0
    %4694 = vmatpush1.msra.mxu0 0.0
    %4695 = vmatprep.subr.mxu0 0.0
    %4696 = vmatpush1.msra.mxu0 0.0
    %4697 = vmatprep.subr.mxu0 0.0
    %4698 = vmatpush1.msra.mxu0 0.0
    %4699 = vmatprep.subr.mxu0 0.0
    %4700 = vmatpush1.msra.mxu0 0.0
    %4701 = vmatprep.subr.mxu0 0.0
    %4702 = vmatpush1.msra.mxu0 0.0
    %4703 = vmatprep.subr.mxu0 0.0
    %4704 = vmatpush1.msra.mxu0 0.0
    %4705 = vmatprep.subr.mxu0 0.0
    %4706 = vmatpush1.msra.mxu0 0.0
    %4707 = vmatprep.subr.mxu0 0.0
    %4708 = vmatpush1.msra.mxu0 0.0
    %4709 = vmatprep.subr.mxu0 0.0
    %4710 = vmatpush1.msra.mxu0 0.0
    %4711 = vmatprep.mubr.f32.mxu0 0.0
    %4712 = vmatmul.mubr.f32.gmra.mrb[0].mxu0 %v4627
    %v4713 = vpop.f32.mrb[0].mxu0
    %v4714 = vadd.f32 0.0, %v4713
    %v4715 = vpop.f32.mrb[0].mxu0
    %4716 = vmatprep.mubr.f32.mxu0 0.0
    %4717 = vmatmul.mubr.f32.gmra.mrb[0].mxu0 %v4628
    %v4718 = vpop.f32.mrb[0].mxu0
    %v4719 = vadd.f32 0.0, %v4718
    %v4720 = vpop.f32.mrb[0].mxu0
    %4721 = vmatprep.mubr.f32.mxu0 0.0
    %4722 = vmatmul.mubr.f32.gmra.mrb[0].mxu0 %v4629
    %v4723 = vpop.f32.mrb[0].mxu0
    %v4724 = vadd.f32 0.0, %v4723
    %v4725 = vpop.f32.mrb[0].mxu0
    %4726 = vmatprep.mubr.f32.mxu0 0.0
    %4727 = vmatmul.mubr.f32.gmra.mrb[0].mxu0 %v4630
    %v4728 = vpop.f32.mrb[0].mxu0
    %v4729 = vadd.f32 0.0, %v4728
    %v4730 = vpop.f32.mrb[0].mxu0
    %4731 = vdwg.mxu0
    %v4734 = vrot.slane %v4714, 1
    %v4735 = vrot.slane %v4719, 1
    %v4736 = vsel %vm268, %v4734, %v4735
    %v4740 = vsel %vm268, 0.0, %v4734
    %v4741 = vsel %vm268, %v4735, 0.0
    %v4743 = vrot.slane %v4740, 1
    %v4744 = vsel %vm268, %v279, %v4743
    %v4745 = vrot.slane %v4736, 1
    %v4746 = vsel %vm268, %v4743, %v4745
    %4747 = vrot.lane.b32.xlu0 %v4744, 32
    %v4748 = vpop.permute.xlu0 %4747
    %4749 = vrot.lane.b32.xlu0 %v4746, 32
    %v4750 = vpop.permute.xlu0 %4749
    %v4753 = vrot.slane %v4740, 2
    %v4754 = vsel %vm290, %v291, %v4753
    %v4755 = vrot.slane %v4736, 2
    %v4756 = vsel %vm290, %v4753, %v4755
    %4757 = vrot.lane.b32.xlu0 %v4754, 64
    %v4758 = vpop.permute.xlu0 %4757
    %4759 = vrot.lane.b32.xlu0 %v4756, 64
    %v4760 = vpop.permute.xlu0 %4759
    %v4763 = vrot.slane %v4740, 3
    %v4764 = vsel %vm302, %v303, %v4763
    %v4765 = vrot.slane %v4736, 3
    %v4766 = vsel %vm302, %v4763, %v4765
    %4767 = vrot.lane.b32.xlu0 %v4764, 96
    %v4768 = vpop.permute.xlu0 %4767
    %4769 = vrot.lane.b32.xlu0 %v4766, 96
    %v4770 = vpop.permute.xlu0 %4769
    %v4773 = vrot.slane %v4740, 4
    %v4774 = vsel %vm177, %v314, %v4773
    %v4775 = vrot.slane %v4736, 4
    %v4776 = vsel %vm177, %v4773, %v4775
    %v4779 = vrot.slane %v4740, 5
    %v4780 = vsel %vm321, %v322, %v4779
    %v4781 = vrot.slane %v4736, 5
    %v4782 = vsel %vm321, %v4779, %v4781
    %4783 = vrot.lane.b32.xlu0 %v4780, 32
    %v4784 = vpop.permute.xlu0 %4783
    %4785 = vrot.lane.b32.xlu0 %v4782, 32
    %v4786 = vpop.permute.xlu0 %4785
    %v4789 = vrot.slane %v4740, 6
    %v4790 = vsel %vm333, %v334, %v4789
    %v4791 = vrot.slane %v4736, 6
    %v4792 = vsel %vm333, %v4789, %v4791
    %4793 = vrot.lane.b32.xlu0 %v4790, 64
    %v4794 = vpop.permute.xlu0 %4793
    %4795 = vrot.lane.b32.xlu0 %v4792, 64
    %v4796 = vpop.permute.xlu0 %4795
    %v4799 = vrot.slane %v4740, 7
    %v4800 = vsel %vm345, %v346, %v4799
    %v4801 = vrot.slane %v4736, 7
    %v4802 = vsel %vm345, %v4799, %v4801
    %4803 = vrot.lane.b32.xlu0 %v4800, 96
    %v4804 = vpop.permute.xlu0 %4803
    %4805 = vrot.lane.b32.xlu0 %v4802, 96
    %v4806 = vpop.permute.xlu0 %4805
    %v4810 = vrot.slane %v4741, 1
    %v4811 = vsel %vm268, %v4745, %v4810
    %4812 = vrot.lane.b32.xlu0 %v4811, 32
    %v4813 = vpop.permute.xlu0 %4812
    %v4815 = vrot.slane %v4741, 2
    %v4816 = vsel %vm290, %v4755, %v4815
    %4817 = vrot.lane.b32.xlu0 %v4816, 64
    %v4818 = vpop.permute.xlu0 %4817
    %v4820 = vrot.slane %v4741, 3
    %v4821 = vsel %vm302, %v4765, %v4820
    %4822 = vrot.lane.b32.xlu0 %v4821, 96
    %v4823 = vpop.permute.xlu0 %4822
    %v4825 = vrot.slane %v4741, 4
    %v4826 = vsel %vm177, %v4775, %v4825
    %v4828 = vrot.slane %v4741, 5
    %v4829 = vsel %vm321, %v4781, %v4828
    %4830 = vrot.lane.b32.xlu0 %v4829, 32
    %v4831 = vpop.permute.xlu0 %4830
    %v4833 = vrot.slane %v4741, 6
    %v4834 = vsel %vm333, %v4791, %v4833
    %4835 = vrot.lane.b32.xlu0 %v4834, 64
    %v4836 = vpop.permute.xlu0 %4835
    %v4838 = vrot.slane %v4741, 7
    %v4839 = vsel %vm345, %v4801, %v4838
    %4840 = vrot.lane.b32.xlu0 %v4839, 96
    %v4841 = vpop.permute.xlu0 %4840
    %v4843 = vsel %vm391, 0.0, %v4748
    %v4844 = vsel %vm391, %v4740, %v4750
    %v4845 = vsel %vm394, %v4843, %v4758
    %v4846 = vsel %vm394, %v4844, %v4760
    %v4847 = vsel %vm397, %v4845, %v4768
    %v4848 = vsel %vm397, %v4846, %v4770
    %v4849 = vsel %vm391, %v4774, %v4784
    %v4850 = vsel %vm391, %v4776, %v4786
    %v4851 = vsel %vm394, %v4849, %v4794
    %v4852 = vsel %vm394, %v4850, %v4796
    %v4853 = vsel %vm397, %v4851, %v4804
    %v4854 = vsel %vm397, %v4852, %v4806
    %v4855 = vsel %vm391, %v4736, %v4813
    %v4856 = vsel %vm394, %v4855, %v4818
    %v4857 = vsel %vm397, %v4856, %v4823
    %v4858 = vsel %vm391, %v4826, %v4831
    %v4859 = vsel %vm394, %v4858, %v4836
    %v4860 = vsel %vm397, %v4859, %v4841
    %v4861 = vsel %vm268, %v4810, %v279
    %4862 = vrot.lane.b32.xlu0 %v4861, 32
    %v4863 = vpop.permute.xlu0 %4862
    %v4865 = vsel %vm290, %v4815, %v291
    %4866 = vrot.lane.b32.xlu0 %v4865, 64
    %v4867 = vpop.permute.xlu0 %4866
    %v4869 = vsel %vm302, %v4820, %v303
    %4870 = vrot.lane.b32.xlu0 %v4869, 96
    %v4871 = vpop.permute.xlu0 %4870
    %v4873 = vsel %vm177, %v4825, %v314
    %v4875 = vsel %vm321, %v4828, %v322
    %4876 = vrot.lane.b32.xlu0 %v4875, 32
    %v4877 = vpop.permute.xlu0 %4876
    %v4879 = vsel %vm333, %v4833, %v334
    %4880 = vrot.lane.b32.xlu0 %v4879, 64
    %v4881 = vpop.permute.xlu0 %4880
    %v4883 = vsel %vm345, %v4838, %v346
    %4884 = vrot.lane.b32.xlu0 %v4883, 96
    %v4885 = vpop.permute.xlu0 %4884
    %v4887 = vsel %vm391, %v4741, %v4863
    %v4888 = vsel %vm394, %v4887, %v4867
    %v4889 = vsel %vm397, %v4888, %v4871
    %v4890 = vsel %vm391, %v4873, %v4877
    %v4891 = vsel %vm394, %v4890, %v4881
    %v4892 = vsel %vm397, %v4891, %v4885
    %v4895 = vrot.slane %v4724, 1
    %v4896 = vrot.slane %v4729, 1
    %v4897 = vsel %vm268, %v4895, %v4896
    %v4901 = vsel %vm268, 0.0, %v4895
    %v4902 = vsel %vm268, %v4896, 0.0
    %v4904 = vrot.slane %v4901, 1
    %v4905 = vsel %vm268, %v279, %v4904
    %v4906 = vrot.slane %v4897, 1
    %v4907 = vsel %vm268, %v4904, %v4906
    %4908 = vrot.lane.b32.xlu0 %v4905, 32
    %v4909 = vpop.permute.xlu0 %4908
    %4910 = vrot.lane.b32.xlu0 %v4907, 32
    %v4911 = vpop.permute.xlu0 %4910
    %v4914 = vrot.slane %v4901, 2
    %v4915 = vsel %vm290, %v291, %v4914
    %v4916 = vrot.slane %v4897, 2
    %v4917 = vsel %vm290, %v4914, %v4916
    %4918 = vrot.lane.b32.xlu0 %v4915, 64
    %v4919 = vpop.permute.xlu0 %4918
    %4920 = vrot.lane.b32.xlu0 %v4917, 64
    %v4921 = vpop.permute.xlu0 %4920
    %v4924 = vrot.slane %v4901, 3
    %v4925 = vsel %vm302, %v303, %v4924
    %v4926 = vrot.slane %v4897, 3
    %v4927 = vsel %vm302, %v4924, %v4926
    %4928 = vrot.lane.b32.xlu0 %v4925, 96
    %v4929 = vpop.permute.xlu0 %4928
    %4930 = vrot.lane.b32.xlu0 %v4927, 96
    %v4931 = vpop.permute.xlu0 %4930
    %v4934 = vrot.slane %v4901, 4
    %v4935 = vsel %vm177, %v314, %v4934
    %v4936 = vrot.slane %v4897, 4
    %v4937 = vsel %vm177, %v4934, %v4936
    %v4940 = vrot.slane %v4901, 5
    %v4941 = vsel %vm321, %v322, %v4940
    %v4942 = vrot.slane %v4897, 5
    %v4943 = vsel %vm321, %v4940, %v4942
    %4944 = vrot.lane.b32.xlu0 %v4941, 32
    %v4945 = vpop.permute.xlu0 %4944
    %4946 = vrot.lane.b32.xlu0 %v4943, 32
    %v4947 = vpop.permute.xlu0 %4946
    %v4950 = vrot.slane %v4901, 6
    %v4951 = vsel %vm333, %v334, %v4950
    %v4952 = vrot.slane %v4897, 6
    %v4953 = vsel %vm333, %v4950, %v4952
    %4954 = vrot.lane.b32.xlu0 %v4951, 64
    %v4955 = vpop.permute.xlu0 %4954
    %4956 = vrot.lane.b32.xlu0 %v4953, 64
    %v4957 = vpop.permute.xlu0 %4956
    %v4960 = vrot.slane %v4901, 7
    %v4961 = vsel %vm345, %v346, %v4960
    %v4962 = vrot.slane %v4897, 7
    %v4963 = vsel %vm345, %v4960, %v4962
    %4964 = vrot.lane.b32.xlu0 %v4961, 96
    %v4965 = vpop.permute.xlu0 %4964
    %4966 = vrot.lane.b32.xlu0 %v4963, 96
    %v4967 = vpop.permute.xlu0 %4966
    %v4971 = vrot.slane %v4902, 1
    %v4972 = vsel %vm268, %v4906, %v4971
    %4973 = vrot.lane.b32.xlu0 %v4972, 32
    %v4974 = vpop.permute.xlu0 %4973
    %v4976 = vrot.slane %v4902, 2
    %v4977 = vsel %vm290, %v4916, %v4976
    %4978 = vrot.lane.b32.xlu0 %v4977, 64
    %v4979 = vpop.permute.xlu0 %4978
    %v4981 = vrot.slane %v4902, 3
    %v4982 = vsel %vm302, %v4926, %v4981
    %4983 = vrot.lane.b32.xlu0 %v4982, 96
    %v4984 = vpop.permute.xlu0 %4983
    %v4986 = vrot.slane %v4902, 4
    %v4987 = vsel %vm177, %v4936, %v4986
    %v4989 = vrot.slane %v4902, 5
    %v4990 = vsel %vm321, %v4942, %v4989
    %4991 = vrot.lane.b32.xlu0 %v4990, 32
    %v4992 = vpop.permute.xlu0 %4991
    %v4994 = vrot.slane %v4902, 6
    %v4995 = vsel %vm333, %v4952, %v4994
    %4996 = vrot.lane.b32.xlu0 %v4995, 64
    %v4997 = vpop.permute.xlu0 %4996
    %v4999 = vrot.slane %v4902, 7
    %v5000 = vsel %vm345, %v4962, %v4999
    %5001 = vrot.lane.b32.xlu0 %v5000, 96
    %v5002 = vpop.permute.xlu0 %5001
    %v5004 = vsel %vm391, 0.0, %v4909
    %v5005 = vsel %vm391, %v4901, %v4911
    %v5006 = vsel %vm394, %v5004, %v4919
    %v5007 = vsel %vm394, %v5005, %v4921
    %v5008 = vsel %vm397, %v5006, %v4929
    %v5009 = vsel %vm397, %v5007, %v4931
    %v5010 = vsel %vm391, %v4935, %v4945
    %v5011 = vsel %vm391, %v4937, %v4947
    %v5012 = vsel %vm394, %v5010, %v4955
    %v5013 = vsel %vm394, %v5011, %v4957
    %v5014 = vsel %vm397, %v5012, %v4965
    %v5015 = vsel %vm397, %v5013, %v4967
    %v5016 = vsel %vm391, %v4897, %v4974
    %v5017 = vsel %vm394, %v5016, %v4979
    %v5018 = vsel %vm397, %v5017, %v4984
    %v5019 = vsel %vm391, %v4987, %v4992
    %v5020 = vsel %vm394, %v5019, %v4997
    %v5021 = vsel %vm397, %v5020, %v5002
    %v5022 = vsel %vm268, %v4971, %v279
    %5023 = vrot.lane.b32.xlu0 %v5022, 32
    %v5024 = vpop.permute.xlu0 %5023
    %v5026 = vsel %vm290, %v4976, %v291
    %5027 = vrot.lane.b32.xlu0 %v5026, 64
    %v5028 = vpop.permute.xlu0 %5027
    %v5030 = vsel %vm302, %v4981, %v303
    %5031 = vrot.lane.b32.xlu0 %v5030, 96
    %v5032 = vpop.permute.xlu0 %5031
    %v5034 = vsel %vm177, %v4986, %v314
    %v5036 = vsel %vm321, %v4989, %v322
    %5037 = vrot.lane.b32.xlu0 %v5036, 32
    %v5038 = vpop.permute.xlu0 %5037
    %v5040 = vsel %vm333, %v4994, %v334
    %5041 = vrot.lane.b32.xlu0 %v5040, 64
    %v5042 = vpop.permute.xlu0 %5041
    %v5044 = vsel %vm345, %v4999, %v346
    %5045 = vrot.lane.b32.xlu0 %v5044, 96
    %v5046 = vpop.permute.xlu0 %5045
    %v5048 = vsel %vm391, %v4902, %v5024
    %v5049 = vsel %vm394, %v5048, %v5028
    %v5050 = vsel %vm397, %v5049, %v5032
    %v5051 = vsel %vm391, %v5034, %v5038
    %v5052 = vsel %vm394, %v5051, %v5042
    %v5053 = vsel %vm397, %v5052, %v5046
    %v5054 = vld [vmem:[%s45] sm:$0xff]
    %v5055 = vld [vmem:[%s45 + $0x8] sm:$0xff]
    %v5056 = vld [vmem:[%s45 + $0x10] sm:$0xff]
    %v5057 = vld [vmem:[%s45 + $0x18] sm:$0xff]
    %v5058 = vld [vmem:[%s45 + $0x20] sm:$0xff]
    %v5059 = vld [vmem:[%s45 + $0x28] sm:$0xff]
    %v5060 = vld [vmem:[%s45 + $0x30] sm:$0xff]
    %v5061 = vld [vmem:[%s45 + $0x38] sm:$0xff]
    %v5062 = vld [vmem:[%s45 + $0x40] sm:$0xff]
    %v5063 = vld [vmem:[%s45 + $0x48] sm:$0xff]
    %v5064 = vld [vmem:[%s45 + $0x50] sm:$0xff]
    %v5065 = vld [vmem:[%s45 + $0x58] sm:$0xff]
    %v5066 = vld [vmem:[%s45 + $0x60] sm:$0xff]
    %v5067 = vld [vmem:[%s45 + $0x68] sm:$0xff]
    %v5068 = vld [vmem:[%s45 + $0x70] sm:$0xff]
    %v5069 = vld [vmem:[%s45 + $0x78] sm:$0xff]
    %v5070 = vld [vmem:[%s45 + $0x80] sm:$0xff]
    %v5071 = vld [vmem:[%s45 + $0x88] sm:$0xff]
    %v5072 = vld [vmem:[%s45 + $0x90] sm:$0xff]
    %v5073 = vld [vmem:[%s45 + $0x98] sm:$0xff]
    %v5074 = vld [vmem:[%s45 + $0xa0] sm:$0xff]
    %v5075 = vld [vmem:[%s45 + $0xa8] sm:$0xff]
    %v5076 = vld [vmem:[%s45 + $0xb0] sm:$0xff]
    %v5077 = vld [vmem:[%s45 + $0xb8] sm:$0xff]
    %v5078 = vld [vmem:[%s45 + $0xc0] sm:$0xff]
    %v5079 = vld [vmem:[%s45 + $0xc8] sm:$0xff]
    %v5080 = vld [vmem:[%s45 + $0xd0] sm:$0xff]
    %v5081 = vld [vmem:[%s45 + $0xd8] sm:$0xff]
    %v5082 = vld [vmem:[%s45 + $0xe0] sm:$0xff]
    %v5083 = vld [vmem:[%s45 + $0xe8] sm:$0xff]
    %v5084 = vld [vmem:[%s45 + $0xf0] sm:$0xff]
    %v5085 = vld [vmem:[%s45 + $0xf8] sm:$0xff]
    %v5086 = vld [vmem:[%s45 + $0x100] sm:$0xff]
    %v5087 = vld [vmem:[%s45 + $0x108] sm:$0xff]
    %v5088 = vld [vmem:[%s45 + $0x110] sm:$0xff]
    %v5089 = vld [vmem:[%s45 + $0x118] sm:$0xff]
    %v5090 = vld [vmem:[%s45 + $0x120] sm:$0xff]
    %v5091 = vld [vmem:[%s45 + $0x128] sm:$0xff]
    %v5092 = vld [vmem:[%s45 + $0x130] sm:$0xff]
    %v5093 = vld [vmem:[%s45 + $0x138] sm:$0xff]
    %v5094 = vld [vmem:[%s45 + $0x140] sm:$0xff]
    %v5095 = vld [vmem:[%s45 + $0x148] sm:$0xff]
    %v5096 = vld [vmem:[%s45 + $0x150] sm:$0xff]
    %v5097 = vld [vmem:[%s45 + $0x158] sm:$0xff]
    %v5098 = vld [vmem:[%s45 + $0x160] sm:$0xff]
    %v5099 = vld [vmem:[%s45 + $0x168] sm:$0xff]
    %v5100 = vld [vmem:[%s45 + $0x170] sm:$0xff]
    %v5101 = vld [vmem:[%s45 + $0x178] sm:$0xff]
    %v5102 = vld [vmem:[%s45 + $0x180] sm:$0xff]
    %v5103 = vld [vmem:[%s45 + $0x188] sm:$0xff]
    %v5104 = vld [vmem:[%s45 + $0x190] sm:$0xff]
    %v5105 = vld [vmem:[%s45 + $0x198] sm:$0xff]
    %v5106 = vld [vmem:[%s45 + $0x1a0] sm:$0xff]
    %v5107 = vld [vmem:[%s45 + $0x1a8] sm:$0xff]
    %v5108 = vld [vmem:[%s45 + $0x1b0] sm:$0xff]
    %v5109 = vld [vmem:[%s45 + $0x1b8] sm:$0xff]
    %v5110 = vld [vmem:[%s45 + $0x1c0] sm:$0xff]
    %v5111 = vld [vmem:[%s45 + $0x1c8] sm:$0xff]
    %v5112 = vld [vmem:[%s45 + $0x1d0] sm:$0xff]
    %v5113 = vld [vmem:[%s45 + $0x1d8] sm:$0xff]
    %v5114 = vld [vmem:[%s45 + $0x1e0] sm:$0xff]
    %v5115 = vld [vmem:[%s45 + $0x1e8] sm:$0xff]
    %v5116 = vld [vmem:[%s45 + $0x1f0] sm:$0xff]
    %v5117 = vld [vmem:[%s45 + $0x1f8] sm:$0xff]
    %v5118 = vld [vmem:[%s45 + $0x200] sm:$0xff]
    %v5119 = vld [vmem:[%s45 + $0x208] sm:$0xff]
    %v5120 = vld [vmem:[%s45 + $0x210] sm:$0xff]
    %v5121 = vld [vmem:[%s45 + $0x218] sm:$0xff]
    %v5122 = vld [vmem:[%s45 + $0x220] sm:$0xff]
    %v5123 = vld [vmem:[%s45 + $0x228] sm:$0xff]
    %v5124 = vld [vmem:[%s45 + $0x230] sm:$0xff]
    %v5125 = vld [vmem:[%s45 + $0x238] sm:$0xff]
    %v5126 = vld [vmem:[%s45 + $0x240] sm:$0xff]
    %v5127 = vld [vmem:[%s45 + $0x248] sm:$0xff]
    %v5128 = vld [vmem:[%s45 + $0x250] sm:$0xff]
    %v5129 = vld [vmem:[%s45 + $0x258] sm:$0xff]
    %v5130 = vld [vmem:[%s45 + $0x260] sm:$0xff]
    %v5131 = vld [vmem:[%s45 + $0x268] sm:$0xff]
    %v5132 = vld [vmem:[%s45 + $0x270] sm:$0xff]
    %v5133 = vld [vmem:[%s45 + $0x278] sm:$0xff]
    %v5134 = vld [vmem:[%s45 + $0x280] sm:$0xff]
    %v5135 = vld [vmem:[%s45 + $0x288] sm:$0xff]
    %v5136 = vld [vmem:[%s45 + $0x290] sm:$0xff]
    %v5137 = vld [vmem:[%s45 + $0x298] sm:$0xff]
    %v5138 = vld [vmem:[%s45 + $0x2a0] sm:$0xff]
    %v5139 = vld [vmem:[%s45 + $0x2a8] sm:$0xff]
    %v5140 = vld [vmem:[%s45 + $0x2b0] sm:$0xff]
    %v5141 = vld [vmem:[%s45 + $0x2b8] sm:$0xff]
    %v5142 = vld [vmem:[%s45 + $0x2c0] sm:$0xff]
    %v5143 = vld [vmem:[%s45 + $0x2c8] sm:$0xff]
    %v5144 = vld [vmem:[%s45 + $0x2d0] sm:$0xff]
    %v5145 = vld [vmem:[%s45 + $0x2d8] sm:$0xff]
    %v5146 = vld [vmem:[%s45 + $0x2e0] sm:$0xff]
    %v5147 = vld [vmem:[%s45 + $0x2e8] sm:$0xff]
    %v5148 = vld [vmem:[%s45 + $0x2f0] sm:$0xff]
    %v5149 = vld [vmem:[%s45 + $0x2f8] sm:$0xff]
    %v5150 = vld [vmem:[%s45 + $0x300] sm:$0xff]
    %v5151 = vld [vmem:[%s45 + $0x308] sm:$0xff]
    %v5152 = vld [vmem:[%s45 + $0x310] sm:$0xff]
    %v5153 = vld [vmem:[%s45 + $0x318] sm:$0xff]
    %v5154 = vld [vmem:[%s45 + $0x320] sm:$0xff]
    %v5155 = vld [vmem:[%s45 + $0x328] sm:$0xff]
    %v5156 = vld [vmem:[%s45 + $0x330] sm:$0xff]
    %v5157 = vld [vmem:[%s45 + $0x338] sm:$0xff]
    %v5158 = vld [vmem:[%s45 + $0x340] sm:$0xff]
    %v5159 = vld [vmem:[%s45 + $0x348] sm:$0xff]
    %v5160 = vld [vmem:[%s45 + $0x350] sm:$0xff]
    %v5161 = vld [vmem:[%s45 + $0x358] sm:$0xff]
    %v5162 = vld [vmem:[%s45 + $0x360] sm:$0xff]
    %v5163 = vld [vmem:[%s45 + $0x368] sm:$0xff]
    %v5164 = vld [vmem:[%s45 + $0x370] sm:$0xff]
    %v5165 = vld [vmem:[%s45 + $0x378] sm:$0xff]
    %v5166 = vld [vmem:[%s45 + $0x380] sm:$0xff]
    %v5167 = vld [vmem:[%s45 + $0x388] sm:$0xff]
    %v5168 = vld [vmem:[%s45 + $0x390] sm:$0xff]
    %v5169 = vld [vmem:[%s45 + $0x398] sm:$0xff]
    %v5170 = vld [vmem:[%s45 + $0x3a0] sm:$0xff]
    %v5171 = vld [vmem:[%s45 + $0x3a8] sm:$0xff]
    %v5172 = vld [vmem:[%s45 + $0x3b0] sm:$0xff]
    %v5173 = vld [vmem:[%s45 + $0x3b8] sm:$0xff]
    %v5174 = vld [vmem:[%s45 + $0x3c0] sm:$0xff]
    %v5175 = vld [vmem:[%s45 + $0x3c8] sm:$0xff]
    %v5176 = vld [vmem:[%s45 + $0x3d0] sm:$0xff]
    %v5177 = vld [vmem:[%s45 + $0x3d8] sm:$0xff]
    %v5179 = vsel %vm397, %v4891, 0
    %v5182 = vsel %vm397, %v5052, 0
    %5184 = vmatprep.subr.mxu0 0.0
    %5185 = vmatpush1.msra.mxu0 %v5054
    %5186 = vmatprep.subr.mxu0 0.0
    %5187 = vmatpush1.msra.mxu0 %v5055
    %5188 = vmatprep.subr.mxu0 0.0
    %5189 = vmatpush1.msra.mxu0 %v5056
    %5190 = vmatprep.subr.mxu0 0.0
    %5191 = vmatpush1.msra.mxu0 %v5057
    %5192 = vmatprep.subr.mxu0 0.0
    %5193 = vmatpush1.msra.mxu0 %v5058
    %5194 = vmatprep.subr.mxu0 0.0
    %5195 = vmatpush1.msra.mxu0 %v5059
    %5196 = vmatprep.subr.mxu0 0.0
    %5197 = vmatpush1.msra.mxu0 %v5060
    %5198 = vmatprep.subr.mxu0 0.0
    %5199 = vmatpush1.msra.mxu0 %v5061
    %5200 = vmatprep.subr.mxu0 0.0
    %5201 = vmatpush1.msra.mxu0 %v5062
    %5202 = vmatprep.subr.mxu0 0.0
    %5203 = vmatpush1.msra.mxu0 %v5063
    %5204 = vmatprep.subr.mxu0 0.0
    %5205 = vmatpush1.msra.mxu0 %v5064
    %5206 = vmatprep.subr.mxu0 0.0
    %5207 = vmatpush1.msra.mxu0 %v5065
    %5208 = vmatprep.subr.mxu0 0.0
    %5209 = vmatpush1.msra.mxu0 %v5066
    %5210 = vmatprep.subr.mxu0 0.0
    %5211 = vmatpush1.msra.mxu0 %v5067
    %5212 = vmatprep.subr.mxu0 0.0
    %5213 = vmatpush1.msra.mxu0 %v5068
    %5214 = vmatprep.subr.mxu0 0.0
    %5215 = vmatpush1.msra.mxu0 %v5069
    %5216 = vmatprep.subr.mxu0 0.0
    %5217 = vmatpush1.msra.mxu0 %v5070
    %5218 = vmatprep.subr.mxu0 0.0
    %5219 = vmatpush1.msra.mxu0 %v5071
    %5220 = vmatprep.subr.mxu0 0.0
    %5221 = vmatpush1.msra.mxu0 %v5072
    %5222 = vmatprep.subr.mxu0 0.0
    %5223 = vmatpush1.msra.mxu0 %v5073
    %5224 = vmatprep.subr.mxu0 0.0
    %5225 = vmatpush1.msra.mxu0 %v5074
    %5226 = vmatprep.subr.mxu0 0.0
    %5227 = vmatpush1.msra.mxu0 %v5075
    %5228 = vmatprep.subr.mxu0 0.0
    %5229 = vmatpush1.msra.mxu0 %v5076
    %5230 = vmatprep.subr.mxu0 0.0
    %5231 = vmatpush1.msra.mxu0 %v5077
    %5232 = vmatprep.subr.mxu0 0.0
    %5233 = vmatpush1.msra.mxu0 %v5078
    %5234 = vmatprep.subr.mxu0 0.0
    %5235 = vmatpush1.msra.mxu0 %v5079
    %5236 = vmatprep.subr.mxu0 0.0
    %5237 = vmatpush1.msra.mxu0 %v5080
    %5238 = vmatprep.subr.mxu0 0.0
    %5239 = vmatpush1.msra.mxu0 %v5081
    %5240 = vmatprep.subr.mxu0 0.0
    %5241 = vmatpush1.msra.mxu0 %v5082
    %5242 = vmatprep.subr.mxu0 0.0
    %5243 = vmatpush1.msra.mxu0 %v5083
    %5244 = vmatprep.subr.mxu0 0.0
    %5245 = vmatpush1.msra.mxu0 %v5084
    %5246 = vmatprep.subr.mxu0 0.0
    %5247 = vmatpush1.msra.mxu0 %v5085
    %5248 = vmatprep.mubr.f32.mxu0 %v4853
    %5249 = vmatmul.mubr.f32.gmra.mrb[0].mxu0 %v4847
    %v5250 = vpop.f32.mrb[0].mxu0
    %v5251 = vadd.f32 0.0, %v5250
    %v5252 = vpop.f32.mrb[0].mxu0
    %5253 = vmatprep.mubr.f32.mxu0 %v4854
    %5254 = vmatmul.mubr.f32.gmra.mrb[0].mxu0 %v4848
    %v5255 = vpop.f32.mrb[0].mxu0
    %v5256 = vadd.f32 0.0, %v5255
    %v5257 = vpop.f32.mrb[0].mxu0
    %5258 = vmatprep.mubr.f32.mxu0 %v5014
    %5259 = vmatmul.mubr.f32.gmra.mrb[0].mxu0 %v5008
    %v5260 = vpop.f32.mrb[0].mxu0
    %v5261 = vadd.f32 0.0, %v5260
    %v5262 = vpop.f32.mrb[0].mxu0
    %5263 = vmatprep.mubr.f32.mxu0 %v5015
    %5264 = vmatmul.mubr.f32.gmra.mrb[0].mxu0 %v5009
    %v5265 = vpop.f32.mrb[0].mxu0
    %v5266 = vadd.f32 0.0, %v5265
    %v5267 = vpop.f32.mrb[0].mxu0
    %5268 = vdwg.mxu0
    %5269 = vmatprep.subr.mxu0 0.0
    %5270 = vmatpush1.msra.mxu0 %v5086
    %5271 = vmatprep.subr.mxu0 0.0
    %5272 = vmatpush1.msra.mxu0 %v5087
    %5273 = vmatprep.subr.mxu0 0.0
    %5274 = vmatpush1.msra.mxu0 %v5088
    %5275 = vmatprep.subr.mxu0 0.0
    %5276 = vmatpush1.msra.mxu0 %v5089
    %5277 = vmatprep.subr.mxu0 0.0
    %5278 = vmatpush1.msra.mxu0 %v5090
    %5279 = vmatprep.subr.mxu0 0.0
    %5280 = vmatpush1.msra.mxu0 %v5091
    %5281 = vmatprep.subr.mxu0 0.0
    %5282 = vmatpush1.msra.mxu0 %v5092
    %5283 = vmatprep.subr.mxu0 0.0
    %5284 = vmatpush1.msra.mxu0 %v5093
    %5285 = vmatprep.subr.mxu0 0.0
    %5286 = vmatpush1.msra.mxu0 %v5094
    %5287 = vmatprep.subr.mxu0 0.0
    %5288 = vmatpush1.msra.mxu0 %v5095
    %5289 = vmatprep.subr.mxu0 0.0
    %5290 = vmatpush1.msra.mxu0 %v5096
    %5291 = vmatprep.subr.mxu0 0.0
    %5292 = vmatpush1.msra.mxu0 %v5097
    %5293 = vmatprep.subr.mxu0 0.0
    %5294 = vmatpush1.msra.mxu0 %v5098
    %5295 = vmatprep.subr.mxu0 0.0
    %5296 = vmatpush1.msra.mxu0 %v5099
    %5297 = vmatprep.subr.mxu0 0.0
    %5298 = vmatpush1.msra.mxu0 %v5100
    %5299 = vmatprep.subr.mxu0 0.0
    %5300 = vmatpush1.msra.mxu0 %v5101
    %5301 = vmatprep.subr.mxu0 0.0
    %5302 = vmatpush1.msra.mxu0 %v5102
    %5303 = vmatprep.subr.mxu0 0.0
    %5304 = vmatpush1.msra.mxu0 %v5103
    %5305 = vmatprep.subr.mxu0 0.0
    %5306 = vmatpush1.msra.mxu0 %v5104
    %5307 = vmatprep.subr.mxu0 0.0
    %5308 = vmatpush1.msra.mxu0 %v5105
    %5309 = vmatprep.subr.mxu0 0.0
    %5310 = vmatpush1.msra.mxu0 %v5106
    %5311 = vmatprep.subr.mxu0 0.0
    %5312 = vmatpush1.msra.mxu0 %v5107
    %5313 = vmatprep.subr.mxu0 0.0
    %5314 = vmatpush1.msra.mxu0 %v5108
    %5315 = vmatprep.subr.mxu0 0.0
    %5316 = vmatpush1.msra.mxu0 %v5109
    %5317 = vmatprep.subr.mxu0 0.0
    %5318 = vmatpush1.msra.mxu0 %v5110
    %5319 = vmatprep.subr.mxu0 0.0
    %5320 = vmatpush1.msra.mxu0 %v5111
    %5321 = vmatprep.subr.mxu0 0.0
    %5322 = vmatpush1.msra.mxu0 %v5112
    %5323 = vmatprep.subr.mxu0 0.0
    %5324 = vmatpush1.msra.mxu0 %v5113
    %5325 = vmatprep.subr.mxu0 0.0
    %5326 = vmatpush1.msra.mxu0 %v5114
    %5327 = vmatprep.subr.mxu0 0.0
    %5328 = vmatpush1.msra.mxu0 %v5115
    %5329 = vmatprep.subr.mxu0 0.0
    %5330 = vmatpush1.msra.mxu0 %v5116
    %5331 = vmatprep.subr.mxu0 0.0
    %5332 = vmatpush1.msra.mxu0 %v5117
    %5333 = vmatprep.mubr.f32.mxu0 %v4854
    %5334 = vmatmul.mubr.f32.gmra.mrb[0].mxu0 %v4848
    %v5335 = vpop.f32.mrb[0].mxu0
    %v5336 = vadd.f32 %v5251, %v5335
    %v5337 = vpop.f32.mrb[0].mxu0
    %5338 = vmatprep.mubr.f32.mxu0 %v4860
    %5339 = vmatmul.mubr.f32.gmra.mrb[0].mxu0 %v4857
    %v5340 = vpop.f32.mrb[0].mxu0
    %v5341 = vadd.f32 %v5256, %v5340
    %v5342 = vpop.f32.mrb[0].mxu0
    %5343 = vmatprep.mubr.f32.mxu0 %v5015
    %5344 = vmatmul.mubr.f32.gmra.mrb[0].mxu0 %v5009
    %v5345 = vpop.f32.mrb[0].mxu0
    %v5346 = vadd.f32 %v5261, %v5345
    %v5347 = vpop.f32.mrb[0].mxu0
    %5348 = vmatprep.mubr.f32.mxu0 %v5021
    %5349 = vmatmul.mubr.f32.gmra.mrb[0].mxu0 %v5018
    %v5350 = vpop.f32.mrb[0].mxu0
    %v5351 = vadd.f32 %v5266, %v5350
    %v5352 = vpop.f32.mrb[0].mxu0
    %5353 = vdwg.mxu0
    %5354 = vmatprep.subr.mxu0 0.0
    %5355 = vmatpush1.msra.mxu0 %v5118
    %5356 = vmatprep.subr.mxu0 0.0
    %5357 = vmatpush1.msra.mxu0 %v5119
    %5358 = vmatprep.subr.mxu0 0.0
    %5359 = vmatpush1.msra.mxu0 %v5120
    %5360 = vmatprep.subr.mxu0 0.0
    %5361 = vmatpush1.msra.mxu0 %v5121
    %5362 = vmatprep.subr.mxu0 0.0
    %5363 = vmatpush1.msra.mxu0 %v5122
    %5364 = vmatprep.subr.mxu0 0.0
    %5365 = vmatpush1.msra.mxu0 %v5123
    %5366 = vmatprep.subr.mxu0 0.0
    %5367 = vmatpush1.msra.mxu0 %v5124
    %5368 = vmatprep.subr.mxu0 0.0
    %5369 = vmatpush1.msra.mxu0 %v5125
    %5370 = vmatprep.subr.mxu0 0.0
    %5371 = vmatpush1.msra.mxu0 %v5126
    %5372 = vmatprep.subr.mxu0 0.0
    %5373 = vmatpush1.msra.mxu0 %v5127
    %5374 = vmatprep.subr.mxu0 0.0
    %5375 = vmatpush1.msra.mxu0 %v5128
    %5376 = vmatprep.subr.mxu0 0.0
    %5377 = vmatpush1.msra.mxu0 %v5129
    %5378 = vmatprep.subr.mxu0 0.0
    %5379 = vmatpush1.msra.mxu0 %v5130
    %5380 = vmatprep.subr.mxu0 0.0
    %5381 = vmatpush1.msra.mxu0 %v5131
    %5382 = vmatprep.subr.mxu0 0.0
    %5383 = vmatpush1.msra.mxu0 %v5132
    %5384 = vmatprep.subr.mxu0 0.0
    %5385 = vmatpush1.msra.mxu0 %v5133
    %5386 = vmatprep.subr.mxu0 0.0
    %5387 = vmatpush1.msra.mxu0 %v5134
    %5388 = vmatprep.subr.mxu0 0.0
    %5389 = vmatpush1.msra.mxu0 %v5135
    %5390 = vmatprep.subr.mxu0 0.0
    %5391 = vmatpush1.msra.mxu0 %v5136
    %5392 = vmatprep.subr.mxu0 0.0
    %5393 = vmatpush1.msra.mxu0 %v5137
    %5394 = vmatprep.subr.mxu0 0.0
    %5395 = vmatpush1.msra.mxu0 %v5138
    %5396 = vmatprep.subr.mxu0 0.0
    %5397 = vmatpush1.msra.mxu0 %v5139
    %5398 = vmatprep.subr.mxu0 0.0
    %5399 = vmatpush1.msra.mxu0 %v5140
    %5400 = vmatprep.subr.mxu0 0.0
    %5401 = vmatpush1.msra.mxu0 %v5141
    %5402 = vmatprep.subr.mxu0 0.0
    %5403 = vmatpush1.msra.mxu0 %v5142
    %5404 = vmatprep.subr.mxu0 0.0
    %5405 = vmatpush1.msra.mxu0 %v5143
    %5406 = vmatprep.subr.mxu0 0.0
    %5407 = vmatpush1.msra.mxu0 %v5144
    %5408 = vmatprep.subr.mxu0 0.0
    %5409 = vmatpush1.msra.mxu0 %v5145
    %5410 = vmatprep.subr.mxu0 0.0
    %5411 = vmatpush1.msra.mxu0 %v5146
    %5412 = vmatprep.subr.mxu0 0.0
    %5413 = vmatpush1.msra.mxu0 %v5147
    %5414 = vmatprep.subr.mxu0 0.0
    %5415 = vmatpush1.msra.mxu0 %v5148
    %5416 = vmatprep.subr.mxu0 0.0
    %5417 = vmatpush1.msra.mxu0 %v5149
    %5418 = vmatprep.mubr.f32.mxu0 %v4860
    %5419 = vmatmul.mubr.f32.gmra.mrb[0].mxu0 %v4857
    %v5420 = vpop.f32.mrb[0].mxu0
    %v5421 = vadd.f32 %v5336, %v5420
    %v5422 = vpop.f32.mrb[0].mxu0
    %5423 = vmatprep.mubr.f32.mxu0 %v4892
    %5424 = vmatmul.mubr.f32.gmra.mrb[0].mxu0 %v4889
    %v5425 = vpop.f32.mrb[0].mxu0
    %v5426 = vadd.f32 %v5341, %v5425
    %v5427 = vpop.f32.mrb[0].mxu0
    %5428 = vmatprep.mubr.f32.mxu0 %v5021
    %5429 = vmatmul.mubr.f32.gmra.mrb[0].mxu0 %v5018
    %v5430 = vpop.f32.mrb[0].mxu0
    %v5431 = vadd.f32 %v5346, %v5430
    %v5432 = vpop.f32.mrb[0].mxu0
    %5433 = vmatprep.mubr.f32.mxu0 %v5053
    %5434 = vmatmul.mubr.f32.gmra.mrb[0].mxu0 %v5050
    %v5435 = vpop.f32.mrb[0].mxu0
    %v5436 = vadd.f32 %v5351, %v5435
    %v5437 = vpop.f32.mrb[0].mxu0
    %5438 = vdwg.mxu0
    %5439 = vmatprep.subr.mxu0 0.0
    %5440 = vmatpush1.msra.mxu0 %v5150
    %5441 = vmatprep.subr.mxu0 0.0
    %5442 = vmatpush1.msra.mxu0 %v5151
    %5443 = vmatprep.subr.mxu0 0.0
    %5444 = vmatpush1.msra.mxu0 %v5152
    %5445 = vmatprep.subr.mxu0 0.0
    %5446 = vmatpush1.msra.mxu0 %v5153
    %5447 = vmatprep.subr.mxu0 0.0
    %5448 = vmatpush1.msra.mxu0 %v5154
    %5449 = vmatprep.subr.mxu0 0.0
    %5450 = vmatpush1.msra.mxu0 %v5155
    %5451 = vmatprep.subr.mxu0 0.0
    %5452 = vmatpush1.msra.mxu0 %v5156
    %5453 = vmatprep.subr.mxu0 0.0
    %5454 = vmatpush1.msra.mxu0 %v5157
    %5455 = vmatprep.subr.mxu0 0.0
    %5456 = vmatpush1.msra.mxu0 %v5158
    %5457 = vmatprep.subr.mxu0 0.0
    %5458 = vmatpush1.msra.mxu0 %v5159
    %5459 = vmatprep.subr.mxu0 0.0
    %5460 = vmatpush1.msra.mxu0 %v5160
    %5461 = vmatprep.subr.mxu0 0.0
    %5462 = vmatpush1.msra.mxu0 %v5161
    %5463 = vmatprep.subr.mxu0 0.0
    %5464 = vmatpush1.msra.mxu0 %v5162
    %5465 = vmatprep.subr.mxu0 0.0
    %5466 = vmatpush1.msra.mxu0 %v5163
    %5467 = vmatprep.subr.mxu0 0.0
    %5468 = vmatpush1.msra.mxu0 %v5164
    %5469 = vmatprep.subr.mxu0 0.0
    %5470 = vmatpush1.msra.mxu0 %v5165
    %5471 = vmatprep.subr.mxu0 0.0
    %5472 = vmatpush1.msra.mxu0 %v5166
    %5473 = vmatprep.subr.mxu0 0.0
    %5474 = vmatpush1.msra.mxu0 %v5167
    %5475 = vmatprep.subr.mxu0 0.0
    %5476 = vmatpush1.msra.mxu0 %v5168
    %5477 = vmatprep.subr.mxu0 0.0
    %5478 = vmatpush1.msra.mxu0 %v5169
    %5479 = vmatprep.subr.mxu0 0.0
    %5480 = vmatpush1.msra.mxu0 %v5170
    %5481 = vmatprep.subr.mxu0 0.0
    %5482 = vmatpush1.msra.mxu0 %v5171
    %5483 = vmatprep.subr.mxu0 0.0
    %5484 = vmatpush1.msra.mxu0 %v5172
    %5485 = vmatprep.subr.mxu0 0.0
    %5486 = vmatpush1.msra.mxu0 %v5173
    %5487 = vmatprep.subr.mxu0 0.0
    %5488 = vmatpush1.msra.mxu0 %v5174
    %5489 = vmatprep.subr.mxu0 0.0
    %5490 = vmatpush1.msra.mxu0 %v5175
    %5491 = vmatprep.subr.mxu0 0.0
    %5492 = vmatpush1.msra.mxu0 %v5176
    %5493 = vmatprep.subr.mxu0 0.0
    %5494 = vmatpush1.msra.mxu0 %v5177
    %5495 = vmatprep.subr.mxu0 0.0
    %5496 = vmatpush1.msra.mxu0 0.0
    %5497 = vmatprep.subr.mxu0 0.0
    %5498 = vmatpush1.msra.mxu0 0.0
    %5499 = vmatprep.subr.mxu0 0.0
    %5500 = vmatpush1.msra.mxu0 0.0
    %5501 = vmatprep.subr.mxu0 0.0
    %5502 = vmatpush1.msra.mxu0 0.0
    %5503 = vmatprep.mubr.f32.mxu0 %v5179
    %5504 = vmatmul.mubr.f32.gmra.mrb[0].mxu0 %v4889
    %v5505 = vpop.f32.mrb[0].mxu0
    %v5506 = vadd.f32 %v5421, %v5505
    %v5507 = vpop.f32.mrb[0].mxu0
    %5508 = vmatprep.mubr.f32.mxu0 %v760
    %5509 = vmatmul.mubr.f32.gmra.mrb[0].mxu0 %v468
    %v5510 = vpop.f32.mrb[0].mxu0
    %v5511 = vadd.f32 %v5426, %v5510
    %v5512 = vpop.f32.mrb[0].mxu0
    %5513 = vmatprep.mubr.f32.mxu0 %v5182
    %5514 = vmatmul.mubr.f32.gmra.mrb[0].mxu0 %v5050
    %v5515 = vpop.f32.mrb[0].mxu0
    %v5516 = vadd.f32 %v5431, %v5515
    %v5517 = vpop.f32.mrb[0].mxu0
    %5518 = vmatprep.mubr.f32.mxu0 %v760
    %5519 = vmatmul.mubr.f32.gmra.mrb[0].mxu0 %v468
    %v5520 = vpop.f32.mrb[0].mxu0
    %v5521 = vadd.f32 %v5436, %v5520
    %v5522 = vpop.f32.mrb[0].mxu0
    %5523 = vdwg.mxu0
    %v5526 = vrot.slane %v4627, 1
    %v5527 = vrot.slane %v4628, 1
    %v5528 = vsel %vm268, %v5526, %v5527
    %v5531 = vsel %vm268, %v5527, -inf
    %v5532 = vrot.slane %v4627, 7
    %v5533 = vrot.slane %v4628, 7
    %v5534 = vsel %vm345, %v5532, %v5533
    %v5537 = vsel %vm345, -inf, %v5532
    %v5538 = vmax.f32 %v5528, %v4627
    %v5539 = vmax.f32 %v5531, %v4628
    %v5540 = vmax.f32 %v5538, %v5537
    %v5541 = vmax.f32 %v5539, %v5534
    %v5544 = vrot.slane %v4629, 1
    %v5545 = vrot.slane %v4630, 1
    %v5546 = vsel %vm268, %v5544, %v5545
    %v5549 = vsel %vm268, %v5545, -inf
    %v5550 = vrot.slane %v4629, 7
    %v5551 = vrot.slane %v4630, 7
    %v5552 = vsel %vm345, %v5550, %v5551
    %v5555 = vsel %vm345, -inf, %v5550
    %v5556 = vmax.f32 %v5546, %v4629
    %v5557 = vmax.f32 %v5549, %v4630
    %v5558 = vmax.f32 %v5556, %v5555
    %v5559 = vmax.f32 %v5557, %v5552
    %v5560 = vld [vmem:[%s47] sm:$0xff]
    %v5561 = vld [vmem:[%s47 + $0x8] sm:$0xff]
    %v5562 = vld [vmem:[%s47 + $0x10] sm:$0xff]
    %v5563 = vld [vmem:[%s47 + $0x18] sm:$0xff]
    %v5564 = vld [vmem:[%s47 + $0x20] sm:$0xff]
    %v5565 = vld [vmem:[%s47 + $0x28] sm:$0xff]
    %v5566 = vld [vmem:[%s47 + $0x30] sm:$0xff]
    %v5567 = vld [vmem:[%s47 + $0x38] sm:$0xff]
    %v5568 = vld [vmem:[%s47 + $0x40] sm:$0xff]
    %v5569 = vld [vmem:[%s47 + $0x48] sm:$0xff]
    %v5570 = vld [vmem:[%s47 + $0x50] sm:$0xff]
    %v5571 = vld [vmem:[%s47 + $0x58] sm:$0xff]
    %v5572 = vld [vmem:[%s47 + $0x60] sm:$0xff]
    %v5573 = vld [vmem:[%s47 + $0x68] sm:$0xff]
    %v5574 = vld [vmem:[%s47 + $0x70] sm:$0xff]
    %v5575 = vld [vmem:[%s47 + $0x78] sm:$0xff]
    %5576 = vmatprep.subr.mxu0 0.0
    %5577 = vmatpush1.msra.mxu0 %v5560
    %5578 = vmatprep.subr.mxu0 0.0
    %5579 = vmatpush1.msra.mxu0 %v5561
    %5580 = vmatprep.subr.mxu0 0.0
    %5581 = vmatpush1.msra.mxu0 %v5562
    %5582 = vmatprep.subr.mxu0 0.0
    %5583 = vmatpush1.msra.mxu0 %v5563
    %5584 = vmatprep.subr.mxu0 0.0
    %5585 = vmatpush1.msra.mxu0 %v5564
    %5586 = vmatprep.subr.mxu0 0.0
    %5587 = vmatpush1.msra.mxu0 %v5565
    %5588 = vmatprep.subr.mxu0 0.0
    %5589 = vmatpush1.msra.mxu0 %v5566
    %5590 = vmatprep.subr.mxu0 0.0
    %5591 = vmatpush1.msra.mxu0 %v5567
    %5592 = vmatprep.subr.mxu0 0.0
    %5593 = vmatpush1.msra.mxu0 %v5568
    %5594 = vmatprep.subr.mxu0 0.0
    %5595 = vmatpush1.msra.mxu0 %v5569
    %5596 = vmatprep.subr.mxu0 0.0
    %5597 = vmatpush1.msra.mxu0 %v5570
    %5598 = vmatprep.subr.mxu0 0.0
    %5599 = vmatpush1.msra.mxu0 %v5571
    %5600 = vmatprep.subr.mxu0 0.0
    %5601 = vmatpush1.msra.mxu0 %v5572
    %5602 = vmatprep.subr.mxu0 0.0
    %5603 = vmatpush1.msra.mxu0 %v5573
    %5604 = vmatprep.subr.mxu0 0.0
    %5605 = vmatpush1.msra.mxu0 %v5574
    %5606 = vmatprep.subr.mxu0 0.0
    %5607 = vmatpush1.msra.mxu0 %v5575
    %5608 = vmatprep.subr.mxu0 0.0
    %5609 = vmatpush1.msra.mxu0 0.0
    %5610 = vmatprep.subr.mxu0 0.0
    %5611 = vmatpush1.msra.mxu0 0.0
    %5612 = vmatprep.subr.mxu0 0.0
    %5613 = vmatpush1.msra.mxu0 0.0
    %5614 = vmatprep.subr.mxu0 0.0
    %5615 = vmatpush1.msra.mxu0 0.0
    %5616 = vmatprep.subr.mxu0 0.0
    %5617 = vmatpush1.msra.mxu0 0.0
    %5618 = vmatprep.subr.mxu0 0.0
    %5619 = vmatpush1.msra.mxu0 0.0
    %5620 = vmatprep.subr.mxu0 0.0
    %5621 = vmatpush1.msra.mxu0 0.0
    %5622 = vmatprep.subr.mxu0 0.0
    %5623 = vmatpush1.msra.mxu0 0.0
    %5624 = vmatprep.subr.mxu0 0.0
    %5625 = vmatpush1.msra.mxu0 0.0
    %5626 = vmatprep.subr.mxu0 0.0
    %5627 = vmatpush1.msra.mxu0 0.0
    %5628 = vmatprep.subr.mxu0 0.0
    %5629 = vmatpush1.msra.mxu0 0.0
    %5630 = vmatprep.subr.mxu0 0.0
    %5631 = vmatpush1.msra.mxu0 0.0
    %5632 = vmatprep.subr.mxu0 0.0
    %5633 = vmatpush1.msra.mxu0 0.0
    %5634 = vmatprep.subr.mxu0 0.0
    %5635 = vmatpush1.msra.mxu0 0.0
    %5636 = vmatprep.subr.mxu0 0.0
    %5637 = vmatpush1.msra.mxu0 0.0
    %5638 = vmatprep.subr.mxu0 0.0
    %5639 = vmatpush1.msra.mxu0 0.0
    %5640 = vmatprep.mubr.f32.mxu0 0.0
    %5641 = vmatmul.mubr.f32.gmra.mrb[0].mxu0 %v5540
    %v5642 = vpop.f32.mrb[0].mxu0
    %v5643 = vadd.f32 0.0, %v5642
    %v5644 = vpop.f32.mrb[0].mxu0
    %5645 = vmatprep.mubr.f32.mxu0 0.0
    %5646 = vmatmul.mubr.f32.gmra.mrb[0].mxu0 %v5541
    %v5647 = vpop.f32.mrb[0].mxu0
    %v5648 = vadd.f32 0.0, %v5647
    %v5649 = vpop.f32.mrb[0].mxu0
    %5650 = vmatprep.mubr.f32.mxu0 0.0
    %5651 = vmatmul.mubr.f32.gmra.mrb[0].mxu0 %v5558
    %v5652 = vpop.f32.mrb[0].mxu0
    %v5653 = vadd.f32 0.0, %v5652
    %v5654 = vpop.f32.mrb[0].mxu0
    %5655 = vmatprep.mubr.f32.mxu0 0.0
    %5656 = vmatmul.mubr.f32.gmra.mrb[0].mxu0 %v5559
    %v5657 = vpop.f32.mrb[0].mxu0
    %v5658 = vadd.f32 0.0, %v5657
    %v5659 = vpop.f32.mrb[0].mxu0
    %5660 = vdwg.mxu0
    %5665 = vrot.lane.b32.xlu0 %v5643, 96
    %v5666 = vpop.permute.xlu0 %5665
    %5667 = vrot.lane.b32.xlu0 %v5648, 96
    %v5668 = vpop.permute.xlu0 %5667
    %5669 = vrot.lane.b32.xlu0 %v5653, 96
    %v5670 = vpop.permute.xlu0 %5669
    %5671 = vrot.lane.b32.xlu0 %v5658, 96
    %v5672 = vpop.permute.xlu0 %5671
    %v5677 = vsel %vm397, %v5506, %v5666
    %v5678 = vsel %vm397, %v5511, %v5668
    %v5679 = vsel %vm397, %v5516, %v5670
    %v5680 = vsel %vm397, %v5521, %v5672
    %v5681 = vld [vmem:[%s49] sm:$0x1]
    %v5683 = vlaneseq
    %v5684 = vshrl.u32 %v5683, 7
    %v5685 = vsub.s32 0, %v5684
    %v5686 = vrot.slane %v5681, %v5685
    %v5688 = vmul.f32 %v5677, %v5686
    %v5689 = vmul.f32 %v5678, %v5686
    %v5690 = vmul.f32 %v5679, %v5686
    %v5691 = vmul.f32 %v5680, %v5686
    %v5692 = vld [vmem:[%s51] sm:$0x1]
    %v5694 = vlaneseq
    %v5695 = vshrl.u32 %v5694, 7
    %v5696 = vsub.s32 0, %v5695
    %v5697 = vrot.slane %v5692, %v5696
    %v5699 = vadd.f32 %v5688, %v5697
    %v5700 = vadd.f32 %v5689, %v5697
    %v5701 = vadd.f32 %v5690, %v5697
    %v5702 = vadd.f32 %v5691, %v5697
    %v5703 = vmax.f32 %v5699, 0.0
    %v5704 = vmax.f32 %v5700, 0.0
    %v5705 = vmax.f32 %v5701, 0.0
    %v5706 = vmax.f32 %v5702, 0.0
    %v5707 = vld [vmem:[%s53] sm:$0xff]
    %v5708 = vld [vmem:[%s53 + $0x8] sm:$0xff]
    %v5709 = vld [vmem:[%s53 + $0x10] sm:$0xff]
    %v5710 = vld [vmem:[%s53 + $0x18] sm:$0xff]
    %v5711 = vld [vmem:[%s53 + $0x20] sm:$0xff]
    %v5712 = vld [vmem:[%s53 + $0x28] sm:$0xff]
    %v5713 = vld [vmem:[%s53 + $0x30] sm:$0xff]
    %v5714 = vld [vmem:[%s53 + $0x38] sm:$0xff]
    %v5715 = vld [vmem:[%s53 + $0x40] sm:$0xff]
    %v5716 = vld [vmem:[%s53 + $0x48] sm:$0xff]
    %v5717 = vld [vmem:[%s53 + $0x50] sm:$0xff]
    %v5718 = vld [vmem:[%s53 + $0x58] sm:$0xff]
    %v5719 = vld [vmem:[%s53 + $0x60] sm:$0xff]
    %v5720 = vld [vmem:[%s53 + $0x68] sm:$0xff]
    %v5721 = vld [vmem:[%s53 + $0x70] sm:$0xff]
    %v5722 = vld [vmem:[%s53 + $0x78] sm:$0xff]
    %5723 = vmatprep.subr.mxu0 0.0
    %5724 = vmatpush1.msra.mxu0 %v5707
    %5725 = vmatprep.subr.mxu0 0.0
    %5726 = vmatpush1.msra.mxu0 %v5708
    %5727 = vmatprep.subr.mxu0 0.0
    %5728 = vmatpush1.msra.mxu0 %v5709
    %5729 = vmatprep.subr.mxu0 0.0
    %5730 = vmatpush1.msra.mxu0 %v5710
    %5731 = vmatprep.subr.mxu0 0.0
    %5732 = vmatpush1.msra.mxu0 %v5711
    %5733 = vmatprep.subr.mxu0 0.0
    %5734 = vmatpush1.msra.mxu0 %v5712
    %5735 = vmatprep.subr.mxu0 0.0
    %5736 = vmatpush1.msra.mxu0 %v5713
    %5737 = vmatprep.subr.mxu0 0.0
    %5738 = vmatpush1.msra.mxu0 %v5714
    %5739 = vmatprep.subr.mxu0 0.0
    %5740 = vmatpush1.msra.mxu0 %v5715
    %5741 = vmatprep.subr.mxu0 0.0
    %5742 = vmatpush1.msra.mxu0 %v5716
    %5743 = vmatprep.subr.mxu0 0.0
    %5744 = vmatpush1.msra.mxu0 %v5717
    %5745 = vmatprep.subr.mxu0 0.0
    %5746 = vmatpush1.msra.mxu0 %v5718
    %5747 = vmatprep.subr.mxu0 0.0
    %5748 = vmatpush1.msra.mxu0 %v5719
    %5749 = vmatprep.subr.mxu0 0.0
    %5750 = vmatpush1.msra.mxu0 %v5720
    %5751 = vmatprep.subr.mxu0 0.0
    %5752 = vmatpush1.msra.mxu0 %v5721
    %5753 = vmatprep.subr.mxu0 0.0
    %5754 = vmatpush1.msra.mxu0 %v5722
    %5755 = vmatprep.subr.mxu0 0.0
    %5756 = vmatpush1.msra.mxu0 0.0
    %5757 = vmatprep.subr.mxu0 0.0
    %5758 = vmatpush1.msra.mxu0 0.0
    %5759 = vmatprep.subr.mxu0 0.0
    %5760 = vmatpush1.msra.mxu0 0.0
    %5761 = vmatprep.subr.mxu0 0.0
    %5762 = vmatpush1.msra.mxu0 0.0
    %5763 = vmatprep.subr.mxu0 0.0
    %5764 = vmatpush1.msra.mxu0 0.0
    %5765 = vmatprep.subr.mxu0 0.0
    %5766 = vmatpush1.msra.mxu0 0.0
    %5767 = vmatprep.subr.mxu0 0.0
    %5768 = vmatpush1.msra.mxu0 0.0
    %5769 = vmatprep.subr.mxu0 0.0
    %5770 = vmatpush1.msra.mxu0 0.0
    %5771 = vmatprep.subr.mxu0 0.0
    %5772 = vmatpush1.msra.mxu0 0.0
    %5773 = vmatprep.subr.mxu0 0.0
    %5774 = vmatpush1.msra.mxu0 0.0
    %5775 = vmatprep.subr.mxu0 0.0
    %5776 = vmatpush1.msra.mxu0 0.0
    %5777 = vmatprep.subr.mxu0 0.0
    %5778 = vmatpush1.msra.mxu0 0.0
    %5779 = vmatprep.subr.mxu0 0.0
    %5780 = vmatpush1.msra.mxu0 0.0
    %5781 = vmatprep.subr.mxu0 0.0
    %5782 = vmatpush1.msra.mxu0 0.0
    %5783 = vmatprep.subr.mxu0 0.0
    %5784 = vmatpush1.msra.mxu0 0.0
    %5785 = vmatprep.subr.mxu0 0.0
    %5786 = vmatpush1.msra.mxu0 0.0
    %5787 = vmatprep.mubr.f32.mxu0 0.0
    %5788 = vmatmul.mubr.f32.gmra.mrb[0].mxu0 %v5703
    %v5789 = vpop.f32.mrb[0].mxu0
    %v5790 = vadd.f32 0.0, %v5789
    %v5791 = vpop.f32.mrb[0].mxu0
    %5792 = vmatprep.mubr.f32.mxu0 0.0
    %5793 = vmatmul.mubr.f32.gmra.mrb[0].mxu0 %v5704
    %v5794 = vpop.f32.mrb[0].mxu0
    %v5795 = vadd.f32 0.0, %v5794
    %v5796 = vpop.f32.mrb[0].mxu0
    %5797 = vmatprep.mubr.f32.mxu0 0.0
    %5798 = vmatmul.mubr.f32.gmra.mrb[0].mxu0 %v5705
    %v5799 = vpop.f32.mrb[0].mxu0
    %v5800 = vadd.f32 0.0, %v5799
    %v5801 = vpop.f32.mrb[0].mxu0
    %5802 = vmatprep.mubr.f32.mxu0 0.0
    %5803 = vmatmul.mubr.f32.gmra.mrb[0].mxu0 %v5706
    %v5804 = vpop.f32.mrb[0].mxu0
    %v5805 = vadd.f32 0.0, %v5804
    %v5806 = vpop.f32.mrb[0].mxu0
    %5807 = vdwg.mxu0
    %v5810 = vrot.slane %v5790, 1
    %v5811 = vrot.slane %v5795, 1
    %v5812 = vsel %vm268, %v5810, %v5811
    %v5816 = vsel %vm268, 0.0, %v5810
    %v5817 = vsel %vm268, %v5811, 0.0
    %v5819 = vrot.slane %v5816, 1
    %v5820 = vsel %vm268, %v279, %v5819
    %v5821 = vrot.slane %v5812, 1
    %v5822 = vsel %vm268, %v5819, %v5821
    %5823 = vrot.lane.b32.xlu0 %v5820, 32
    %v5824 = vpop.permute.xlu0 %5823
    %5825 = vrot.lane.b32.xlu0 %v5822, 32
    %v5826 = vpop.permute.xlu0 %5825
    %v5829 = vrot.slane %v5816, 2
    %v5830 = vsel %vm290, %v291, %v5829
    %v5831 = vrot.slane %v5812, 2
    %v5832 = vsel %vm290, %v5829, %v5831
    %5833 = vrot.lane.b32.xlu0 %v5830, 64
    %v5834 = vpop.permute.xlu0 %5833
    %5835 = vrot.lane.b32.xlu0 %v5832, 64
    %v5836 = vpop.permute.xlu0 %5835
    %v5839 = vrot.slane %v5816, 3
    %v5840 = vsel %vm302, %v303, %v5839
    %v5841 = vrot.slane %v5812, 3
    %v5842 = vsel %vm302, %v5839, %v5841
    %5843 = vrot.lane.b32.xlu0 %v5840, 96
    %v5844 = vpop.permute.xlu0 %5843
    %5845 = vrot.lane.b32.xlu0 %v5842, 96
    %v5846 = vpop.permute.xlu0 %5845
    %v5849 = vrot.slane %v5816, 4
    %v5850 = vsel %vm177, %v314, %v5849
    %v5851 = vrot.slane %v5812, 4
    %v5852 = vsel %vm177, %v5849, %v5851
    %v5855 = vrot.slane %v5816, 5
    %v5856 = vsel %vm321, %v322, %v5855
    %v5857 = vrot.slane %v5812, 5
    %v5858 = vsel %vm321, %v5855, %v5857
    %5859 = vrot.lane.b32.xlu0 %v5856, 32
    %v5860 = vpop.permute.xlu0 %5859
    %5861 = vrot.lane.b32.xlu0 %v5858, 32
    %v5862 = vpop.permute.xlu0 %5861
    %v5865 = vrot.slane %v5816, 6
    %v5866 = vsel %vm333, %v334, %v5865
    %v5867 = vrot.slane %v5812, 6
    %v5868 = vsel %vm333, %v5865, %v5867
    %5869 = vrot.lane.b32.xlu0 %v5866, 64
    %v5870 = vpop.permute.xlu0 %5869
    %5871 = vrot.lane.b32.xlu0 %v5868, 64
    %v5872 = vpop.permute.xlu0 %5871
    %v5875 = vrot.slane %v5816, 7
    %v5876 = vsel %vm345, %v346, %v5875
    %v5877 = vrot.slane %v5812, 7
    %v5878 = vsel %vm345, %v5875, %v5877
    %5879 = vrot.lane.b32.xlu0 %v5876, 96
    %v5880 = vpop.permute.xlu0 %5879
    %5881 = vrot.lane.b32.xlu0 %v5878, 96
    %v5882 = vpop.permute.xlu0 %5881
    %v5886 = vrot.slane %v5817, 1
    %v5887 = vsel %vm268, %v5821, %v5886
    %5888 = vrot.lane.b32.xlu0 %v5887, 32
    %v5889 = vpop.permute.xlu0 %5888
    %v5891 = vrot.slane %v5817, 2
    %v5892 = vsel %vm290, %v5831, %v5891
    %5893 = vrot.lane.b32.xlu0 %v5892, 64
    %v5894 = vpop.permute.xlu0 %5893
    %v5896 = vrot.slane %v5817, 3
    %v5897 = vsel %vm302, %v5841, %v5896
    %5898 = vrot.lane.b32.xlu0 %v5897, 96
    %v5899 = vpop.permute.xlu0 %5898
    %v5901 = vrot.slane %v5817, 4
    %v5902 = vsel %vm177, %v5851, %v5901
    %v5904 = vrot.slane %v5817, 5
    %v5905 = vsel %vm321, %v5857, %v5904
    %5906 = vrot.lane.b32.xlu0 %v5905, 32
    %v5907 = vpop.permute.xlu0 %5906
    %v5909 = vrot.slane %v5817, 6
    %v5910 = vsel %vm333, %v5867, %v5909
    %5911 = vrot.lane.b32.xlu0 %v5910, 64
    %v5912 = vpop.permute.xlu0 %5911
    %v5914 = vrot.slane %v5817, 7
    %v5915 = vsel %vm345, %v5877, %v5914
    %5916 = vrot.lane.b32.xlu0 %v5915, 96
    %v5917 = vpop.permute.xlu0 %5916
    %v5919 = vsel %vm391, 0.0, %v5824
    %v5920 = vsel %vm391, %v5816, %v5826
    %v5921 = vsel %vm394, %v5919, %v5834
    %v5922 = vsel %vm394, %v5920, %v5836
    %v5923 = vsel %vm397, %v5921, %v5844
    %v5924 = vsel %vm397, %v5922, %v5846
    %v5925 = vsel %vm391, %v5850, %v5860
    %v5926 = vsel %vm391, %v5852, %v5862
    %v5927 = vsel %vm394, %v5925, %v5870
    %v5928 = vsel %vm394, %v5926, %v5872
    %v5929 = vsel %vm397, %v5927, %v5880
    %v5930 = vsel %vm397, %v5928, %v5882
    %v5931 = vsel %vm391, %v5812, %v5889
    %v5932 = vsel %vm394, %v5931, %v5894
    %v5933 = vsel %vm397, %v5932, %v5899
    %v5934 = vsel %vm391, %v5902, %v5907
    %v5935 = vsel %vm394, %v5934, %v5912
    %v5936 = vsel %vm397, %v5935, %v5917
    %v5937 = vsel %vm268, %v5886, %v279
    %5938 = vrot.lane.b32.xlu0 %v5937, 32
    %v5939 = vpop.permute.xlu0 %5938
    %v5941 = vsel %vm290, %v5891, %v291
    %5942 = vrot.lane.b32.xlu0 %v5941, 64
    %v5943 = vpop.permute.xlu0 %5942
    %v5945 = vsel %vm302, %v5896, %v303
    %5946 = vrot.lane.b32.xlu0 %v5945, 96
    %v5947 = vpop.permute.xlu0 %5946
    %v5949 = vsel %vm177, %v5901, %v314
    %v5951 = vsel %vm321, %v5904, %v322
    %5952 = vrot.lane.b32.xlu0 %v5951, 32
    %v5953 = vpop.permute.xlu0 %5952
    %v5955 = vsel %vm333, %v5909, %v334
    %5956 = vrot.lane.b32.xlu0 %v5955, 64
    %v5957 = vpop.permute.xlu0 %5956
    %v5959 = vsel %vm345, %v5914, %v346
    %5960 = vrot.lane.b32.xlu0 %v5959, 96
    %v5961 = vpop.permute.xlu0 %5960
    %v5963 = vsel %vm391, %v5817, %v5939
    %v5964 = vsel %vm394, %v5963, %v5943
    %v5965 = vsel %vm397, %v5964, %v5947
    %v5966 = vsel %vm391, %v5949, %v5953
    %v5967 = vsel %vm394, %v5966, %v5957
    %v5968 = vsel %vm397, %v5967, %v5961
    %v5971 = vrot.slane %v5800, 1
    %v5972 = vrot.slane %v5805, 1
    %v5973 = vsel %vm268, %v5971, %v5972
    %v5977 = vsel %vm268, 0.0, %v5971
    %v5978 = vsel %vm268, %v5972, 0.0
    %v5980 = vrot.slane %v5977, 1
    %v5981 = vsel %vm268, %v279, %v5980
    %v5982 = vrot.slane %v5973, 1
    %v5983 = vsel %vm268, %v5980, %v5982
    %5984 = vrot.lane.b32.xlu0 %v5981, 32
    %v5985 = vpop.permute.xlu0 %5984
    %5986 = vrot.lane.b32.xlu0 %v5983, 32
    %v5987 = vpop.permute.xlu0 %5986
    %v5990 = vrot.slane %v5977, 2
    %v5991 = vsel %vm290, %v291, %v5990
    %v5992 = vrot.slane %v5973, 2
    %v5993 = vsel %vm290, %v5990, %v5992
    %5994 = vrot.lane.b32.xlu0 %v5991, 64
    %v5995 = vpop.permute.xlu0 %5994
    %5996 = vrot.lane.b32.xlu0 %v5993, 64
    %v5997 = vpop.permute.xlu0 %5996
    %v6000 = vrot.slane %v5977, 3
    %v6001 = vsel %vm302, %v303, %v6000
    %v6002 = vrot.slane %v5973, 3
    %v6003 = vsel %vm302, %v6000, %v6002
    %6004 = vrot.lane.b32.xlu0 %v6001, 96
    %v6005 = vpop.permute.xlu0 %6004
    %6006 = vrot.lane.b32.xlu0 %v6003, 96
    %v6007 = vpop.permute.xlu0 %6006
    %v6010 = vrot.slane %v5977, 4
    %v6011 = vsel %vm177, %v314, %v6010
    %v6012 = vrot.slane %v5973, 4
    %v6013 = vsel %vm177, %v6010, %v6012
    %v6016 = vrot.slane %v5977, 5
    %v6017 = vsel %vm321, %v322, %v6016
    %v6018 = vrot.slane %v5973, 5
    %v6019 = vsel %vm321, %v6016, %v6018
    %6020 = vrot.lane.b32.xlu0 %v6017, 32
    %v6021 = vpop.permute.xlu0 %6020
    %6022 = vrot.lane.b32.xlu0 %v6019, 32
    %v6023 = vpop.permute.xlu0 %6022
    %v6026 = vrot.slane %v5977, 6
    %v6027 = vsel %vm333, %v334, %v6026
    %v6028 = vrot.slane %v5973, 6
    %v6029 = vsel %vm333, %v6026, %v6028
    %6030 = vrot.lane.b32.xlu0 %v6027, 64
    %v6031 = vpop.permute.xlu0 %6030
    %6032 = vrot.lane.b32.xlu0 %v6029, 64
    %v6033 = vpop.permute.xlu0 %6032
    %v6036 = vrot.slane %v5977, 7
    %v6037 = vsel %vm345, %v346, %v6036
    %v6038 = vrot.slane %v5973, 7
    %v6039 = vsel %vm345, %v6036, %v6038
    %6040 = vrot.lane.b32.xlu0 %v6037, 96
    %v6041 = vpop.permute.xlu0 %6040
    %6042 = vrot.lane.b32.xlu0 %v6039, 96
    %v6043 = vpop.permute.xlu0 %6042
    %v6047 = vrot.slane %v5978, 1
    %v6048 = vsel %vm268, %v5982, %v6047
    %6049 = vrot.lane.b32.xlu0 %v6048, 32
    %v6050 = vpop.permute.xlu0 %6049
    %v6052 = vrot.slane %v5978, 2
    %v6053 = vsel %vm290, %v5992, %v6052
    %6054 = vrot.lane.b32.xlu0 %v6053, 64
    %v6055 = vpop.permute.xlu0 %6054
    %v6057 = vrot.slane %v5978, 3
    %v6058 = vsel %vm302, %v6002, %v6057
    %6059 = vrot.lane.b32.xlu0 %v6058, 96
    %v6060 = vpop.permute.xlu0 %6059
    %v6062 = vrot.slane %v5978, 4
    %v6063 = vsel %vm177, %v6012, %v6062
    %v6065 = vrot.slane %v5978, 5
    %v6066 = vsel %vm321, %v6018, %v6065
    %6067 = vrot.lane.b32.xlu0 %v6066, 32
    %v6068 = vpop.permute.xlu0 %6067
    %v6070 = vrot.slane %v5978, 6
    %v6071 = vsel %vm333, %v6028, %v6070
    %6072 = vrot.lane.b32.xlu0 %v6071, 64
    %v6073 = vpop.permute.xlu0 %6072
    %v6075 = vrot.slane %v5978, 7
    %v6076 = vsel %vm345, %v6038, %v6075
    %6077 = vrot.lane.b32.xlu0 %v6076, 96
    %v6078 = vpop.permute.xlu0 %6077
    %v6080 = vsel %vm391, 0.0, %v5985
    %v6081 = vsel %vm391, %v5977, %v5987
    %v6082 = vsel %vm394, %v6080, %v5995
    %v6083 = vsel %vm394, %v6081, %v5997
    %v6084 = vsel %vm397, %v6082, %v6005
    %v6085 = vsel %vm397, %v6083, %v6007
    %v6086 = vsel %vm391, %v6011, %v6021
    %v6087 = vsel %vm391, %v6013, %v6023
    %v6088 = vsel %vm394, %v6086, %v6031
    %v6089 = vsel %vm394, %v6087, %v6033
    %v6090 = vsel %vm397, %v6088, %v6041
    %v6091 = vsel %vm397, %v6089, %v6043
    %v6092 = vsel %vm391, %v5973, %v6050
    %v6093 = vsel %vm394, %v6092, %v6055
    %v6094 = vsel %vm397, %v6093, %v6060
    %v6095 = vsel %vm391, %v6063, %v6068
    %v6096 = vsel %vm394, %v6095, %v6073
    %v6097 = vsel %vm397, %v6096, %v6078
    %v6098 = vsel %vm268, %v6047, %v279
    %6099 = vrot.lane.b32.xlu0 %v6098, 32
    %v6100 = vpop.permute.xlu0 %6099
    %v6102 = vsel %vm290, %v6052, %v291
    %6103 = vrot.lane.b32.xlu0 %v6102, 64
    %v6104 = vpop.permute.xlu0 %6103
    %v6106 = vsel %vm302, %v6057, %v303
    %6107 = vrot.lane.b32.xlu0 %v6106, 96
    %v6108 = vpop.permute.xlu0 %6107
    %v6110 = vsel %vm177, %v6062, %v314
    %v6112 = vsel %vm321, %v6065, %v322
    %6113 = vrot.lane.b32.xlu0 %v6112, 32
    %v6114 = vpop.permute.xlu0 %6113
    %v6116 = vsel %vm333, %v6070, %v334
    %6117 = vrot.lane.b32.xlu0 %v6116, 64
    %v6118 = vpop.permute.xlu0 %6117
    %v6120 = vsel %vm345, %v6075, %v346
    %6121 = vrot.lane.b32.xlu0 %v6120, 96
    %v6122 = vpop.permute.xlu0 %6121
    %v6124 = vsel %vm391, %v5978, %v6100
    %v6125 = vsel %vm394, %v6124, %v6104
    %v6126 = vsel %vm397, %v6125, %v6108
    %v6127 = vsel %vm391, %v6110, %v6114
    %v6128 = vsel %vm394, %v6127, %v6118
    %v6129 = vsel %vm397, %v6128, %v6122
    %v6130 = vld [vmem:[%s55] sm:$0xff]
    %v6131 = vld [vmem:[%s55 + $0x8] sm:$0xff]
    %v6132 = vld [vmem:[%s55 + $0x10] sm:$0xff]
    %v6133 = vld [vmem:[%s55 + $0x18] sm:$0xff]
    %v6134 = vld [vmem:[%s55 + $0x20] sm:$0xff]
    %v6135 = vld [vmem:[%s55 + $0x28] sm:$0xff]
    %v6136 = vld [vmem:[%s55 + $0x30] sm:$0xff]
    %v6137 = vld [vmem:[%s55 + $0x38] sm:$0xff]
    %v6138 = vld [vmem:[%s55 + $0x40] sm:$0xff]
    %v6139 = vld [vmem:[%s55 + $0x48] sm:$0xff]
    %v6140 = vld [vmem:[%s55 + $0x50] sm:$0xff]
    %v6141 = vld [vmem:[%s55 + $0x58] sm:$0xff]
    %v6142 = vld [vmem:[%s55 + $0x60] sm:$0xff]
    %v6143 = vld [vmem:[%s55 + $0x68] sm:$0xff]
    %v6144 = vld [vmem:[%s55 + $0x70] sm:$0xff]
    %v6145 = vld [vmem:[%s55 + $0x78] sm:$0xff]
    %v6146 = vld [vmem:[%s55 + $0x80] sm:$0xff]
    %v6147 = vld [vmem:[%s55 + $0x88] sm:$0xff]
    %v6148 = vld [vmem:[%s55 + $0x90] sm:$0xff]
    %v6149 = vld [vmem:[%s55 + $0x98] sm:$0xff]
    %v6150 = vld [vmem:[%s55 + $0xa0] sm:$0xff]
    %v6151 = vld [vmem:[%s55 + $0xa8] sm:$0xff]
    %v6152 = vld [vmem:[%s55 + $0xb0] sm:$0xff]
    %v6153 = vld [vmem:[%s55 + $0xb8] sm:$0xff]
    %v6154 = vld [vmem:[%s55 + $0xc0] sm:$0xff]
    %v6155 = vld [vmem:[%s55 + $0xc8] sm:$0xff]
    %v6156 = vld [vmem:[%s55 + $0xd0] sm:$0xff]
    %v6157 = vld [vmem:[%s55 + $0xd8] sm:$0xff]
    %v6158 = vld [vmem:[%s55 + $0xe0] sm:$0xff]
    %v6159 = vld [vmem:[%s55 + $0xe8] sm:$0xff]
    %v6160 = vld [vmem:[%s55 + $0xf0] sm:$0xff]
    %v6161 = vld [vmem:[%s55 + $0xf8] sm:$0xff]
    %v6162 = vld [vmem:[%s55 + $0x100] sm:$0xff]
    %v6163 = vld [vmem:[%s55 + $0x108] sm:$0xff]
    %v6164 = vld [vmem:[%s55 + $0x110] sm:$0xff]
    %v6165 = vld [vmem:[%s55 + $0x118] sm:$0xff]
    %v6166 = vld [vmem:[%s55 + $0x120] sm:$0xff]
    %v6167 = vld [vmem:[%s55 + $0x128] sm:$0xff]
    %v6168 = vld [vmem:[%s55 + $0x130] sm:$0xff]
    %v6169 = vld [vmem:[%s55 + $0x138] sm:$0xff]
    %v6170 = vld [vmem:[%s55 + $0x140] sm:$0xff]
    %v6171 = vld [vmem:[%s55 + $0x148] sm:$0xff]
    %v6172 = vld [vmem:[%s55 + $0x150] sm:$0xff]
    %v6173 = vld [vmem:[%s55 + $0x158] sm:$0xff]
    %v6174 = vld [vmem:[%s55 + $0x160] sm:$0xff]
    %v6175 = vld [vmem:[%s55 + $0x168] sm:$0xff]
    %v6176 = vld [vmem:[%s55 + $0x170] sm:$0xff]
    %v6177 = vld [vmem:[%s55 + $0x178] sm:$0xff]
    %v6178 = vld [vmem:[%s55 + $0x180] sm:$0xff]
    %v6179 = vld [vmem:[%s55 + $0x188] sm:$0xff]
    %v6180 = vld [vmem:[%s55 + $0x190] sm:$0xff]
    %v6181 = vld [vmem:[%s55 + $0x198] sm:$0xff]
    %v6182 = vld [vmem:[%s55 + $0x1a0] sm:$0xff]
    %v6183 = vld [vmem:[%s55 + $0x1a8] sm:$0xff]
    %v6184 = vld [vmem:[%s55 + $0x1b0] sm:$0xff]
    %v6185 = vld [vmem:[%s55 + $0x1b8] sm:$0xff]
    %v6186 = vld [vmem:[%s55 + $0x1c0] sm:$0xff]
    %v6187 = vld [vmem:[%s55 + $0x1c8] sm:$0xff]
    %v6188 = vld [vmem:[%s55 + $0x1d0] sm:$0xff]
    %v6189 = vld [vmem:[%s55 + $0x1d8] sm:$0xff]
    %v6190 = vld [vmem:[%s55 + $0x1e0] sm:$0xff]
    %v6191 = vld [vmem:[%s55 + $0x1e8] sm:$0xff]
    %v6192 = vld [vmem:[%s55 + $0x1f0] sm:$0xff]
    %v6193 = vld [vmem:[%s55 + $0x1f8] sm:$0xff]
    %v6194 = vld [vmem:[%s55 + $0x200] sm:$0xff]
    %v6195 = vld [vmem:[%s55 + $0x208] sm:$0xff]
    %v6196 = vld [vmem:[%s55 + $0x210] sm:$0xff]
    %v6197 = vld [vmem:[%s55 + $0x218] sm:$0xff]
    %v6198 = vld [vmem:[%s55 + $0x220] sm:$0xff]
    %v6199 = vld [vmem:[%s55 + $0x228] sm:$0xff]
    %v6200 = vld [vmem:[%s55 + $0x230] sm:$0xff]
    %v6201 = vld [vmem:[%s55 + $0x238] sm:$0xff]
    %v6202 = vld [vmem:[%s55 + $0x240] sm:$0xff]
    %v6203 = vld [vmem:[%s55 + $0x248] sm:$0xff]
    %v6204 = vld [vmem:[%s55 + $0x250] sm:$0xff]
    %v6205 = vld [vmem:[%s55 + $0x258] sm:$0xff]
    %v6206 = vld [vmem:[%s55 + $0x260] sm:$0xff]
    %v6207 = vld [vmem:[%s55 + $0x268] sm:$0xff]
    %v6208 = vld [vmem:[%s55 + $0x270] sm:$0xff]
    %v6209 = vld [vmem:[%s55 + $0x278] sm:$0xff]
    %v6210 = vld [vmem:[%s55 + $0x280] sm:$0xff]
    %v6211 = vld [vmem:[%s55 + $0x288] sm:$0xff]
    %v6212 = vld [vmem:[%s55 + $0x290] sm:$0xff]
    %v6213 = vld [vmem:[%s55 + $0x298] sm:$0xff]
    %v6214 = vld [vmem:[%s55 + $0x2a0] sm:$0xff]
    %v6215 = vld [vmem:[%s55 + $0x2a8] sm:$0xff]
    %v6216 = vld [vmem:[%s55 + $0x2b0] sm:$0xff]
    %v6217 = vld [vmem:[%s55 + $0x2b8] sm:$0xff]
    %v6218 = vld [vmem:[%s55 + $0x2c0] sm:$0xff]
    %v6219 = vld [vmem:[%s55 + $0x2c8] sm:$0xff]
    %v6220 = vld [vmem:[%s55 + $0x2d0] sm:$0xff]
    %v6221 = vld [vmem:[%s55 + $0x2d8] sm:$0xff]
    %v6222 = vld [vmem:[%s55 + $0x2e0] sm:$0xff]
    %v6223 = vld [vmem:[%s55 + $0x2e8] sm:$0xff]
    %v6224 = vld [vmem:[%s55 + $0x2f0] sm:$0xff]
    %v6225 = vld [vmem:[%s55 + $0x2f8] sm:$0xff]
    %v6226 = vld [vmem:[%s55 + $0x300] sm:$0xff]
    %v6227 = vld [vmem:[%s55 + $0x308] sm:$0xff]
    %v6228 = vld [vmem:[%s55 + $0x310] sm:$0xff]
    %v6229 = vld [vmem:[%s55 + $0x318] sm:$0xff]
    %v6230 = vld [vmem:[%s55 + $0x320] sm:$0xff]
    %v6231 = vld [vmem:[%s55 + $0x328] sm:$0xff]
    %v6232 = vld [vmem:[%s55 + $0x330] sm:$0xff]
    %v6233 = vld [vmem:[%s55 + $0x338] sm:$0xff]
    %v6234 = vld [vmem:[%s55 + $0x340] sm:$0xff]
    %v6235 = vld [vmem:[%s55 + $0x348] sm:$0xff]
    %v6236 = vld [vmem:[%s55 + $0x350] sm:$0xff]
    %v6237 = vld [vmem:[%s55 + $0x358] sm:$0xff]
    %v6238 = vld [vmem:[%s55 + $0x360] sm:$0xff]
    %v6239 = vld [vmem:[%s55 + $0x368] sm:$0xff]
    %v6240 = vld [vmem:[%s55 + $0x370] sm:$0xff]
    %v6241 = vld [vmem:[%s55 + $0x378] sm:$0xff]
    %v6242 = vld [vmem:[%s55 + $0x380] sm:$0xff]
    %v6243 = vld [vmem:[%s55 + $0x388] sm:$0xff]
    %v6244 = vld [vmem:[%s55 + $0x390] sm:$0xff]
    %v6245 = vld [vmem:[%s55 + $0x398] sm:$0xff]
    %v6246 = vld [vmem:[%s55 + $0x3a0] sm:$0xff]
    %v6247 = vld [vmem:[%s55 + $0x3a8] sm:$0xff]
    %v6248 = vld [vmem:[%s55 + $0x3b0] sm:$0xff]
    %v6249 = vld [vmem:[%s55 + $0x3b8] sm:$0xff]
    %v6250 = vld [vmem:[%s55 + $0x3c0] sm:$0xff]
    %v6251 = vld [vmem:[%s55 + $0x3c8] sm:$0xff]
    %v6252 = vld [vmem:[%s55 + $0x3d0] sm:$0xff]
    %v6253 = vld [vmem:[%s55 + $0x3d8] sm:$0xff]
    %v6255 = vsel %vm397, %v5967, 0
    %v6258 = vsel %vm397, %v6128, 0
    %6260 = vmatprep.subr.mxu0 0.0
    %6261 = vmatpush1.msra.mxu0 %v6130
    %6262 = vmatprep.subr.mxu0 0.0
    %6263 = vmatpush1.msra.mxu0 %v6131
    %6264 = vmatprep.subr.mxu0 0.0
    %6265 = vmatpush1.msra.mxu0 %v6132
    %6266 = vmatprep.subr.mxu0 0.0
    %6267 = vmatpush1.msra.mxu0 %v6133
    %6268 = vmatprep.subr.mxu0 0.0
    %6269 = vmatpush1.msra.mxu0 %v6134
    %6270 = vmatprep.subr.mxu0 0.0
    %6271 = vmatpush1.msra.mxu0 %v6135
    %6272 = vmatprep.subr.mxu0 0.0
    %6273 = vmatpush1.msra.mxu0 %v6136
    %6274 = vmatprep.subr.mxu0 0.0
    %6275 = vmatpush1.msra.mxu0 %v6137
    %6276 = vmatprep.subr.mxu0 0.0
    %6277 = vmatpush1.msra.mxu0 %v6138
    %6278 = vmatprep.subr.mxu0 0.0
    %6279 = vmatpush1.msra.mxu0 %v6139
    %6280 = vmatprep.subr.mxu0 0.0
    %6281 = vmatpush1.msra.mxu0 %v6140
    %6282 = vmatprep.subr.mxu0 0.0
    %6283 = vmatpush1.msra.mxu0 %v6141
    %6284 = vmatprep.subr.mxu0 0.0
    %6285 = vmatpush1.msra.mxu0 %v6142
    %6286 = vmatprep.subr.mxu0 0.0
    %6287 = vmatpush1.msra.mxu0 %v6143
    %6288 = vmatprep.subr.mxu0 0.0
    %6289 = vmatpush1.msra.mxu0 %v6144
    %6290 = vmatprep.subr.mxu0 0.0
    %6291 = vmatpush1.msra.mxu0 %v6145
    %6292 = vmatprep.subr.mxu0 0.0
    %6293 = vmatpush1.msra.mxu0 %v6146
    %6294 = vmatprep.subr.mxu0 0.0
    %6295 = vmatpush1.msra.mxu0 %v6147
    %6296 = vmatprep.subr.mxu0 0.0
    %6297 = vmatpush1.msra.mxu0 %v6148
    %6298 = vmatprep.subr.mxu0 0.0
    %6299 = vmatpush1.msra.mxu0 %v6149
    %6300 = vmatprep.subr.mxu0 0.0
    %6301 = vmatpush1.msra.mxu0 %v6150
    %6302 = vmatprep.subr.mxu0 0.0
    %6303 = vmatpush1.msra.mxu0 %v6151
    %6304 = vmatprep.subr.mxu0 0.0
    %6305 = vmatpush1.msra.mxu0 %v6152
    %6306 = vmatprep.subr.mxu0 0.0
    %6307 = vmatpush1.msra.mxu0 %v6153
    %6308 = vmatprep.subr.mxu0 0.0
    %6309 = vmatpush1.msra.mxu0 %v6154
    %6310 = vmatprep.subr.mxu0 0.0
    %6311 = vmatpush1.msra.mxu0 %v6155
    %6312 = vmatprep.subr.mxu0 0.0
    %6313 = vmatpush1.msra.mxu0 %v6156
    %6314 = vmatprep.subr.mxu0 0.0
    %6315 = vmatpush1.msra.mxu0 %v6157
    %6316 = vmatprep.subr.mxu0 0.0
    %6317 = vmatpush1.msra.mxu0 %v6158
    %6318 = vmatprep.subr.mxu0 0.0
    %6319 = vmatpush1.msra.mxu0 %v6159
    %6320 = vmatprep.subr.mxu0 0.0
    %6321 = vmatpush1.msra.mxu0 %v6160
    %6322 = vmatprep.subr.mxu0 0.0
    %6323 = vmatpush1.msra.mxu0 %v6161
    %6324 = vmatprep.mubr.f32.mxu0 %v5929
    %6325 = vmatmul.mubr.f32.gmra.mrb[0].mxu0 %v5923
    %v6326 = vpop.f32.mrb[0].mxu0
    %v6327 = vadd.f32 0.0, %v6326
    %v6328 = vpop.f32.mrb[0].mxu0
    %6329 = vmatprep.mubr.f32.mxu0 %v5930
    %6330 = vmatmul.mubr.f32.gmra.mrb[0].mxu0 %v5924
    %v6331 = vpop.f32.mrb[0].mxu0
    %v6332 = vadd.f32 0.0, %v6331
    %v6333 = vpop.f32.mrb[0].mxu0
    %6334 = vmatprep.mubr.f32.mxu0 %v6090
    %6335 = vmatmul.mubr.f32.gmra.mrb[0].mxu0 %v6084
    %v6336 = vpop.f32.mrb[0].mxu0
    %v6337 = vadd.f32 0.0, %v6336
    %v6338 = vpop.f32.mrb[0].mxu0
    %6339 = vmatprep.mubr.f32.mxu0 %v6091
    %6340 = vmatmul.mubr.f32.gmra.mrb[0].mxu0 %v6085
    %v6341 = vpop.f32.mrb[0].mxu0
    %v6342 = vadd.f32 0.0, %v6341
    %v6343 = vpop.f32.mrb[0].mxu0
    %6344 = vdwg.mxu0
    %6345 = vmatprep.subr.mxu0 0.0
    %6346 = vmatpush1.msra.mxu0 %v6162
    %6347 = vmatprep.subr.mxu0 0.0
    %6348 = vmatpush1.msra.mxu0 %v6163
    %6349 = vmatprep.subr.mxu0 0.0
    %6350 = vmatpush1.msra.mxu0 %v6164
    %6351 = vmatprep.subr.mxu0 0.0
    %6352 = vmatpush1.msra.mxu0 %v6165
    %6353 = vmatprep.subr.mxu0 0.0
    %6354 = vmatpush1.msra.mxu0 %v6166
    %6355 = vmatprep.subr.mxu0 0.0
    %6356 = vmatpush1.msra.mxu0 %v6167
    %6357 = vmatprep.subr.mxu0 0.0
    %6358 = vmatpush1.msra.mxu0 %v6168
    %6359 = vmatprep.subr.mxu0 0.0
    %6360 = vmatpush1.msra.mxu0 %v6169
    %6361 = vmatprep.subr.mxu0 0.0
    %6362 = vmatpush1.msra.mxu0 %v6170
    %6363 = vmatprep.subr.mxu0 0.0
    %6364 = vmatpush1.msra.mxu0 %v6171
    %6365 = vmatprep.subr.mxu0 0.0
    %6366 = vmatpush1.msra.mxu0 %v6172
    %6367 = vmatprep.subr.mxu0 0.0
    %6368 = vmatpush1.msra.mxu0 %v6173
    %6369 = vmatprep.subr.mxu0 0.0
    %6370 = vmatpush1.msra.mxu0 %v6174
    %6371 = vmatprep.subr.mxu0 0.0
    %6372 = vmatpush1.msra.mxu0 %v6175
    %6373 = vmatprep.subr.mxu0 0.0
    %6374 = vmatpush1.msra.mxu0 %v6176
    %6375 = vmatprep.subr.mxu0 0.0
    %6376 = vmatpush1.msra.mxu0 %v6177
    %6377 = vmatprep.subr.mxu0 0.0
    %6378 = vmatpush1.msra.mxu0 %v6178
    %6379 = vmatprep.subr.mxu0 0.0
    %6380 = vmatpush1.msra.mxu0 %v6179
    %6381 = vmatprep.subr.mxu0 0.0
    %6382 = vmatpush1.msra.mxu0 %v6180
    %6383 = vmatprep.subr.mxu0 0.0
    %6384 = vmatpush1.msra.mxu0 %v6181
    %6385 = vmatprep.subr.mxu0 0.0
    %6386 = vmatpush1.msra.mxu0 %v6182
    %6387 = vmatprep.subr.mxu0 0.0
    %6388 = vmatpush1.msra.mxu0 %v6183
    %6389 = vmatprep.subr.mxu0 0.0
    %6390 = vmatpush1.msra.mxu0 %v6184
    %6391 = vmatprep.subr.mxu0 0.0
    %6392 = vmatpush1.msra.mxu0 %v6185
    %6393 = vmatprep.subr.mxu0 0.0
    %6394 = vmatpush1.msra.mxu0 %v6186
    %6395 = vmatprep.subr.mxu0 0.0
    %6396 = vmatpush1.msra.mxu0 %v6187
    %6397 = vmatprep.subr.mxu0 0.0
    %6398 = vmatpush1.msra.mxu0 %v6188
    %6399 = vmatprep.subr.mxu0 0.0
    %6400 = vmatpush1.msra.mxu0 %v6189
    %6401 = vmatprep.subr.mxu0 0.0
    %6402 = vmatpush1.msra.mxu0 %v6190
    %6403 = vmatprep.subr.mxu0 0.0
    %6404 = vmatpush1.msra.mxu0 %v6191
    %6405 = vmatprep.subr.mxu0 0.0
    %6406 = vmatpush1.msra.mxu0 %v6192
    %6407 = vmatprep.subr.mxu0 0.0
    %6408 = vmatpush1.msra.mxu0 %v6193
    %6409 = vmatprep.mubr.f32.mxu0 %v5930
    %6410 = vmatmul.mubr.f32.gmra.mrb[0].mxu0 %v5924
    %v6411 = vpop.f32.mrb[0].mxu0
    %v6412 = vadd.f32 %v6327, %v6411
    %v6413 = vpop.f32.mrb[0].mxu0
    %6414 = vmatprep.mubr.f32.mxu0 %v5936
    %6415 = vmatmul.mubr.f32.gmra.mrb[0].mxu0 %v5933
    %v6416 = vpop.f32.mrb[0].mxu0
    %v6417 = vadd.f32 %v6332, %v6416
    %v6418 = vpop.f32.mrb[0].mxu0
    %6419 = vmatprep.mubr.f32.mxu0 %v6091
    %6420 = vmatmul.mubr.f32.gmra.mrb[0].mxu0 %v6085
    %v6421 = vpop.f32.mrb[0].mxu0
    %v6422 = vadd.f32 %v6337, %v6421
    %v6423 = vpop.f32.mrb[0].mxu0
    %6424 = vmatprep.mubr.f32.mxu0 %v6097
    %6425 = vmatmul.mubr.f32.gmra.mrb[0].mxu0 %v6094
    %v6426 = vpop.f32.mrb[0].mxu0
    %v6427 = vadd.f32 %v6342, %v6426
    %v6428 = vpop.f32.mrb[0].mxu0
    %6429 = vdwg.mxu0
    %6430 = vmatprep.subr.mxu0 0.0
    %6431 = vmatpush1.msra.mxu0 %v6194
    %6432 = vmatprep.subr.mxu0 0.0
    %6433 = vmatpush1.msra.mxu0 %v6195
    %6434 = vmatprep.subr.mxu0 0.0
    %6435 = vmatpush1.msra.mxu0 %v6196
    %6436 = vmatprep.subr.mxu0 0.0
    %6437 = vmatpush1.msra.mxu0 %v6197
    %6438 = vmatprep.subr.mxu0 0.0
    %6439 = vmatpush1.msra.mxu0 %v6198
    %6440 = vmatprep.subr.mxu0 0.0
    %6441 = vmatpush1.msra.mxu0 %v6199
    %6442 = vmatprep.subr.mxu0 0.0
    %6443 = vmatpush1.msra.mxu0 %v6200
    %6444 = vmatprep.subr.mxu0 0.0
    %6445 = vmatpush1.msra.mxu0 %v6201
    %6446 = vmatprep.subr.mxu0 0.0
    %6447 = vmatpush1.msra.mxu0 %v6202
    %6448 = vmatprep.subr.mxu0 0.0
    %6449 = vmatpush1.msra.mxu0 %v6203
    %6450 = vmatprep.subr.mxu0 0.0
    %6451 = vmatpush1.msra.mxu0 %v6204
    %6452 = vmatprep.subr.mxu0 0.0
    %6453 = vmatpush1.msra.mxu0 %v6205
    %6454 = vmatprep.subr.mxu0 0.0
    %6455 = vmatpush1.msra.mxu0 %v6206
    %6456 = vmatprep.subr.mxu0 0.0
    %6457 = vmatpush1.msra.mxu0 %v6207
    %6458 = vmatprep.subr.mxu0 0.0
    %6459 = vmatpush1.msra.mxu0 %v6208
    %6460 = vmatprep.subr.mxu0 0.0
    %6461 = vmatpush1.msra.mxu0 %v6209
    %6462 = vmatprep.subr.mxu0 0.0
    %6463 = vmatpush1.msra.mxu0 %v6210
    %6464 = vmatprep.subr.mxu0 0.0
    %6465 = vmatpush1.msra.mxu0 %v6211
    %6466 = vmatprep.subr.mxu0 0.0
    %6467 = vmatpush1.msra.mxu0 %v6212
    %6468 = vmatprep.subr.mxu0 0.0
    %6469 = vmatpush1.msra.mxu0 %v6213
    %6470 = vmatprep.subr.mxu0 0.0
    %6471 = vmatpush1.msra.mxu0 %v6214
    %6472 = vmatprep.subr.mxu0 0.0
    %6473 = vmatpush1.msra.mxu0 %v6215
    %6474 = vmatprep.subr.mxu0 0.0
    %6475 = vmatpush1.msra.mxu0 %v6216
    %6476 = vmatprep.subr.mxu0 0.0
    %6477 = vmatpush1.msra.mxu0 %v6217
    %6478 = vmatprep.subr.mxu0 0.0
    %6479 = vmatpush1.msra.mxu0 %v6218
    %6480 = vmatprep.subr.mxu0 0.0
    %6481 = vmatpush1.msra.mxu0 %v6219
    %6482 = vmatprep.subr.mxu0 0.0
    %6483 = vmatpush1.msra.mxu0 %v6220
    %6484 = vmatprep.subr.mxu0 0.0
    %6485 = vmatpush1.msra.mxu0 %v6221
    %6486 = vmatprep.subr.mxu0 0.0
    %6487 = vmatpush1.msra.mxu0 %v6222
    %6488 = vmatprep.subr.mxu0 0.0
    %6489 = vmatpush1.msra.mxu0 %v6223
    %6490 = vmatprep.subr.mxu0 0.0
    %6491 = vmatpush1.msra.mxu0 %v6224
    %6492 = vmatprep.subr.mxu0 0.0
    %6493 = vmatpush1.msra.mxu0 %v6225
    %6494 = vmatprep.mubr.f32.mxu0 %v5936
    %6495 = vmatmul.mubr.f32.gmra.mrb[0].mxu0 %v5933
    %v6496 = vpop.f32.mrb[0].mxu0
    %v6497 = vadd.f32 %v6412, %v6496
    %v6498 = vpop.f32.mrb[0].mxu0
    %6499 = vmatprep.mubr.f32.mxu0 %v5968
    %6500 = vmatmul.mubr.f32.gmra.mrb[0].mxu0 %v5965
    %v6501 = vpop.f32.mrb[0].mxu0
    %v6502 = vadd.f32 %v6417, %v6501
    %v6503 = vpop.f32.mrb[0].mxu0
    %6504 = vmatprep.mubr.f32.mxu0 %v6097
    %6505 = vmatmul.mubr.f32.gmra.mrb[0].mxu0 %v6094
    %v6506 = vpop.f32.mrb[0].mxu0
    %v6507 = vadd.f32 %v6422, %v6506
    %v6508 = vpop.f32.mrb[0].mxu0
    %6509 = vmatprep.mubr.f32.mxu0 %v6129
    %6510 = vmatmul.mubr.f32.gmra.mrb[0].mxu0 %v6126
    %v6511 = vpop.f32.mrb[0].mxu0
    %v6512 = vadd.f32 %v6427, %v6511
    %v6513 = vpop.f32.mrb[0].mxu0
    %6514 = vdwg.mxu0
    %6515 = vmatprep.subr.mxu0 0.0
    %6516 = vmatpush1.msra.mxu0 %v6226
    %6517 = vmatprep.subr.mxu0 0.0
    %6518 = vmatpush1.msra.mxu0 %v6227
    %6519 = vmatprep.subr.mxu0 0.0
    %6520 = vmatpush1.msra.mxu0 %v6228
    %6521 = vmatprep.subr.mxu0 0.0
    %6522 = vmatpush1.msra.mxu0 %v6229
    %6523 = vmatprep.subr.mxu0 0.0
    %6524 = vmatpush1.msra.mxu0 %v6230
    %6525 = vmatprep.subr.mxu0 0.0
    %6526 = vmatpush1.msra.mxu0 %v6231
    %6527 = vmatprep.subr.mxu0 0.0
    %6528 = vmatpush1.msra.mxu0 %v6232
    %6529 = vmatprep.subr.mxu0 0.0
    %6530 = vmatpush1.msra.mxu0 %v6233
    %6531 = vmatprep.subr.mxu0 0.0
    %6532 = vmatpush1.msra.mxu0 %v6234
    %6533 = vmatprep.subr.mxu0 0.0
    %6534 = vmatpush1.msra.mxu0 %v6235
    %6535 = vmatprep.subr.mxu0 0.0
    %6536 = vmatpush1.msra.mxu0 %v6236
    %6537 = vmatprep.subr.mxu0 0.0
    %6538 = vmatpush1.msra.mxu0 %v6237
    %6539 = vmatprep.subr.mxu0 0.0
    %6540 = vmatpush1.msra.mxu0 %v6238
    %6541 = vmatprep.subr.mxu0 0.0
    %6542 = vmatpush1.msra.mxu0 %v6239
    %6543 = vmatprep.subr.mxu0 0.0
    %6544 = vmatpush1.msra.mxu0 %v6240
    %6545 = vmatprep.subr.mxu0 0.0
    %6546 = vmatpush1.msra.mxu0 %v6241
    %6547 = vmatprep.subr.mxu0 0.0
    %6548 = vmatpush1.msra.mxu0 %v6242
    %6549 = vmatprep.subr.mxu0 0.0
    %6550 = vmatpush1.msra.mxu0 %v6243
    %6551 = vmatprep.subr.mxu0 0.0
    %6552 = vmatpush1.msra.mxu0 %v6244
    %6553 = vmatprep.subr.mxu0 0.0
    %6554 = vmatpush1.msra.mxu0 %v6245
    %6555 = vmatprep.subr.mxu0 0.0
    %6556 = vmatpush1.msra.mxu0 %v6246
    %6557 = vmatprep.subr.mxu0 0.0
    %6558 = vmatpush1.msra.mxu0 %v6247
    %6559 = vmatprep.subr.mxu0 0.0
    %6560 = vmatpush1.msra.mxu0 %v6248
    %6561 = vmatprep.subr.mxu0 0.0
    %6562 = vmatpush1.msra.mxu0 %v6249
    %6563 = vmatprep.subr.mxu0 0.0
    %6564 = vmatpush1.msra.mxu0 %v6250
    %6565 = vmatprep.subr.mxu0 0.0
    %6566 = vmatpush1.msra.mxu0 %v6251
    %6567 = vmatprep.subr.mxu0 0.0
    %6568 = vmatpush1.msra.mxu0 %v6252
    %6569 = vmatprep.subr.mxu0 0.0
    %6570 = vmatpush1.msra.mxu0 %v6253
    %6571 = vmatprep.subr.mxu0 0.0
    %6572 = vmatpush1.msra.mxu0 0.0
    %6573 = vmatprep.subr.mxu0 0.0
    %6574 = vmatpush1.msra.mxu0 0.0
    %6575 = vmatprep.subr.mxu0 0.0
    %6576 = vmatpush1.msra.mxu0 0.0
    %6577 = vmatprep.subr.mxu0 0.0
    %6578 = vmatpush1.msra.mxu0 0.0
    %6579 = vmatprep.mubr.f32.mxu0 %v6255
    %6580 = vmatmul.mubr.f32.gmra.mrb[0].mxu0 %v5965
    %v6581 = vpop.f32.mrb[0].mxu0
    %v6582 = vadd.f32 %v6497, %v6581
    %v6583 = vpop.f32.mrb[0].mxu0
    %6584 = vmatprep.mubr.f32.mxu0 %v760
    %6585 = vmatmul.mubr.f32.gmra.mrb[0].mxu0 %v468
    %v6586 = vpop.f32.mrb[0].mxu0
    %v6587 = vadd.f32 %v6502, %v6586
    %v6588 = vpop.f32.mrb[0].mxu0
    %6589 = vmatprep.mubr.f32.mxu0 %v6258
    %6590 = vmatmul.mubr.f32.gmra.mrb[0].mxu0 %v6126
    %v6591 = vpop.f32.mrb[0].mxu0
    %v6592 = vadd.f32 %v6507, %v6591
    %v6593 = vpop.f32.mrb[0].mxu0
    %6594 = vmatprep.mubr.f32.mxu0 %v760
    %6595 = vmatmul.mubr.f32.gmra.mrb[0].mxu0 %v468
    %v6596 = vpop.f32.mrb[0].mxu0
    %v6597 = vadd.f32 %v6512, %v6596
    %v6598 = vpop.f32.mrb[0].mxu0
    %6599 = vdwg.mxu0
    %v6602 = vrot.slane %v5703, 1
    %v6603 = vrot.slane %v5704, 1
    %v6604 = vsel %vm268, %v6602, %v6603
    %v6607 = vsel %vm268, %v6603, -inf
    %v6608 = vrot.slane %v5703, 7
    %v6609 = vrot.slane %v5704, 7
    %v6610 = vsel %vm345, %v6608, %v6609
    %v6613 = vsel %vm345, -inf, %v6608
    %v6614 = vmax.f32 %v6604, %v5703
    %v6615 = vmax.f32 %v6607, %v5704
    %v6616 = vmax.f32 %v6614, %v6613
    %v6617 = vmax.f32 %v6615, %v6610
    %v6620 = vrot.slane %v5705, 1
    %v6621 = vrot.slane %v5706, 1
    %v6622 = vsel %vm268, %v6620, %v6621
    %v6625 = vsel %vm268, %v6621, -inf
    %v6626 = vrot.slane %v5705, 7
    %v6627 = vrot.slane %v5706, 7
    %v6628 = vsel %vm345, %v6626, %v6627
    %v6631 = vsel %vm345, -inf, %v6626
    %v6632 = vmax.f32 %v6622, %v5705
    %v6633 = vmax.f32 %v6625, %v5706
    %v6634 = vmax.f32 %v6632, %v6631
    %v6635 = vmax.f32 %v6633, %v6628
    %v6636 = vld [vmem:[%s57] sm:$0xff]
    %v6637 = vld [vmem:[%s57 + $0x8] sm:$0xff]
    %v6638 = vld [vmem:[%s57 + $0x10] sm:$0xff]
    %v6639 = vld [vmem:[%s57 + $0x18] sm:$0xff]
    %v6640 = vld [vmem:[%s57 + $0x20] sm:$0xff]
    %v6641 = vld [vmem:[%s57 + $0x28] sm:$0xff]
    %v6642 = vld [vmem:[%s57 + $0x30] sm:$0xff]
    %v6643 = vld [vmem:[%s57 + $0x38] sm:$0xff]
    %v6644 = vld [vmem:[%s57 + $0x40] sm:$0xff]
    %v6645 = vld [vmem:[%s57 + $0x48] sm:$0xff]
    %v6646 = vld [vmem:[%s57 + $0x50] sm:$0xff]
    %v6647 = vld [vmem:[%s57 + $0x58] sm:$0xff]
    %v6648 = vld [vmem:[%s57 + $0x60] sm:$0xff]
    %v6649 = vld [vmem:[%s57 + $0x68] sm:$0xff]
    %v6650 = vld [vmem:[%s57 + $0x70] sm:$0xff]
    %v6651 = vld [vmem:[%s57 + $0x78] sm:$0xff]
    %6652 = vmatprep.subr.mxu0 0.0
    %6653 = vmatpush1.msra.mxu0 %v6636
    %6654 = vmatprep.subr.mxu0 0.0
    %6655 = vmatpush1.msra.mxu0 %v6637
    %6656 = vmatprep.subr.mxu0 0.0
    %6657 = vmatpush1.msra.mxu0 %v6638
    %6658 = vmatprep.subr.mxu0 0.0
    %6659 = vmatpush1.msra.mxu0 %v6639
    %6660 = vmatprep.subr.mxu0 0.0
    %6661 = vmatpush1.msra.mxu0 %v6640
    %6662 = vmatprep.subr.mxu0 0.0
    %6663 = vmatpush1.msra.mxu0 %v6641
    %6664 = vmatprep.subr.mxu0 0.0
    %6665 = vmatpush1.msra.mxu0 %v6642
    %6666 = vmatprep.subr.mxu0 0.0
    %6667 = vmatpush1.msra.mxu0 %v6643
    %6668 = vmatprep.subr.mxu0 0.0
    %6669 = vmatpush1.msra.mxu0 %v6644
    %6670 = vmatprep.subr.mxu0 0.0
    %6671 = vmatpush1.msra.mxu0 %v6645
    %6672 = vmatprep.subr.mxu0 0.0
    %6673 = vmatpush1.msra.mxu0 %v6646
    %6674 = vmatprep.subr.mxu0 0.0
    %6675 = vmatpush1.msra.mxu0 %v6647
    %6676 = vmatprep.subr.mxu0 0.0
    %6677 = vmatpush1.msra.mxu0 %v6648
    %6678 = vmatprep.subr.mxu0 0.0
    %6679 = vmatpush1.msra.mxu0 %v6649
    %6680 = vmatprep.subr.mxu0 0.0
    %6681 = vmatpush1.msra.mxu0 %v6650
    %6682 = vmatprep.subr.mxu0 0.0
    %6683 = vmatpush1.msra.mxu0 %v6651
    %6684 = vmatprep.subr.mxu0 0.0
    %6685 = vmatpush1.msra.mxu0 0.0
    %6686 = vmatprep.subr.mxu0 0.0
    %6687 = vmatpush1.msra.mxu0 0.0
    %6688 = vmatprep.subr.mxu0 0.0
    %6689 = vmatpush1.msra.mxu0 0.0
    %6690 = vmatprep.subr.mxu0 0.0
    %6691 = vmatpush1.msra.mxu0 0.0
    %6692 = vmatprep.subr.mxu0 0.0
    %6693 = vmatpush1.msra.mxu0 0.0
    %6694 = vmatprep.subr.mxu0 0.0
    %6695 = vmatpush1.msra.mxu0 0.0
    %6696 = vmatprep.subr.mxu0 0.0
    %6697 = vmatpush1.msra.mxu0 0.0
    %6698 = vmatprep.subr.mxu0 0.0
    %6699 = vmatpush1.msra.mxu0 0.0
    %6700 = vmatprep.subr.mxu0 0.0
    %6701 = vmatpush1.msra.mxu0 0.0
    %6702 = vmatprep.subr.mxu0 0.0
    %6703 = vmatpush1.msra.mxu0 0.0
    %6704 = vmatprep.subr.mxu0 0.0
    %6705 = vmatpush1.msra.mxu0 0.0
    %6706 = vmatprep.subr.mxu0 0.0
    %6707 = vmatpush1.msra.mxu0 0.0
    %6708 = vmatprep.subr.mxu0 0.0
    %6709 = vmatpush1.msra.mxu0 0.0
    %6710 = vmatprep.subr.mxu0 0.0
    %6711 = vmatpush1.msra.mxu0 0.0
    %6712 = vmatprep.subr.mxu0 0.0
    %6713 = vmatpush1.msra.mxu0 0.0
    %6714 = vmatprep.subr.mxu0 0.0
    %6715 = vmatpush1.msra.mxu0 0.0
    %6716 = vmatprep.mubr.f32.mxu0 0.0
    %6717 = vmatmul.mubr.f32.gmra.mrb[0].mxu0 %v6616
    %v6718 = vpop.f32.mrb[0].mxu0
    %v6719 = vadd.f32 0.0, %v6718
    %v6720 = vpop.f32.mrb[0].mxu0
    %6721 = vmatprep.mubr.f32.mxu0 0.0
    %6722 = vmatmul.mubr.f32.gmra.mrb[0].mxu0 %v6617
    %v6723 = vpop.f32.mrb[0].mxu0
    %v6724 = vadd.f32 0.0, %v6723
    %v6725 = vpop.f32.mrb[0].mxu0
    %6726 = vmatprep.mubr.f32.mxu0 0.0
    %6727 = vmatmul.mubr.f32.gmra.mrb[0].mxu0 %v6634
    %v6728 = vpop.f32.mrb[0].mxu0
    %v6729 = vadd.f32 0.0, %v6728
    %v6730 = vpop.f32.mrb[0].mxu0
    %6731 = vmatprep.mubr.f32.mxu0 0.0
    %6732 = vmatmul.mubr.f32.gmra.mrb[0].mxu0 %v6635
    %v6733 = vpop.f32.mrb[0].mxu0
    %v6734 = vadd.f32 0.0, %v6733
    %v6735 = vpop.f32.mrb[0].mxu0
    %6736 = vdwg.mxu0
    %6741 = vrot.lane.b32.xlu0 %v6719, 96
    %v6742 = vpop.permute.xlu0 %6741
    %6743 = vrot.lane.b32.xlu0 %v6724, 96
    %v6744 = vpop.permute.xlu0 %6743
    %6745 = vrot.lane.b32.xlu0 %v6729, 96
    %v6746 = vpop.permute.xlu0 %6745
    %6747 = vrot.lane.b32.xlu0 %v6734, 96
    %v6748 = vpop.permute.xlu0 %6747
    %v6753 = vsel %vm397, %v6582, %v6742
    %v6754 = vsel %vm397, %v6587, %v6744
    %v6755 = vsel %vm397, %v6592, %v6746
    %v6756 = vsel %vm397, %v6597, %v6748
    %v6757 = vld [vmem:[%s59] sm:$0x1]
    %v6759 = vlaneseq
    %v6760 = vshrl.u32 %v6759, 7
    %v6761 = vsub.s32 0, %v6760
    %v6762 = vrot.slane %v6757, %v6761
    %v6764 = vmul.f32 %v6753, %v6762
    %v6765 = vmul.f32 %v6754, %v6762
    %v6766 = vmul.f32 %v6755, %v6762
    %v6767 = vmul.f32 %v6756, %v6762
    %v6768 = vld [vmem:[%s61] sm:$0x1]
    %v6770 = vlaneseq
    %v6771 = vshrl.u32 %v6770, 7
    %v6772 = vsub.s32 0, %v6771
    %v6773 = vrot.slane %v6768, %v6772
    %v6775 = vadd.f32 %v6764, %v6773
    %v6776 = vadd.f32 %v6765, %v6773
    %v6777 = vadd.f32 %v6766, %v6773
    %v6778 = vadd.f32 %v6767, %v6773
    %v6779 = vmax.f32 %v6775, 0.0
    %v6780 = vmax.f32 %v6776, 0.0
    %v6781 = vmax.f32 %v6777, 0.0
    %v6782 = vmax.f32 %v6778, 0.0
    %v6783 = vld [vmem:[%s69] sm:$0x1]
    %v6785 = vlaneseq
    %v6786 = vshrl.u32 %v6785, 7
    %v6787 = vsub.s32 0, %v6786
    %v6788 = vrot.slane %v6783, %v6787
    %v6790 = vmul.f32 %v3551, %v6788
    %v6791 = vmul.f32 %v3552, %v6788
    %v6792 = vmul.f32 %v3553, %v6788
    %v6793 = vmul.f32 %v3554, %v6788
    %v6794 = vld [vmem:[%s71] sm:$0x1]
    %v6796 = vlaneseq
    %v6797 = vshrl.u32 %v6796, 7
    %v6798 = vsub.s32 0, %v6797
    %v6799 = vrot.slane %v6794, %v6798
    %v6801 = vadd.f32 %v6790, %v6799
    %v6802 = vadd.f32 %v6791, %v6799
    %v6803 = vadd.f32 %v6792, %v6799
    %v6804 = vadd.f32 %v6793, %v6799
    %v6805 = vadd.f32 %v6779, %v6801
    %v6806 = vadd.f32 %v6780, %v6802
    %v6807 = vadd.f32 %v6781, %v6803
    %v6808 = vadd.f32 %v6782, %v6804
    %v6809 = vmax.f32 %v6805, 0.0
    %v6810 = vmax.f32 %v6806, 0.0
    %v6811 = vmax.f32 %v6807, 0.0
    %v6812 = vmax.f32 %v6808, 0.0
    %v6813 = vadd.f32 %v6809, %v6810
    %v6814 = vrot.slane %v6813, 4
    %v6815 = vadd.f32 %v6813, %v6814
    %v6816 = vrot.slane %v6815, 2
    %v6817 = vadd.f32 %v6815, %v6816
    %v6818 = vrot.slane %v6817, 1
    %v6819 = vadd.f32 %v6817, %v6818
    %v6820 = vrcp.pop 16.0
    %v6821 = vmul.f32 %v6819, %v6820
    %v6822 = vadd.f32 %v6811, %v6812
    %v6823 = vrot.slane %v6822, 4
    %v6824 = vadd.f32 %v6822, %v6823
    %v6825 = vrot.slane %v6824, 2
    %v6826 = vadd.f32 %v6824, %v6825
    %v6827 = vrot.slane %v6826, 1
    %v6828 = vadd.f32 %v6826, %v6827
    %v6829 = vmul.f32 %v6828, %v6820
    %v6830 = vsel %vm345, %v6821, %v6829
    %v6831 = vld [vmem:[%s73] sm:$0xff]
    %v6832 = vld [vmem:[%s73 + $0x8] sm:$0xff]
    %v6833 = vld [vmem:[%s73 + $0x10] sm:$0xff]
    %v6834 = vld [vmem:[%s73 + $0x18] sm:$0xff]
    %v6835 = vld [vmem:[%s73 + $0x20] sm:$0xff]
    %v6836 = vld [vmem:[%s73 + $0x28] sm:$0xff]
    %v6837 = vld [vmem:[%s73 + $0x30] sm:$0xff]
    %v6838 = vld [vmem:[%s73 + $0x38] sm:$0xff]
    %v6839 = vld [vmem:[%s73 + $0x40] sm:$0xff]
    %v6840 = vld [vmem:[%s73 + $0x48] sm:$0xff]
    %v6841 = vld [vmem:[%s73 + $0x50] sm:$0xff]
    %v6842 = vld [vmem:[%s73 + $0x58] sm:$0xff]
    %v6843 = vld [vmem:[%s73 + $0x60] sm:$0xff]
    %v6844 = vld [vmem:[%s73 + $0x68] sm:$0xff]
    %v6845 = vld [vmem:[%s73 + $0x70] sm:$0xff]
    %v6846 = vld [vmem:[%s73 + $0x78] sm:$0xff]
    %v6847 = vld [vmem:[%s75] sm:$0x1]
    %v6849 = vlaneseq
    %v6850 = vshrl.u32 %v6849, 7
    %v6851 = vsub.s32 0, %v6850
    %v6852 = vrot.slane %v6847, %v6851
    %6854 = vmatprep.subr.mxu0 0.0
    %6855 = vmatpush1.msra.mxu0 %v6831
    %6856 = vmatprep.subr.mxu0 0.0
    %6857 = vmatpush1.msra.mxu0 %v6832
    %6858 = vmatprep.subr.mxu0 0.0
    %6859 = vmatpush1.msra.mxu0 %v6833
    %6860 = vmatprep.subr.mxu0 0.0
    %6861 = vmatpush1.msra.mxu0 %v6834
    %6862 = vmatprep.subr.mxu0 0.0
    %6863 = vmatpush1.msra.mxu0 %v6835
    %6864 = vmatprep.subr.mxu0 0.0
    %6865 = vmatpush1.msra.mxu0 %v6836
    %6866 = vmatprep.subr.mxu0 0.0
    %6867 = vmatpush1.msra.mxu0 %v6837
    %6868 = vmatprep.subr.mxu0 0.0
    %6869 = vmatpush1.msra.mxu0 %v6838
    %6870 = vmatprep.subr.mxu0 0.0
    %6871 = vmatpush1.msra.mxu0 %v6839
    %6872 = vmatprep.subr.mxu0 0.0
    %6873 = vmatpush1.msra.mxu0 %v6840
    %6874 = vmatprep.subr.mxu0 0.0
    %6875 = vmatpush1.msra.mxu0 %v6841
    %6876 = vmatprep.subr.mxu0 0.0
    %6877 = vmatpush1.msra.mxu0 %v6842
    %6878 = vmatprep.subr.mxu0 0.0
    %6879 = vmatpush1.msra.mxu0 %v6843
    %6880 = vmatprep.subr.mxu0 0.0
    %6881 = vmatpush1.msra.mxu0 %v6844
    %6882 = vmatprep.subr.mxu0 0.0
    %6883 = vmatpush1.msra.mxu0 %v6845
    %6884 = vmatprep.subr.mxu0 0.0
    %6885 = vmatpush1.msra.mxu0 %v6846
    %6886 = vmatprep.subr.mxu0 0.0
    %6887 = vmatpush1.msra.mxu0 0.0
    %6888 = vmatprep.subr.mxu0 0.0
    %6889 = vmatpush1.msra.mxu0 0.0
    %6890 = vmatprep.subr.mxu0 0.0
    %6891 = vmatpush1.msra.mxu0 0.0
    %6892 = vmatprep.subr.mxu0 0.0
    %6893 = vmatpush1.msra.mxu0 0.0
    %6894 = vmatprep.subr.mxu0 0.0
    %6895 = vmatpush1.msra.mxu0 0.0
    %6896 = vmatprep.subr.mxu0 0.0
    %6897 = vmatpush1.msra.mxu0 0.0
    %6898 = vmatprep.subr.mxu0 0.0
    %6899 = vmatpush1.msra.mxu0 0.0
    %6900 = vmatprep.subr.mxu0 0.0
    %6901 = vmatpush1.msra.mxu0 0.0
    %6902 = vmatprep.subr.mxu0 0.0
    %6903 = vmatpush1.msra.mxu0 0.0
    %6904 = vmatprep.subr.mxu0 0.0
    %6905 = vmatpush1.msra.mxu0 0.0
    %6906 = vmatprep.subr.mxu0 0.0
    %6907 = vmatpush1.msra.mxu0 0.0
    %6908 = vmatprep.subr.mxu0 0.0
    %6909 = vmatpush1.msra.mxu0 0.0
    %6910 = vmatprep.subr.mxu0 0.0
    %6911 = vmatpush1.msra.mxu0 0.0
    %6912 = vmatprep.subr.mxu0 0.0
    %6913 = vmatpush1.msra.mxu0 0.0
    %6914 = vmatprep.subr.mxu0 0.0
    %6915 = vmatpush1.msra.mxu0 0.0
    %6916 = vmatprep.subr.mxu0 0.0
    %6917 = vmatpush1.msra.mxu0 0.0
    %6918 = vmatprep.mubr.f32.mxu0 0.0
    %6919 = vmatmul.mubr.f32.gmra.mrb[0].mxu0 %v6830
    %v6920 = vpop.f32.mrb[0].mxu0
    %v6921 = vadd.f32 %v6852, %v6920
    %v6922 = vpop.f32.mrb[0].mxu0
    %6923 = vdwg.mxu0
    %vm6924 = vcmask 33792
    %6925 = vst.msk [vmem:[#allocation2] sm:$0x3] %vm6924, %v6921
    // Predicated region
    $region154: #{tpu_custom_call.1} parent=1 // pred_check
      _
    $region155: #{tpu_custom_call.1} parent=1 // pred_check_branch
      %6927 = sbr.rel (0) target = $region157
    $region156: #{tpu_custom_call.1} parent=1 // pred_region
      %s6929 = ssub.s32 32, 32
      %6930 = vsyncadd [#allocation3], %s6929
      %s6932 = sshll.u32 [#allocation2], 4
      %s6933 = int_to_ptr.vmem [resolvable:$true] %s6932
      %6935 = dma.vmem_to_hbm [thread:$0]  %s6933, 32, %s77, [#allocation3]
    $region157: #{tpu_custom_call.1} parent=1 // pred_fallthru
      _
    // Predicated region
    $region158: #{tpu_custom_call.1} parent=1 // pred_check
      _
    $region159: #{tpu_custom_call.1} parent=1 // pred_check_branch
      %6937 = sbr.rel (0) target = $region161
    $region160: #{tpu_custom_call.1} parent=1 // pred_region
      %6938 = dma.done [#allocation3], 32
    $region161: #{tpu_custom_call.1} parent=1 // pred_fallthru
      _
    %6939 = vsyncpa [#allocation3], 1

</llo_original>
